<compile_context>
chip_gen: v6e
topology: v6e:2x2x1
jax: 0.10.0
libtpu: 0.0.40
codegen_flags: <defaults>
</compile_context>

<pallas_src>
import functools

import jax
import jax.numpy as jnp
from jax import lax
from jax.experimental import pallas as pl
from jax.experimental.pallas import tpu as pltpu

_VMEM_LIMIT = 32 * 1024 * 1024  # explicit, safe on all generations

CONV1_K = 3 * 5 * 5        # 75
CONV1_KPAD = 128
CONV2_K = 64 * 5 * 5       # 1600
CONV2_KPAD = 13 * 128      # 1664
FC3_NPAD = 128             # fc3 N=10 padded to a full lane width


# ---------------------------------------------------------------------------
# In-kernel helper: max-pool window 3 / stride 2 along axis 0 or 1 of an
# (H, W, C) value using only contiguous slices + reshapes.
# For output index p the window is {2p, 2p+1, 2p+2}:
#   pairs  = reshape of y[: 2P]      -> max(y[2p], y[2p+1])
#   odd    = reshape of y[1 : 1+2P]  -> y[2p+2]
# ---------------------------------------------------------------------------
def _pool3s2(y, axis):
    n = y.shape[axis]
    p = (n - 3) // 2 + 1
    h, w, c = y.shape
    if axis == 0:
        r = y[: 2 * p].reshape(p, 2, w, c)
        s = y[1 : 1 + 2 * p].reshape(p, 2, w, c)
        return jnp.maximum(jnp.maximum(r[:, 0], r[:, 1]), s[:, 1])
    else:
        r = y[:, : 2 * p, :].reshape(h, p, 2, c)
        s = y[:, 1 : 1 + 2 * p, :].reshape(h, p, 2, c)
        return jnp.maximum(jnp.maximum(r[:, :, 0], r[:, :, 1]), s[:, :, 1])


# ---------------------------------------------------------------------------
# Fused conv (as im2col GEMM) + bias + ReLU + maxpool3x3/s2, one batch item
# per grid step.
# ---------------------------------------------------------------------------
def _conv_relu_pool_kernel(a_ref, w_ref, b_ref, o_ref, *, OH, OW):
    # a_ref: (1, OH*OW, Kp) bf16   w_ref: (Kp, OC) bf16   b_ref: (1, OC) f32
    # o_ref: (1, PH, PW, OC) bf16
    oc = w_ref.shape[1]
    acc = jnp.dot(a_ref[0], w_ref[...], preferred_element_type=jnp.float32)
    acc = jnp.maximum(acc + b_ref[...], 0.0)          # bias + ReLU epilogue
    y = acc.reshape(OH, OW, oc)
    y = _pool3s2(y, axis=1)                           # pool along W
    y = _pool3s2(y, axis=0)                           # pool along H
    o_ref[0] = y.astype(o_ref.dtype)


def conv_relu_pool(x, w_mat, b):
    """x: (B, H, W, IC) NHWC.  w_mat: (Kpad, OC), rows ordered (ki, kj, ic).
    Returns maxpool3x3s2(relu(conv5x5_valid(x))) as (B, PH, PW, OC) bf16."""
    kh = kw = 5
    B, H, W, IC = x.shape
    OH, OW = H - kh + 1, W - kw + 1
    PH, PW = (OH - 3) // 2 + 1, (OW - 3) // 2 + 1
    k = kh * kw * IC
    k_pad, OC = w_mat.shape

    # im2col patches (plain-JAX glue), feature order (ki, kj, ic) matching w_mat.
    slabs = [x[:, ki:ki + OH, kj:kj + OW, :] for ki in range(kh) for kj in range(kw)]
    if k_pad > k:
        slabs.append(jnp.zeros((B, OH, OW, k_pad - k), x.dtype))
    a = jnp.concatenate(slabs, axis=-1).reshape(B, OH * OW, k_pad).astype(jnp.bfloat16)

    kernel = functools.partial(_conv_relu_pool_kernel, OH=OH, OW=OW)
    return pl.pallas_call(
        kernel,
        out_shape=jax.ShapeDtypeStruct((B, PH, PW, OC), jnp.bfloat16),
        grid=(B,),
        in_specs=[
            pl.BlockSpec((1, OH * OW, k_pad), lambda i: (i, 0, 0)),
            pl.BlockSpec((k_pad, OC), lambda i: (0, 0)),
            pl.BlockSpec((1, OC), lambda i: (0, 0)),
        ],
        out_specs=pl.BlockSpec((1, PH, PW, OC), lambda i: (i, 0, 0, 0)),
        compiler_params=pltpu.CompilerParams(
            dimension_semantics=("parallel",),
            vmem_limit_bytes=_VMEM_LIMIT,
        ),
    )(a, w_mat, b)


# ---------------------------------------------------------------------------
# Fused fc1 -> relu -> fc2 -> relu -> fc3 (fc3 output padded to 128 lanes).
# ---------------------------------------------------------------------------
def _fc_fused_kernel(x_ref, w1_ref, b1_ref, w2_ref, b2_ref, w3_ref, b3_ref, o_ref):
    h = jnp.dot(x_ref[...], w1_ref[...], preferred_element_type=jnp.float32)
    h = jnp.maximum(h + b1_ref[...], 0.0).astype(jnp.bfloat16)
    h = jnp.dot(h, w2_ref[...], preferred_element_type=jnp.float32)
    h = jnp.maximum(h + b2_ref[...], 0.0).astype(jnp.bfloat16)
    h = jnp.dot(h, w3_ref[...], preferred_element_type=jnp.float32)
    o_ref[...] = (h + b3_ref[...]).astype(o_ref.dtype)


def fc_fused(x, w1, b1, w2, b2, w3, b3, *, tm_max=256):
    B, K1 = x.shape
    N3 = w3.shape[1]
    tm = B if B <= tm_max else tm_max            # tm_max is a multiple of 8
    grid_m = pl.cdiv(B, tm)
    return pl.pallas_call(
        _fc_fused_kernel,
        out_shape=jax.ShapeDtypeStruct((B, N3), jnp.float32),
        grid=(grid_m,),
        in_specs=[
            pl.BlockSpec((tm, K1), lambda i: (i, 0)),
            pl.BlockSpec(w1.shape, lambda i: (0, 0)),
            pl.BlockSpec(b1.shape, lambda i: (0, 0)),
            pl.BlockSpec(w2.shape, lambda i: (0, 0)),
            pl.BlockSpec(b2.shape, lambda i: (0, 0)),
            pl.BlockSpec(w3.shape, lambda i: (0, 0)),
            pl.BlockSpec(b3.shape, lambda i: (0, 0)),
        ],
        out_specs=pl.BlockSpec((tm, N3), lambda i: (i, 0)),
        compiler_params=pltpu.CompilerParams(
            dimension_semantics=("parallel",),
            vmem_limit_bytes=_VMEM_LIMIT,
        ),
    )(x, w1, b1, w2, b2, w3, b3)


# ---------------------------------------------------------------------------
# Parameters: deterministic PyTorch-layout init, then a one-time "prepare"
# step that pre-flattens / pre-transposes / pads / casts to bf16.
# ---------------------------------------------------------------------------
def init_params(key):
    ks = jax.random.split(key, 10)

    def u(k, shape, fan_in):
        bound = 1.0 / jnp.sqrt(fan_in)
        return jax.random.uniform(k, shape, jnp.float32, -bound, bound)

    return {
        "conv1_w": u(ks[0], (64, 3, 5, 5), 3 * 5 * 5),
        "conv1_b": u(ks[1], (64,), 3 * 5 * 5),
        "conv2_w": u(ks[2], (64, 64, 5, 5), 64 * 5 * 5),
        "conv2_b": u(ks[3], (64,), 64 * 5 * 5),
        "fc1_w": u(ks[4], (384, 64 * 4 * 4), 64 * 4 * 4),   # PyTorch (out, in)
        "fc1_b": u(ks[5], (384,), 64 * 4 * 4),
        "fc2_w": u(ks[6], (192, 384), 384),
        "fc2_b": u(ks[7], (192,), 384),
        "fc3_w": u(ks[8], (10, 192), 192),
        "fc3_b": u(ks[9], (10,), 192),
    }


def _prep_conv_w(w, k_pad):
    OC, IC, KH, KW = w.shape
    k = KH * KW * IC
    wm = jnp.transpose(w, (2, 3, 1, 0)).reshape(k, OC)   # rows ordered (ki, kj, ic)
    if k_pad > k:
        wm = jnp.pad(wm, ((0, k_pad - k), (0, 0)))
    return wm.astype(jnp.bfloat16)


def prepare_params(p):
    # fc1: PyTorch flattens NCHW -> (C,H,W); our activations flatten NHWC ->
    # (H,W,C).  Permute fc1's input axis accordingly, once.
    fc1 = p["fc1_w"].reshape(384, 64, 4, 4).transpose(0, 2, 3, 1).reshape(384, 1024).T
    fc3 = jnp.pad(p["fc3_w"].T, ((0, 0), (0, FC3_NPAD - 10)))
    fc3_b = jnp.pad(p["fc3_b"], (0, FC3_NPAD - 10))
    return {
        "conv1_w": _prep_conv_w(p["conv1_w"], CONV1_KPAD),
        "conv1_b": p["conv1_b"].reshape(1, -1).astype(jnp.float32),
        "conv2_w": _prep_conv_w(p["conv2_w"], CONV2_KPAD),
        "conv2_b": p["conv2_b"].reshape(1, -1).astype(jnp.float32),
        "fc1_w": fc1.astype(jnp.bfloat16),
        "fc1_b": p["fc1_b"].reshape(1, -1).astype(jnp.float32),
        "fc2_w": p["fc2_w"].T.astype(jnp.bfloat16),
        "fc2_b": p["fc2_b"].reshape(1, -1).astype(jnp.float32),
        "fc3_w": fc3.astype(jnp.bfloat16),
        "fc3_b": fc3_b.reshape(1, -1).astype(jnp.float32),
    }


# ---------------------------------------------------------------------------
# Forward pass (Pallas) and a pure-JAX f32 reference for validation.
# ---------------------------------------------------------------------------
def cnn_net_forward(prepared, x_nchw):
    """x_nchw: (B, 3, 32, 32) float32 (PyTorch layout).  Returns (B, 10) f32."""
    x = jnp.transpose(x_nchw, (0, 2, 3, 1))                           # NHWC once
    x = conv_relu_pool(x, prepared["conv1_w"], prepared["conv1_b"])   # (B,13,13,64)
    x = conv_relu_pool(x, prepared["conv2_w"], prepared["conv2_b"])   # (B,4,4,64)
    B = x.shape[0]
    x = x.reshape(B, -1)                                              # (H,W,C) flatten
    out = fc_fused(x, prepared["fc1_w"], prepared["fc1_b"],
                   prepared["fc2_w"], prepared["fc2_b"],
                   prepared["fc3_w"], prepared["fc3_b"])              # (B, 128) f32
    return out[:, :10]


def reference_forward(params, x):
    y = lax.conv_general_dilated(x, params["conv1_w"], (1, 1), "VALID",
                                 dimension_numbers=("NCHW", "OIHW", "NCHW"))
    y = jax.nn.relu(y + params["conv1_b"][None, :, None, None])
    y = lax.reduce_window(y, -jnp.inf, lax.max, (1, 1, 3, 3), (1, 1, 2, 2), "VALID")
    y = lax.conv_general_dilated(y, params["conv2_w"], (1, 1), "VALID",
                                 dimension_numbers=("NCHW", "OIHW", "NCHW"))
    y = jax.nn.relu(y + params["conv2_b"][None, :, None, None])
    y = lax.reduce_window(y, -jnp.inf, lax.max, (1, 1, 3, 3), (1, 1, 2, 2), "VALID")
    y = y.reshape(y.shape[0], -1)
    y = jax.nn.relu(y @ params["fc1_w"].T + params["fc1_b"])
    y = jax.nn.relu(y @ params["fc2_w"].T + params["fc2_b"])
    return y @ params["fc3_w"].T + params["fc3_b"]


if __name__ == "__main__":
    key = jax.random.PRNGKey(0)
    k_param, k_x = jax.random.split(key)
    params = init_params(k_param)          # PyTorch-layout parameters
    prepared = prepare_params(params)      # kernel-layout (hoisted, done once)

    # Input 32x32 is implied by fc1's 64*4*4 input features after two conv5+pool stages.
    x = jax.random.normal(k_x, (2, 3, 32, 32), dtype=jnp.float32)

    fwd = jax.jit(cnn_net_forward)
    out = jax.block_until_ready(fwd(prepared, x))
    assert out.shape == (2, 10), out.shape

    # Validate against an f32 pure-JAX reference (loose tol: bf16 GEMM operands).
    ref = reference_forward(params, x)
    max_err = float(jnp.max(jnp.abs(out - ref)))
    assert max_err < 5e-2, f"max |err| vs f32 reference too large: {max_err}"
    print("KERNEL_OK")
</pallas_src>

<mosaic_0001>
module attributes {stable_mosaic.version = 11 : i64} {
  func.func @_conv_relu_pool_kernel(%arg0: i32, %arg1: memref<1x784x128xbf16, #tpu.memory_space<vmem>>, %arg2: memref<128x64xbf16, #tpu.memory_space<vmem>>, %arg3: memref<1x64xf32, #tpu.memory_space<vmem>>, %arg4: memref<1x13x13x64xbf16, #tpu.memory_space<vmem>>) attributes {dimension_semantics = [#tpu.dimension_semantics<parallel>], iteration_bounds = array<i64: 2>, scalar_prefetch = 0 : i64, scratch_operands = 0 : i64, tpu.core_type = #tpu.core_type<tc>, window_params = [{transform_indices = @transform_0, window_bounds = array<i64: 1, 784, 128>}, {pipeline_mode = #tpu.pipeline_mode<synchronous>, transform_indices = @transform_1, window_bounds = array<i64: 128, 64>}, {pipeline_mode = #tpu.pipeline_mode<synchronous>, transform_indices = @transform_2, window_bounds = array<i64: 1, 64>}, {transform_indices = @transform_3, window_bounds = array<i64: 1, 13, 13, 64>}]} {
    %c0 = arith.constant 0 : index
    %c0_0 = arith.constant 0 : index
    %c0_1 = arith.constant 0 : index
    %0 = vector.load %arg1[%c0, %c0_0, %c0_1] : memref<1x784x128xbf16, #tpu.memory_space<vmem>>, vector<1x784x128xbf16>
    %1 = vector.shape_cast %0 : vector<1x784x128xbf16> to vector<784x128xbf16>
    %c0_2 = arith.constant 0 : index
    %c0_3 = arith.constant 0 : index
    %2 = vector.load %arg2[%c0_2, %c0_3] : memref<128x64xbf16, #tpu.memory_space<vmem>>, vector<128x64xbf16>
    %cst = arith.constant dense<0.000000e+00> : vector<784x64xf32>
    %3 = tpu.matmul %1, %2, %cst {dimension_numbers = #tpu.dot_dimension_numbers<[1], [0], [0], [1], [0, 0, 1, 1], [], []>} : vector<784x128xbf16>, vector<128x64xbf16>, vector<784x64xf32> -> vector<784x64xf32>
    %c0_4 = arith.constant 0 : index
    %c0_5 = arith.constant 0 : index
    %4 = vector.load %arg3[%c0_4, %c0_5] : memref<1x64xf32, #tpu.memory_space<vmem>>, vector<1x64xf32>
    %5 = vector.broadcast %4 : vector<1x64xf32> to vector<784x64xf32>
    %6 = arith.addf %3, %5 : vector<784x64xf32>
    %cst_6 = arith.constant 0.000000e+00 : f32
    %7 = vector.broadcast %cst_6 : f32 to vector<784x64xf32>
    %8 = arith.maximumf %6, %7 : vector<784x64xf32>
    %9 = vector.shape_cast %8 : vector<784x64xf32> to vector<28x28x64xf32>
    %10 = vector.extract_strided_slice %9 {offsets = [0, 0, 0], sizes = [28, 26, 64], strides = [1, 1, 1]} : vector<28x28x64xf32> to vector<28x26x64xf32>
    %11 = vector.shape_cast %10 : vector<28x26x64xf32> to vector<28x13x2x64xf32>
    %12 = vector.extract_strided_slice %9 {offsets = [0, 1, 0], sizes = [28, 26, 64], strides = [1, 1, 1]} : vector<28x28x64xf32> to vector<28x26x64xf32>
    %13 = vector.shape_cast %12 : vector<28x26x64xf32> to vector<28x13x2x64xf32>
    %14 = vector.extract_strided_slice %11 {offsets = [0, 0, 0, 0], sizes = [28, 13, 1, 64], strides = [1, 1, 1, 1]} : vector<28x13x2x64xf32> to vector<28x13x1x64xf32>
    %15 = vector.shape_cast %14 : vector<28x13x1x64xf32> to vector<28x13x64xf32>
    %16 = vector.extract_strided_slice %11 {offsets = [0, 0, 1, 0], sizes = [28, 13, 1, 64], strides = [1, 1, 1, 1]} : vector<28x13x2x64xf32> to vector<28x13x1x64xf32>
    %17 = vector.shape_cast %16 : vector<28x13x1x64xf32> to vector<28x13x64xf32>
    %18 = arith.maximumf %15, %17 : vector<28x13x64xf32>
    %19 = vector.extract_strided_slice %13 {offsets = [0, 0, 1, 0], sizes = [28, 13, 1, 64], strides = [1, 1, 1, 1]} : vector<28x13x2x64xf32> to vector<28x13x1x64xf32>
    %20 = vector.shape_cast %19 : vector<28x13x1x64xf32> to vector<28x13x64xf32>
    %21 = arith.maximumf %18, %20 : vector<28x13x64xf32>
    %22 = vector.extract_strided_slice %21 {offsets = [0, 0, 0], sizes = [26, 13, 64], strides = [1, 1, 1]} : vector<28x13x64xf32> to vector<26x13x64xf32>
    %23 = vector.shape_cast %22 : vector<26x13x64xf32> to vector<13x2x13x64xf32>
    %24 = vector.extract_strided_slice %21 {offsets = [1, 0, 0], sizes = [26, 13, 64], strides = [1, 1, 1]} : vector<28x13x64xf32> to vector<26x13x64xf32>
    %25 = vector.shape_cast %24 : vector<26x13x64xf32> to vector<13x2x13x64xf32>
    %26 = vector.extract_strided_slice %23 {offsets = [0, 0, 0, 0], sizes = [13, 1, 13, 64], strides = [1, 1, 1, 1]} : vector<13x2x13x64xf32> to vector<13x1x13x64xf32>
    %27 = vector.shape_cast %26 : vector<13x1x13x64xf32> to vector<13x13x64xf32>
    %28 = vector.extract_strided_slice %23 {offsets = [0, 1, 0, 0], sizes = [13, 1, 13, 64], strides = [1, 1, 1, 1]} : vector<13x2x13x64xf32> to vector<13x1x13x64xf32>
    %29 = vector.shape_cast %28 : vector<13x1x13x64xf32> to vector<13x13x64xf32>
    %30 = arith.maximumf %27, %29 : vector<13x13x64xf32>
    %31 = vector.extract_strided_slice %25 {offsets = [0, 1, 0, 0], sizes = [13, 1, 13, 64], strides = [1, 1, 1, 1]} : vector<13x2x13x64xf32> to vector<13x1x13x64xf32>
    %32 = vector.shape_cast %31 : vector<13x1x13x64xf32> to vector<13x13x64xf32>
    %33 = arith.maximumf %30, %32 : vector<13x13x64xf32>
    %34 = arith.truncf %33 : vector<13x13x64xf32> to vector<13x13x64xbf16>
    %c0_7 = arith.constant 0 : index
    %c0_8 = arith.constant 0 : index
    %c0_9 = arith.constant 0 : index
    %c0_10 = arith.constant 0 : index
    %35 = vector.load %arg4[%c0_7, %c0_8, %c0_9, %c0_10] : memref<1x13x13x64xbf16, #tpu.memory_space<vmem>>, vector<1x13x13x64xbf16>
    %36 = vector.shape_cast %35 : vector<1x13x13x64xbf16> to vector<13x13x64xbf16>
    %37 = vector.shape_cast %34 : vector<13x13x64xbf16> to vector<1x13x13x64xbf16>
    tpu.vector_store %arg4[%c0_7, %c0_8, %c0_9, %c0_10], %37 {strides = array<i32>} : memref<1x13x13x64xbf16, #tpu.memory_space<vmem>>, vector<1x13x13x64xbf16>,
    return
  }
  func.func @transform_0(%arg0: i32) -> (i32, i32, i32) {
    %c0_i32 = arith.constant 0 : i32
    %c0_i32_0 = arith.constant 0 : i32
    %c0_i32_1 = arith.constant 0 : i32
    return %arg0, %c0_i32, %c0_i32_0 : i32, i32, i32
  }
  func.func @transform_1(%arg0: i32) -> (i32, i32) {
    %c0_i32 = arith.constant 0 : i32
    %c0_i32_0 = arith.constant 0 : i32
    %c0_i32_1 = arith.constant 0 : i32
    return %c0_i32, %c0_i32_0 : i32, i32
  }
  func.func @transform_2(%arg0: i32) -> (i32, i32) {
    %c0_i32 = arith.constant 0 : i32
    %c0_i32_0 = arith.constant 0 : i32
    %c0_i32_1 = arith.constant 0 : i32
    return %c0_i32, %c0_i32_0 : i32, i32
  }
  func.func @transform_3(%arg0: i32) -> (i32, i32, i32, i32) {
    %c0_i32 = arith.constant 0 : i32
    %c0_i32_0 = arith.constant 0 : i32
    %c0_i32_1 = arith.constant 0 : i32
    %c0_i32_2 = arith.constant 0 : i32
    return %arg0, %c0_i32, %c0_i32_0, %c0_i32_1 : i32, i32, i32, i32
  }
}

module attributes {stable_mosaic.version = 11 : i64} {
  func.func @_conv_relu_pool_kernel(%arg0: i32, %arg1: memref<1x81x1664xbf16, #tpu.memory_space<vmem>>, %arg2: memref<1664x64xbf16, #tpu.memory_space<vmem>>, %arg3: memref<1x64xf32, #tpu.memory_space<vmem>>, %arg4: memref<1x4x4x64xbf16, #tpu.memory_space<vmem>>) attributes {dimension_semantics = [#tpu.dimension_semantics<parallel>], iteration_bounds = array<i64: 2>, scalar_prefetch = 0 : i64, scratch_operands = 0 : i64, tpu.core_type = #tpu.core_type<tc>, window_params = [{transform_indices = @transform_0, window_bounds = array<i64: 1, 81, 1664>}, {pipeline_mode = #tpu.pipeline_mode<synchronous>, transform_indices = @transform_1, window_bounds = array<i64: 1664, 64>}, {pipeline_mode = #tpu.pipeline_mode<synchronous>, transform_indices = @transform_2, window_bounds = array<i64: 1, 64>}, {transform_indices = @transform_3, window_bounds = array<i64: 1, 4, 4, 64>}]} {
    %c0 = arith.constant 0 : index
    %c0_0 = arith.constant 0 : index
    %c0_1 = arith.constant 0 : index
    %0 = vector.load %arg1[%c0, %c0_0, %c0_1] : memref<1x81x1664xbf16, #tpu.memory_space<vmem>>, vector<1x81x1664xbf16>
    %1 = vector.shape_cast %0 : vector<1x81x1664xbf16> to vector<81x1664xbf16>
    %c0_2 = arith.constant 0 : index
    %c0_3 = arith.constant 0 : index
    %2 = vector.load %arg2[%c0_2, %c0_3] : memref<1664x64xbf16, #tpu.memory_space<vmem>>, vector<1664x64xbf16>
    %cst = arith.constant dense<0.000000e+00> : vector<81x64xf32>
    %3 = tpu.matmul %1, %2, %cst {dimension_numbers = #tpu.dot_dimension_numbers<[1], [0], [0], [1], [0, 0, 1, 1], [], []>} : vector<81x1664xbf16>, vector<1664x64xbf16>, vector<81x64xf32> -> vector<81x64xf32>
    %c0_4 = arith.constant 0 : index
    %c0_5 = arith.constant 0 : index
    %4 = vector.load %arg3[%c0_4, %c0_5] : memref<1x64xf32, #tpu.memory_space<vmem>>, vector<1x64xf32>
    %5 = vector.broadcast %4 : vector<1x64xf32> to vector<81x64xf32>
    %6 = arith.addf %3, %5 : vector<81x64xf32>
    %cst_6 = arith.constant 0.000000e+00 : f32
    %7 = vector.broadcast %cst_6 : f32 to vector<81x64xf32>
    %8 = arith.maximumf %6, %7 : vector<81x64xf32>
    %9 = vector.shape_cast %8 : vector<81x64xf32> to vector<9x9x64xf32>
    %10 = vector.extract_strided_slice %9 {offsets = [0, 0, 0], sizes = [9, 8, 64], strides = [1, 1, 1]} : vector<9x9x64xf32> to vector<9x8x64xf32>
    %11 = vector.shape_cast %10 : vector<9x8x64xf32> to vector<9x4x2x64xf32>
    %12 = vector.extract_strided_slice %9 {offsets = [0, 1, 0], sizes = [9, 8, 64], strides = [1, 1, 1]} : vector<9x9x64xf32> to vector<9x8x64xf32>
    %13 = vector.shape_cast %12 : vector<9x8x64xf32> to vector<9x4x2x64xf32>
    %14 = vector.extract_strided_slice %11 {offsets = [0, 0, 0, 0], sizes = [9, 4, 1, 64], strides = [1, 1, 1, 1]} : vector<9x4x2x64xf32> to vector<9x4x1x64xf32>
    %15 = vector.shape_cast %14 : vector<9x4x1x64xf32> to vector<9x4x64xf32>
    %16 = vector.extract_strided_slice %11 {offsets = [0, 0, 1, 0], sizes = [9, 4, 1, 64], strides = [1, 1, 1, 1]} : vector<9x4x2x64xf32> to vector<9x4x1x64xf32>
    %17 = vector.shape_cast %16 : vector<9x4x1x64xf32> to vector<9x4x64xf32>
    %18 = arith.maximumf %15, %17 : vector<9x4x64xf32>
    %19 = vector.extract_strided_slice %13 {offsets = [0, 0, 1, 0], sizes = [9, 4, 1, 64], strides = [1, 1, 1, 1]} : vector<9x4x2x64xf32> to vector<9x4x1x64xf32>
    %20 = vector.shape_cast %19 : vector<9x4x1x64xf32> to vector<9x4x64xf32>
    %21 = arith.maximumf %18, %20 : vector<9x4x64xf32>
    %22 = vector.extract_strided_slice %21 {offsets = [0, 0, 0], sizes = [8, 4, 64], strides = [1, 1, 1]} : vector<9x4x64xf32> to vector<8x4x64xf32>
    %23 = vector.shape_cast %22 : vector<8x4x64xf32> to vector<4x2x4x64xf32>
    %24 = vector.extract_strided_slice %21 {offsets = [1, 0, 0], sizes = [8, 4, 64], strides = [1, 1, 1]} : vector<9x4x64xf32> to vector<8x4x64xf32>
    %25 = vector.shape_cast %24 : vector<8x4x64xf32> to vector<4x2x4x64xf32>
    %26 = vector.extract_strided_slice %23 {offsets = [0, 0, 0, 0], sizes = [4, 1, 4, 64], strides = [1, 1, 1, 1]} : vector<4x2x4x64xf32> to vector<4x1x4x64xf32>
    %27 = vector.shape_cast %26 : vector<4x1x4x64xf32> to vector<4x4x64xf32>
    %28 = vector.extract_strided_slice %23 {offsets = [0, 1, 0, 0], sizes = [4, 1, 4, 64], strides = [1, 1, 1, 1]} : vector<4x2x4x64xf32> to vector<4x1x4x64xf32>
    %29 = vector.shape_cast %28 : vector<4x1x4x64xf32> to vector<4x4x64xf32>
    %30 = arith.maximumf %27, %29 : vector<4x4x64xf32>
    %31 = vector.extract_strided_slice %25 {offsets = [0, 1, 0, 0], sizes = [4, 1, 4, 64], strides = [1, 1, 1, 1]} : vector<4x2x4x64xf32> to vector<4x1x4x64xf32>
    %32 = vector.shape_cast %31 : vector<4x1x4x64xf32> to vector<4x4x64xf32>
    %33 = arith.maximumf %30, %32 : vector<4x4x64xf32>
    %34 = arith.truncf %33 : vector<4x4x64xf32> to vector<4x4x64xbf16>
    %c0_7 = arith.constant 0 : index
    %c0_8 = arith.constant 0 : index
    %c0_9 = arith.constant 0 : index
    %c0_10 = arith.constant 0 : index
    %35 = vector.load %arg4[%c0_7, %c0_8, %c0_9, %c0_10] : memref<1x4x4x64xbf16, #tpu.memory_space<vmem>>, vector<1x4x4x64xbf16>
    %36 = vector.shape_cast %35 : vector<1x4x4x64xbf16> to vector<4x4x64xbf16>
    %37 = vector.shape_cast %34 : vector<4x4x64xbf16> to vector<1x4x4x64xbf16>
    tpu.vector_store %arg4[%c0_7, %c0_8, %c0_9, %c0_10], %37 {strides = array<i32>} : memref<1x4x4x64xbf16, #tpu.memory_space<vmem>>, vector<1x4x4x64xbf16>,
    return
  }
  func.func @transform_0(%arg0: i32) -> (i32, i32, i32) {
    %c0_i32 = arith.constant 0 : i32
    %c0_i32_0 = arith.constant 0 : i32
    %c0_i32_1 = arith.constant 0 : i32
    return %arg0, %c0_i32, %c0_i32_0 : i32, i32, i32
  }
  func.func @transform_1(%arg0: i32) -> (i32, i32) {
    %c0_i32 = arith.constant 0 : i32
    %c0_i32_0 = arith.constant 0 : i32
    %c0_i32_1 = arith.constant 0 : i32
    return %c0_i32, %c0_i32_0 : i32, i32
  }
  func.func @transform_2(%arg0: i32) -> (i32, i32) {
    %c0_i32 = arith.constant 0 : i32
    %c0_i32_0 = arith.constant 0 : i32
    %c0_i32_1 = arith.constant 0 : i32
    return %c0_i32, %c0_i32_0 : i32, i32
  }
  func.func @transform_3(%arg0: i32) -> (i32, i32, i32, i32) {
    %c0_i32 = arith.constant 0 : i32
    %c0_i32_0 = arith.constant 0 : i32
    %c0_i32_1 = arith.constant 0 : i32
    %c0_i32_2 = arith.constant 0 : i32
    return %arg0, %c0_i32, %c0_i32_0, %c0_i32_1 : i32, i32, i32, i32
  }
}

module attributes {stable_mosaic.version = 11 : i64} {
  func.func @_fc_fused_kernel(%arg0: i32, %arg1: memref<2x1024xbf16, #tpu.memory_space<vmem>>, %arg2: memref<1024x384xbf16, #tpu.memory_space<vmem>>, %arg3: memref<1x384xf32, #tpu.memory_space<vmem>>, %arg4: memref<384x192xbf16, #tpu.memory_space<vmem>>, %arg5: memref<1x192xf32, #tpu.memory_space<vmem>>, %arg6: memref<192x128xbf16, #tpu.memory_space<vmem>>, %arg7: memref<1x128xf32, #tpu.memory_space<vmem>>, %arg8: memref<2x128xf32, #tpu.memory_space<vmem>>) attributes {dimension_semantics = [#tpu.dimension_semantics<parallel>], iteration_bounds = array<i64: 1>, scalar_prefetch = 0 : i64, scratch_operands = 0 : i64, tpu.core_type = #tpu.core_type<tc>, window_params = [{transform_indices = @transform_0, window_bounds = array<i64: 2, 1024>}, {pipeline_mode = #tpu.pipeline_mode<synchronous>, transform_indices = @transform_1, window_bounds = array<i64: 1024, 384>}, {pipeline_mode = #tpu.pipeline_mode<synchronous>, transform_indices = @transform_2, window_bounds = array<i64: 1, 384>}, {pipeline_mode = #tpu.pipeline_mode<synchronous>, transform_indices = @transform_3, window_bounds = array<i64: 384, 192>}, {pipeline_mode = #tpu.pipeline_mode<synchronous>, transform_indices = @transform_4, window_bounds = array<i64: 1, 192>}, {pipeline_mode = #tpu.pipeline_mode<synchronous>, transform_indices = @transform_5, window_bounds = array<i64: 192, 128>}, {pipeline_mode = #tpu.pipeline_mode<synchronous>, transform_indices = @transform_6, window_bounds = array<i64: 1, 128>}, {transform_indices = @transform_7, window_bounds = array<i64: 2, 128>}]} {
    %c0 = arith.constant 0 : index
    %c0_0 = arith.constant 0 : index
    %0 = vector.load %arg1[%c0, %c0_0] : memref<2x1024xbf16, #tpu.memory_space<vmem>>, vector<2x1024xbf16>
    %c0_1 = arith.constant 0 : index
    %c0_2 = arith.constant 0 : index
    %1 = vector.load %arg2[%c0_1, %c0_2] : memref<1024x384xbf16, #tpu.memory_space<vmem>>, vector<1024x384xbf16>
    %cst = arith.constant dense<0.000000e+00> : vector<2x384xf32>
    %2 = tpu.matmul %0, %1, %cst {dimension_numbers = #tpu.dot_dimension_numbers<[1], [0], [0], [1], [0, 0, 1, 1], [], []>} : vector<2x1024xbf16>, vector<1024x384xbf16>, vector<2x384xf32> -> vector<2x384xf32>
    %c0_3 = arith.constant 0 : index
    %c0_4 = arith.constant 0 : index
    %3 = vector.load %arg3[%c0_3, %c0_4] : memref<1x384xf32, #tpu.memory_space<vmem>>, vector<1x384xf32>
    %4 = vector.broadcast %3 : vector<1x384xf32> to vector<2x384xf32>
    %5 = arith.addf %2, %4 : vector<2x384xf32>
    %cst_5 = arith.constant 0.000000e+00 : f32
    %6 = vector.broadcast %cst_5 : f32 to vector<2x384xf32>
    %7 = arith.maximumf %5, %6 : vector<2x384xf32>
    %8 = arith.truncf %7 : vector<2x384xf32> to vector<2x384xbf16>
    %c0_6 = arith.constant 0 : index
    %c0_7 = arith.constant 0 : index
    %9 = vector.load %arg4[%c0_6, %c0_7] : memref<384x192xbf16, #tpu.memory_space<vmem>>, vector<384x192xbf16>
    %cst_8 = arith.constant dense<0.000000e+00> : vector<2x192xf32>
    %10 = tpu.matmul %8, %9, %cst_8 {dimension_numbers = #tpu.dot_dimension_numbers<[1], [0], [0], [1], [0, 0, 1, 1], [], []>} : vector<2x384xbf16>, vector<384x192xbf16>, vector<2x192xf32> -> vector<2x192xf32>
    %c0_9 = arith.constant 0 : index
    %c0_10 = arith.constant 0 : index
    %11 = vector.load %arg5[%c0_9, %c0_10] : memref<1x192xf32, #tpu.memory_space<vmem>>, vector<1x192xf32>
    %12 = vector.broadcast %11 : vector<1x192xf32> to vector<2x192xf32>
    %13 = arith.addf %10, %12 : vector<2x192xf32>
    %cst_11 = arith.constant 0.000000e+00 : f32
    %14 = vector.broadcast %cst_11 : f32 to vector<2x192xf32>
    %15 = arith.maximumf %13, %14 : vector<2x192xf32>
    %16 = arith.truncf %15 : vector<2x192xf32> to vector<2x192xbf16>
    %c0_12 = arith.constant 0 : index
    %c0_13 = arith.constant 0 : index
    %17 = vector.load %arg6[%c0_12, %c0_13] : memref<192x128xbf16, #tpu.memory_space<vmem>>, vector<192x128xbf16>
    %cst_14 = arith.constant dense<0.000000e+00> : vector<2x128xf32>
    %18 = tpu.matmul %16, %17, %cst_14 {dimension_numbers = #tpu.dot_dimension_numbers<[1], [0], [0], [1], [0, 0, 1, 1], [], []>} : vector<2x192xbf16>, vector<192x128xbf16>, vector<2x128xf32> -> vector<2x128xf32>
    %c0_15 = arith.constant 0 : index
    %c0_16 = arith.constant 0 : index
    %19 = vector.load %arg7[%c0_15, %c0_16] : memref<1x128xf32, #tpu.memory_space<vmem>>, vector<1x128xf32>
    %20 = vector.broadcast %19 : vector<1x128xf32> to vector<2x128xf32>
    %21 = arith.addf %18, %20 : vector<2x128xf32>
    %c0_17 = arith.constant 0 : index
    %c0_18 = arith.constant 0 : index
    %22 = vector.load %arg8[%c0_17, %c0_18] : memref<2x128xf32, #tpu.memory_space<vmem>>, vector<2x128xf32>
    tpu.vector_store %arg8[%c0_17, %c0_18], %21 {strides = array<i32>} : memref<2x128xf32, #tpu.memory_space<vmem>>, vector<2x128xf32>,
    return
  }
  func.func @transform_0(%arg0: i32) -> (i32, i32) {
    %c0_i32 = arith.constant 0 : i32
    %c0_i32_0 = arith.constant 0 : i32
    return %arg0, %c0_i32 : i32, i32
  }
  func.func @transform_1(%arg0: i32) -> (i32, i32) {
    %c0_i32 = arith.constant 0 : i32
    %c0_i32_0 = arith.constant 0 : i32
    %c0_i32_1 = arith.constant 0 : i32
    return %c0_i32, %c0_i32_0 : i32, i32
  }
  func.func @transform_2(%arg0: i32) -> (i32, i32) {
    %c0_i32 = arith.constant 0 : i32
    %c0_i32_0 = arith.constant 0 : i32
    %c0_i32_1 = arith.constant 0 : i32
    return %c0_i32, %c0_i32_0 : i32, i32
  }
  func.func @transform_3(%arg0: i32) -> (i32, i32) {
    %c0_i32 = arith.constant 0 : i32
    %c0_i32_0 = arith.constant 0 : i32
    %c0_i32_1 = arith.constant 0 : i32
    return %c0_i32, %c0_i32_0 : i32, i32
  }
  func.func @transform_4(%arg0: i32) -> (i32, i32) {
    %c0_i32 = arith.constant 0 : i32
    %c0_i32_0 = arith.constant 0 : i32
    %c0_i32_1 = arith.constant 0 : i32
    return %c0_i32, %c0_i32_0 : i32, i32
  }
  func.func @transform_5(%arg0: i32) -> (i32, i32) {
    %c0_i32 = arith.constant 0 : i32
    %c0_i32_0 = arith.constant 0 : i32
    %c0_i32_1 = arith.constant 0 : i32
    return %c0_i32, %c0_i32_0 : i32, i32
  }
  func.func @transform_6(%arg0: i32) -> (i32, i32) {
    %c0_i32 = arith.constant 0 : i32
    %c0_i32_0 = arith.constant 0 : i32
    %c0_i32_1 = arith.constant 0 : i32
    return %c0_i32, %c0_i32_0 : i32, i32
  }
  func.func @transform_7(%arg0: i32) -> (i32, i32) {
    %c0_i32 = arith.constant 0 : i32
    %c0_i32_0 = arith.constant 0 : i32
    return %arg0, %c0_i32 : i32, i32
  }
}

</mosaic_0001>

<llo_original>
// kernel: cnn_net_forward.3
$region0: #{cnn_net_forward.3}
  #allocation0 [shape = 'u32[]', space=smem, size = 0x4, offset = 0x4, fixed_abs, tag = 'smem constant byte address 0x4 - core index']
  #allocation1 [shape = 'u32[144,128]{1,0:T(1,128)}', space=vmem, size = 0x12000, scoped, tag = 'internal scratch']
  %s0 = inlined_call_operand.vmem [shape: bf16[2,784,128], index: 0, kind: input, shape index: {}]
  %s1 = inlined_call_operand.vmem [shape: bf16[128,64], index: 1, kind: input, shape index: {}]
  %s2 = inlined_call_operand.vmem [shape: f32[1,64], index: 2, kind: input, shape index: {}]
  %s3 = inlined_call_operand.vmem [shape: bf16[2,13,13,64], index: 3, kind: output, shape index: {}]
  %s4 = sld [smem:[#allocation0]]
  $region45: #{cnn_net_forward.3} parent=0
    _
  %s6 = ssub.s32 1, %s4
  %s7 = scalar_select 0, %s6, %s4
  loop: start=0, step=1, limit=4
  $region2: #{cnn_net_forward.3} parent=0 // loop_pre_header
    _
  $region3: #{cnn_net_forward.3} parent=0 // loop_header
    %s9 = sphi 0, %s13
    %p10 = scmp.ge.s32.totalorder %s9, 4
    %s19 = sphi 0, %s21
    %s22 = sphi 0, %s19
    %s23 = sphi 0, %s22
    %s39 = sphi 0, %s23
    %s43 = sphi 0, %s43
    %s45 = sphi 0, %s43
    %s46 = sphi 0, %s45
    %s60 = sphi 0, %s46
    %s64 = sphi 0, %s64
    %s66 = sphi 0, %s64
    %s67 = sphi 0, %s66
    %s81 = sphi 0, %s67
    %s87 = sphi 0, %s89
    %s90 = sphi 0, %s87
    %s91 = sphi 0, %s90
    %s107 = sphi 0, %s91
  $region4: #{cnn_net_forward.3} parent=0 // loop_header_branch
    %12 = sbr.rel (%p10) target = $region8
  $region5: #{cnn_net_forward.3} parent=0 // loop_body
    %s14 = ssub.s32 %s9, 1
    %s15 = ssub.s32 %s9, 2
    %s16 = sadd.s32 %s9, 1
    %s17 = ssub.s32 %s9, %s16
    %p18 = scmp.eq.s32.totalorder %s17, 0
    %s20 = sadd.s32 %s19, 1
    %s21 = scalar_select %p18, %s19, %s20
    %p24 = pneg %p18
    %p25 = scmp.eq.s32.totalorder %s9, 1
    %p26 = por %p24, %p25
    %p27 = scmp.ne.s32.totalorder %s19, %s22
    %p28 = scmp.eq.s32.totalorder %s9, 0
    %p29 = por %p27, %p28
    %p30 = scmp.ne.s32.totalorder %s19, %s22
    %p31 = scmp.eq.s32.totalorder %s14, 1
    %p32 = por %p30, %p31
    %p33 = scmp.ne.s32.totalorder %s22, %s23
    %p34 = scmp.eq.s32.totalorder %s14, 0
    %p35 = por %p33, %p34
    %p36 = scmp.ne.s32.totalorder %s22, %s23
    %p37 = scmp.eq.s32.totalorder %s15, 1
    %p38 = por %p36, %p37
    %p40 = scmp.ne.s32.totalorder %s23, %s39
    %p41 = scmp.eq.s32.totalorder %s15, 0
    %p42 = por %p40, %p41
    %s44 = sadd.s32 %s43, 1
    %p47 = scmp.eq.s32.totalorder %s9, 1
    %p48 = scmp.ne.s32.totalorder %s43, %s45
    %p49 = scmp.eq.s32.totalorder %s9, 0
    %p50 = por %p48, %p49
    %p51 = scmp.ne.s32.totalorder %s43, %s45
    %p52 = scmp.eq.s32.totalorder %s14, 1
    %p53 = por %p51, %p52
    %p54 = scmp.ne.s32.totalorder %s45, %s46
    %p55 = scmp.eq.s32.totalorder %s14, 0
    %p56 = por %p54, %p55
    %p57 = scmp.ne.s32.totalorder %s45, %s46
    %p58 = scmp.eq.s32.totalorder %s15, 1
    %p59 = por %p57, %p58
    %p61 = scmp.ne.s32.totalorder %s46, %s60
    %p62 = scmp.eq.s32.totalorder %s15, 0
    %p63 = por %p61, %p62
    %s65 = sadd.s32 %s64, 1
    %p68 = scmp.eq.s32.totalorder %s9, 1
    %p69 = scmp.ne.s32.totalorder %s64, %s66
    %p70 = scmp.eq.s32.totalorder %s9, 0
    %p71 = por %p69, %p70
    %p72 = scmp.ne.s32.totalorder %s64, %s66
    %p73 = scmp.eq.s32.totalorder %s14, 1
    %p74 = por %p72, %p73
    %p75 = scmp.ne.s32.totalorder %s66, %s67
    %p76 = scmp.eq.s32.totalorder %s14, 0
    %p77 = por %p75, %p76
    %p78 = scmp.ne.s32.totalorder %s66, %s67
    %p79 = scmp.eq.s32.totalorder %s15, 1
    %p80 = por %p78, %p79
    %p82 = scmp.ne.s32.totalorder %s67, %s81
    %p83 = scmp.eq.s32.totalorder %s15, 0
    %p84 = por %p82, %p83
    %s85 = ssub.s32 %s9, %s16
    %p86 = scmp.eq.s32.totalorder %s85, 0
    %s88 = sadd.s32 %s87, 1
    %s89 = scalar_select %p86, %s87, %s88
    %p92 = pneg %p86
    %p93 = scmp.eq.s32.totalorder %s9, 1
    %p94 = por %p92, %p93
    %p95 = scmp.ne.s32.totalorder %s87, %s90
    %p96 = scmp.eq.s32.totalorder %s9, 0
    %p97 = por %p95, %p96
    %p98 = scmp.ne.s32.totalorder %s87, %s90
    %p99 = scmp.eq.s32.totalorder %s14, 1
    %p100 = por %p98, %p99
    %p101 = scmp.ne.s32.totalorder %s90, %s91
    %p102 = scmp.eq.s32.totalorder %s14, 0
    %p103 = por %p101, %p102
    %p104 = scmp.ne.s32.totalorder %s90, %s91
    %p105 = scmp.eq.s32.totalorder %s15, 1
    %p106 = por %p104, %p105
    %p108 = scmp.ne.s32.totalorder %s91, %s107
    %p109 = scmp.eq.s32.totalorder %s15, 0
    %p110 = por %p108, %p109
    %p111 = scmp.le.s32.totalorder 1, %s9
    %p112 = scmp.lt.s32.totalorder %s9, 3
    %p113 = pnand %p111, %p112
    %p114 = pneg %p113
    // Predicated region
    $region9: #{cnn_net_forward.3} parent=5 // pred_check
      _
    $region10: #{cnn_net_forward.3} parent=5 // pred_check_branch
      %116 = sbr.rel (%p113) target = $region12
    $region11: #{cnn_net_forward.3} parent=5 // pred_region
      %s117 = ssub.s32 %s9, 1
      // Predicated region
      $region13: #{cnn_net_forward.3} parent=11 // pred_check
        %p118 = pneg %p56
      $region14: #{cnn_net_forward.3} parent=11 // pred_check_branch
        %120 = sbr.rel (%p118) target = $region16
      $region15: #{cnn_net_forward.3} parent=11 // pred_region
        _
      $region16: #{cnn_net_forward.3} parent=11 // pred_fallthru
        _
      // Predicated region
      $region17: #{cnn_net_forward.3} parent=11 // pred_check
        %p121 = pneg %p77
      $region18: #{cnn_net_forward.3} parent=11 // pred_check_branch
        %123 = sbr.rel (%p121) target = $region20
      $region19: #{cnn_net_forward.3} parent=11 // pred_region
        _
      $region20: #{cnn_net_forward.3} parent=11 // pred_fallthru
        _
    $region12: #{cnn_net_forward.3} parent=5 // pred_fallthru
      _
    %p124 = scmp.lt.s32.totalorder %s9, 2
    // Predicated region
    $region21: #{cnn_net_forward.3} parent=5 // pred_check
      %p125 = pneg %p124
    $region22: #{cnn_net_forward.3} parent=5 // pred_check_branch
      %127 = sbr.rel (%p125) target = $region24
    $region23: #{cnn_net_forward.3} parent=5 // pred_region
      // Predicated region
      $region25: #{cnn_net_forward.3} parent=23 // pred_check
        %p128 = pneg %p29
      $region26: #{cnn_net_forward.3} parent=23 // pred_check_branch
        %130 = sbr.rel (%p128) target = $region28
      $region27: #{cnn_net_forward.3} parent=23 // pred_region
        %p131 = scmp.lt.s32.totalorder %s9, 1
        %s132 = scalar_select %p131, %s9, 1
        %s133 = smul.addr %s132, 98
        %s134 = smul.addr %s133, 4
        %s135 = scalar_lea.vmem %s0, %s134
      $region28: #{cnn_net_forward.3} parent=23 // pred_fallthru
        _
    $region24: #{cnn_net_forward.3} parent=5 // pred_fallthru
      _
    %p136 = scmp.le.s32.totalorder 1, %s9
    %p137 = scmp.lt.s32.totalorder %s9, 3
    %p138 = pnand %p136, %p137
    %p139 = pneg %p138
    // Predicated region
    $region29: #{cnn_net_forward.3} parent=5 // pred_check
      _
    $region30: #{cnn_net_forward.3} parent=5 // pred_check_branch
      %141 = sbr.rel (%p138) target = $region32
    $region31: #{cnn_net_forward.3} parent=5 // pred_region
      %s142 = ssub.s32 %s9, 1
      %p143 = scmp.lt.s32.totalorder %s14, 1
      %s144 = scalar_select %p143, %s14, 1
      %s145 = smul.addr %s144, 98
      %s146 = smul.addr %s145, 4
      %s147 = scalar_lea.vmem %s0, %s146
      %p148 = pneg %p35
      %p149 = pneg %p32
      %p150 = pneg %p56
      %p151 = pneg %p53
      %p152 = pneg %p77
      %p153 = pneg %p74
      %p154 = pneg %p103
      %p155 = pneg %p100
      %p156 = scmp.lt.s32.totalorder %s14, 1
      %s157 = scalar_select %p156, %s14, 1
      %s158 = smul.addr %s157, 26
      %s159 = smul.addr %s158, 4
      %s160 = scalar_lea.vmem %s3, %s159
      %p161 = scmp.lt.s32.totalorder %s14, 1
      %s162 = scalar_select %p161, %s14, 1
      %s163 = smul.addr %s162, 98
      %s164 = smul.addr %s163, 4
      %s165 = scalar_lea.vmem %s0, %s164
      %p166 = scmp.lt.s32.totalorder %s14, 1
      %s167 = scalar_select %p166, %s14, 1
      %s168 = smul.addr %s167, 26
      %s169 = smul.addr %s168, 4
      %s170 = scalar_lea.vmem %s3, %s169
      %v172 = vld [vmem:[%s165] sm:$0xf]
      %v173 = vld [vmem:[%s165 + $0x4] sm:$0xf]
      %v174 = vld [vmem:[%s165 + $0x8] sm:$0xf]
      %v175 = vld [vmem:[%s165 + $0xc] sm:$0xf]
      %v176 = vld [vmem:[%s165 + $0x10] sm:$0xf]
      %v177 = vld [vmem:[%s165 + $0x14] sm:$0xf]
      %v178 = vld [vmem:[%s165 + $0x18] sm:$0xf]
      %v179 = vld [vmem:[%s165 + $0x1c] sm:$0xf]
      %v180 = vld [vmem:[%s165 + $0x20] sm:$0xf]
      %v181 = vld [vmem:[%s165 + $0x24] sm:$0xf]
      %v182 = vld [vmem:[%s165 + $0x28] sm:$0xf]
      %v183 = vld [vmem:[%s165 + $0x2c] sm:$0xf]
      %v184 = vld [vmem:[%s165 + $0x30] sm:$0xf]
      %v185 = vld [vmem:[%s165 + $0x34] sm:$0xf]
      %v186 = vld [vmem:[%s165 + $0x38] sm:$0xf]
      %v187 = vld [vmem:[%s165 + $0x3c] sm:$0xf]
      %v188 = vld [vmem:[%s165 + $0x40] sm:$0xf]
      %v189 = vld [vmem:[%s165 + $0x44] sm:$0xf]
      %v190 = vld [vmem:[%s165 + $0x48] sm:$0xf]
      %v191 = vld [vmem:[%s165 + $0x4c] sm:$0xf]
      %v192 = vld [vmem:[%s165 + $0x50] sm:$0xf]
      %v193 = vld [vmem:[%s165 + $0x54] sm:$0xf]
      %v194 = vld [vmem:[%s165 + $0x58] sm:$0xf]
      %v195 = vld [vmem:[%s165 + $0x5c] sm:$0xf]
      %v196 = vld [vmem:[%s165 + $0x60] sm:$0xf]
      %v197 = vld [vmem:[%s165 + $0x64] sm:$0xf]
      %v198 = vld [vmem:[%s165 + $0x68] sm:$0xf]
      %v199 = vld [vmem:[%s165 + $0x6c] sm:$0xf]
      %v200 = vld [vmem:[%s165 + $0x70] sm:$0xf]
      %v201 = vld [vmem:[%s165 + $0x74] sm:$0xf]
      %v202 = vld [vmem:[%s165 + $0x78] sm:$0xf]
      %v203 = vld [vmem:[%s165 + $0x7c] sm:$0xf]
      %v204 = vld [vmem:[%s165 + $0x80] sm:$0xf]
      %v205 = vld [vmem:[%s165 + $0x84] sm:$0xf]
      %v206 = vld [vmem:[%s165 + $0x88] sm:$0xf]
      %v207 = vld [vmem:[%s165 + $0x8c] sm:$0xf]
      %v208 = vld [vmem:[%s165 + $0x90] sm:$0xf]
      %v209 = vld [vmem:[%s165 + $0x94] sm:$0xf]
      %v210 = vld [vmem:[%s165 + $0x98] sm:$0xf]
      %v211 = vld [vmem:[%s165 + $0x9c] sm:$0xf]
      %v212 = vld [vmem:[%s165 + $0xa0] sm:$0xf]
      %v213 = vld [vmem:[%s165 + $0xa4] sm:$0xf]
      %v214 = vld [vmem:[%s165 + $0xa8] sm:$0xf]
      %v215 = vld [vmem:[%s165 + $0xac] sm:$0xf]
      %v216 = vld [vmem:[%s165 + $0xb0] sm:$0xf]
      %v217 = vld [vmem:[%s165 + $0xb4] sm:$0xf]
      %v218 = vld [vmem:[%s165 + $0xb8] sm:$0xf]
      %v219 = vld [vmem:[%s165 + $0xbc] sm:$0xf]
      %v220 = vld [vmem:[%s165 + $0xc0] sm:$0xf]
      %v221 = vld [vmem:[%s165 + $0xc4] sm:$0xf]
      %v222 = vld [vmem:[%s165 + $0xc8] sm:$0xf]
      %v223 = vld [vmem:[%s165 + $0xcc] sm:$0xf]
      %v224 = vld [vmem:[%s165 + $0xd0] sm:$0xf]
      %v225 = vld [vmem:[%s165 + $0xd4] sm:$0xf]
      %v226 = vld [vmem:[%s165 + $0xd8] sm:$0xf]
      %v227 = vld [vmem:[%s165 + $0xdc] sm:$0xf]
      %v228 = vld [vmem:[%s165 + $0xe0] sm:$0xf]
      %v229 = vld [vmem:[%s165 + $0xe4] sm:$0xf]
      %v230 = vld [vmem:[%s165 + $0xe8] sm:$0xf]
      %v231 = vld [vmem:[%s165 + $0xec] sm:$0xf]
      %v232 = vld [vmem:[%s165 + $0xf0] sm:$0xf]
      %v233 = vld [vmem:[%s165 + $0xf4] sm:$0xf]
      %v234 = vld [vmem:[%s165 + $0xf8] sm:$0xf]
      %v235 = vld [vmem:[%s165 + $0xfc] sm:$0xf]
      %v236 = vld [vmem:[%s165 + $0x100] sm:$0xf]
      %v237 = vld [vmem:[%s165 + $0x104] sm:$0xf]
      %v238 = vld [vmem:[%s165 + $0x108] sm:$0xf]
      %v239 = vld [vmem:[%s165 + $0x10c] sm:$0xf]
      %v240 = vld [vmem:[%s165 + $0x110] sm:$0xf]
      %v241 = vld [vmem:[%s165 + $0x114] sm:$0xf]
      %v242 = vld [vmem:[%s165 + $0x118] sm:$0xf]
      %v243 = vld [vmem:[%s165 + $0x11c] sm:$0xf]
      %v244 = vld [vmem:[%s165 + $0x120] sm:$0xf]
      %v245 = vld [vmem:[%s165 + $0x124] sm:$0xf]
      %v246 = vld [vmem:[%s165 + $0x128] sm:$0xf]
      %v247 = vld [vmem:[%s165 + $0x12c] sm:$0xf]
      %v248 = vld [vmem:[%s165 + $0x130] sm:$0xf]
      %v249 = vld [vmem:[%s165 + $0x134] sm:$0xf]
      %v250 = vld [vmem:[%s165 + $0x138] sm:$0xf]
      %v251 = vld [vmem:[%s165 + $0x13c] sm:$0xf]
      %v252 = vld [vmem:[%s165 + $0x140] sm:$0xf]
      %v253 = vld [vmem:[%s165 + $0x144] sm:$0xf]
      %v254 = vld [vmem:[%s165 + $0x148] sm:$0xf]
      %v255 = vld [vmem:[%s165 + $0x14c] sm:$0xf]
      %v256 = vld [vmem:[%s165 + $0x150] sm:$0xf]
      %v257 = vld [vmem:[%s165 + $0x154] sm:$0xf]
      %v258 = vld [vmem:[%s165 + $0x158] sm:$0xf]
      %v259 = vld [vmem:[%s165 + $0x15c] sm:$0xf]
      %v260 = vld [vmem:[%s165 + $0x160] sm:$0xf]
      %v261 = vld [vmem:[%s165 + $0x164] sm:$0xf]
      %v262 = vld [vmem:[%s165 + $0x168] sm:$0xf]
      %v263 = vld [vmem:[%s165 + $0x16c] sm:$0xf]
      %v264 = vld [vmem:[%s165 + $0x170] sm:$0xf]
      %v265 = vld [vmem:[%s165 + $0x174] sm:$0xf]
      %v266 = vld [vmem:[%s165 + $0x178] sm:$0xf]
      %v267 = vld [vmem:[%s165 + $0x17c] sm:$0xf]
      %v268 = vld [vmem:[%s165 + $0x180] sm:$0xf]
      %v269 = vld [vmem:[%s165 + $0x184] sm:$0xf]
      %v270 = vld [vmem:[%s1] sm:$0xf]
      %v271 = vld [vmem:[%s1 + $0x4] sm:$0xf]
      %v272 = vld [vmem:[%s1 + $0x8] sm:$0xf]
      %v273 = vld [vmem:[%s1 + $0xc] sm:$0xf]
      %v274 = vld [vmem:[%s1 + $0x10] sm:$0xf]
      %v275 = vld [vmem:[%s1 + $0x14] sm:$0xf]
      %v276 = vld [vmem:[%s1 + $0x18] sm:$0xf]
      %v277 = vld [vmem:[%s1 + $0x1c] sm:$0xf]
      %v278 = vld [vmem:[%s1 + $0x20] sm:$0xf]
      %v279 = vld [vmem:[%s1 + $0x24] sm:$0xf]
      %v280 = vld [vmem:[%s1 + $0x28] sm:$0xf]
      %v281 = vld [vmem:[%s1 + $0x2c] sm:$0xf]
      %v282 = vld [vmem:[%s1 + $0x30] sm:$0xf]
      %v283 = vld [vmem:[%s1 + $0x34] sm:$0xf]
      %v284 = vld [vmem:[%s1 + $0x38] sm:$0xf]
      %v285 = vld [vmem:[%s1 + $0x3c] sm:$0xf]
      %v286 = vld [vmem:[%s2] sm:$0x1]
      %v288 = vlaneseq
      %v289 = vshrl.u32 %v288, 7
      %v290 = vsub.s32 0, %v289
      %v291 = vrot.slane %v286, %v290
      %v391 = vunpack.c.l.b16 %v172
      %v392 = vunpack.c.l.b16 %v173
      %v393 = vunpack.c.l.b16 %v174
      %v394 = vunpack.c.l.b16 %v175
      %v395 = vunpack.c.l.b16 %v176
      %v396 = vunpack.c.l.b16 %v177
      %v397 = vunpack.c.l.b16 %v178
      %v398 = vunpack.c.l.b16 %v179
      %v399 = vunpack.c.l.b16 %v180
      %v400 = vunpack.c.l.b16 %v181
      %v401 = vunpack.c.l.b16 %v182
      %v402 = vunpack.c.l.b16 %v183
      %v403 = vunpack.c.l.b16 %v184
      %v404 = vunpack.c.l.b16 %v185
      %v405 = vunpack.c.l.b16 %v186
      %v406 = vunpack.c.l.b16 %v187
      %v407 = vunpack.c.l.b16 %v188
      %v408 = vunpack.c.l.b16 %v189
      %v409 = vunpack.c.l.b16 %v190
      %v410 = vunpack.c.l.b16 %v191
      %v411 = vunpack.c.l.b16 %v192
      %v412 = vunpack.c.l.b16 %v193
      %v413 = vunpack.c.l.b16 %v194
      %v414 = vunpack.c.l.b16 %v195
      %v415 = vunpack.c.l.b16 %v196
      %v416 = vunpack.c.l.b16 %v197
      %v417 = vunpack.c.l.b16 %v198
      %v418 = vunpack.c.l.b16 %v199
      %v419 = vunpack.c.l.b16 %v200
      %v420 = vunpack.c.l.b16 %v201
      %v421 = vunpack.c.l.b16 %v202
      %v422 = vunpack.c.l.b16 %v203
      %v423 = vunpack.c.l.b16 %v204
      %v424 = vunpack.c.l.b16 %v205
      %v425 = vunpack.c.l.b16 %v206
      %v426 = vunpack.c.l.b16 %v207
      %v427 = vunpack.c.l.b16 %v208
      %v428 = vunpack.c.l.b16 %v209
      %v429 = vunpack.c.l.b16 %v210
      %v430 = vunpack.c.l.b16 %v211
      %v431 = vunpack.c.l.b16 %v212
      %v432 = vunpack.c.l.b16 %v213
      %v433 = vunpack.c.l.b16 %v214
      %v434 = vunpack.c.l.b16 %v215
      %v435 = vunpack.c.l.b16 %v216
      %v436 = vunpack.c.l.b16 %v217
      %v437 = vunpack.c.l.b16 %v218
      %v438 = vunpack.c.l.b16 %v219
      %v439 = vunpack.c.l.b16 %v220
      %v440 = vunpack.c.l.b16 %v221
      %v441 = vunpack.c.l.b16 %v222
      %v442 = vunpack.c.l.b16 %v223
      %v443 = vunpack.c.l.b16 %v224
      %v444 = vunpack.c.l.b16 %v225
      %v445 = vunpack.c.l.b16 %v226
      %v446 = vunpack.c.l.b16 %v227
      %v447 = vunpack.c.l.b16 %v228
      %v448 = vunpack.c.l.b16 %v229
      %v449 = vunpack.c.l.b16 %v230
      %v450 = vunpack.c.l.b16 %v231
      %v451 = vunpack.c.l.b16 %v232
      %v452 = vunpack.c.l.b16 %v233
      %v453 = vunpack.c.l.b16 %v234
      %v454 = vunpack.c.l.b16 %v235
      %v455 = vunpack.c.l.b16 %v236
      %v456 = vunpack.c.l.b16 %v237
      %v457 = vunpack.c.l.b16 %v238
      %v458 = vunpack.c.l.b16 %v239
      %v459 = vunpack.c.l.b16 %v240
      %v460 = vunpack.c.l.b16 %v241
      %v461 = vunpack.c.l.b16 %v242
      %v462 = vunpack.c.l.b16 %v243
      %v463 = vunpack.c.l.b16 %v244
      %v464 = vunpack.c.l.b16 %v245
      %v465 = vunpack.c.l.b16 %v246
      %v466 = vunpack.c.l.b16 %v247
      %v467 = vunpack.c.l.b16 %v248
      %v468 = vunpack.c.l.b16 %v249
      %v469 = vunpack.c.l.b16 %v250
      %v470 = vunpack.c.l.b16 %v251
      %v471 = vunpack.c.l.b16 %v252
      %v472 = vunpack.c.l.b16 %v253
      %v473 = vunpack.c.l.b16 %v254
      %v474 = vunpack.c.l.b16 %v255
      %v475 = vunpack.c.l.b16 %v256
      %v476 = vunpack.c.l.b16 %v257
      %v477 = vunpack.c.l.b16 %v258
      %v478 = vunpack.c.l.b16 %v259
      %v479 = vunpack.c.l.b16 %v260
      %v480 = vunpack.c.l.b16 %v261
      %v481 = vunpack.c.l.b16 %v262
      %v482 = vunpack.c.l.b16 %v263
      %v483 = vunpack.c.l.b16 %v264
      %v484 = vunpack.c.l.b16 %v265
      %v485 = vunpack.c.l.b16 %v266
      %v486 = vunpack.c.l.b16 %v267
      %v487 = vunpack.c.l.b16 %v268
      %v488 = vunpack.c.l.b16 %v269
      %v489 = vpack.c.b16 %v392, %v391
      %v490 = vpack.c.b16 %v394, %v393
      %v491 = vpack.c.b16 %v396, %v395
      %v492 = vpack.c.b16 %v398, %v397
      %v493 = vpack.c.b16 %v400, %v399
      %v494 = vpack.c.b16 %v402, %v401
      %v495 = vpack.c.b16 %v404, %v403
      %v496 = vpack.c.b16 %v406, %v405
      %v497 = vpack.c.b16 %v408, %v407
      %v498 = vpack.c.b16 %v410, %v409
      %v499 = vpack.c.b16 %v412, %v411
      %v500 = vpack.c.b16 %v414, %v413
      %v501 = vpack.c.b16 %v416, %v415
      %v502 = vpack.c.b16 %v418, %v417
      %v503 = vpack.c.b16 %v420, %v419
      %v504 = vpack.c.b16 %v422, %v421
      %v505 = vpack.c.b16 %v424, %v423
      %v506 = vpack.c.b16 %v426, %v425
      %v507 = vpack.c.b16 %v428, %v427
      %v508 = vpack.c.b16 %v430, %v429
      %v509 = vpack.c.b16 %v432, %v431
      %v510 = vpack.c.b16 %v434, %v433
      %v511 = vpack.c.b16 %v436, %v435
      %v512 = vpack.c.b16 %v438, %v437
      %v513 = vpack.c.b16 %v440, %v439
      %v514 = vpack.c.b16 %v442, %v441
      %v515 = vpack.c.b16 %v444, %v443
      %v516 = vpack.c.b16 %v446, %v445
      %v517 = vpack.c.b16 %v448, %v447
      %v518 = vpack.c.b16 %v450, %v449
      %v519 = vpack.c.b16 %v452, %v451
      %v520 = vpack.c.b16 %v454, %v453
      %v521 = vpack.c.b16 %v456, %v455
      %v522 = vpack.c.b16 %v458, %v457
      %v523 = vpack.c.b16 %v460, %v459
      %v524 = vpack.c.b16 %v462, %v461
      %v525 = vpack.c.b16 %v464, %v463
      %v526 = vpack.c.b16 %v466, %v465
      %v527 = vpack.c.b16 %v468, %v467
      %v528 = vpack.c.b16 %v470, %v469
      %v529 = vpack.c.b16 %v472, %v471
      %v530 = vpack.c.b16 %v474, %v473
      %v531 = vpack.c.b16 %v476, %v475
      %v532 = vpack.c.b16 %v478, %v477
      %v533 = vpack.c.b16 %v480, %v479
      %v534 = vpack.c.b16 %v482, %v481
      %v535 = vpack.c.b16 %v484, %v483
      %v536 = vpack.c.b16 %v486, %v485
      %v537 = vpack.c.b16 %v488, %v487
      %v603 = vunpack.c.l.b16 %v270
      %v604 = vunpack.c.l.b16 %v271
      %v605 = vunpack.c.l.b16 %v272
      %v606 = vunpack.c.l.b16 %v273
      %v607 = vunpack.c.l.b16 %v274
      %v608 = vunpack.c.l.b16 %v275
      %v609 = vunpack.c.l.b16 %v276
      %v610 = vunpack.c.l.b16 %v277
      %v611 = vunpack.c.l.b16 %v278
      %v612 = vunpack.c.l.b16 %v279
      %v613 = vunpack.c.l.b16 %v280
      %v614 = vunpack.c.l.b16 %v281
      %v615 = vunpack.c.l.b16 %v282
      %v616 = vunpack.c.l.b16 %v283
      %v617 = vunpack.c.l.b16 %v284
      %v618 = vunpack.c.l.b16 %v285
      %v619 = vpack.c.b16 %v604, %v603
      %v620 = vpack.c.b16 %v606, %v605
      %v621 = vpack.c.b16 %v608, %v607
      %v622 = vpack.c.b16 %v610, %v609
      %v623 = vpack.c.b16 %v612, %v611
      %v624 = vpack.c.b16 %v614, %v613
      %v625 = vpack.c.b16 %v616, %v615
      %v626 = vpack.c.b16 %v618, %v617
      %635 = vmatprep.subr.bf16.mxu0 0
      %636 = vmatpush1.bf16.msra.mxu0 %v626
      %637 = vmatprep.subr.bf16.mxu0 0
      %638 = vmatpush1.bf16.msra.mxu0 %v625
      %639 = vmatprep.subr.bf16.mxu0 0
      %640 = vmatpush1.bf16.msra.mxu0 %v624
      %641 = vmatprep.subr.bf16.mxu0 0
      %642 = vmatpush1.bf16.msra.mxu0 %v623
      %643 = vmatprep.subr.bf16.mxu0 0
      %644 = vmatpush1.bf16.msra.mxu0 %v622
      %645 = vmatprep.subr.bf16.mxu0 0
      %646 = vmatpush1.bf16.msra.mxu0 %v621
      %647 = vmatprep.subr.bf16.mxu0 0
      %648 = vmatpush1.bf16.msra.mxu0 %v620
      %649 = vmatprep.subr.bf16.mxu0 0
      %650 = vmatpush1.bf16.msra.mxu0 %v619
      %651 = vmatprep.subr.bf16.mxu0 0
      %652 = vmatpush2.bf16.msra.mxu0 0
      %653 = vmatprep.subr.bf16.mxu0 0
      %654 = vmatpush2.bf16.msra.mxu0 0
      %655 = vmatprep.subr.bf16.mxu0 0
      %656 = vmatpush2.bf16.msra.mxu0 0
      %657 = vmatprep.subr.bf16.mxu0 0
      %658 = vmatpush2.bf16.msra.mxu0 0
      %659 = vmatprep.subr.bf16.mxu0 0
      %660 = vmatpush2.bf16.msra.mxu0 0
      %661 = vmatprep.subr.bf16.mxu0 0
      %662 = vmatpush2.bf16.msra.mxu0 0
      %663 = vmatprep.subr.bf16.mxu0 0
      %664 = vmatpush2.bf16.msra.mxu0 0
      %665 = vmatprep.subr.bf16.mxu0 0
      %666 = vmatpush2.bf16.msra.mxu0 0
      %667 = vmatprep.mubr.bf16.mxu0 0
      %668 = vmatmul.mubr.bf16.gmra.mxu0 %v489
      %v669 = vpop.f32.mrf.mxu0
      %v670 = vadd.f32 %v291, %v669
      %v671 = vpop.f32.mrf.mxu0
      %v672 = vpop.f32.mrf.mxu0
      %v673 = vadd.f32 %v291, %v672
      %v674 = vpop.f32.mrf.mxu0
      %675 = vmatprep.mubr.bf16.mxu0 0
      %676 = vmatmul.mubr.bf16.gmra.mxu0 %v490
      %v677 = vpop.f32.mrf.mxu0
      %v678 = vadd.f32 %v291, %v677
      %v679 = vpop.f32.mrf.mxu0
      %v680 = vpop.f32.mrf.mxu0
      %v681 = vadd.f32 %v291, %v680
      %v682 = vpop.f32.mrf.mxu0
      %683 = vmatprep.mubr.bf16.mxu0 0
      %684 = vmatmul.mubr.bf16.gmra.mxu0 %v491
      %v685 = vpop.f32.mrf.mxu0
      %v686 = vadd.f32 %v291, %v685
      %v687 = vpop.f32.mrf.mxu0
      %v688 = vpop.f32.mrf.mxu0
      %v689 = vadd.f32 %v291, %v688
      %v690 = vpop.f32.mrf.mxu0
      %691 = vmatprep.mubr.bf16.mxu0 0
      %692 = vmatmul.mubr.bf16.gmra.mxu0 %v492
      %v693 = vpop.f32.mrf.mxu0
      %v694 = vadd.f32 %v291, %v693
      %v695 = vpop.f32.mrf.mxu0
      %v696 = vpop.f32.mrf.mxu0
      %v697 = vadd.f32 %v291, %v696
      %v698 = vpop.f32.mrf.mxu0
      %699 = vmatprep.mubr.bf16.mxu0 0
      %700 = vmatmul.mubr.bf16.gmra.mxu0 %v493
      %v701 = vpop.f32.mrf.mxu0
      %v702 = vadd.f32 %v291, %v701
      %v703 = vpop.f32.mrf.mxu0
      %v704 = vpop.f32.mrf.mxu0
      %v705 = vadd.f32 %v291, %v704
      %v706 = vpop.f32.mrf.mxu0
      %707 = vmatprep.mubr.bf16.mxu0 0
      %708 = vmatmul.mubr.bf16.gmra.mxu0 %v494
      %v709 = vpop.f32.mrf.mxu0
      %v710 = vadd.f32 %v291, %v709
      %v711 = vpop.f32.mrf.mxu0
      %v712 = vpop.f32.mrf.mxu0
      %v713 = vadd.f32 %v291, %v712
      %v714 = vpop.f32.mrf.mxu0
      %715 = vmatprep.mubr.bf16.mxu0 0
      %716 = vmatmul.mubr.bf16.gmra.mxu0 %v495
      %v717 = vpop.f32.mrf.mxu0
      %v718 = vadd.f32 %v291, %v717
      %v719 = vpop.f32.mrf.mxu0
      %v720 = vpop.f32.mrf.mxu0
      %v721 = vadd.f32 %v291, %v720
      %v722 = vpop.f32.mrf.mxu0
      %723 = vmatprep.mubr.bf16.mxu0 0
      %724 = vmatmul.mubr.bf16.gmra.mxu0 %v496
      %v725 = vpop.f32.mrf.mxu0
      %v726 = vadd.f32 %v291, %v725
      %v727 = vpop.f32.mrf.mxu0
      %v728 = vpop.f32.mrf.mxu0
      %v729 = vadd.f32 %v291, %v728
      %v730 = vpop.f32.mrf.mxu0
      %731 = vmatprep.mubr.bf16.mxu0 0
      %732 = vmatmul.mubr.bf16.gmra.mxu0 %v497
      %v733 = vpop.f32.mrf.mxu0
      %v734 = vadd.f32 %v291, %v733
      %v735 = vpop.f32.mrf.mxu0
      %v736 = vpop.f32.mrf.mxu0
      %v737 = vadd.f32 %v291, %v736
      %v738 = vpop.f32.mrf.mxu0
      %739 = vmatprep.mubr.bf16.mxu0 0
      %740 = vmatmul.mubr.bf16.gmra.mxu0 %v498
      %v741 = vpop.f32.mrf.mxu0
      %v742 = vadd.f32 %v291, %v741
      %v743 = vpop.f32.mrf.mxu0
      %v744 = vpop.f32.mrf.mxu0
      %v745 = vadd.f32 %v291, %v744
      %v746 = vpop.f32.mrf.mxu0
      %747 = vmatprep.mubr.bf16.mxu0 0
      %748 = vmatmul.mubr.bf16.gmra.mxu0 %v499
      %v749 = vpop.f32.mrf.mxu0
      %v750 = vadd.f32 %v291, %v749
      %v751 = vpop.f32.mrf.mxu0
      %v752 = vpop.f32.mrf.mxu0
      %v753 = vadd.f32 %v291, %v752
      %v754 = vpop.f32.mrf.mxu0
      %755 = vmatprep.mubr.bf16.mxu0 0
      %756 = vmatmul.mubr.bf16.gmra.mxu0 %v500
      %v757 = vpop.f32.mrf.mxu0
      %v758 = vadd.f32 %v291, %v757
      %v759 = vpop.f32.mrf.mxu0
      %v760 = vpop.f32.mrf.mxu0
      %v761 = vadd.f32 %v291, %v760
      %v762 = vpop.f32.mrf.mxu0
      %763 = vmatprep.mubr.bf16.mxu0 0
      %764 = vmatmul.mubr.bf16.gmra.mxu0 %v501
      %v765 = vpop.f32.mrf.mxu0
      %v766 = vadd.f32 %v291, %v765
      %v767 = vpop.f32.mrf.mxu0
      %v768 = vpop.f32.mrf.mxu0
      %v769 = vadd.f32 %v291, %v768
      %v770 = vpop.f32.mrf.mxu0
      %771 = vmatprep.mubr.bf16.mxu0 0
      %772 = vmatmul.mubr.bf16.gmra.mxu0 %v502
      %v773 = vpop.f32.mrf.mxu0
      %v774 = vadd.f32 %v291, %v773
      %v775 = vpop.f32.mrf.mxu0
      %v776 = vpop.f32.mrf.mxu0
      %v777 = vadd.f32 %v291, %v776
      %v778 = vpop.f32.mrf.mxu0
      %779 = vmatprep.mubr.bf16.mxu0 0
      %780 = vmatmul.mubr.bf16.gmra.mxu0 %v503
      %v781 = vpop.f32.mrf.mxu0
      %v782 = vadd.f32 %v291, %v781
      %v783 = vpop.f32.mrf.mxu0
      %v784 = vpop.f32.mrf.mxu0
      %v785 = vadd.f32 %v291, %v784
      %v786 = vpop.f32.mrf.mxu0
      %787 = vmatprep.mubr.bf16.mxu0 0
      %788 = vmatmul.mubr.bf16.gmra.mxu0 %v504
      %v789 = vpop.f32.mrf.mxu0
      %v790 = vadd.f32 %v291, %v789
      %v791 = vpop.f32.mrf.mxu0
      %v792 = vpop.f32.mrf.mxu0
      %v793 = vadd.f32 %v291, %v792
      %v794 = vpop.f32.mrf.mxu0
      %795 = vmatprep.mubr.bf16.mxu0 0
      %796 = vmatmul.mubr.bf16.gmra.mxu0 %v505
      %v797 = vpop.f32.mrf.mxu0
      %v798 = vadd.f32 %v291, %v797
      %v799 = vpop.f32.mrf.mxu0
      %v800 = vpop.f32.mrf.mxu0
      %v801 = vadd.f32 %v291, %v800
      %v802 = vpop.f32.mrf.mxu0
      %803 = vmatprep.mubr.bf16.mxu0 0
      %804 = vmatmul.mubr.bf16.gmra.mxu0 %v506
      %v805 = vpop.f32.mrf.mxu0
      %v806 = vadd.f32 %v291, %v805
      %v807 = vpop.f32.mrf.mxu0
      %v808 = vpop.f32.mrf.mxu0
      %v809 = vadd.f32 %v291, %v808
      %v810 = vpop.f32.mrf.mxu0
      %811 = vmatprep.mubr.bf16.mxu0 0
      %812 = vmatmul.mubr.bf16.gmra.mxu0 %v507
      %v813 = vpop.f32.mrf.mxu0
      %v814 = vadd.f32 %v291, %v813
      %v815 = vpop.f32.mrf.mxu0
      %v816 = vpop.f32.mrf.mxu0
      %v817 = vadd.f32 %v291, %v816
      %v818 = vpop.f32.mrf.mxu0
      %819 = vmatprep.mubr.bf16.mxu0 0
      %820 = vmatmul.mubr.bf16.gmra.mxu0 %v508
      %v821 = vpop.f32.mrf.mxu0
      %v822 = vadd.f32 %v291, %v821
      %v823 = vpop.f32.mrf.mxu0
      %v824 = vpop.f32.mrf.mxu0
      %v825 = vadd.f32 %v291, %v824
      %v826 = vpop.f32.mrf.mxu0
      %827 = vmatprep.mubr.bf16.mxu0 0
      %828 = vmatmul.mubr.bf16.gmra.mxu0 %v509
      %v829 = vpop.f32.mrf.mxu0
      %v830 = vadd.f32 %v291, %v829
      %v831 = vpop.f32.mrf.mxu0
      %v832 = vpop.f32.mrf.mxu0
      %v833 = vadd.f32 %v291, %v832
      %v834 = vpop.f32.mrf.mxu0
      %835 = vmatprep.mubr.bf16.mxu0 0
      %836 = vmatmul.mubr.bf16.gmra.mxu0 %v510
      %v837 = vpop.f32.mrf.mxu0
      %v838 = vadd.f32 %v291, %v837
      %v839 = vpop.f32.mrf.mxu0
      %v840 = vpop.f32.mrf.mxu0
      %v841 = vadd.f32 %v291, %v840
      %v842 = vpop.f32.mrf.mxu0
      %843 = vmatprep.mubr.bf16.mxu0 0
      %844 = vmatmul.mubr.bf16.gmra.mxu0 %v511
      %v845 = vpop.f32.mrf.mxu0
      %v846 = vadd.f32 %v291, %v845
      %v847 = vpop.f32.mrf.mxu0
      %v848 = vpop.f32.mrf.mxu0
      %v849 = vadd.f32 %v291, %v848
      %v850 = vpop.f32.mrf.mxu0
      %851 = vmatprep.mubr.bf16.mxu0 0
      %852 = vmatmul.mubr.bf16.gmra.mxu0 %v512
      %v853 = vpop.f32.mrf.mxu0
      %v854 = vadd.f32 %v291, %v853
      %v855 = vpop.f32.mrf.mxu0
      %v856 = vpop.f32.mrf.mxu0
      %v857 = vadd.f32 %v291, %v856
      %v858 = vpop.f32.mrf.mxu0
      %859 = vmatprep.mubr.bf16.mxu0 0
      %860 = vmatmul.mubr.bf16.gmra.mxu0 %v513
      %v861 = vpop.f32.mrf.mxu0
      %v862 = vadd.f32 %v291, %v861
      %v863 = vpop.f32.mrf.mxu0
      %v864 = vpop.f32.mrf.mxu0
      %v865 = vadd.f32 %v291, %v864
      %v866 = vpop.f32.mrf.mxu0
      %867 = vmatprep.mubr.bf16.mxu0 0
      %868 = vmatmul.mubr.bf16.gmra.mxu0 %v514
      %v869 = vpop.f32.mrf.mxu0
      %v870 = vadd.f32 %v291, %v869
      %v871 = vpop.f32.mrf.mxu0
      %v872 = vpop.f32.mrf.mxu0
      %v873 = vadd.f32 %v291, %v872
      %v874 = vpop.f32.mrf.mxu0
      %875 = vmatprep.mubr.bf16.mxu0 0
      %876 = vmatmul.mubr.bf16.gmra.mxu0 %v515
      %v877 = vpop.f32.mrf.mxu0
      %v878 = vadd.f32 %v291, %v877
      %v879 = vpop.f32.mrf.mxu0
      %v880 = vpop.f32.mrf.mxu0
      %v881 = vadd.f32 %v291, %v880
      %v882 = vpop.f32.mrf.mxu0
      %883 = vmatprep.mubr.bf16.mxu0 0
      %884 = vmatmul.mubr.bf16.gmra.mxu0 %v516
      %v885 = vpop.f32.mrf.mxu0
      %v886 = vadd.f32 %v291, %v885
      %v887 = vpop.f32.mrf.mxu0
      %v888 = vpop.f32.mrf.mxu0
      %v889 = vadd.f32 %v291, %v888
      %v890 = vpop.f32.mrf.mxu0
      %891 = vmatprep.mubr.bf16.mxu0 0
      %892 = vmatmul.mubr.bf16.gmra.mxu0 %v517
      %v893 = vpop.f32.mrf.mxu0
      %v894 = vadd.f32 %v291, %v893
      %v895 = vpop.f32.mrf.mxu0
      %v896 = vpop.f32.mrf.mxu0
      %v897 = vadd.f32 %v291, %v896
      %v898 = vpop.f32.mrf.mxu0
      %899 = vmatprep.mubr.bf16.mxu0 0
      %900 = vmatmul.mubr.bf16.gmra.mxu0 %v518
      %v901 = vpop.f32.mrf.mxu0
      %v902 = vadd.f32 %v291, %v901
      %v903 = vpop.f32.mrf.mxu0
      %v904 = vpop.f32.mrf.mxu0
      %v905 = vadd.f32 %v291, %v904
      %v906 = vpop.f32.mrf.mxu0
      %907 = vmatprep.mubr.bf16.mxu0 0
      %908 = vmatmul.mubr.bf16.gmra.mxu0 %v519
      %v909 = vpop.f32.mrf.mxu0
      %v910 = vadd.f32 %v291, %v909
      %v911 = vpop.f32.mrf.mxu0
      %v912 = vpop.f32.mrf.mxu0
      %v913 = vadd.f32 %v291, %v912
      %v914 = vpop.f32.mrf.mxu0
      %915 = vmatprep.mubr.bf16.mxu0 0
      %916 = vmatmul.mubr.bf16.gmra.mxu0 %v520
      %v917 = vpop.f32.mrf.mxu0
      %v918 = vadd.f32 %v291, %v917
      %v919 = vpop.f32.mrf.mxu0
      %v920 = vpop.f32.mrf.mxu0
      %v921 = vadd.f32 %v291, %v920
      %v922 = vpop.f32.mrf.mxu0
      %923 = vmatprep.mubr.bf16.mxu0 0
      %924 = vmatmul.mubr.bf16.gmra.mxu0 %v521
      %v925 = vpop.f32.mrf.mxu0
      %v926 = vadd.f32 %v291, %v925
      %v927 = vpop.f32.mrf.mxu0
      %v928 = vpop.f32.mrf.mxu0
      %v929 = vadd.f32 %v291, %v928
      %v930 = vpop.f32.mrf.mxu0
      %931 = vmatprep.mubr.bf16.mxu0 0
      %932 = vmatmul.mubr.bf16.gmra.mxu0 %v522
      %v933 = vpop.f32.mrf.mxu0
      %v934 = vadd.f32 %v291, %v933
      %v935 = vpop.f32.mrf.mxu0
      %v936 = vpop.f32.mrf.mxu0
      %v937 = vadd.f32 %v291, %v936
      %v938 = vpop.f32.mrf.mxu0
      %939 = vmatprep.mubr.bf16.mxu0 0
      %940 = vmatmul.mubr.bf16.gmra.mxu0 %v523
      %v941 = vpop.f32.mrf.mxu0
      %v942 = vadd.f32 %v291, %v941
      %v943 = vpop.f32.mrf.mxu0
      %v944 = vpop.f32.mrf.mxu0
      %v945 = vadd.f32 %v291, %v944
      %v946 = vpop.f32.mrf.mxu0
      %947 = vmatprep.mubr.bf16.mxu0 0
      %948 = vmatmul.mubr.bf16.gmra.mxu0 %v524
      %v949 = vpop.f32.mrf.mxu0
      %v950 = vadd.f32 %v291, %v949
      %v951 = vpop.f32.mrf.mxu0
      %v952 = vpop.f32.mrf.mxu0
      %v953 = vadd.f32 %v291, %v952
      %v954 = vpop.f32.mrf.mxu0
      %955 = vmatprep.mubr.bf16.mxu0 0
      %956 = vmatmul.mubr.bf16.gmra.mxu0 %v525
      %v957 = vpop.f32.mrf.mxu0
      %v958 = vadd.f32 %v291, %v957
      %v959 = vpop.f32.mrf.mxu0
      %v960 = vpop.f32.mrf.mxu0
      %v961 = vadd.f32 %v291, %v960
      %v962 = vpop.f32.mrf.mxu0
      %963 = vmatprep.mubr.bf16.mxu0 0
      %964 = vmatmul.mubr.bf16.gmra.mxu0 %v526
      %v965 = vpop.f32.mrf.mxu0
      %v966 = vadd.f32 %v291, %v965
      %v967 = vpop.f32.mrf.mxu0
      %v968 = vpop.f32.mrf.mxu0
      %v969 = vadd.f32 %v291, %v968
      %v970 = vpop.f32.mrf.mxu0
      %971 = vmatprep.mubr.bf16.mxu0 0
      %972 = vmatmul.mubr.bf16.gmra.mxu0 %v527
      %v973 = vpop.f32.mrf.mxu0
      %v974 = vadd.f32 %v291, %v973
      %v975 = vpop.f32.mrf.mxu0
      %v976 = vpop.f32.mrf.mxu0
      %v977 = vadd.f32 %v291, %v976
      %v978 = vpop.f32.mrf.mxu0
      %979 = vmatprep.mubr.bf16.mxu0 0
      %980 = vmatmul.mubr.bf16.gmra.mxu0 %v528
      %v981 = vpop.f32.mrf.mxu0
      %v982 = vadd.f32 %v291, %v981
      %v983 = vpop.f32.mrf.mxu0
      %v984 = vpop.f32.mrf.mxu0
      %v985 = vadd.f32 %v291, %v984
      %v986 = vpop.f32.mrf.mxu0
      %987 = vmatprep.mubr.bf16.mxu0 0
      %988 = vmatmul.mubr.bf16.gmra.mxu0 %v529
      %v989 = vpop.f32.mrf.mxu0
      %v990 = vadd.f32 %v291, %v989
      %v991 = vpop.f32.mrf.mxu0
      %v992 = vpop.f32.mrf.mxu0
      %v993 = vadd.f32 %v291, %v992
      %v994 = vpop.f32.mrf.mxu0
      %995 = vmatprep.mubr.bf16.mxu0 0
      %996 = vmatmul.mubr.bf16.gmra.mxu0 %v530
      %v997 = vpop.f32.mrf.mxu0
      %v998 = vadd.f32 %v291, %v997
      %v999 = vpop.f32.mrf.mxu0
      %v1000 = vpop.f32.mrf.mxu0
      %v1001 = vadd.f32 %v291, %v1000
      %v1002 = vpop.f32.mrf.mxu0
      %1003 = vmatprep.mubr.bf16.mxu0 0
      %1004 = vmatmul.mubr.bf16.gmra.mxu0 %v531
      %v1005 = vpop.f32.mrf.mxu0
      %v1006 = vadd.f32 %v291, %v1005
      %v1007 = vpop.f32.mrf.mxu0
      %v1008 = vpop.f32.mrf.mxu0
      %v1009 = vadd.f32 %v291, %v1008
      %v1010 = vpop.f32.mrf.mxu0
      %1011 = vmatprep.mubr.bf16.mxu0 0
      %1012 = vmatmul.mubr.bf16.gmra.mxu0 %v532
      %v1013 = vpop.f32.mrf.mxu0
      %v1014 = vadd.f32 %v291, %v1013
      %v1015 = vpop.f32.mrf.mxu0
      %v1016 = vpop.f32.mrf.mxu0
      %v1017 = vadd.f32 %v291, %v1016
      %v1018 = vpop.f32.mrf.mxu0
      %1019 = vmatprep.mubr.bf16.mxu0 0
      %1020 = vmatmul.mubr.bf16.gmra.mxu0 %v533
      %v1021 = vpop.f32.mrf.mxu0
      %v1022 = vadd.f32 %v291, %v1021
      %v1023 = vpop.f32.mrf.mxu0
      %v1024 = vpop.f32.mrf.mxu0
      %v1025 = vadd.f32 %v291, %v1024
      %v1026 = vpop.f32.mrf.mxu0
      %1027 = vmatprep.mubr.bf16.mxu0 0
      %1028 = vmatmul.mubr.bf16.gmra.mxu0 %v534
      %v1029 = vpop.f32.mrf.mxu0
      %v1030 = vadd.f32 %v291, %v1029
      %v1031 = vpop.f32.mrf.mxu0
      %v1032 = vpop.f32.mrf.mxu0
      %v1033 = vadd.f32 %v291, %v1032
      %v1034 = vpop.f32.mrf.mxu0
      %1035 = vmatprep.mubr.bf16.mxu0 0
      %1036 = vmatmul.mubr.bf16.gmra.mxu0 %v535
      %v1037 = vpop.f32.mrf.mxu0
      %v1038 = vadd.f32 %v291, %v1037
      %v1039 = vpop.f32.mrf.mxu0
      %v1040 = vpop.f32.mrf.mxu0
      %v1041 = vadd.f32 %v291, %v1040
      %v1042 = vpop.f32.mrf.mxu0
      %1043 = vmatprep.mubr.bf16.mxu0 0
      %1044 = vmatmul.mubr.bf16.gmra.mxu0 %v536
      %v1045 = vpop.f32.mrf.mxu0
      %v1046 = vadd.f32 %v291, %v1045
      %v1047 = vpop.f32.mrf.mxu0
      %v1048 = vpop.f32.mrf.mxu0
      %v1049 = vpop.f32.mrf.mxu0
      %1050 = vmatprep.mubr.bf16.mxu0 0
      %1051 = vmatmul.mubr.bf16.gmra.mxu0 %v537
      %v1052 = vpop.f32.mrf.mxu0
      %v1053 = vpop.f32.mrf.mxu0
      %v1054 = vpop.f32.mrf.mxu0
      %v1055 = vpop.f32.mrf.mxu0
      %1056 = vdwg.mxu0
      %v1057 = vmax.f32 %v670, 0.0
      %v1058 = vmax.f32 %v673, 0.0
      %v1059 = vmax.f32 %v678, 0.0
      %v1060 = vmax.f32 %v681, 0.0
      %v1061 = vmax.f32 %v686, 0.0
      %v1062 = vmax.f32 %v689, 0.0
      %v1063 = vmax.f32 %v694, 0.0
      %v1064 = vmax.f32 %v697, 0.0
      %v1065 = vmax.f32 %v702, 0.0
      %v1066 = vmax.f32 %v705, 0.0
      %v1067 = vmax.f32 %v710, 0.0
      %v1068 = vmax.f32 %v713, 0.0
      %v1069 = vmax.f32 %v718, 0.0
      %v1070 = vmax.f32 %v721, 0.0
      %v1071 = vmax.f32 %v726, 0.0
      %v1072 = vmax.f32 %v729, 0.0
      %v1073 = vmax.f32 %v734, 0.0
      %v1074 = vmax.f32 %v737, 0.0
      %v1075 = vmax.f32 %v742, 0.0
      %v1076 = vmax.f32 %v745, 0.0
      %v1077 = vmax.f32 %v750, 0.0
      %v1078 = vmax.f32 %v753, 0.0
      %v1079 = vmax.f32 %v758, 0.0
      %v1080 = vmax.f32 %v761, 0.0
      %v1081 = vmax.f32 %v766, 0.0
      %v1082 = vmax.f32 %v769, 0.0
      %v1083 = vmax.f32 %v774, 0.0
      %v1084 = vmax.f32 %v777, 0.0
      %v1085 = vmax.f32 %v782, 0.0
      %v1086 = vmax.f32 %v785, 0.0
      %v1087 = vmax.f32 %v790, 0.0
      %v1088 = vmax.f32 %v793, 0.0
      %v1089 = vmax.f32 %v798, 0.0
      %v1090 = vmax.f32 %v801, 0.0
      %v1091 = vmax.f32 %v806, 0.0
      %v1092 = vmax.f32 %v809, 0.0
      %v1093 = vmax.f32 %v814, 0.0
      %v1094 = vmax.f32 %v817, 0.0
      %v1095 = vmax.f32 %v822, 0.0
      %v1096 = vmax.f32 %v825, 0.0
      %v1097 = vmax.f32 %v830, 0.0
      %v1098 = vmax.f32 %v833, 0.0
      %v1099 = vmax.f32 %v838, 0.0
      %v1100 = vmax.f32 %v841, 0.0
      %v1101 = vmax.f32 %v846, 0.0
      %v1102 = vmax.f32 %v849, 0.0
      %v1103 = vmax.f32 %v854, 0.0
      %v1104 = vmax.f32 %v857, 0.0
      %v1105 = vmax.f32 %v862, 0.0
      %v1106 = vmax.f32 %v865, 0.0
      %v1107 = vmax.f32 %v870, 0.0
      %v1108 = vmax.f32 %v873, 0.0
      %v1109 = vmax.f32 %v878, 0.0
      %v1110 = vmax.f32 %v881, 0.0
      %v1111 = vmax.f32 %v886, 0.0
      %v1112 = vmax.f32 %v889, 0.0
      %v1113 = vmax.f32 %v894, 0.0
      %v1114 = vmax.f32 %v897, 0.0
      %v1115 = vmax.f32 %v902, 0.0
      %v1116 = vmax.f32 %v905, 0.0
      %v1117 = vmax.f32 %v910, 0.0
      %v1118 = vmax.f32 %v913, 0.0
      %v1119 = vmax.f32 %v918, 0.0
      %v1120 = vmax.f32 %v921, 0.0
      %v1121 = vmax.f32 %v926, 0.0
      %v1122 = vmax.f32 %v929, 0.0
      %v1123 = vmax.f32 %v934, 0.0
      %v1124 = vmax.f32 %v937, 0.0
      %v1125 = vmax.f32 %v942, 0.0
      %v1126 = vmax.f32 %v945, 0.0
      %v1127 = vmax.f32 %v950, 0.0
      %v1128 = vmax.f32 %v953, 0.0
      %v1129 = vmax.f32 %v958, 0.0
      %v1130 = vmax.f32 %v961, 0.0
      %v1131 = vmax.f32 %v966, 0.0
      %v1132 = vmax.f32 %v969, 0.0
      %v1133 = vmax.f32 %v974, 0.0
      %v1134 = vmax.f32 %v977, 0.0
      %v1135 = vmax.f32 %v982, 0.0
      %v1136 = vmax.f32 %v985, 0.0
      %v1137 = vmax.f32 %v990, 0.0
      %v1138 = vmax.f32 %v993, 0.0
      %v1139 = vmax.f32 %v998, 0.0
      %v1140 = vmax.f32 %v1001, 0.0
      %v1141 = vmax.f32 %v1006, 0.0
      %v1142 = vmax.f32 %v1009, 0.0
      %v1143 = vmax.f32 %v1014, 0.0
      %v1144 = vmax.f32 %v1017, 0.0
      %v1145 = vmax.f32 %v1022, 0.0
      %v1146 = vmax.f32 %v1025, 0.0
      %v1147 = vmax.f32 %v1030, 0.0
      %v1148 = vmax.f32 %v1033, 0.0
      %v1149 = vmax.f32 %v1038, 0.0
      %v1150 = vmax.f32 %v1041, 0.0
      %v1151 = vmax.f32 %v1046, 0.0
      %v1247 = vcombine.high %v1057, %v1057
      %v1248 = vcombine.high %v1058, %v1058
      %v1249 = vcombine.high %v1059, %v1059
      %v1250 = vcombine.high %v1060, %v1060
      %v1251 = vcombine.high %v1061, %v1061
      %v1252 = vcombine.high %v1062, %v1062
      %v1253 = vcombine.high %v1063, %v1063
      %v1254 = vcombine.high %v1064, %v1064
      %v1255 = vcombine.high %v1065, %v1065
      %v1256 = vcombine.high %v1066, %v1066
      %v1257 = vcombine.high %v1067, %v1067
      %v1258 = vcombine.high %v1068, %v1068
      %v1259 = vcombine.high %v1069, %v1069
      %v1260 = vcombine.high %v1070, %v1070
      %v1261 = vcombine.high %v1071, %v1071
      %v1262 = vcombine.high %v1072, %v1072
      %v1263 = vcombine.high %v1073, %v1073
      %v1264 = vcombine.high %v1074, %v1074
      %v1265 = vcombine.high %v1075, %v1075
      %v1266 = vcombine.high %v1076, %v1076
      %v1267 = vcombine.high %v1077, %v1077
      %v1268 = vcombine.high %v1078, %v1078
      %v1269 = vcombine.high %v1079, %v1079
      %v1270 = vcombine.high %v1080, %v1080
      %v1271 = vcombine.high %v1081, %v1081
      %v1272 = vcombine.high %v1082, %v1082
      %v1273 = vcombine.high %v1083, %v1083
      %v1274 = vcombine.high %v1084, %v1084
      %v1275 = vcombine.high %v1085, %v1085
      %v1276 = vcombine.high %v1086, %v1086
      %v1277 = vcombine.high %v1087, %v1087
      %v1278 = vcombine.high %v1088, %v1088
      %v1279 = vcombine.high %v1089, %v1089
      %v1280 = vcombine.high %v1090, %v1090
      %v1281 = vcombine.high %v1091, %v1091
      %v1282 = vcombine.high %v1092, %v1092
      %v1283 = vcombine.high %v1093, %v1093
      %v1284 = vcombine.high %v1094, %v1094
      %v1285 = vcombine.high %v1095, %v1095
      %v1286 = vcombine.high %v1096, %v1096
      %v1287 = vcombine.high %v1097, %v1097
      %v1288 = vcombine.high %v1098, %v1098
      %v1289 = vcombine.high %v1099, %v1099
      %v1290 = vcombine.high %v1100, %v1100
      %v1291 = vcombine.high %v1101, %v1101
      %v1292 = vcombine.high %v1102, %v1102
      %v1293 = vcombine.high %v1103, %v1103
      %v1294 = vcombine.high %v1104, %v1104
      %v1295 = vcombine.high %v1105, %v1105
      %v1296 = vcombine.high %v1106, %v1106
      %v1297 = vcombine.high %v1107, %v1107
      %v1298 = vcombine.high %v1108, %v1108
      %v1299 = vcombine.high %v1109, %v1109
      %v1300 = vcombine.high %v1110, %v1110
      %v1301 = vcombine.high %v1111, %v1111
      %v1302 = vcombine.high %v1112, %v1112
      %v1303 = vcombine.high %v1113, %v1113
      %v1304 = vcombine.high %v1114, %v1114
      %v1305 = vcombine.high %v1115, %v1115
      %v1306 = vcombine.high %v1116, %v1116
      %v1307 = vcombine.high %v1117, %v1117
      %v1308 = vcombine.high %v1118, %v1118
      %v1309 = vcombine.high %v1119, %v1119
      %v1310 = vcombine.high %v1120, %v1120
      %v1311 = vcombine.high %v1121, %v1121
      %v1312 = vcombine.high %v1122, %v1122
      %v1313 = vcombine.high %v1123, %v1123
      %v1314 = vcombine.high %v1124, %v1124
      %v1315 = vcombine.high %v1125, %v1125
      %v1316 = vcombine.high %v1126, %v1126
      %v1317 = vcombine.high %v1127, %v1127
      %v1318 = vcombine.high %v1128, %v1128
      %v1319 = vcombine.high %v1129, %v1129
      %v1320 = vcombine.high %v1130, %v1130
      %v1321 = vcombine.high %v1131, %v1131
      %v1322 = vcombine.high %v1132, %v1132
      %v1323 = vcombine.high %v1133, %v1133
      %v1324 = vcombine.high %v1134, %v1134
      %v1325 = vcombine.high %v1135, %v1135
      %v1326 = vcombine.high %v1136, %v1136
      %v1327 = vcombine.high %v1137, %v1137
      %v1328 = vcombine.high %v1138, %v1138
      %v1329 = vcombine.high %v1139, %v1139
      %v1330 = vcombine.high %v1140, %v1140
      %v1331 = vcombine.high %v1141, %v1141
      %v1332 = vcombine.high %v1142, %v1142
      %v1333 = vcombine.high %v1143, %v1143
      %v1334 = vcombine.high %v1144, %v1144
      %v1335 = vcombine.high %v1145, %v1145
      %v1336 = vcombine.high %v1146, %v1146
      %v1337 = vcombine.high %v1147, %v1147
      %v1338 = vcombine.high %v1148, %v1148
      %v1339 = vcombine.high %v1149, %v1149
      %v1340 = vcombine.high %v1150, %v1150
      %v1342 = vunpack.c.l.s4 1983009808
      %v1343 = vunpack.c.0.s8 %v1342
      %v1344 = vlaneseq
      %v1345 = vshrl.u32 %v1344, 7
      %v1346 = vsub.s32 %v1343, %v1345
      %v1347 = vrot.slane %v1057, %v1346
      %v1348 = vcombine.high %v1347, %v1347
      %v1350 = vunpack.c.l.s4 1983009808
      %v1351 = vunpack.c.0.s8 %v1350
      %v1352 = vlaneseq
      %v1353 = vshrl.u32 %v1352, 7
      %v1354 = vsub.s32 %v1351, %v1353
      %v1355 = vrot.slane %v1247, %v1354
      %v1356 = vcombine.high %v1355, %v1355
      %v1358 = vunpack.c.l.s4 1983009808
      %v1359 = vunpack.c.0.s8 %v1358
      %v1360 = vlaneseq
      %v1361 = vshrl.u32 %v1360, 7
      %v1362 = vsub.s32 %v1359, %v1361
      %v1363 = vrot.slane %v1058, %v1362
      %v1364 = vcombine.high %v1363, %v1363
      %v1366 = vunpack.c.l.s4 1983009808
      %v1367 = vunpack.c.0.s8 %v1366
      %v1368 = vlaneseq
      %v1369 = vshrl.u32 %v1368, 7
      %v1370 = vsub.s32 %v1367, %v1369
      %v1371 = vrot.slane %v1248, %v1370
      %v1372 = vcombine.high %v1371, %v1371
      %v1374 = vunpack.c.l.s4 1983009808
      %v1375 = vunpack.c.0.s8 %v1374
      %v1376 = vlaneseq
      %v1377 = vshrl.u32 %v1376, 7
      %v1378 = vsub.s32 %v1375, %v1377
      %v1379 = vrot.slane %v1059, %v1378
      %v1380 = vcombine.high %v1379, %v1379
      %v1382 = vunpack.c.l.s4 1983009808
      %v1383 = vunpack.c.0.s8 %v1382
      %v1384 = vlaneseq
      %v1385 = vshrl.u32 %v1384, 7
      %v1386 = vsub.s32 %v1383, %v1385
      %v1387 = vrot.slane %v1249, %v1386
      %v1388 = vcombine.high %v1387, %v1387
      %v1390 = vunpack.c.l.s4 1983009808
      %v1391 = vunpack.c.0.s8 %v1390
      %v1392 = vlaneseq
      %v1393 = vshrl.u32 %v1392, 7
      %v1394 = vsub.s32 %v1391, %v1393
      %v1395 = vrot.slane %v1060, %v1394
      %v1397 = vunpack.c.l.s4 1983009808
      %v1398 = vunpack.c.0.s8 %v1397
      %v1399 = vlaneseq
      %v1400 = vshrl.u32 %v1399, 7
      %v1401 = vsub.s32 %v1398, %v1400
      %v1402 = vrot.slane %v1250, %v1401
      %v1403 = vcombine.high %v1402, %v1402
      %v1405 = vunpack.c.l.s4 1983009808
      %v1406 = vunpack.c.0.s8 %v1405
      %v1407 = vlaneseq
      %v1408 = vshrl.u32 %v1407, 7
      %v1409 = vsub.s32 %v1406, %v1408
      %v1410 = vrot.slane %v1061, %v1409
      %v1411 = vcombine.high %v1410, %v1410
      %v1413 = vunpack.c.l.s4 1983009808
      %v1414 = vunpack.c.0.s8 %v1413
      %v1415 = vlaneseq
      %v1416 = vshrl.u32 %v1415, 7
      %v1417 = vsub.s32 %v1414, %v1416
      %v1418 = vrot.slane %v1251, %v1417
      %v1419 = vcombine.high %v1418, %v1418
      %v1421 = vunpack.c.l.s4 1983009808
      %v1422 = vunpack.c.0.s8 %v1421
      %v1423 = vlaneseq
      %v1424 = vshrl.u32 %v1423, 7
      %v1425 = vsub.s32 %v1422, %v1424
      %v1426 = vrot.slane %v1062, %v1425
      %v1427 = vcombine.high %v1426, %v1426
      %v1429 = vunpack.c.l.s4 1983009808
      %v1430 = vunpack.c.0.s8 %v1429
      %v1431 = vlaneseq
      %v1432 = vshrl.u32 %v1431, 7
      %v1433 = vsub.s32 %v1430, %v1432
      %v1434 = vrot.slane %v1252, %v1433
      %v1435 = vcombine.high %v1434, %v1434
      %v1437 = vunpack.c.l.s4 1983009808
      %v1438 = vunpack.c.0.s8 %v1437
      %v1439 = vlaneseq
      %v1440 = vshrl.u32 %v1439, 7
      %v1441 = vsub.s32 %v1438, %v1440
      %v1442 = vrot.slane %v1063, %v1441
      %v1443 = vcombine.high %v1442, %v1442
      %v1445 = vunpack.c.l.s4 1983009808
      %v1446 = vunpack.c.0.s8 %v1445
      %v1447 = vlaneseq
      %v1448 = vshrl.u32 %v1447, 7
      %v1449 = vsub.s32 %v1446, %v1448
      %v1450 = vrot.slane %v1253, %v1449
      %v1452 = vunpack.c.l.s4 1983009808
      %v1453 = vunpack.c.0.s8 %v1452
      %v1454 = vlaneseq
      %v1455 = vshrl.u32 %v1454, 7
      %v1456 = vsub.s32 %v1453, %v1455
      %v1457 = vrot.slane %v1064, %v1456
      %v1458 = vcombine.high %v1457, %v1457
      %v1460 = vunpack.c.l.s4 1983009808
      %v1461 = vunpack.c.0.s8 %v1460
      %v1462 = vlaneseq
      %v1463 = vshrl.u32 %v1462, 7
      %v1464 = vsub.s32 %v1461, %v1463
      %v1465 = vrot.slane %v1254, %v1464
      %v1466 = vcombine.high %v1465, %v1465
      %v1468 = vunpack.c.l.s4 1983009808
      %v1469 = vunpack.c.0.s8 %v1468
      %v1470 = vlaneseq
      %v1471 = vshrl.u32 %v1470, 7
      %v1472 = vsub.s32 %v1469, %v1471
      %v1473 = vrot.slane %v1065, %v1472
      %v1474 = vcombine.high %v1473, %v1473
      %v1476 = vunpack.c.l.s4 1983009808
      %v1477 = vunpack.c.0.s8 %v1476
      %v1478 = vlaneseq
      %v1479 = vshrl.u32 %v1478, 7
      %v1480 = vsub.s32 %v1477, %v1479
      %v1481 = vrot.slane %v1255, %v1480
      %v1482 = vcombine.high %v1481, %v1481
      %v1484 = vunpack.c.l.s4 1983009808
      %v1485 = vunpack.c.0.s8 %v1484
      %v1486 = vlaneseq
      %v1487 = vshrl.u32 %v1486, 7
      %v1488 = vsub.s32 %v1485, %v1487
      %v1489 = vrot.slane %v1066, %v1488
      %v1490 = vcombine.high %v1489, %v1489
      %v1492 = vunpack.c.l.s4 1983009808
      %v1493 = vunpack.c.0.s8 %v1492
      %v1494 = vlaneseq
      %v1495 = vshrl.u32 %v1494, 7
      %v1496 = vsub.s32 %v1493, %v1495
      %v1497 = vrot.slane %v1256, %v1496
      %v1498 = vcombine.high %v1497, %v1497
      %v1500 = vunpack.c.l.s4 1983009808
      %v1501 = vunpack.c.0.s8 %v1500
      %v1502 = vlaneseq
      %v1503 = vshrl.u32 %v1502, 7
      %v1504 = vsub.s32 %v1501, %v1503
      %v1505 = vrot.slane %v1067, %v1504
      %v1507 = vunpack.c.l.s4 1983009808
      %v1508 = vunpack.c.0.s8 %v1507
      %v1509 = vlaneseq
      %v1510 = vshrl.u32 %v1509, 7
      %v1511 = vsub.s32 %v1508, %v1510
      %v1512 = vrot.slane %v1257, %v1511
      %v1513 = vcombine.high %v1512, %v1512
      %v1515 = vunpack.c.l.s4 1983009808
      %v1516 = vunpack.c.0.s8 %v1515
      %v1517 = vlaneseq
      %v1518 = vshrl.u32 %v1517, 7
      %v1519 = vsub.s32 %v1516, %v1518
      %v1520 = vrot.slane %v1068, %v1519
      %v1521 = vcombine.high %v1520, %v1520
      %v1523 = vunpack.c.l.s4 1983009808
      %v1524 = vunpack.c.0.s8 %v1523
      %v1525 = vlaneseq
      %v1526 = vshrl.u32 %v1525, 7
      %v1527 = vsub.s32 %v1524, %v1526
      %v1528 = vrot.slane %v1258, %v1527
      %v1529 = vcombine.high %v1528, %v1528
      %v1531 = vunpack.c.l.s4 1983009808
      %v1532 = vunpack.c.0.s8 %v1531
      %v1533 = vlaneseq
      %v1534 = vshrl.u32 %v1533, 7
      %v1535 = vsub.s32 %v1532, %v1534
      %v1536 = vrot.slane %v1069, %v1535
      %v1537 = vcombine.high %v1536, %v1536
      %v1539 = vunpack.c.l.s4 1983009808
      %v1540 = vunpack.c.0.s8 %v1539
      %v1541 = vlaneseq
      %v1542 = vshrl.u32 %v1541, 7
      %v1543 = vsub.s32 %v1540, %v1542
      %v1544 = vrot.slane %v1259, %v1543
      %v1545 = vcombine.high %v1544, %v1544
      %v1547 = vunpack.c.l.s4 1983009808
      %v1548 = vunpack.c.0.s8 %v1547
      %v1549 = vlaneseq
      %v1550 = vshrl.u32 %v1549, 7
      %v1551 = vsub.s32 %v1548, %v1550
      %v1552 = vrot.slane %v1070, %v1551
      %v1553 = vcombine.high %v1552, %v1552
      %v1555 = vunpack.c.l.s4 1983009808
      %v1556 = vunpack.c.0.s8 %v1555
      %v1557 = vlaneseq
      %v1558 = vshrl.u32 %v1557, 7
      %v1559 = vsub.s32 %v1556, %v1558
      %v1560 = vrot.slane %v1260, %v1559
      %v1562 = vunpack.c.l.s4 1983009808
      %v1563 = vunpack.c.0.s8 %v1562
      %v1564 = vlaneseq
      %v1565 = vshrl.u32 %v1564, 7
      %v1566 = vsub.s32 %v1563, %v1565
      %v1567 = vrot.slane %v1071, %v1566
      %v1568 = vcombine.high %v1567, %v1567
      %v1570 = vunpack.c.l.s4 1983009808
      %v1571 = vunpack.c.0.s8 %v1570
      %v1572 = vlaneseq
      %v1573 = vshrl.u32 %v1572, 7
      %v1574 = vsub.s32 %v1571, %v1573
      %v1575 = vrot.slane %v1261, %v1574
      %v1576 = vcombine.high %v1575, %v1575
      %v1578 = vunpack.c.l.s4 1983009808
      %v1579 = vunpack.c.0.s8 %v1578
      %v1580 = vlaneseq
      %v1581 = vshrl.u32 %v1580, 7
      %v1582 = vsub.s32 %v1579, %v1581
      %v1583 = vrot.slane %v1072, %v1582
      %v1584 = vcombine.high %v1583, %v1583
      %v1586 = vunpack.c.l.s4 1983009808
      %v1587 = vunpack.c.0.s8 %v1586
      %v1588 = vlaneseq
      %v1589 = vshrl.u32 %v1588, 7
      %v1590 = vsub.s32 %v1587, %v1589
      %v1591 = vrot.slane %v1262, %v1590
      %v1592 = vcombine.high %v1591, %v1591
      %v1594 = vunpack.c.l.s4 1983009808
      %v1595 = vunpack.c.0.s8 %v1594
      %v1596 = vlaneseq
      %v1597 = vshrl.u32 %v1596, 7
      %v1598 = vsub.s32 %v1595, %v1597
      %v1599 = vrot.slane %v1073, %v1598
      %v1600 = vcombine.high %v1599, %v1599
      %v1602 = vunpack.c.l.s4 1983009808
      %v1603 = vunpack.c.0.s8 %v1602
      %v1604 = vlaneseq
      %v1605 = vshrl.u32 %v1604, 7
      %v1606 = vsub.s32 %v1603, %v1605
      %v1607 = vrot.slane %v1263, %v1606
      %v1608 = vcombine.high %v1607, %v1607
      %v1610 = vunpack.c.l.s4 1983009808
      %v1611 = vunpack.c.0.s8 %v1610
      %v1612 = vlaneseq
      %v1613 = vshrl.u32 %v1612, 7
      %v1614 = vsub.s32 %v1611, %v1613
      %v1615 = vrot.slane %v1074, %v1614
      %v1617 = vunpack.c.l.s4 1983009808
      %v1618 = vunpack.c.0.s8 %v1617
      %v1619 = vlaneseq
      %v1620 = vshrl.u32 %v1619, 7
      %v1621 = vsub.s32 %v1618, %v1620
      %v1622 = vrot.slane %v1264, %v1621
      %v1623 = vcombine.high %v1622, %v1622
      %v1625 = vunpack.c.l.s4 1983009808
      %v1626 = vunpack.c.0.s8 %v1625
      %v1627 = vlaneseq
      %v1628 = vshrl.u32 %v1627, 7
      %v1629 = vsub.s32 %v1626, %v1628
      %v1630 = vrot.slane %v1075, %v1629
      %v1631 = vcombine.high %v1630, %v1630
      %v1633 = vunpack.c.l.s4 1983009808
      %v1634 = vunpack.c.0.s8 %v1633
      %v1635 = vlaneseq
      %v1636 = vshrl.u32 %v1635, 7
      %v1637 = vsub.s32 %v1634, %v1636
      %v1638 = vrot.slane %v1265, %v1637
      %v1639 = vcombine.high %v1638, %v1638
      %v1641 = vunpack.c.l.s4 1983009808
      %v1642 = vunpack.c.0.s8 %v1641
      %v1643 = vlaneseq
      %v1644 = vshrl.u32 %v1643, 7
      %v1645 = vsub.s32 %v1642, %v1644
      %v1646 = vrot.slane %v1076, %v1645
      %v1647 = vcombine.high %v1646, %v1646
      %v1649 = vunpack.c.l.s4 1983009808
      %v1650 = vunpack.c.0.s8 %v1649
      %v1651 = vlaneseq
      %v1652 = vshrl.u32 %v1651, 7
      %v1653 = vsub.s32 %v1650, %v1652
      %v1654 = vrot.slane %v1266, %v1653
      %v1655 = vcombine.high %v1654, %v1654
      %v1657 = vunpack.c.l.s4 1983009808
      %v1658 = vunpack.c.0.s8 %v1657
      %v1659 = vlaneseq
      %v1660 = vshrl.u32 %v1659, 7
      %v1661 = vsub.s32 %v1658, %v1660
      %v1662 = vrot.slane %v1077, %v1661
      %v1663 = vcombine.high %v1662, %v1662
      %v1665 = vunpack.c.l.s4 1983009808
      %v1666 = vunpack.c.0.s8 %v1665
      %v1667 = vlaneseq
      %v1668 = vshrl.u32 %v1667, 7
      %v1669 = vsub.s32 %v1666, %v1668
      %v1670 = vrot.slane %v1267, %v1669
      %v1672 = vunpack.c.l.s4 1983009808
      %v1673 = vunpack.c.0.s8 %v1672
      %v1674 = vlaneseq
      %v1675 = vshrl.u32 %v1674, 7
      %v1676 = vsub.s32 %v1673, %v1675
      %v1677 = vrot.slane %v1078, %v1676
      %v1678 = vcombine.high %v1677, %v1677
      %v1680 = vunpack.c.l.s4 1983009808
      %v1681 = vunpack.c.0.s8 %v1680
      %v1682 = vlaneseq
      %v1683 = vshrl.u32 %v1682, 7
      %v1684 = vsub.s32 %v1681, %v1683
      %v1685 = vrot.slane %v1268, %v1684
      %v1686 = vcombine.high %v1685, %v1685
      %v1688 = vunpack.c.l.s4 1983009808
      %v1689 = vunpack.c.0.s8 %v1688
      %v1690 = vlaneseq
      %v1691 = vshrl.u32 %v1690, 7
      %v1692 = vsub.s32 %v1689, %v1691
      %v1693 = vrot.slane %v1079, %v1692
      %v1694 = vcombine.high %v1693, %v1693
      %v1696 = vunpack.c.l.s4 1983009808
      %v1697 = vunpack.c.0.s8 %v1696
      %v1698 = vlaneseq
      %v1699 = vshrl.u32 %v1698, 7
      %v1700 = vsub.s32 %v1697, %v1699
      %v1701 = vrot.slane %v1269, %v1700
      %v1702 = vcombine.high %v1701, %v1701
      %v1704 = vunpack.c.l.s4 1983009808
      %v1705 = vunpack.c.0.s8 %v1704
      %v1706 = vlaneseq
      %v1707 = vshrl.u32 %v1706, 7
      %v1708 = vsub.s32 %v1705, %v1707
      %v1709 = vrot.slane %v1080, %v1708
      %v1710 = vcombine.high %v1709, %v1709
      %v1712 = vunpack.c.l.s4 1983009808
      %v1713 = vunpack.c.0.s8 %v1712
      %v1714 = vlaneseq
      %v1715 = vshrl.u32 %v1714, 7
      %v1716 = vsub.s32 %v1713, %v1715
      %v1717 = vrot.slane %v1270, %v1716
      %v1718 = vcombine.high %v1717, %v1717
      %v1720 = vunpack.c.l.s4 1983009808
      %v1721 = vunpack.c.0.s8 %v1720
      %v1722 = vlaneseq
      %v1723 = vshrl.u32 %v1722, 7
      %v1724 = vsub.s32 %v1721, %v1723
      %v1725 = vrot.slane %v1081, %v1724
      %v1727 = vunpack.c.l.s4 1983009808
      %v1728 = vunpack.c.0.s8 %v1727
      %v1729 = vlaneseq
      %v1730 = vshrl.u32 %v1729, 7
      %v1731 = vsub.s32 %v1728, %v1730
      %v1732 = vrot.slane %v1271, %v1731
      %v1733 = vcombine.high %v1732, %v1732
      %v1735 = vunpack.c.l.s4 1983009808
      %v1736 = vunpack.c.0.s8 %v1735
      %v1737 = vlaneseq
      %v1738 = vshrl.u32 %v1737, 7
      %v1739 = vsub.s32 %v1736, %v1738
      %v1740 = vrot.slane %v1082, %v1739
      %v1741 = vcombine.high %v1740, %v1740
      %v1743 = vunpack.c.l.s4 1983009808
      %v1744 = vunpack.c.0.s8 %v1743
      %v1745 = vlaneseq
      %v1746 = vshrl.u32 %v1745, 7
      %v1747 = vsub.s32 %v1744, %v1746
      %v1748 = vrot.slane %v1272, %v1747
      %v1749 = vcombine.high %v1748, %v1748
      %v1751 = vunpack.c.l.s4 1983009808
      %v1752 = vunpack.c.0.s8 %v1751
      %v1753 = vlaneseq
      %v1754 = vshrl.u32 %v1753, 7
      %v1755 = vsub.s32 %v1752, %v1754
      %v1756 = vrot.slane %v1083, %v1755
      %v1757 = vcombine.high %v1756, %v1756
      %v1759 = vunpack.c.l.s4 1983009808
      %v1760 = vunpack.c.0.s8 %v1759
      %v1761 = vlaneseq
      %v1762 = vshrl.u32 %v1761, 7
      %v1763 = vsub.s32 %v1760, %v1762
      %v1764 = vrot.slane %v1273, %v1763
      %v1765 = vcombine.high %v1764, %v1764
      %v1767 = vunpack.c.l.s4 1983009808
      %v1768 = vunpack.c.0.s8 %v1767
      %v1769 = vlaneseq
      %v1770 = vshrl.u32 %v1769, 7
      %v1771 = vsub.s32 %v1768, %v1770
      %v1772 = vrot.slane %v1084, %v1771
      %v1773 = vcombine.high %v1772, %v1772
      %v1775 = vunpack.c.l.s4 1983009808
      %v1776 = vunpack.c.0.s8 %v1775
      %v1777 = vlaneseq
      %v1778 = vshrl.u32 %v1777, 7
      %v1779 = vsub.s32 %v1776, %v1778
      %v1780 = vrot.slane %v1274, %v1779
      %v1782 = vunpack.c.l.s4 1983009808
      %v1783 = vunpack.c.0.s8 %v1782
      %v1784 = vlaneseq
      %v1785 = vshrl.u32 %v1784, 7
      %v1786 = vsub.s32 %v1783, %v1785
      %v1787 = vrot.slane %v1085, %v1786
      %v1788 = vcombine.high %v1787, %v1787
      %v1790 = vunpack.c.l.s4 1983009808
      %v1791 = vunpack.c.0.s8 %v1790
      %v1792 = vlaneseq
      %v1793 = vshrl.u32 %v1792, 7
      %v1794 = vsub.s32 %v1791, %v1793
      %v1795 = vrot.slane %v1275, %v1794
      %v1796 = vcombine.high %v1795, %v1795
      %v1798 = vunpack.c.l.s4 1983009808
      %v1799 = vunpack.c.0.s8 %v1798
      %v1800 = vlaneseq
      %v1801 = vshrl.u32 %v1800, 7
      %v1802 = vsub.s32 %v1799, %v1801
      %v1803 = vrot.slane %v1086, %v1802
      %v1804 = vcombine.high %v1803, %v1803
      %v1806 = vunpack.c.l.s4 1983009808
      %v1807 = vunpack.c.0.s8 %v1806
      %v1808 = vlaneseq
      %v1809 = vshrl.u32 %v1808, 7
      %v1810 = vsub.s32 %v1807, %v1809
      %v1811 = vrot.slane %v1276, %v1810
      %v1812 = vcombine.high %v1811, %v1811
      %v1814 = vunpack.c.l.s4 1983009808
      %v1815 = vunpack.c.0.s8 %v1814
      %v1816 = vlaneseq
      %v1817 = vshrl.u32 %v1816, 7
      %v1818 = vsub.s32 %v1815, %v1817
      %v1819 = vrot.slane %v1087, %v1818
      %v1820 = vcombine.high %v1819, %v1819
      %v1822 = vunpack.c.l.s4 1983009808
      %v1823 = vunpack.c.0.s8 %v1822
      %v1824 = vlaneseq
      %v1825 = vshrl.u32 %v1824, 7
      %v1826 = vsub.s32 %v1823, %v1825
      %v1827 = vrot.slane %v1277, %v1826
      %v1828 = vcombine.high %v1827, %v1827
      %v1830 = vunpack.c.l.s4 1983009808
      %v1831 = vunpack.c.0.s8 %v1830
      %v1832 = vlaneseq
      %v1833 = vshrl.u32 %v1832, 7
      %v1834 = vsub.s32 %v1831, %v1833
      %v1835 = vrot.slane %v1088, %v1834
      %v1837 = vunpack.c.l.s4 1983009808
      %v1838 = vunpack.c.0.s8 %v1837
      %v1839 = vlaneseq
      %v1840 = vshrl.u32 %v1839, 7
      %v1841 = vsub.s32 %v1838, %v1840
      %v1842 = vrot.slane %v1278, %v1841
      %v1843 = vcombine.high %v1842, %v1842
      %v1845 = vunpack.c.l.s4 1983009808
      %v1846 = vunpack.c.0.s8 %v1845
      %v1847 = vlaneseq
      %v1848 = vshrl.u32 %v1847, 7
      %v1849 = vsub.s32 %v1846, %v1848
      %v1850 = vrot.slane %v1089, %v1849
      %v1851 = vcombine.high %v1850, %v1850
      %v1853 = vunpack.c.l.s4 1983009808
      %v1854 = vunpack.c.0.s8 %v1853
      %v1855 = vlaneseq
      %v1856 = vshrl.u32 %v1855, 7
      %v1857 = vsub.s32 %v1854, %v1856
      %v1858 = vrot.slane %v1279, %v1857
      %v1859 = vcombine.high %v1858, %v1858
      %v1861 = vunpack.c.l.s4 1983009808
      %v1862 = vunpack.c.0.s8 %v1861
      %v1863 = vlaneseq
      %v1864 = vshrl.u32 %v1863, 7
      %v1865 = vsub.s32 %v1862, %v1864
      %v1866 = vrot.slane %v1090, %v1865
      %v1867 = vcombine.high %v1866, %v1866
      %v1869 = vunpack.c.l.s4 1983009808
      %v1870 = vunpack.c.0.s8 %v1869
      %v1871 = vlaneseq
      %v1872 = vshrl.u32 %v1871, 7
      %v1873 = vsub.s32 %v1870, %v1872
      %v1874 = vrot.slane %v1280, %v1873
      %v1875 = vcombine.high %v1874, %v1874
      %v1877 = vunpack.c.l.s4 1983009808
      %v1878 = vunpack.c.0.s8 %v1877
      %v1879 = vlaneseq
      %v1880 = vshrl.u32 %v1879, 7
      %v1881 = vsub.s32 %v1878, %v1880
      %v1882 = vrot.slane %v1091, %v1881
      %v1883 = vcombine.high %v1882, %v1882
      %v1885 = vunpack.c.l.s4 1983009808
      %v1886 = vunpack.c.0.s8 %v1885
      %v1887 = vlaneseq
      %v1888 = vshrl.u32 %v1887, 7
      %v1889 = vsub.s32 %v1886, %v1888
      %v1890 = vrot.slane %v1281, %v1889
      %v1892 = vunpack.c.l.s4 1983009808
      %v1893 = vunpack.c.0.s8 %v1892
      %v1894 = vlaneseq
      %v1895 = vshrl.u32 %v1894, 7
      %v1896 = vsub.s32 %v1893, %v1895
      %v1897 = vrot.slane %v1092, %v1896
      %v1898 = vcombine.high %v1897, %v1897
      %v1900 = vunpack.c.l.s4 1983009808
      %v1901 = vunpack.c.0.s8 %v1900
      %v1902 = vlaneseq
      %v1903 = vshrl.u32 %v1902, 7
      %v1904 = vsub.s32 %v1901, %v1903
      %v1905 = vrot.slane %v1282, %v1904
      %v1906 = vcombine.high %v1905, %v1905
      %v1908 = vunpack.c.l.s4 1983009808
      %v1909 = vunpack.c.0.s8 %v1908
      %v1910 = vlaneseq
      %v1911 = vshrl.u32 %v1910, 7
      %v1912 = vsub.s32 %v1909, %v1911
      %v1913 = vrot.slane %v1093, %v1912
      %v1914 = vcombine.high %v1913, %v1913
      %v1916 = vunpack.c.l.s4 1983009808
      %v1917 = vunpack.c.0.s8 %v1916
      %v1918 = vlaneseq
      %v1919 = vshrl.u32 %v1918, 7
      %v1920 = vsub.s32 %v1917, %v1919
      %v1921 = vrot.slane %v1283, %v1920
      %v1922 = vcombine.high %v1921, %v1921
      %v1924 = vunpack.c.l.s4 1983009808
      %v1925 = vunpack.c.0.s8 %v1924
      %v1926 = vlaneseq
      %v1927 = vshrl.u32 %v1926, 7
      %v1928 = vsub.s32 %v1925, %v1927
      %v1929 = vrot.slane %v1094, %v1928
      %v1930 = vcombine.high %v1929, %v1929
      %v1932 = vunpack.c.l.s4 1983009808
      %v1933 = vunpack.c.0.s8 %v1932
      %v1934 = vlaneseq
      %v1935 = vshrl.u32 %v1934, 7
      %v1936 = vsub.s32 %v1933, %v1935
      %v1937 = vrot.slane %v1284, %v1936
      %v1938 = vcombine.high %v1937, %v1937
      %v1940 = vunpack.c.l.s4 1983009808
      %v1941 = vunpack.c.0.s8 %v1940
      %v1942 = vlaneseq
      %v1943 = vshrl.u32 %v1942, 7
      %v1944 = vsub.s32 %v1941, %v1943
      %v1945 = vrot.slane %v1095, %v1944
      %v1947 = vunpack.c.l.s4 1983009808
      %v1948 = vunpack.c.0.s8 %v1947
      %v1949 = vlaneseq
      %v1950 = vshrl.u32 %v1949, 7
      %v1951 = vsub.s32 %v1948, %v1950
      %v1952 = vrot.slane %v1285, %v1951
      %v1953 = vcombine.high %v1952, %v1952
      %v1955 = vunpack.c.l.s4 1983009808
      %v1956 = vunpack.c.0.s8 %v1955
      %v1957 = vlaneseq
      %v1958 = vshrl.u32 %v1957, 7
      %v1959 = vsub.s32 %v1956, %v1958
      %v1960 = vrot.slane %v1096, %v1959
      %v1961 = vcombine.high %v1960, %v1960
      %v1963 = vunpack.c.l.s4 1983009808
      %v1964 = vunpack.c.0.s8 %v1963
      %v1965 = vlaneseq
      %v1966 = vshrl.u32 %v1965, 7
      %v1967 = vsub.s32 %v1964, %v1966
      %v1968 = vrot.slane %v1286, %v1967
      %v1969 = vcombine.high %v1968, %v1968
      %v1971 = vunpack.c.l.s4 1983009808
      %v1972 = vunpack.c.0.s8 %v1971
      %v1973 = vlaneseq
      %v1974 = vshrl.u32 %v1973, 7
      %v1975 = vsub.s32 %v1972, %v1974
      %v1976 = vrot.slane %v1097, %v1975
      %v1977 = vcombine.high %v1976, %v1976
      %v1979 = vunpack.c.l.s4 1983009808
      %v1980 = vunpack.c.0.s8 %v1979
      %v1981 = vlaneseq
      %v1982 = vshrl.u32 %v1981, 7
      %v1983 = vsub.s32 %v1980, %v1982
      %v1984 = vrot.slane %v1287, %v1983
      %v1985 = vcombine.high %v1984, %v1984
      %v1987 = vunpack.c.l.s4 1983009808
      %v1988 = vunpack.c.0.s8 %v1987
      %v1989 = vlaneseq
      %v1990 = vshrl.u32 %v1989, 7
      %v1991 = vsub.s32 %v1988, %v1990
      %v1992 = vrot.slane %v1098, %v1991
      %v1993 = vcombine.high %v1992, %v1992
      %v1995 = vunpack.c.l.s4 1983009808
      %v1996 = vunpack.c.0.s8 %v1995
      %v1997 = vlaneseq
      %v1998 = vshrl.u32 %v1997, 7
      %v1999 = vsub.s32 %v1996, %v1998
      %v2000 = vrot.slane %v1288, %v1999
      %v2002 = vunpack.c.l.s4 1983009808
      %v2003 = vunpack.c.0.s8 %v2002
      %v2004 = vlaneseq
      %v2005 = vshrl.u32 %v2004, 7
      %v2006 = vsub.s32 %v2003, %v2005
      %v2007 = vrot.slane %v1099, %v2006
      %v2008 = vcombine.high %v2007, %v2007
      %v2010 = vunpack.c.l.s4 1983009808
      %v2011 = vunpack.c.0.s8 %v2010
      %v2012 = vlaneseq
      %v2013 = vshrl.u32 %v2012, 7
      %v2014 = vsub.s32 %v2011, %v2013
      %v2015 = vrot.slane %v1289, %v2014
      %v2016 = vcombine.high %v2015, %v2015
      %v2018 = vunpack.c.l.s4 1983009808
      %v2019 = vunpack.c.0.s8 %v2018
      %v2020 = vlaneseq
      %v2021 = vshrl.u32 %v2020, 7
      %v2022 = vsub.s32 %v2019, %v2021
      %v2023 = vrot.slane %v1100, %v2022
      %v2024 = vcombine.high %v2023, %v2023
      %v2026 = vunpack.c.l.s4 1983009808
      %v2027 = vunpack.c.0.s8 %v2026
      %v2028 = vlaneseq
      %v2029 = vshrl.u32 %v2028, 7
      %v2030 = vsub.s32 %v2027, %v2029
      %v2031 = vrot.slane %v1290, %v2030
      %v2032 = vcombine.high %v2031, %v2031
      %v2034 = vunpack.c.l.s4 1983009808
      %v2035 = vunpack.c.0.s8 %v2034
      %v2036 = vlaneseq
      %v2037 = vshrl.u32 %v2036, 7
      %v2038 = vsub.s32 %v2035, %v2037
      %v2039 = vrot.slane %v1101, %v2038
      %v2040 = vcombine.high %v2039, %v2039
      %v2042 = vunpack.c.l.s4 1983009808
      %v2043 = vunpack.c.0.s8 %v2042
      %v2044 = vlaneseq
      %v2045 = vshrl.u32 %v2044, 7
      %v2046 = vsub.s32 %v2043, %v2045
      %v2047 = vrot.slane %v1291, %v2046
      %v2048 = vcombine.high %v2047, %v2047
      %v2050 = vunpack.c.l.s4 1983009808
      %v2051 = vunpack.c.0.s8 %v2050
      %v2052 = vlaneseq
      %v2053 = vshrl.u32 %v2052, 7
      %v2054 = vsub.s32 %v2051, %v2053
      %v2055 = vrot.slane %v1102, %v2054
      %v2057 = vunpack.c.l.s4 1983009808
      %v2058 = vunpack.c.0.s8 %v2057
      %v2059 = vlaneseq
      %v2060 = vshrl.u32 %v2059, 7
      %v2061 = vsub.s32 %v2058, %v2060
      %v2062 = vrot.slane %v1292, %v2061
      %v2063 = vcombine.high %v2062, %v2062
      %v2065 = vunpack.c.l.s4 1983009808
      %v2066 = vunpack.c.0.s8 %v2065
      %v2067 = vlaneseq
      %v2068 = vshrl.u32 %v2067, 7
      %v2069 = vsub.s32 %v2066, %v2068
      %v2070 = vrot.slane %v1103, %v2069
      %v2071 = vcombine.high %v2070, %v2070
      %v2073 = vunpack.c.l.s4 1983009808
      %v2074 = vunpack.c.0.s8 %v2073
      %v2075 = vlaneseq
      %v2076 = vshrl.u32 %v2075, 7
      %v2077 = vsub.s32 %v2074, %v2076
      %v2078 = vrot.slane %v1293, %v2077
      %v2079 = vcombine.high %v2078, %v2078
      %v2081 = vunpack.c.l.s4 1983009808
      %v2082 = vunpack.c.0.s8 %v2081
      %v2083 = vlaneseq
      %v2084 = vshrl.u32 %v2083, 7
      %v2085 = vsub.s32 %v2082, %v2084
      %v2086 = vrot.slane %v1104, %v2085
      %v2087 = vcombine.high %v2086, %v2086
      %v2089 = vunpack.c.l.s4 1983009808
      %v2090 = vunpack.c.0.s8 %v2089
      %v2091 = vlaneseq
      %v2092 = vshrl.u32 %v2091, 7
      %v2093 = vsub.s32 %v2090, %v2092
      %v2094 = vrot.slane %v1294, %v2093
      %v2095 = vcombine.high %v2094, %v2094
      %v2097 = vunpack.c.l.s4 1983009808
      %v2098 = vunpack.c.0.s8 %v2097
      %v2099 = vlaneseq
      %v2100 = vshrl.u32 %v2099, 7
      %v2101 = vsub.s32 %v2098, %v2100
      %v2102 = vrot.slane %v1105, %v2101
      %v2103 = vcombine.high %v2102, %v2102
      %v2105 = vunpack.c.l.s4 1983009808
      %v2106 = vunpack.c.0.s8 %v2105
      %v2107 = vlaneseq
      %v2108 = vshrl.u32 %v2107, 7
      %v2109 = vsub.s32 %v2106, %v2108
      %v2110 = vrot.slane %v1295, %v2109
      %v2112 = vunpack.c.l.s4 1983009808
      %v2113 = vunpack.c.0.s8 %v2112
      %v2114 = vlaneseq
      %v2115 = vshrl.u32 %v2114, 7
      %v2116 = vsub.s32 %v2113, %v2115
      %v2117 = vrot.slane %v1106, %v2116
      %v2118 = vcombine.high %v2117, %v2117
      %v2120 = vunpack.c.l.s4 1983009808
      %v2121 = vunpack.c.0.s8 %v2120
      %v2122 = vlaneseq
      %v2123 = vshrl.u32 %v2122, 7
      %v2124 = vsub.s32 %v2121, %v2123
      %v2125 = vrot.slane %v1296, %v2124
      %v2126 = vcombine.high %v2125, %v2125
      %v2128 = vunpack.c.l.s4 1983009808
      %v2129 = vunpack.c.0.s8 %v2128
      %v2130 = vlaneseq
      %v2131 = vshrl.u32 %v2130, 7
      %v2132 = vsub.s32 %v2129, %v2131
      %v2133 = vrot.slane %v1107, %v2132
      %v2134 = vcombine.high %v2133, %v2133
      %v2136 = vunpack.c.l.s4 1983009808
      %v2137 = vunpack.c.0.s8 %v2136
      %v2138 = vlaneseq
      %v2139 = vshrl.u32 %v2138, 7
      %v2140 = vsub.s32 %v2137, %v2139
      %v2141 = vrot.slane %v1297, %v2140
      %v2142 = vcombine.high %v2141, %v2141
      %v2144 = vunpack.c.l.s4 1983009808
      %v2145 = vunpack.c.0.s8 %v2144
      %v2146 = vlaneseq
      %v2147 = vshrl.u32 %v2146, 7
      %v2148 = vsub.s32 %v2145, %v2147
      %v2149 = vrot.slane %v1108, %v2148
      %v2150 = vcombine.high %v2149, %v2149
      %v2152 = vunpack.c.l.s4 1983009808
      %v2153 = vunpack.c.0.s8 %v2152
      %v2154 = vlaneseq
      %v2155 = vshrl.u32 %v2154, 7
      %v2156 = vsub.s32 %v2153, %v2155
      %v2157 = vrot.slane %v1298, %v2156
      %v2158 = vcombine.high %v2157, %v2157
      %v2160 = vunpack.c.l.s4 1983009808
      %v2161 = vunpack.c.0.s8 %v2160
      %v2162 = vlaneseq
      %v2163 = vshrl.u32 %v2162, 7
      %v2164 = vsub.s32 %v2161, %v2163
      %v2165 = vrot.slane %v1109, %v2164
      %v2167 = vunpack.c.l.s4 1983009808
      %v2168 = vunpack.c.0.s8 %v2167
      %v2169 = vlaneseq
      %v2170 = vshrl.u32 %v2169, 7
      %v2171 = vsub.s32 %v2168, %v2170
      %v2172 = vrot.slane %v1299, %v2171
      %v2173 = vcombine.high %v2172, %v2172
      %v2175 = vunpack.c.l.s4 1983009808
      %v2176 = vunpack.c.0.s8 %v2175
      %v2177 = vlaneseq
      %v2178 = vshrl.u32 %v2177, 7
      %v2179 = vsub.s32 %v2176, %v2178
      %v2180 = vrot.slane %v1110, %v2179
      %v2181 = vcombine.high %v2180, %v2180
      %v2183 = vunpack.c.l.s4 1983009808
      %v2184 = vunpack.c.0.s8 %v2183
      %v2185 = vlaneseq
      %v2186 = vshrl.u32 %v2185, 7
      %v2187 = vsub.s32 %v2184, %v2186
      %v2188 = vrot.slane %v1300, %v2187
      %v2189 = vcombine.high %v2188, %v2188
      %v2191 = vunpack.c.l.s4 1983009808
      %v2192 = vunpack.c.0.s8 %v2191
      %v2193 = vlaneseq
      %v2194 = vshrl.u32 %v2193, 7
      %v2195 = vsub.s32 %v2192, %v2194
      %v2196 = vrot.slane %v1111, %v2195
      %v2197 = vcombine.high %v2196, %v2196
      %v2199 = vunpack.c.l.s4 1983009808
      %v2200 = vunpack.c.0.s8 %v2199
      %v2201 = vlaneseq
      %v2202 = vshrl.u32 %v2201, 7
      %v2203 = vsub.s32 %v2200, %v2202
      %v2204 = vrot.slane %v1301, %v2203
      %v2205 = vcombine.high %v2204, %v2204
      %v2207 = vunpack.c.l.s4 1983009808
      %v2208 = vunpack.c.0.s8 %v2207
      %v2209 = vlaneseq
      %v2210 = vshrl.u32 %v2209, 7
      %v2211 = vsub.s32 %v2208, %v2210
      %v2212 = vrot.slane %v1112, %v2211
      %v2213 = vcombine.high %v2212, %v2212
      %v2215 = vunpack.c.l.s4 1983009808
      %v2216 = vunpack.c.0.s8 %v2215
      %v2217 = vlaneseq
      %v2218 = vshrl.u32 %v2217, 7
      %v2219 = vsub.s32 %v2216, %v2218
      %v2220 = vrot.slane %v1302, %v2219
      %v2222 = vunpack.c.l.s4 1983009808
      %v2223 = vunpack.c.0.s8 %v2222
      %v2224 = vlaneseq
      %v2225 = vshrl.u32 %v2224, 7
      %v2226 = vsub.s32 %v2223, %v2225
      %v2227 = vrot.slane %v1113, %v2226
      %v2228 = vcombine.high %v2227, %v2227
      %v2230 = vunpack.c.l.s4 1983009808
      %v2231 = vunpack.c.0.s8 %v2230
      %v2232 = vlaneseq
      %v2233 = vshrl.u32 %v2232, 7
      %v2234 = vsub.s32 %v2231, %v2233
      %v2235 = vrot.slane %v1303, %v2234
      %v2236 = vcombine.high %v2235, %v2235
      %v2238 = vunpack.c.l.s4 1983009808
      %v2239 = vunpack.c.0.s8 %v2238
      %v2240 = vlaneseq
      %v2241 = vshrl.u32 %v2240, 7
      %v2242 = vsub.s32 %v2239, %v2241
      %v2243 = vrot.slane %v1114, %v2242
      %v2244 = vcombine.high %v2243, %v2243
      %v2246 = vunpack.c.l.s4 1983009808
      %v2247 = vunpack.c.0.s8 %v2246
      %v2248 = vlaneseq
      %v2249 = vshrl.u32 %v2248, 7
      %v2250 = vsub.s32 %v2247, %v2249
      %v2251 = vrot.slane %v1304, %v2250
      %v2252 = vcombine.high %v2251, %v2251
      %v2254 = vunpack.c.l.s4 1983009808
      %v2255 = vunpack.c.0.s8 %v2254
      %v2256 = vlaneseq
      %v2257 = vshrl.u32 %v2256, 7
      %v2258 = vsub.s32 %v2255, %v2257
      %v2259 = vrot.slane %v1115, %v2258
      %v2260 = vcombine.high %v2259, %v2259
      %v2262 = vunpack.c.l.s4 1983009808
      %v2263 = vunpack.c.0.s8 %v2262
      %v2264 = vlaneseq
      %v2265 = vshrl.u32 %v2264, 7
      %v2266 = vsub.s32 %v2263, %v2265
      %v2267 = vrot.slane %v1305, %v2266
      %v2268 = vcombine.high %v2267, %v2267
      %v2270 = vunpack.c.l.s4 1983009808
      %v2271 = vunpack.c.0.s8 %v2270
      %v2272 = vlaneseq
      %v2273 = vshrl.u32 %v2272, 7
      %v2274 = vsub.s32 %v2271, %v2273
      %v2275 = vrot.slane %v1116, %v2274
      %v2277 = vunpack.c.l.s4 1983009808
      %v2278 = vunpack.c.0.s8 %v2277
      %v2279 = vlaneseq
      %v2280 = vshrl.u32 %v2279, 7
      %v2281 = vsub.s32 %v2278, %v2280
      %v2282 = vrot.slane %v1306, %v2281
      %v2283 = vcombine.high %v2282, %v2282
      %v2285 = vunpack.c.l.s4 1983009808
      %v2286 = vunpack.c.0.s8 %v2285
      %v2287 = vlaneseq
      %v2288 = vshrl.u32 %v2287, 7
      %v2289 = vsub.s32 %v2286, %v2288
      %v2290 = vrot.slane %v1117, %v2289
      %v2291 = vcombine.high %v2290, %v2290
      %v2293 = vunpack.c.l.s4 1983009808
      %v2294 = vunpack.c.0.s8 %v2293
      %v2295 = vlaneseq
      %v2296 = vshrl.u32 %v2295, 7
      %v2297 = vsub.s32 %v2294, %v2296
      %v2298 = vrot.slane %v1307, %v2297
      %v2299 = vcombine.high %v2298, %v2298
      %v2301 = vunpack.c.l.s4 1983009808
      %v2302 = vunpack.c.0.s8 %v2301
      %v2303 = vlaneseq
      %v2304 = vshrl.u32 %v2303, 7
      %v2305 = vsub.s32 %v2302, %v2304
      %v2306 = vrot.slane %v1118, %v2305
      %v2307 = vcombine.high %v2306, %v2306
      %v2309 = vunpack.c.l.s4 1983009808
      %v2310 = vunpack.c.0.s8 %v2309
      %v2311 = vlaneseq
      %v2312 = vshrl.u32 %v2311, 7
      %v2313 = vsub.s32 %v2310, %v2312
      %v2314 = vrot.slane %v1308, %v2313
      %v2315 = vcombine.high %v2314, %v2314
      %v2317 = vunpack.c.l.s4 1983009808
      %v2318 = vunpack.c.0.s8 %v2317
      %v2319 = vlaneseq
      %v2320 = vshrl.u32 %v2319, 7
      %v2321 = vsub.s32 %v2318, %v2320
      %v2322 = vrot.slane %v1119, %v2321
      %v2323 = vcombine.high %v2322, %v2322
      %v2325 = vunpack.c.l.s4 1983009808
      %v2326 = vunpack.c.0.s8 %v2325
      %v2327 = vlaneseq
      %v2328 = vshrl.u32 %v2327, 7
      %v2329 = vsub.s32 %v2326, %v2328
      %v2330 = vrot.slane %v1309, %v2329
      %v2332 = vunpack.c.l.s4 1983009808
      %v2333 = vunpack.c.0.s8 %v2332
      %v2334 = vlaneseq
      %v2335 = vshrl.u32 %v2334, 7
      %v2336 = vsub.s32 %v2333, %v2335
      %v2337 = vrot.slane %v1120, %v2336
      %v2338 = vcombine.high %v2337, %v2337
      %v2340 = vunpack.c.l.s4 1983009808
      %v2341 = vunpack.c.0.s8 %v2340
      %v2342 = vlaneseq
      %v2343 = vshrl.u32 %v2342, 7
      %v2344 = vsub.s32 %v2341, %v2343
      %v2345 = vrot.slane %v1310, %v2344
      %v2346 = vcombine.high %v2345, %v2345
      %v2348 = vunpack.c.l.s4 1983009808
      %v2349 = vunpack.c.0.s8 %v2348
      %v2350 = vlaneseq
      %v2351 = vshrl.u32 %v2350, 7
      %v2352 = vsub.s32 %v2349, %v2351
      %v2353 = vrot.slane %v1121, %v2352
      %v2354 = vcombine.high %v2353, %v2353
      %v2356 = vunpack.c.l.s4 1983009808
      %v2357 = vunpack.c.0.s8 %v2356
      %v2358 = vlaneseq
      %v2359 = vshrl.u32 %v2358, 7
      %v2360 = vsub.s32 %v2357, %v2359
      %v2361 = vrot.slane %v1311, %v2360
      %v2362 = vcombine.high %v2361, %v2361
      %v2364 = vunpack.c.l.s4 1983009808
      %v2365 = vunpack.c.0.s8 %v2364
      %v2366 = vlaneseq
      %v2367 = vshrl.u32 %v2366, 7
      %v2368 = vsub.s32 %v2365, %v2367
      %v2369 = vrot.slane %v1122, %v2368
      %v2370 = vcombine.high %v2369, %v2369
      %v2372 = vunpack.c.l.s4 1983009808
      %v2373 = vunpack.c.0.s8 %v2372
      %v2374 = vlaneseq
      %v2375 = vshrl.u32 %v2374, 7
      %v2376 = vsub.s32 %v2373, %v2375
      %v2377 = vrot.slane %v1312, %v2376
      %v2378 = vcombine.high %v2377, %v2377
      %v2380 = vunpack.c.l.s4 1983009808
      %v2381 = vunpack.c.0.s8 %v2380
      %v2382 = vlaneseq
      %v2383 = vshrl.u32 %v2382, 7
      %v2384 = vsub.s32 %v2381, %v2383
      %v2385 = vrot.slane %v1123, %v2384
      %v2387 = vunpack.c.l.s4 1983009808
      %v2388 = vunpack.c.0.s8 %v2387
      %v2389 = vlaneseq
      %v2390 = vshrl.u32 %v2389, 7
      %v2391 = vsub.s32 %v2388, %v2390
      %v2392 = vrot.slane %v1313, %v2391
      %v2393 = vcombine.high %v2392, %v2392
      %v2395 = vunpack.c.l.s4 1983009808
      %v2396 = vunpack.c.0.s8 %v2395
      %v2397 = vlaneseq
      %v2398 = vshrl.u32 %v2397, 7
      %v2399 = vsub.s32 %v2396, %v2398
      %v2400 = vrot.slane %v1124, %v2399
      %v2401 = vcombine.high %v2400, %v2400
      %v2403 = vunpack.c.l.s4 1983009808
      %v2404 = vunpack.c.0.s8 %v2403
      %v2405 = vlaneseq
      %v2406 = vshrl.u32 %v2405, 7
      %v2407 = vsub.s32 %v2404, %v2406
      %v2408 = vrot.slane %v1314, %v2407
      %v2409 = vcombine.high %v2408, %v2408
      %v2411 = vunpack.c.l.s4 1983009808
      %v2412 = vunpack.c.0.s8 %v2411
      %v2413 = vlaneseq
      %v2414 = vshrl.u32 %v2413, 7
      %v2415 = vsub.s32 %v2412, %v2414
      %v2416 = vrot.slane %v1125, %v2415
      %v2417 = vcombine.high %v2416, %v2416
      %v2419 = vunpack.c.l.s4 1983009808
      %v2420 = vunpack.c.0.s8 %v2419
      %v2421 = vlaneseq
      %v2422 = vshrl.u32 %v2421, 7
      %v2423 = vsub.s32 %v2420, %v2422
      %v2424 = vrot.slane %v1315, %v2423
      %v2425 = vcombine.high %v2424, %v2424
      %v2427 = vunpack.c.l.s4 1983009808
      %v2428 = vunpack.c.0.s8 %v2427
      %v2429 = vlaneseq
      %v2430 = vshrl.u32 %v2429, 7
      %v2431 = vsub.s32 %v2428, %v2430
      %v2432 = vrot.slane %v1126, %v2431
      %v2433 = vcombine.high %v2432, %v2432
      %v2435 = vunpack.c.l.s4 1983009808
      %v2436 = vunpack.c.0.s8 %v2435
      %v2437 = vlaneseq
      %v2438 = vshrl.u32 %v2437, 7
      %v2439 = vsub.s32 %v2436, %v2438
      %v2440 = vrot.slane %v1316, %v2439
      %v2442 = vunpack.c.l.s4 1983009808
      %v2443 = vunpack.c.0.s8 %v2442
      %v2444 = vlaneseq
      %v2445 = vshrl.u32 %v2444, 7
      %v2446 = vsub.s32 %v2443, %v2445
      %v2447 = vrot.slane %v1127, %v2446
      %v2448 = vcombine.high %v2447, %v2447
      %v2450 = vunpack.c.l.s4 1983009808
      %v2451 = vunpack.c.0.s8 %v2450
      %v2452 = vlaneseq
      %v2453 = vshrl.u32 %v2452, 7
      %v2454 = vsub.s32 %v2451, %v2453
      %v2455 = vrot.slane %v1317, %v2454
      %v2456 = vcombine.high %v2455, %v2455
      %v2458 = vunpack.c.l.s4 1983009808
      %v2459 = vunpack.c.0.s8 %v2458
      %v2460 = vlaneseq
      %v2461 = vshrl.u32 %v2460, 7
      %v2462 = vsub.s32 %v2459, %v2461
      %v2463 = vrot.slane %v1128, %v2462
      %v2464 = vcombine.high %v2463, %v2463
      %v2466 = vunpack.c.l.s4 1983009808
      %v2467 = vunpack.c.0.s8 %v2466
      %v2468 = vlaneseq
      %v2469 = vshrl.u32 %v2468, 7
      %v2470 = vsub.s32 %v2467, %v2469
      %v2471 = vrot.slane %v1318, %v2470
      %v2472 = vcombine.high %v2471, %v2471
      %v2474 = vunpack.c.l.s4 1983009808
      %v2475 = vunpack.c.0.s8 %v2474
      %v2476 = vlaneseq
      %v2477 = vshrl.u32 %v2476, 7
      %v2478 = vsub.s32 %v2475, %v2477
      %v2479 = vrot.slane %v1129, %v2478
      %v2480 = vcombine.high %v2479, %v2479
      %v2482 = vunpack.c.l.s4 1983009808
      %v2483 = vunpack.c.0.s8 %v2482
      %v2484 = vlaneseq
      %v2485 = vshrl.u32 %v2484, 7
      %v2486 = vsub.s32 %v2483, %v2485
      %v2487 = vrot.slane %v1319, %v2486
      %v2488 = vcombine.high %v2487, %v2487
      %v2490 = vunpack.c.l.s4 1983009808
      %v2491 = vunpack.c.0.s8 %v2490
      %v2492 = vlaneseq
      %v2493 = vshrl.u32 %v2492, 7
      %v2494 = vsub.s32 %v2491, %v2493
      %v2495 = vrot.slane %v1130, %v2494
      %v2497 = vunpack.c.l.s4 1983009808
      %v2498 = vunpack.c.0.s8 %v2497
      %v2499 = vlaneseq
      %v2500 = vshrl.u32 %v2499, 7
      %v2501 = vsub.s32 %v2498, %v2500
      %v2502 = vrot.slane %v1320, %v2501
      %v2503 = vcombine.high %v2502, %v2502
      %v2505 = vunpack.c.l.s4 1983009808
      %v2506 = vunpack.c.0.s8 %v2505
      %v2507 = vlaneseq
      %v2508 = vshrl.u32 %v2507, 7
      %v2509 = vsub.s32 %v2506, %v2508
      %v2510 = vrot.slane %v1131, %v2509
      %v2511 = vcombine.high %v2510, %v2510
      %v2513 = vunpack.c.l.s4 1983009808
      %v2514 = vunpack.c.0.s8 %v2513
      %v2515 = vlaneseq
      %v2516 = vshrl.u32 %v2515, 7
      %v2517 = vsub.s32 %v2514, %v2516
      %v2518 = vrot.slane %v1321, %v2517
      %v2519 = vcombine.high %v2518, %v2518
      %v2521 = vunpack.c.l.s4 1983009808
      %v2522 = vunpack.c.0.s8 %v2521
      %v2523 = vlaneseq
      %v2524 = vshrl.u32 %v2523, 7
      %v2525 = vsub.s32 %v2522, %v2524
      %v2526 = vrot.slane %v1132, %v2525
      %v2527 = vcombine.high %v2526, %v2526
      %v2529 = vunpack.c.l.s4 1983009808
      %v2530 = vunpack.c.0.s8 %v2529
      %v2531 = vlaneseq
      %v2532 = vshrl.u32 %v2531, 7
      %v2533 = vsub.s32 %v2530, %v2532
      %v2534 = vrot.slane %v1322, %v2533
      %v2535 = vcombine.high %v2534, %v2534
      %v2537 = vunpack.c.l.s4 1983009808
      %v2538 = vunpack.c.0.s8 %v2537
      %v2539 = vlaneseq
      %v2540 = vshrl.u32 %v2539, 7
      %v2541 = vsub.s32 %v2538, %v2540
      %v2542 = vrot.slane %v1133, %v2541
      %v2543 = vcombine.high %v2542, %v2542
      %v2545 = vunpack.c.l.s4 1983009808
      %v2546 = vunpack.c.0.s8 %v2545
      %v2547 = vlaneseq
      %v2548 = vshrl.u32 %v2547, 7
      %v2549 = vsub.s32 %v2546, %v2548
      %v2550 = vrot.slane %v1323, %v2549
      %v2552 = vunpack.c.l.s4 1983009808
      %v2553 = vunpack.c.0.s8 %v2552
      %v2554 = vlaneseq
      %v2555 = vshrl.u32 %v2554, 7
      %v2556 = vsub.s32 %v2553, %v2555
      %v2557 = vrot.slane %v1134, %v2556
      %v2558 = vcombine.high %v2557, %v2557
      %v2560 = vunpack.c.l.s4 1983009808
      %v2561 = vunpack.c.0.s8 %v2560
      %v2562 = vlaneseq
      %v2563 = vshrl.u32 %v2562, 7
      %v2564 = vsub.s32 %v2561, %v2563
      %v2565 = vrot.slane %v1324, %v2564
      %v2566 = vcombine.high %v2565, %v2565
      %v2568 = vunpack.c.l.s4 1983009808
      %v2569 = vunpack.c.0.s8 %v2568
      %v2570 = vlaneseq
      %v2571 = vshrl.u32 %v2570, 7
      %v2572 = vsub.s32 %v2569, %v2571
      %v2573 = vrot.slane %v1135, %v2572
      %v2574 = vcombine.high %v2573, %v2573
      %v2576 = vunpack.c.l.s4 1983009808
      %v2577 = vunpack.c.0.s8 %v2576
      %v2578 = vlaneseq
      %v2579 = vshrl.u32 %v2578, 7
      %v2580 = vsub.s32 %v2577, %v2579
      %v2581 = vrot.slane %v1325, %v2580
      %v2582 = vcombine.high %v2581, %v2581
      %v2584 = vunpack.c.l.s4 1983009808
      %v2585 = vunpack.c.0.s8 %v2584
      %v2586 = vlaneseq
      %v2587 = vshrl.u32 %v2586, 7
      %v2588 = vsub.s32 %v2585, %v2587
      %v2589 = vrot.slane %v1136, %v2588
      %v2590 = vcombine.high %v2589, %v2589
      %v2592 = vunpack.c.l.s4 1983009808
      %v2593 = vunpack.c.0.s8 %v2592
      %v2594 = vlaneseq
      %v2595 = vshrl.u32 %v2594, 7
      %v2596 = vsub.s32 %v2593, %v2595
      %v2597 = vrot.slane %v1326, %v2596
      %v2598 = vcombine.high %v2597, %v2597
      %v2600 = vunpack.c.l.s4 1983009808
      %v2601 = vunpack.c.0.s8 %v2600
      %v2602 = vlaneseq
      %v2603 = vshrl.u32 %v2602, 7
      %v2604 = vsub.s32 %v2601, %v2603
      %v2605 = vrot.slane %v1137, %v2604
      %v2607 = vunpack.c.l.s4 1983009808
      %v2608 = vunpack.c.0.s8 %v2607
      %v2609 = vlaneseq
      %v2610 = vshrl.u32 %v2609, 7
      %v2611 = vsub.s32 %v2608, %v2610
      %v2612 = vrot.slane %v1327, %v2611
      %v2613 = vcombine.high %v2612, %v2612
      %v2615 = vunpack.c.l.s4 1983009808
      %v2616 = vunpack.c.0.s8 %v2615
      %v2617 = vlaneseq
      %v2618 = vshrl.u32 %v2617, 7
      %v2619 = vsub.s32 %v2616, %v2618
      %v2620 = vrot.slane %v1138, %v2619
      %v2621 = vcombine.high %v2620, %v2620
      %v2623 = vunpack.c.l.s4 1983009808
      %v2624 = vunpack.c.0.s8 %v2623
      %v2625 = vlaneseq
      %v2626 = vshrl.u32 %v2625, 7
      %v2627 = vsub.s32 %v2624, %v2626
      %v2628 = vrot.slane %v1328, %v2627
      %v2629 = vcombine.high %v2628, %v2628
      %v2631 = vunpack.c.l.s4 1983009808
      %v2632 = vunpack.c.0.s8 %v2631
      %v2633 = vlaneseq
      %v2634 = vshrl.u32 %v2633, 7
      %v2635 = vsub.s32 %v2632, %v2634
      %v2636 = vrot.slane %v1139, %v2635
      %v2637 = vcombine.high %v2636, %v2636
      %v2639 = vunpack.c.l.s4 1983009808
      %v2640 = vunpack.c.0.s8 %v2639
      %v2641 = vlaneseq
      %v2642 = vshrl.u32 %v2641, 7
      %v2643 = vsub.s32 %v2640, %v2642
      %v2644 = vrot.slane %v1329, %v2643
      %v2645 = vcombine.high %v2644, %v2644
      %v2647 = vunpack.c.l.s4 1983009808
      %v2648 = vunpack.c.0.s8 %v2647
      %v2649 = vlaneseq
      %v2650 = vshrl.u32 %v2649, 7
      %v2651 = vsub.s32 %v2648, %v2650
      %v2652 = vrot.slane %v1140, %v2651
      %v2653 = vcombine.high %v2652, %v2652
      %v2655 = vunpack.c.l.s4 1983009808
      %v2656 = vunpack.c.0.s8 %v2655
      %v2657 = vlaneseq
      %v2658 = vshrl.u32 %v2657, 7
      %v2659 = vsub.s32 %v2656, %v2658
      %v2660 = vrot.slane %v1330, %v2659
      %v2662 = vunpack.c.l.s4 1983009808
      %v2663 = vunpack.c.0.s8 %v2662
      %v2664 = vlaneseq
      %v2665 = vshrl.u32 %v2664, 7
      %v2666 = vsub.s32 %v2663, %v2665
      %v2667 = vrot.slane %v1141, %v2666
      %v2668 = vcombine.high %v2667, %v2667
      %v2670 = vunpack.c.l.s4 1983009808
      %v2671 = vunpack.c.0.s8 %v2670
      %v2672 = vlaneseq
      %v2673 = vshrl.u32 %v2672, 7
      %v2674 = vsub.s32 %v2671, %v2673
      %v2675 = vrot.slane %v1331, %v2674
      %v2676 = vcombine.high %v2675, %v2675
      %v2678 = vunpack.c.l.s4 1983009808
      %v2679 = vunpack.c.0.s8 %v2678
      %v2680 = vlaneseq
      %v2681 = vshrl.u32 %v2680, 7
      %v2682 = vsub.s32 %v2679, %v2681
      %v2683 = vrot.slane %v1142, %v2682
      %v2684 = vcombine.high %v2683, %v2683
      %v2686 = vunpack.c.l.s4 1983009808
      %v2687 = vunpack.c.0.s8 %v2686
      %v2688 = vlaneseq
      %v2689 = vshrl.u32 %v2688, 7
      %v2690 = vsub.s32 %v2687, %v2689
      %v2691 = vrot.slane %v1332, %v2690
      %v2692 = vcombine.high %v2691, %v2691
      %v2694 = vunpack.c.l.s4 1983009808
      %v2695 = vunpack.c.0.s8 %v2694
      %v2696 = vlaneseq
      %v2697 = vshrl.u32 %v2696, 7
      %v2698 = vsub.s32 %v2695, %v2697
      %v2699 = vrot.slane %v1143, %v2698
      %v2700 = vcombine.high %v2699, %v2699
      %v2702 = vunpack.c.l.s4 1983009808
      %v2703 = vunpack.c.0.s8 %v2702
      %v2704 = vlaneseq
      %v2705 = vshrl.u32 %v2704, 7
      %v2706 = vsub.s32 %v2703, %v2705
      %v2707 = vrot.slane %v1333, %v2706
      %v2708 = vcombine.high %v2707, %v2707
      %v2710 = vunpack.c.l.s4 1983009808
      %v2711 = vunpack.c.0.s8 %v2710
      %v2712 = vlaneseq
      %v2713 = vshrl.u32 %v2712, 7
      %v2714 = vsub.s32 %v2711, %v2713
      %v2715 = vrot.slane %v1144, %v2714
      %v2717 = vunpack.c.l.s4 1983009808
      %v2718 = vunpack.c.0.s8 %v2717
      %v2719 = vlaneseq
      %v2720 = vshrl.u32 %v2719, 7
      %v2721 = vsub.s32 %v2718, %v2720
      %v2722 = vrot.slane %v1334, %v2721
      %v2723 = vcombine.high %v2722, %v2722
      %v2725 = vunpack.c.l.s4 1983009808
      %v2726 = vunpack.c.0.s8 %v2725
      %v2727 = vlaneseq
      %v2728 = vshrl.u32 %v2727, 7
      %v2729 = vsub.s32 %v2726, %v2728
      %v2730 = vrot.slane %v1145, %v2729
      %v2731 = vcombine.high %v2730, %v2730
      %v2733 = vunpack.c.l.s4 1983009808
      %v2734 = vunpack.c.0.s8 %v2733
      %v2735 = vlaneseq
      %v2736 = vshrl.u32 %v2735, 7
      %v2737 = vsub.s32 %v2734, %v2736
      %v2738 = vrot.slane %v1335, %v2737
      %v2739 = vcombine.high %v2738, %v2738
      %v2741 = vunpack.c.l.s4 1983009808
      %v2742 = vunpack.c.0.s8 %v2741
      %v2743 = vlaneseq
      %v2744 = vshrl.u32 %v2743, 7
      %v2745 = vsub.s32 %v2742, %v2744
      %v2746 = vrot.slane %v1146, %v2745
      %v2747 = vcombine.high %v2746, %v2746
      %v2749 = vunpack.c.l.s4 1983009808
      %v2750 = vunpack.c.0.s8 %v2749
      %v2751 = vlaneseq
      %v2752 = vshrl.u32 %v2751, 7
      %v2753 = vsub.s32 %v2750, %v2752
      %v2754 = vrot.slane %v1336, %v2753
      %v2755 = vcombine.high %v2754, %v2754
      %v2757 = vunpack.c.l.s4 1983009808
      %v2758 = vunpack.c.0.s8 %v2757
      %v2759 = vlaneseq
      %v2760 = vshrl.u32 %v2759, 7
      %v2761 = vsub.s32 %v2758, %v2760
      %v2762 = vrot.slane %v1147, %v2761
      %v2763 = vcombine.high %v2762, %v2762
      %v2765 = vunpack.c.l.s4 1983009808
      %v2766 = vunpack.c.0.s8 %v2765
      %v2767 = vlaneseq
      %v2768 = vshrl.u32 %v2767, 7
      %v2769 = vsub.s32 %v2766, %v2768
      %v2770 = vrot.slane %v1337, %v2769
      %v2772 = vunpack.c.l.s4 1983009808
      %v2773 = vunpack.c.0.s8 %v2772
      %v2774 = vlaneseq
      %v2775 = vshrl.u32 %v2774, 7
      %v2776 = vsub.s32 %v2773, %v2775
      %v2777 = vrot.slane %v1148, %v2776
      %v2778 = vcombine.high %v2777, %v2777
      %v2780 = vunpack.c.l.s4 1983009808
      %v2781 = vunpack.c.0.s8 %v2780
      %v2782 = vlaneseq
      %v2783 = vshrl.u32 %v2782, 7
      %v2784 = vsub.s32 %v2781, %v2783
      %v2785 = vrot.slane %v1338, %v2784
      %v2786 = vcombine.high %v2785, %v2785
      %v2788 = vunpack.c.l.s4 1983009808
      %v2789 = vunpack.c.0.s8 %v2788
      %v2790 = vlaneseq
      %v2791 = vshrl.u32 %v2790, 7
      %v2792 = vsub.s32 %v2789, %v2791
      %v2793 = vrot.slane %v1149, %v2792
      %v2794 = vcombine.high %v2793, %v2793
      %v2796 = vunpack.c.l.s4 1983009808
      %v2797 = vunpack.c.0.s8 %v2796
      %v2798 = vlaneseq
      %v2799 = vshrl.u32 %v2798, 7
      %v2800 = vsub.s32 %v2797, %v2799
      %v2801 = vrot.slane %v1339, %v2800
      %v2802 = vcombine.high %v2801, %v2801
      %v2804 = vunpack.c.l.s4 1983009808
      %v2805 = vunpack.c.0.s8 %v2804
      %v2806 = vlaneseq
      %v2807 = vshrl.u32 %v2806, 7
      %v2808 = vsub.s32 %v2805, %v2807
      %v2809 = vrot.slane %v1150, %v2808
      %v2810 = vcombine.high %v2809, %v2809
      %v2812 = vunpack.c.l.s4 1983009808
      %v2813 = vunpack.c.0.s8 %v2812
      %v2814 = vlaneseq
      %v2815 = vshrl.u32 %v2814, 7
      %v2816 = vsub.s32 %v2813, %v2815
      %v2817 = vrot.slane %v1340, %v2816
      %v2818 = vcombine.high %v2817, %v2817
      %v2820 = vunpack.c.l.s4 1983009808
      %v2821 = vunpack.c.0.s8 %v2820
      %v2822 = vlaneseq
      %v2823 = vshrl.u32 %v2822, 7
      %v2824 = vsub.s32 %v2821, %v2823
      %v2825 = vrot.slane %v1151, %v2824
      %v3177 = vcombine.high %v1395, %v1395
      %v3178 = vcombine.high %v1450, %v1450
      %v3179 = vcombine.high %v1505, %v1505
      %v3180 = vcombine.high %v1560, %v1560
      %v3181 = vcombine.high %v1615, %v1615
      %v3182 = vcombine.high %v1670, %v1670
      %v3183 = vcombine.high %v1725, %v1725
      %v3184 = vcombine.high %v1780, %v1780
      %v3185 = vcombine.high %v1835, %v1835
      %v3186 = vcombine.high %v1890, %v1890
      %v3187 = vcombine.high %v1945, %v1945
      %v3188 = vcombine.high %v2000, %v2000
      %v3189 = vcombine.high %v2055, %v2055
      %v3190 = vcombine.high %v2110, %v2110
      %v3191 = vcombine.high %v2165, %v2165
      %v3192 = vcombine.high %v2220, %v2220
      %v3193 = vcombine.high %v2275, %v2275
      %v3194 = vcombine.high %v2330, %v2330
      %v3195 = vcombine.high %v2385, %v2385
      %v3196 = vcombine.high %v2440, %v2440
      %v3197 = vcombine.high %v2495, %v2495
      %v3198 = vcombine.high %v2550, %v2550
      %v3199 = vcombine.high %v2605, %v2605
      %v3200 = vcombine.high %v2660, %v2660
      %v3201 = vcombine.high %v2715, %v2715
      %v3202 = vcombine.high %v2770, %v2770
      %v3203 = vcombine.high %v2825, %v2825
      %vm3204 = vcmask 1040384
      %vm3205 = vcmask 1042434
      %vm3206 = vmor %vm3204, %vm3205
      %vm3207 = vcmask 1044484
      %vm3208 = vmor %vm3206, %vm3207
      %vm3209 = vcmask 1046534
      %vm3210 = vmor %vm3208, %vm3209
      %v3211 = vrot.slane %v1347, 7
      %v3212 = vrot.slane %v3211, 2
      %v3213 = vrot.slane %v1348, 7
      %v3214 = vsel %vm3210, %v3212, %v3213
      %v3215 = vrot.slane %v3213, 2
      %v3216 = vrot.slane %v1355, 7
      %v3217 = vsel %vm3210, %v3215, %v3216
      %v3218 = vrot.slane %v3216, 2
      %v3219 = vrot.slane %v1356, 7
      %v3220 = vsel %vm3210, %v3218, %v3219
      %v3221 = vrot.slane %v3219, 2
      %v3222 = vrot.slane %v1363, 7
      %v3223 = vsel %vm3210, %v3221, %v3222
      %v3224 = vrot.slane %v3222, 2
      %v3225 = vrot.slane %v1364, 7
      %v3226 = vsel %vm3210, %v3224, %v3225
      %v3227 = vrot.slane %v3225, 2
      %v3228 = vrot.slane %v1371, 7
      %v3229 = vsel %vm3210, %v3227, %v3228
      %v3230 = vrot.slane %v3228, 2
      %v3231 = vrot.slane %v1372, 7
      %v3232 = vsel %vm3210, %v3230, %v3231
      %v3233 = vrot.slane %v3231, 2
      %v3234 = vrot.slane %v1379, 7
      %v3235 = vsel %vm3210, %v3233, %v3234
      %v3236 = vrot.slane %v3234, 2
      %v3237 = vrot.slane %v1380, 7
      %v3238 = vsel %vm3210, %v3236, %v3237
      %v3239 = vrot.slane %v3237, 2
      %v3240 = vrot.slane %v1387, 7
      %v3241 = vsel %vm3210, %v3239, %v3240
      %v3242 = vrot.slane %v3240, 2
      %v3243 = vrot.slane %v1388, 7
      %v3244 = vsel %vm3210, %v3242, %v3243
      %v3245 = vrot.slane %v3243, 2
      %v3246 = vrot.slane %v1395, 7
      %v3247 = vsel %vm3210, %v3245, %v3246
      %v3248 = vrot.slane %v3246, 2
      %v3249 = vrot.slane %v3177, 7
      %v3250 = vsel %vm3210, %v3248, %v3249
      %v3251 = vrot.slane %v1402, 7
      %v3252 = vrot.slane %v3251, 2
      %v3253 = vrot.slane %v1403, 7
      %v3254 = vsel %vm3210, %v3252, %v3253
      %v3255 = vrot.slane %v3253, 2
      %v3256 = vrot.slane %v1410, 7
      %v3257 = vsel %vm3210, %v3255, %v3256
      %v3258 = vrot.slane %v3256, 2
      %v3259 = vrot.slane %v1411, 7
      %v3260 = vsel %vm3210, %v3258, %v3259
      %v3261 = vrot.slane %v3259, 2
      %v3262 = vrot.slane %v1418, 7
      %v3263 = vsel %vm3210, %v3261, %v3262
      %v3264 = vrot.slane %v3262, 2
      %v3265 = vrot.slane %v1419, 7
      %v3266 = vsel %vm3210, %v3264, %v3265
      %v3267 = vrot.slane %v3265, 2
      %v3268 = vrot.slane %v1426, 7
      %v3269 = vsel %vm3210, %v3267, %v3268
      %v3270 = vrot.slane %v3268, 2
      %v3271 = vrot.slane %v1427, 7
      %v3272 = vsel %vm3210, %v3270, %v3271
      %v3273 = vrot.slane %v3271, 2
      %v3274 = vrot.slane %v1434, 7
      %v3275 = vsel %vm3210, %v3273, %v3274
      %v3276 = vrot.slane %v3274, 2
      %v3277 = vrot.slane %v1435, 7
      %v3278 = vsel %vm3210, %v3276, %v3277
      %v3279 = vrot.slane %v3277, 2
      %v3280 = vrot.slane %v1442, 7
      %v3281 = vsel %vm3210, %v3279, %v3280
      %v3282 = vrot.slane %v3280, 2
      %v3283 = vrot.slane %v1443, 7
      %v3284 = vsel %vm3210, %v3282, %v3283
      %v3285 = vrot.slane %v3283, 2
      %v3286 = vrot.slane %v1450, 7
      %v3287 = vsel %vm3210, %v3285, %v3286
      %v3288 = vrot.slane %v3286, 2
      %v3289 = vrot.slane %v3178, 7
      %v3290 = vsel %vm3210, %v3288, %v3289
      %v3291 = vrot.slane %v1457, 7
      %v3292 = vrot.slane %v3291, 2
      %v3293 = vrot.slane %v1458, 7
      %v3294 = vsel %vm3210, %v3292, %v3293
      %v3295 = vrot.slane %v3293, 2
      %v3296 = vrot.slane %v1465, 7
      %v3297 = vsel %vm3210, %v3295, %v3296
      %v3298 = vrot.slane %v3296, 2
      %v3299 = vrot.slane %v1466, 7
      %v3300 = vsel %vm3210, %v3298, %v3299
      %v3301 = vrot.slane %v3299, 2
      %v3302 = vrot.slane %v1473, 7
      %v3303 = vsel %vm3210, %v3301, %v3302
      %v3304 = vrot.slane %v3302, 2
      %v3305 = vrot.slane %v1474, 7
      %v3306 = vsel %vm3210, %v3304, %v3305
      %v3307 = vrot.slane %v3305, 2
      %v3308 = vrot.slane %v1481, 7
      %v3309 = vsel %vm3210, %v3307, %v3308
      %v3310 = vrot.slane %v3308, 2
      %v3311 = vrot.slane %v1482, 7
      %v3312 = vsel %vm3210, %v3310, %v3311
      %v3313 = vrot.slane %v3311, 2
      %v3314 = vrot.slane %v1489, 7
      %v3315 = vsel %vm3210, %v3313, %v3314
      %v3316 = vrot.slane %v3314, 2
      %v3317 = vrot.slane %v1490, 7
      %v3318 = vsel %vm3210, %v3316, %v3317
      %v3319 = vrot.slane %v3317, 2
      %v3320 = vrot.slane %v1497, 7
      %v3321 = vsel %vm3210, %v3319, %v3320
      %v3322 = vrot.slane %v3320, 2
      %v3323 = vrot.slane %v1498, 7
      %v3324 = vsel %vm3210, %v3322, %v3323
      %v3325 = vrot.slane %v3323, 2
      %v3326 = vrot.slane %v1505, 7
      %v3327 = vsel %vm3210, %v3325, %v3326
      %v3328 = vrot.slane %v3326, 2
      %v3329 = vrot.slane %v3179, 7
      %v3330 = vsel %vm3210, %v3328, %v3329
      %v3331 = vrot.slane %v1512, 7
      %v3332 = vrot.slane %v3331, 2
      %v3333 = vrot.slane %v1513, 7
      %v3334 = vsel %vm3210, %v3332, %v3333
      %v3335 = vrot.slane %v3333, 2
      %v3336 = vrot.slane %v1520, 7
      %v3337 = vsel %vm3210, %v3335, %v3336
      %v3338 = vrot.slane %v3336, 2
      %v3339 = vrot.slane %v1521, 7
      %v3340 = vsel %vm3210, %v3338, %v3339
      %v3341 = vrot.slane %v3339, 2
      %v3342 = vrot.slane %v1528, 7
      %v3343 = vsel %vm3210, %v3341, %v3342
      %v3344 = vrot.slane %v3342, 2
      %v3345 = vrot.slane %v1529, 7
      %v3346 = vsel %vm3210, %v3344, %v3345
      %v3347 = vrot.slane %v3345, 2
      %v3348 = vrot.slane %v1536, 7
      %v3349 = vsel %vm3210, %v3347, %v3348
      %v3350 = vrot.slane %v3348, 2
      %v3351 = vrot.slane %v1537, 7
      %v3352 = vsel %vm3210, %v3350, %v3351
      %v3353 = vrot.slane %v3351, 2
      %v3354 = vrot.slane %v1544, 7
      %v3355 = vsel %vm3210, %v3353, %v3354
      %v3356 = vrot.slane %v3354, 2
      %v3357 = vrot.slane %v1545, 7
      %v3358 = vsel %vm3210, %v3356, %v3357
      %v3359 = vrot.slane %v3357, 2
      %v3360 = vrot.slane %v1552, 7
      %v3361 = vsel %vm3210, %v3359, %v3360
      %v3362 = vrot.slane %v3360, 2
      %v3363 = vrot.slane %v1553, 7
      %v3364 = vsel %vm3210, %v3362, %v3363
      %v3365 = vrot.slane %v3363, 2
      %v3366 = vrot.slane %v1560, 7
      %v3367 = vsel %vm3210, %v3365, %v3366
      %v3368 = vrot.slane %v3366, 2
      %v3369 = vrot.slane %v3180, 7
      %v3370 = vsel %vm3210, %v3368, %v3369
      %v3371 = vrot.slane %v1567, 7
      %v3372 = vrot.slane %v3371, 2
      %v3373 = vrot.slane %v1568, 7
      %v3374 = vsel %vm3210, %v3372, %v3373
      %v3375 = vrot.slane %v3373, 2
      %v3376 = vrot.slane %v1575, 7
      %v3377 = vsel %vm3210, %v3375, %v3376
      %v3378 = vrot.slane %v3376, 2
      %v3379 = vrot.slane %v1576, 7
      %v3380 = vsel %vm3210, %v3378, %v3379
      %v3381 = vrot.slane %v3379, 2
      %v3382 = vrot.slane %v1583, 7
      %v3383 = vsel %vm3210, %v3381, %v3382
      %v3384 = vrot.slane %v3382, 2
      %v3385 = vrot.slane %v1584, 7
      %v3386 = vsel %vm3210, %v3384, %v3385
      %v3387 = vrot.slane %v3385, 2
      %v3388 = vrot.slane %v1591, 7
      %v3389 = vsel %vm3210, %v3387, %v3388
      %v3390 = vrot.slane %v3388, 2
      %v3391 = vrot.slane %v1592, 7
      %v3392 = vsel %vm3210, %v3390, %v3391
      %v3393 = vrot.slane %v3391, 2
      %v3394 = vrot.slane %v1599, 7
      %v3395 = vsel %vm3210, %v3393, %v3394
      %v3396 = vrot.slane %v3394, 2
      %v3397 = vrot.slane %v1600, 7
      %v3398 = vsel %vm3210, %v3396, %v3397
      %v3399 = vrot.slane %v3397, 2
      %v3400 = vrot.slane %v1607, 7
      %v3401 = vsel %vm3210, %v3399, %v3400
      %v3402 = vrot.slane %v3400, 2
      %v3403 = vrot.slane %v1608, 7
      %v3404 = vsel %vm3210, %v3402, %v3403
      %v3405 = vrot.slane %v3403, 2
      %v3406 = vrot.slane %v1615, 7
      %v3407 = vsel %vm3210, %v3405, %v3406
      %v3408 = vrot.slane %v3406, 2
      %v3409 = vrot.slane %v3181, 7
      %v3410 = vsel %vm3210, %v3408, %v3409
      %v3411 = vrot.slane %v1622, 7
      %v3412 = vrot.slane %v3411, 2
      %v3413 = vrot.slane %v1623, 7
      %v3414 = vsel %vm3210, %v3412, %v3413
      %v3415 = vrot.slane %v3413, 2
      %v3416 = vrot.slane %v1630, 7
      %v3417 = vsel %vm3210, %v3415, %v3416
      %v3418 = vrot.slane %v3416, 2
      %v3419 = vrot.slane %v1631, 7
      %v3420 = vsel %vm3210, %v3418, %v3419
      %v3421 = vrot.slane %v3419, 2
      %v3422 = vrot.slane %v1638, 7
      %v3423 = vsel %vm3210, %v3421, %v3422
      %v3424 = vrot.slane %v3422, 2
      %v3425 = vrot.slane %v1639, 7
      %v3426 = vsel %vm3210, %v3424, %v3425
      %v3427 = vrot.slane %v3425, 2
      %v3428 = vrot.slane %v1646, 7
      %v3429 = vsel %vm3210, %v3427, %v3428
      %v3430 = vrot.slane %v3428, 2
      %v3431 = vrot.slane %v1647, 7
      %v3432 = vsel %vm3210, %v3430, %v3431
      %v3433 = vrot.slane %v3431, 2
      %v3434 = vrot.slane %v1654, 7
      %v3435 = vsel %vm3210, %v3433, %v3434
      %v3436 = vrot.slane %v3434, 2
      %v3437 = vrot.slane %v1655, 7
      %v3438 = vsel %vm3210, %v3436, %v3437
      %v3439 = vrot.slane %v3437, 2
      %v3440 = vrot.slane %v1662, 7
      %v3441 = vsel %vm3210, %v3439, %v3440
      %v3442 = vrot.slane %v3440, 2
      %v3443 = vrot.slane %v1663, 7
      %v3444 = vsel %vm3210, %v3442, %v3443
      %v3445 = vrot.slane %v3443, 2
      %v3446 = vrot.slane %v1670, 7
      %v3447 = vsel %vm3210, %v3445, %v3446
      %v3448 = vrot.slane %v3446, 2
      %v3449 = vrot.slane %v3182, 7
      %v3450 = vsel %vm3210, %v3448, %v3449
      %v3451 = vrot.slane %v1677, 7
      %v3452 = vrot.slane %v3451, 2
      %v3453 = vrot.slane %v1678, 7
      %v3454 = vsel %vm3210, %v3452, %v3453
      %v3455 = vrot.slane %v3453, 2
      %v3456 = vrot.slane %v1685, 7
      %v3457 = vsel %vm3210, %v3455, %v3456
      %v3458 = vrot.slane %v3456, 2
      %v3459 = vrot.slane %v1686, 7
      %v3460 = vsel %vm3210, %v3458, %v3459
      %v3461 = vrot.slane %v3459, 2
      %v3462 = vrot.slane %v1693, 7
      %v3463 = vsel %vm3210, %v3461, %v3462
      %v3464 = vrot.slane %v3462, 2
      %v3465 = vrot.slane %v1694, 7
      %v3466 = vsel %vm3210, %v3464, %v3465
      %v3467 = vrot.slane %v3465, 2
      %v3468 = vrot.slane %v1701, 7
      %v3469 = vsel %vm3210, %v3467, %v3468
      %v3470 = vrot.slane %v3468, 2
      %v3471 = vrot.slane %v1702, 7
      %v3472 = vsel %vm3210, %v3470, %v3471
      %v3473 = vrot.slane %v3471, 2
      %v3474 = vrot.slane %v1709, 7
      %v3475 = vsel %vm3210, %v3473, %v3474
      %v3476 = vrot.slane %v3474, 2
      %v3477 = vrot.slane %v1710, 7
      %v3478 = vsel %vm3210, %v3476, %v3477
      %v3479 = vrot.slane %v3477, 2
      %v3480 = vrot.slane %v1717, 7
      %v3481 = vsel %vm3210, %v3479, %v3480
      %v3482 = vrot.slane %v3480, 2
      %v3483 = vrot.slane %v1718, 7
      %v3484 = vsel %vm3210, %v3482, %v3483
      %v3485 = vrot.slane %v3483, 2
      %v3486 = vrot.slane %v1725, 7
      %v3487 = vsel %vm3210, %v3485, %v3486
      %v3488 = vrot.slane %v3486, 2
      %v3489 = vrot.slane %v3183, 7
      %v3490 = vsel %vm3210, %v3488, %v3489
      %v3491 = vrot.slane %v1732, 7
      %v3492 = vrot.slane %v3491, 2
      %v3493 = vrot.slane %v1733, 7
      %v3494 = vsel %vm3210, %v3492, %v3493
      %v3495 = vrot.slane %v3493, 2
      %v3496 = vrot.slane %v1740, 7
      %v3497 = vsel %vm3210, %v3495, %v3496
      %v3498 = vrot.slane %v3496, 2
      %v3499 = vrot.slane %v1741, 7
      %v3500 = vsel %vm3210, %v3498, %v3499
      %v3501 = vrot.slane %v3499, 2
      %v3502 = vrot.slane %v1748, 7
      %v3503 = vsel %vm3210, %v3501, %v3502
      %v3504 = vrot.slane %v3502, 2
      %v3505 = vrot.slane %v1749, 7
      %v3506 = vsel %vm3210, %v3504, %v3505
      %v3507 = vrot.slane %v3505, 2
      %v3508 = vrot.slane %v1756, 7
      %v3509 = vsel %vm3210, %v3507, %v3508
      %v3510 = vrot.slane %v3508, 2
      %v3511 = vrot.slane %v1757, 7
      %v3512 = vsel %vm3210, %v3510, %v3511
      %v3513 = vrot.slane %v3511, 2
      %v3514 = vrot.slane %v1764, 7
      %v3515 = vsel %vm3210, %v3513, %v3514
      %v3516 = vrot.slane %v3514, 2
      %v3517 = vrot.slane %v1765, 7
      %v3518 = vsel %vm3210, %v3516, %v3517
      %v3519 = vrot.slane %v3517, 2
      %v3520 = vrot.slane %v1772, 7
      %v3521 = vsel %vm3210, %v3519, %v3520
      %v3522 = vrot.slane %v3520, 2
      %v3523 = vrot.slane %v1773, 7
      %v3524 = vsel %vm3210, %v3522, %v3523
      %v3525 = vrot.slane %v3523, 2
      %v3526 = vrot.slane %v1780, 7
      %v3527 = vsel %vm3210, %v3525, %v3526
      %v3528 = vrot.slane %v3526, 2
      %v3529 = vrot.slane %v3184, 7
      %v3530 = vsel %vm3210, %v3528, %v3529
      %v3531 = vrot.slane %v1787, 7
      %v3532 = vrot.slane %v3531, 2
      %v3533 = vrot.slane %v1788, 7
      %v3534 = vsel %vm3210, %v3532, %v3533
      %v3535 = vrot.slane %v3533, 2
      %v3536 = vrot.slane %v1795, 7
      %v3537 = vsel %vm3210, %v3535, %v3536
      %v3538 = vrot.slane %v3536, 2
      %v3539 = vrot.slane %v1796, 7
      %v3540 = vsel %vm3210, %v3538, %v3539
      %v3541 = vrot.slane %v3539, 2
      %v3542 = vrot.slane %v1803, 7
      %v3543 = vsel %vm3210, %v3541, %v3542
      %v3544 = vrot.slane %v3542, 2
      %v3545 = vrot.slane %v1804, 7
      %v3546 = vsel %vm3210, %v3544, %v3545
      %v3547 = vrot.slane %v3545, 2
      %v3548 = vrot.slane %v1811, 7
      %v3549 = vsel %vm3210, %v3547, %v3548
      %v3550 = vrot.slane %v3548, 2
      %v3551 = vrot.slane %v1812, 7
      %v3552 = vsel %vm3210, %v3550, %v3551
      %v3553 = vrot.slane %v3551, 2
      %v3554 = vrot.slane %v1819, 7
      %v3555 = vsel %vm3210, %v3553, %v3554
      %v3556 = vrot.slane %v3554, 2
      %v3557 = vrot.slane %v1820, 7
      %v3558 = vsel %vm3210, %v3556, %v3557
      %v3559 = vrot.slane %v3557, 2
      %v3560 = vrot.slane %v1827, 7
      %v3561 = vsel %vm3210, %v3559, %v3560
      %v3562 = vrot.slane %v3560, 2
      %v3563 = vrot.slane %v1828, 7
      %v3564 = vsel %vm3210, %v3562, %v3563
      %v3565 = vrot.slane %v3563, 2
      %v3566 = vrot.slane %v1835, 7
      %v3567 = vsel %vm3210, %v3565, %v3566
      %v3568 = vrot.slane %v3566, 2
      %v3569 = vrot.slane %v3185, 7
      %v3570 = vsel %vm3210, %v3568, %v3569
      %v3571 = vrot.slane %v1842, 7
      %v3572 = vrot.slane %v3571, 2
      %v3573 = vrot.slane %v1843, 7
      %v3574 = vsel %vm3210, %v3572, %v3573
      %v3575 = vrot.slane %v3573, 2
      %v3576 = vrot.slane %v1850, 7
      %v3577 = vsel %vm3210, %v3575, %v3576
      %v3578 = vrot.slane %v3576, 2
      %v3579 = vrot.slane %v1851, 7
      %v3580 = vsel %vm3210, %v3578, %v3579
      %v3581 = vrot.slane %v3579, 2
      %v3582 = vrot.slane %v1858, 7
      %v3583 = vsel %vm3210, %v3581, %v3582
      %v3584 = vrot.slane %v3582, 2
      %v3585 = vrot.slane %v1859, 7
      %v3586 = vsel %vm3210, %v3584, %v3585
      %v3587 = vrot.slane %v3585, 2
      %v3588 = vrot.slane %v1866, 7
      %v3589 = vsel %vm3210, %v3587, %v3588
      %v3590 = vrot.slane %v3588, 2
      %v3591 = vrot.slane %v1867, 7
      %v3592 = vsel %vm3210, %v3590, %v3591
      %v3593 = vrot.slane %v3591, 2
      %v3594 = vrot.slane %v1874, 7
      %v3595 = vsel %vm3210, %v3593, %v3594
      %v3596 = vrot.slane %v3594, 2
      %v3597 = vrot.slane %v1875, 7
      %v3598 = vsel %vm3210, %v3596, %v3597
      %v3599 = vrot.slane %v3597, 2
      %v3600 = vrot.slane %v1882, 7
      %v3601 = vsel %vm3210, %v3599, %v3600
      %v3602 = vrot.slane %v3600, 2
      %v3603 = vrot.slane %v1883, 7
      %v3604 = vsel %vm3210, %v3602, %v3603
      %v3605 = vrot.slane %v3603, 2
      %v3606 = vrot.slane %v1890, 7
      %v3607 = vsel %vm3210, %v3605, %v3606
      %v3608 = vrot.slane %v3606, 2
      %v3609 = vrot.slane %v3186, 7
      %v3610 = vsel %vm3210, %v3608, %v3609
      %v3611 = vrot.slane %v1897, 7
      %v3612 = vrot.slane %v3611, 2
      %v3613 = vrot.slane %v1898, 7
      %v3614 = vsel %vm3210, %v3612, %v3613
      %v3615 = vrot.slane %v3613, 2
      %v3616 = vrot.slane %v1905, 7
      %v3617 = vsel %vm3210, %v3615, %v3616
      %v3618 = vrot.slane %v3616, 2
      %v3619 = vrot.slane %v1906, 7
      %v3620 = vsel %vm3210, %v3618, %v3619
      %v3621 = vrot.slane %v3619, 2
      %v3622 = vrot.slane %v1913, 7
      %v3623 = vsel %vm3210, %v3621, %v3622
      %v3624 = vrot.slane %v3622, 2
      %v3625 = vrot.slane %v1914, 7
      %v3626 = vsel %vm3210, %v3624, %v3625
      %v3627 = vrot.slane %v3625, 2
      %v3628 = vrot.slane %v1921, 7
      %v3629 = vsel %vm3210, %v3627, %v3628
      %v3630 = vrot.slane %v3628, 2
      %v3631 = vrot.slane %v1922, 7
      %v3632 = vsel %vm3210, %v3630, %v3631
      %v3633 = vrot.slane %v3631, 2
      %v3634 = vrot.slane %v1929, 7
      %v3635 = vsel %vm3210, %v3633, %v3634
      %v3636 = vrot.slane %v3634, 2
      %v3637 = vrot.slane %v1930, 7
      %v3638 = vsel %vm3210, %v3636, %v3637
      %v3639 = vrot.slane %v3637, 2
      %v3640 = vrot.slane %v1937, 7
      %v3641 = vsel %vm3210, %v3639, %v3640
      %v3642 = vrot.slane %v3640, 2
      %v3643 = vrot.slane %v1938, 7
      %v3644 = vsel %vm3210, %v3642, %v3643
      %v3645 = vrot.slane %v3643, 2
      %v3646 = vrot.slane %v1945, 7
      %v3647 = vsel %vm3210, %v3645, %v3646
      %v3648 = vrot.slane %v3646, 2
      %v3649 = vrot.slane %v3187, 7
      %v3650 = vsel %vm3210, %v3648, %v3649
      %v3651 = vrot.slane %v1952, 7
      %v3652 = vrot.slane %v3651, 2
      %v3653 = vrot.slane %v1953, 7
      %v3654 = vsel %vm3210, %v3652, %v3653
      %v3655 = vrot.slane %v3653, 2
      %v3656 = vrot.slane %v1960, 7
      %v3657 = vsel %vm3210, %v3655, %v3656
      %v3658 = vrot.slane %v3656, 2
      %v3659 = vrot.slane %v1961, 7
      %v3660 = vsel %vm3210, %v3658, %v3659
      %v3661 = vrot.slane %v3659, 2
      %v3662 = vrot.slane %v1968, 7
      %v3663 = vsel %vm3210, %v3661, %v3662
      %v3664 = vrot.slane %v3662, 2
      %v3665 = vrot.slane %v1969, 7
      %v3666 = vsel %vm3210, %v3664, %v3665
      %v3667 = vrot.slane %v3665, 2
      %v3668 = vrot.slane %v1976, 7
      %v3669 = vsel %vm3210, %v3667, %v3668
      %v3670 = vrot.slane %v3668, 2
      %v3671 = vrot.slane %v1977, 7
      %v3672 = vsel %vm3210, %v3670, %v3671
      %v3673 = vrot.slane %v3671, 2
      %v3674 = vrot.slane %v1984, 7
      %v3675 = vsel %vm3210, %v3673, %v3674
      %v3676 = vrot.slane %v3674, 2
      %v3677 = vrot.slane %v1985, 7
      %v3678 = vsel %vm3210, %v3676, %v3677
      %v3679 = vrot.slane %v3677, 2
      %v3680 = vrot.slane %v1992, 7
      %v3681 = vsel %vm3210, %v3679, %v3680
      %v3682 = vrot.slane %v3680, 2
      %v3683 = vrot.slane %v1993, 7
      %v3684 = vsel %vm3210, %v3682, %v3683
      %v3685 = vrot.slane %v3683, 2
      %v3686 = vrot.slane %v2000, 7
      %v3687 = vsel %vm3210, %v3685, %v3686
      %v3688 = vrot.slane %v3686, 2
      %v3689 = vrot.slane %v3188, 7
      %v3690 = vsel %vm3210, %v3688, %v3689
      %v3691 = vrot.slane %v2007, 7
      %v3692 = vrot.slane %v3691, 2
      %v3693 = vrot.slane %v2008, 7
      %v3694 = vsel %vm3210, %v3692, %v3693
      %v3695 = vrot.slane %v3693, 2
      %v3696 = vrot.slane %v2015, 7
      %v3697 = vsel %vm3210, %v3695, %v3696
      %v3698 = vrot.slane %v3696, 2
      %v3699 = vrot.slane %v2016, 7
      %v3700 = vsel %vm3210, %v3698, %v3699
      %v3701 = vrot.slane %v3699, 2
      %v3702 = vrot.slane %v2023, 7
      %v3703 = vsel %vm3210, %v3701, %v3702
      %v3704 = vrot.slane %v3702, 2
      %v3705 = vrot.slane %v2024, 7
      %v3706 = vsel %vm3210, %v3704, %v3705
      %v3707 = vrot.slane %v3705, 2
      %v3708 = vrot.slane %v2031, 7
      %v3709 = vsel %vm3210, %v3707, %v3708
      %v3710 = vrot.slane %v3708, 2
      %v3711 = vrot.slane %v2032, 7
      %v3712 = vsel %vm3210, %v3710, %v3711
      %v3713 = vrot.slane %v3711, 2
      %v3714 = vrot.slane %v2039, 7
      %v3715 = vsel %vm3210, %v3713, %v3714
      %v3716 = vrot.slane %v3714, 2
      %v3717 = vrot.slane %v2040, 7
      %v3718 = vsel %vm3210, %v3716, %v3717
      %v3719 = vrot.slane %v3717, 2
      %v3720 = vrot.slane %v2047, 7
      %v3721 = vsel %vm3210, %v3719, %v3720
      %v3722 = vrot.slane %v3720, 2
      %v3723 = vrot.slane %v2048, 7
      %v3724 = vsel %vm3210, %v3722, %v3723
      %v3725 = vrot.slane %v3723, 2
      %v3726 = vrot.slane %v2055, 7
      %v3727 = vsel %vm3210, %v3725, %v3726
      %v3728 = vrot.slane %v3726, 2
      %v3729 = vrot.slane %v3189, 7
      %v3730 = vsel %vm3210, %v3728, %v3729
      %v3731 = vrot.slane %v2062, 7
      %v3732 = vrot.slane %v3731, 2
      %v3733 = vrot.slane %v2063, 7
      %v3734 = vsel %vm3210, %v3732, %v3733
      %v3735 = vrot.slane %v3733, 2
      %v3736 = vrot.slane %v2070, 7
      %v3737 = vsel %vm3210, %v3735, %v3736
      %v3738 = vrot.slane %v3736, 2
      %v3739 = vrot.slane %v2071, 7
      %v3740 = vsel %vm3210, %v3738, %v3739
      %v3741 = vrot.slane %v3739, 2
      %v3742 = vrot.slane %v2078, 7
      %v3743 = vsel %vm3210, %v3741, %v3742
      %v3744 = vrot.slane %v3742, 2
      %v3745 = vrot.slane %v2079, 7
      %v3746 = vsel %vm3210, %v3744, %v3745
      %v3747 = vrot.slane %v3745, 2
      %v3748 = vrot.slane %v2086, 7
      %v3749 = vsel %vm3210, %v3747, %v3748
      %v3750 = vrot.slane %v3748, 2
      %v3751 = vrot.slane %v2087, 7
      %v3752 = vsel %vm3210, %v3750, %v3751
      %v3753 = vrot.slane %v3751, 2
      %v3754 = vrot.slane %v2094, 7
      %v3755 = vsel %vm3210, %v3753, %v3754
      %v3756 = vrot.slane %v3754, 2
      %v3757 = vrot.slane %v2095, 7
      %v3758 = vsel %vm3210, %v3756, %v3757
      %v3759 = vrot.slane %v3757, 2
      %v3760 = vrot.slane %v2102, 7
      %v3761 = vsel %vm3210, %v3759, %v3760
      %v3762 = vrot.slane %v3760, 2
      %v3763 = vrot.slane %v2103, 7
      %v3764 = vsel %vm3210, %v3762, %v3763
      %v3765 = vrot.slane %v3763, 2
      %v3766 = vrot.slane %v2110, 7
      %v3767 = vsel %vm3210, %v3765, %v3766
      %v3768 = vrot.slane %v3766, 2
      %v3769 = vrot.slane %v3190, 7
      %v3770 = vsel %vm3210, %v3768, %v3769
      %v3771 = vrot.slane %v2117, 7
      %v3772 = vrot.slane %v3771, 2
      %v3773 = vrot.slane %v2118, 7
      %v3774 = vsel %vm3210, %v3772, %v3773
      %v3775 = vrot.slane %v3773, 2
      %v3776 = vrot.slane %v2125, 7
      %v3777 = vsel %vm3210, %v3775, %v3776
      %v3778 = vrot.slane %v3776, 2
      %v3779 = vrot.slane %v2126, 7
      %v3780 = vsel %vm3210, %v3778, %v3779
      %v3781 = vrot.slane %v3779, 2
      %v3782 = vrot.slane %v2133, 7
      %v3783 = vsel %vm3210, %v3781, %v3782
      %v3784 = vrot.slane %v3782, 2
      %v3785 = vrot.slane %v2134, 7
      %v3786 = vsel %vm3210, %v3784, %v3785
      %v3787 = vrot.slane %v3785, 2
      %v3788 = vrot.slane %v2141, 7
      %v3789 = vsel %vm3210, %v3787, %v3788
      %v3790 = vrot.slane %v3788, 2
      %v3791 = vrot.slane %v2142, 7
      %v3792 = vsel %vm3210, %v3790, %v3791
      %v3793 = vrot.slane %v3791, 2
      %v3794 = vrot.slane %v2149, 7
      %v3795 = vsel %vm3210, %v3793, %v3794
      %v3796 = vrot.slane %v3794, 2
      %v3797 = vrot.slane %v2150, 7
      %v3798 = vsel %vm3210, %v3796, %v3797
      %v3799 = vrot.slane %v3797, 2
      %v3800 = vrot.slane %v2157, 7
      %v3801 = vsel %vm3210, %v3799, %v3800
      %v3802 = vrot.slane %v3800, 2
      %v3803 = vrot.slane %v2158, 7
      %v3804 = vsel %vm3210, %v3802, %v3803
      %v3805 = vrot.slane %v3803, 2
      %v3806 = vrot.slane %v2165, 7
      %v3807 = vsel %vm3210, %v3805, %v3806
      %v3808 = vrot.slane %v3806, 2
      %v3809 = vrot.slane %v3191, 7
      %v3810 = vsel %vm3210, %v3808, %v3809
      %v3811 = vrot.slane %v2172, 7
      %v3812 = vrot.slane %v3811, 2
      %v3813 = vrot.slane %v2173, 7
      %v3814 = vsel %vm3210, %v3812, %v3813
      %v3815 = vrot.slane %v3813, 2
      %v3816 = vrot.slane %v2180, 7
      %v3817 = vsel %vm3210, %v3815, %v3816
      %v3818 = vrot.slane %v3816, 2
      %v3819 = vrot.slane %v2181, 7
      %v3820 = vsel %vm3210, %v3818, %v3819
      %v3821 = vrot.slane %v3819, 2
      %v3822 = vrot.slane %v2188, 7
      %v3823 = vsel %vm3210, %v3821, %v3822
      %v3824 = vrot.slane %v3822, 2
      %v3825 = vrot.slane %v2189, 7
      %v3826 = vsel %vm3210, %v3824, %v3825
      %v3827 = vrot.slane %v3825, 2
      %v3828 = vrot.slane %v2196, 7
      %v3829 = vsel %vm3210, %v3827, %v3828
      %v3830 = vrot.slane %v3828, 2
      %v3831 = vrot.slane %v2197, 7
      %v3832 = vsel %vm3210, %v3830, %v3831
      %v3833 = vrot.slane %v3831, 2
      %v3834 = vrot.slane %v2204, 7
      %v3835 = vsel %vm3210, %v3833, %v3834
      %v3836 = vrot.slane %v3834, 2
      %v3837 = vrot.slane %v2205, 7
      %v3838 = vsel %vm3210, %v3836, %v3837
      %v3839 = vrot.slane %v3837, 2
      %v3840 = vrot.slane %v2212, 7
      %v3841 = vsel %vm3210, %v3839, %v3840
      %v3842 = vrot.slane %v3840, 2
      %v3843 = vrot.slane %v2213, 7
      %v3844 = vsel %vm3210, %v3842, %v3843
      %v3845 = vrot.slane %v3843, 2
      %v3846 = vrot.slane %v2220, 7
      %v3847 = vsel %vm3210, %v3845, %v3846
      %v3848 = vrot.slane %v3846, 2
      %v3849 = vrot.slane %v3192, 7
      %v3850 = vsel %vm3210, %v3848, %v3849
      %v3851 = vrot.slane %v2227, 7
      %v3852 = vrot.slane %v3851, 2
      %v3853 = vrot.slane %v2228, 7
      %v3854 = vsel %vm3210, %v3852, %v3853
      %v3855 = vrot.slane %v3853, 2
      %v3856 = vrot.slane %v2235, 7
      %v3857 = vsel %vm3210, %v3855, %v3856
      %v3858 = vrot.slane %v3856, 2
      %v3859 = vrot.slane %v2236, 7
      %v3860 = vsel %vm3210, %v3858, %v3859
      %v3861 = vrot.slane %v3859, 2
      %v3862 = vrot.slane %v2243, 7
      %v3863 = vsel %vm3210, %v3861, %v3862
      %v3864 = vrot.slane %v3862, 2
      %v3865 = vrot.slane %v2244, 7
      %v3866 = vsel %vm3210, %v3864, %v3865
      %v3867 = vrot.slane %v3865, 2
      %v3868 = vrot.slane %v2251, 7
      %v3869 = vsel %vm3210, %v3867, %v3868
      %v3870 = vrot.slane %v3868, 2
      %v3871 = vrot.slane %v2252, 7
      %v3872 = vsel %vm3210, %v3870, %v3871
      %v3873 = vrot.slane %v3871, 2
      %v3874 = vrot.slane %v2259, 7
      %v3875 = vsel %vm3210, %v3873, %v3874
      %v3876 = vrot.slane %v3874, 2
      %v3877 = vrot.slane %v2260, 7
      %v3878 = vsel %vm3210, %v3876, %v3877
      %v3879 = vrot.slane %v3877, 2
      %v3880 = vrot.slane %v2267, 7
      %v3881 = vsel %vm3210, %v3879, %v3880
      %v3882 = vrot.slane %v3880, 2
      %v3883 = vrot.slane %v2268, 7
      %v3884 = vsel %vm3210, %v3882, %v3883
      %v3885 = vrot.slane %v3883, 2
      %v3886 = vrot.slane %v2275, 7
      %v3887 = vsel %vm3210, %v3885, %v3886
      %v3888 = vrot.slane %v3886, 2
      %v3889 = vrot.slane %v3193, 7
      %v3890 = vsel %vm3210, %v3888, %v3889
      %v3891 = vrot.slane %v2282, 7
      %v3892 = vrot.slane %v3891, 2
      %v3893 = vrot.slane %v2283, 7
      %v3894 = vsel %vm3210, %v3892, %v3893
      %v3895 = vrot.slane %v3893, 2
      %v3896 = vrot.slane %v2290, 7
      %v3897 = vsel %vm3210, %v3895, %v3896
      %v3898 = vrot.slane %v3896, 2
      %v3899 = vrot.slane %v2291, 7
      %v3900 = vsel %vm3210, %v3898, %v3899
      %v3901 = vrot.slane %v3899, 2
      %v3902 = vrot.slane %v2298, 7
      %v3903 = vsel %vm3210, %v3901, %v3902
      %v3904 = vrot.slane %v3902, 2
      %v3905 = vrot.slane %v2299, 7
      %v3906 = vsel %vm3210, %v3904, %v3905
      %v3907 = vrot.slane %v3905, 2
      %v3908 = vrot.slane %v2306, 7
      %v3909 = vsel %vm3210, %v3907, %v3908
      %v3910 = vrot.slane %v3908, 2
      %v3911 = vrot.slane %v2307, 7
      %v3912 = vsel %vm3210, %v3910, %v3911
      %v3913 = vrot.slane %v3911, 2
      %v3914 = vrot.slane %v2314, 7
      %v3915 = vsel %vm3210, %v3913, %v3914
      %v3916 = vrot.slane %v3914, 2
      %v3917 = vrot.slane %v2315, 7
      %v3918 = vsel %vm3210, %v3916, %v3917
      %v3919 = vrot.slane %v3917, 2
      %v3920 = vrot.slane %v2322, 7
      %v3921 = vsel %vm3210, %v3919, %v3920
      %v3922 = vrot.slane %v3920, 2
      %v3923 = vrot.slane %v2323, 7
      %v3924 = vsel %vm3210, %v3922, %v3923
      %v3925 = vrot.slane %v3923, 2
      %v3926 = vrot.slane %v2330, 7
      %v3927 = vsel %vm3210, %v3925, %v3926
      %v3928 = vrot.slane %v3926, 2
      %v3929 = vrot.slane %v3194, 7
      %v3930 = vsel %vm3210, %v3928, %v3929
      %v3931 = vrot.slane %v2337, 7
      %v3932 = vrot.slane %v3931, 2
      %v3933 = vrot.slane %v2338, 7
      %v3934 = vsel %vm3210, %v3932, %v3933
      %v3935 = vrot.slane %v3933, 2
      %v3936 = vrot.slane %v2345, 7
      %v3937 = vsel %vm3210, %v3935, %v3936
      %v3938 = vrot.slane %v3936, 2
      %v3939 = vrot.slane %v2346, 7
      %v3940 = vsel %vm3210, %v3938, %v3939
      %v3941 = vrot.slane %v3939, 2
      %v3942 = vrot.slane %v2353, 7
      %v3943 = vsel %vm3210, %v3941, %v3942
      %v3944 = vrot.slane %v3942, 2
      %v3945 = vrot.slane %v2354, 7
      %v3946 = vsel %vm3210, %v3944, %v3945
      %v3947 = vrot.slane %v3945, 2
      %v3948 = vrot.slane %v2361, 7
      %v3949 = vsel %vm3210, %v3947, %v3948
      %v3950 = vrot.slane %v3948, 2
      %v3951 = vrot.slane %v2362, 7
      %v3952 = vsel %vm3210, %v3950, %v3951
      %v3953 = vrot.slane %v3951, 2
      %v3954 = vrot.slane %v2369, 7
      %v3955 = vsel %vm3210, %v3953, %v3954
      %v3956 = vrot.slane %v3954, 2
      %v3957 = vrot.slane %v2370, 7
      %v3958 = vsel %vm3210, %v3956, %v3957
      %v3959 = vrot.slane %v3957, 2
      %v3960 = vrot.slane %v2377, 7
      %v3961 = vsel %vm3210, %v3959, %v3960
      %v3962 = vrot.slane %v3960, 2
      %v3963 = vrot.slane %v2378, 7
      %v3964 = vsel %vm3210, %v3962, %v3963
      %v3965 = vrot.slane %v3963, 2
      %v3966 = vrot.slane %v2385, 7
      %v3967 = vsel %vm3210, %v3965, %v3966
      %v3968 = vrot.slane %v3966, 2
      %v3969 = vrot.slane %v3195, 7
      %v3970 = vsel %vm3210, %v3968, %v3969
      %v3971 = vrot.slane %v2392, 7
      %v3972 = vrot.slane %v3971, 2
      %v3973 = vrot.slane %v2393, 7
      %v3974 = vsel %vm3210, %v3972, %v3973
      %v3975 = vrot.slane %v3973, 2
      %v3976 = vrot.slane %v2400, 7
      %v3977 = vsel %vm3210, %v3975, %v3976
      %v3978 = vrot.slane %v3976, 2
      %v3979 = vrot.slane %v2401, 7
      %v3980 = vsel %vm3210, %v3978, %v3979
      %v3981 = vrot.slane %v3979, 2
      %v3982 = vrot.slane %v2408, 7
      %v3983 = vsel %vm3210, %v3981, %v3982
      %v3984 = vrot.slane %v3982, 2
      %v3985 = vrot.slane %v2409, 7
      %v3986 = vsel %vm3210, %v3984, %v3985
      %v3987 = vrot.slane %v3985, 2
      %v3988 = vrot.slane %v2416, 7
      %v3989 = vsel %vm3210, %v3987, %v3988
      %v3990 = vrot.slane %v3988, 2
      %v3991 = vrot.slane %v2417, 7
      %v3992 = vsel %vm3210, %v3990, %v3991
      %v3993 = vrot.slane %v3991, 2
      %v3994 = vrot.slane %v2424, 7
      %v3995 = vsel %vm3210, %v3993, %v3994
      %v3996 = vrot.slane %v3994, 2
      %v3997 = vrot.slane %v2425, 7
      %v3998 = vsel %vm3210, %v3996, %v3997
      %v3999 = vrot.slane %v3997, 2
      %v4000 = vrot.slane %v2432, 7
      %v4001 = vsel %vm3210, %v3999, %v4000
      %v4002 = vrot.slane %v4000, 2
      %v4003 = vrot.slane %v2433, 7
      %v4004 = vsel %vm3210, %v4002, %v4003
      %v4005 = vrot.slane %v4003, 2
      %v4006 = vrot.slane %v2440, 7
      %v4007 = vsel %vm3210, %v4005, %v4006
      %v4008 = vrot.slane %v4006, 2
      %v4009 = vrot.slane %v3196, 7
      %v4010 = vsel %vm3210, %v4008, %v4009
      %v4011 = vrot.slane %v2447, 7
      %v4012 = vrot.slane %v4011, 2
      %v4013 = vrot.slane %v2448, 7
      %v4014 = vsel %vm3210, %v4012, %v4013
      %v4015 = vrot.slane %v4013, 2
      %v4016 = vrot.slane %v2455, 7
      %v4017 = vsel %vm3210, %v4015, %v4016
      %v4018 = vrot.slane %v4016, 2
      %v4019 = vrot.slane %v2456, 7
      %v4020 = vsel %vm3210, %v4018, %v4019
      %v4021 = vrot.slane %v4019, 2
      %v4022 = vrot.slane %v2463, 7
      %v4023 = vsel %vm3210, %v4021, %v4022
      %v4024 = vrot.slane %v4022, 2
      %v4025 = vrot.slane %v2464, 7
      %v4026 = vsel %vm3210, %v4024, %v4025
      %v4027 = vrot.slane %v4025, 2
      %v4028 = vrot.slane %v2471, 7
      %v4029 = vsel %vm3210, %v4027, %v4028
      %v4030 = vrot.slane %v4028, 2
      %v4031 = vrot.slane %v2472, 7
      %v4032 = vsel %vm3210, %v4030, %v4031
      %v4033 = vrot.slane %v4031, 2
      %v4034 = vrot.slane %v2479, 7
      %v4035 = vsel %vm3210, %v4033, %v4034
      %v4036 = vrot.slane %v4034, 2
      %v4037 = vrot.slane %v2480, 7
      %v4038 = vsel %vm3210, %v4036, %v4037
      %v4039 = vrot.slane %v4037, 2
      %v4040 = vrot.slane %v2487, 7
      %v4041 = vsel %vm3210, %v4039, %v4040
      %v4042 = vrot.slane %v4040, 2
      %v4043 = vrot.slane %v2488, 7
      %v4044 = vsel %vm3210, %v4042, %v4043
      %v4045 = vrot.slane %v4043, 2
      %v4046 = vrot.slane %v2495, 7
      %v4047 = vsel %vm3210, %v4045, %v4046
      %v4048 = vrot.slane %v4046, 2
      %v4049 = vrot.slane %v3197, 7
      %v4050 = vsel %vm3210, %v4048, %v4049
      %v4051 = vrot.slane %v2502, 7
      %v4052 = vrot.slane %v4051, 2
      %v4053 = vrot.slane %v2503, 7
      %v4054 = vsel %vm3210, %v4052, %v4053
      %v4055 = vrot.slane %v4053, 2
      %v4056 = vrot.slane %v2510, 7
      %v4057 = vsel %vm3210, %v4055, %v4056
      %v4058 = vrot.slane %v4056, 2
      %v4059 = vrot.slane %v2511, 7
      %v4060 = vsel %vm3210, %v4058, %v4059
      %v4061 = vrot.slane %v4059, 2
      %v4062 = vrot.slane %v2518, 7
      %v4063 = vsel %vm3210, %v4061, %v4062
      %v4064 = vrot.slane %v4062, 2
      %v4065 = vrot.slane %v2519, 7
      %v4066 = vsel %vm3210, %v4064, %v4065
      %v4067 = vrot.slane %v4065, 2
      %v4068 = vrot.slane %v2526, 7
      %v4069 = vsel %vm3210, %v4067, %v4068
      %v4070 = vrot.slane %v4068, 2
      %v4071 = vrot.slane %v2527, 7
      %v4072 = vsel %vm3210, %v4070, %v4071
      %v4073 = vrot.slane %v4071, 2
      %v4074 = vrot.slane %v2534, 7
      %v4075 = vsel %vm3210, %v4073, %v4074
      %v4076 = vrot.slane %v4074, 2
      %v4077 = vrot.slane %v2535, 7
      %v4078 = vsel %vm3210, %v4076, %v4077
      %v4079 = vrot.slane %v4077, 2
      %v4080 = vrot.slane %v2542, 7
      %v4081 = vsel %vm3210, %v4079, %v4080
      %v4082 = vrot.slane %v4080, 2
      %v4083 = vrot.slane %v2543, 7
      %v4084 = vsel %vm3210, %v4082, %v4083
      %v4085 = vrot.slane %v4083, 2
      %v4086 = vrot.slane %v2550, 7
      %v4087 = vsel %vm3210, %v4085, %v4086
      %v4088 = vrot.slane %v4086, 2
      %v4089 = vrot.slane %v3198, 7
      %v4090 = vsel %vm3210, %v4088, %v4089
      %v4091 = vrot.slane %v2557, 7
      %v4092 = vrot.slane %v4091, 2
      %v4093 = vrot.slane %v2558, 7
      %v4094 = vsel %vm3210, %v4092, %v4093
      %v4095 = vrot.slane %v4093, 2
      %v4096 = vrot.slane %v2565, 7
      %v4097 = vsel %vm3210, %v4095, %v4096
      %v4098 = vrot.slane %v4096, 2
      %v4099 = vrot.slane %v2566, 7
      %v4100 = vsel %vm3210, %v4098, %v4099
      %v4101 = vrot.slane %v4099, 2
      %v4102 = vrot.slane %v2573, 7
      %v4103 = vsel %vm3210, %v4101, %v4102
      %v4104 = vrot.slane %v4102, 2
      %v4105 = vrot.slane %v2574, 7
      %v4106 = vsel %vm3210, %v4104, %v4105
      %v4107 = vrot.slane %v4105, 2
      %v4108 = vrot.slane %v2581, 7
      %v4109 = vsel %vm3210, %v4107, %v4108
      %v4110 = vrot.slane %v4108, 2
      %v4111 = vrot.slane %v2582, 7
      %v4112 = vsel %vm3210, %v4110, %v4111
      %v4113 = vrot.slane %v4111, 2
      %v4114 = vrot.slane %v2589, 7
      %v4115 = vsel %vm3210, %v4113, %v4114
      %v4116 = vrot.slane %v4114, 2
      %v4117 = vrot.slane %v2590, 7
      %v4118 = vsel %vm3210, %v4116, %v4117
      %v4119 = vrot.slane %v4117, 2
      %v4120 = vrot.slane %v2597, 7
      %v4121 = vsel %vm3210, %v4119, %v4120
      %v4122 = vrot.slane %v4120, 2
      %v4123 = vrot.slane %v2598, 7
      %v4124 = vsel %vm3210, %v4122, %v4123
      %v4125 = vrot.slane %v4123, 2
      %v4126 = vrot.slane %v2605, 7
      %v4127 = vsel %vm3210, %v4125, %v4126
      %v4128 = vrot.slane %v4126, 2
      %v4129 = vrot.slane %v3199, 7
      %v4130 = vsel %vm3210, %v4128, %v4129
      %v4131 = vrot.slane %v2612, 7
      %v4132 = vrot.slane %v4131, 2
      %v4133 = vrot.slane %v2613, 7
      %v4134 = vsel %vm3210, %v4132, %v4133
      %v4135 = vrot.slane %v4133, 2
      %v4136 = vrot.slane %v2620, 7
      %v4137 = vsel %vm3210, %v4135, %v4136
      %v4138 = vrot.slane %v4136, 2
      %v4139 = vrot.slane %v2621, 7
      %v4140 = vsel %vm3210, %v4138, %v4139
      %v4141 = vrot.slane %v4139, 2
      %v4142 = vrot.slane %v2628, 7
      %v4143 = vsel %vm3210, %v4141, %v4142
      %v4144 = vrot.slane %v4142, 2
      %v4145 = vrot.slane %v2629, 7
      %v4146 = vsel %vm3210, %v4144, %v4145
      %v4147 = vrot.slane %v4145, 2
      %v4148 = vrot.slane %v2636, 7
      %v4149 = vsel %vm3210, %v4147, %v4148
      %v4150 = vrot.slane %v4148, 2
      %v4151 = vrot.slane %v2637, 7
      %v4152 = vsel %vm3210, %v4150, %v4151
      %v4153 = vrot.slane %v4151, 2
      %v4154 = vrot.slane %v2644, 7
      %v4155 = vsel %vm3210, %v4153, %v4154
      %v4156 = vrot.slane %v4154, 2
      %v4157 = vrot.slane %v2645, 7
      %v4158 = vsel %vm3210, %v4156, %v4157
      %v4159 = vrot.slane %v4157, 2
      %v4160 = vrot.slane %v2652, 7
      %v4161 = vsel %vm3210, %v4159, %v4160
      %v4162 = vrot.slane %v4160, 2
      %v4163 = vrot.slane %v2653, 7
      %v4164 = vsel %vm3210, %v4162, %v4163
      %v4165 = vrot.slane %v4163, 2
      %v4166 = vrot.slane %v2660, 7
      %v4167 = vsel %vm3210, %v4165, %v4166
      %v4168 = vrot.slane %v4166, 2
      %v4169 = vrot.slane %v3200, 7
      %v4170 = vsel %vm3210, %v4168, %v4169
      %v4171 = vrot.slane %v2667, 7
      %v4172 = vrot.slane %v4171, 2
      %v4173 = vrot.slane %v2668, 7
      %v4174 = vsel %vm3210, %v4172, %v4173
      %v4175 = vrot.slane %v4173, 2
      %v4176 = vrot.slane %v2675, 7
      %v4177 = vsel %vm3210, %v4175, %v4176
      %v4178 = vrot.slane %v4176, 2
      %v4179 = vrot.slane %v2676, 7
      %v4180 = vsel %vm3210, %v4178, %v4179
      %v4181 = vrot.slane %v4179, 2
      %v4182 = vrot.slane %v2683, 7
      %v4183 = vsel %vm3210, %v4181, %v4182
      %v4184 = vrot.slane %v4182, 2
      %v4185 = vrot.slane %v2684, 7
      %v4186 = vsel %vm3210, %v4184, %v4185
      %v4187 = vrot.slane %v4185, 2
      %v4188 = vrot.slane %v2691, 7
      %v4189 = vsel %vm3210, %v4187, %v4188
      %v4190 = vrot.slane %v4188, 2
      %v4191 = vrot.slane %v2692, 7
      %v4192 = vsel %vm3210, %v4190, %v4191
      %v4193 = vrot.slane %v4191, 2
      %v4194 = vrot.slane %v2699, 7
      %v4195 = vsel %vm3210, %v4193, %v4194
      %v4196 = vrot.slane %v4194, 2
      %v4197 = vrot.slane %v2700, 7
      %v4198 = vsel %vm3210, %v4196, %v4197
      %v4199 = vrot.slane %v4197, 2
      %v4200 = vrot.slane %v2707, 7
      %v4201 = vsel %vm3210, %v4199, %v4200
      %v4202 = vrot.slane %v4200, 2
      %v4203 = vrot.slane %v2708, 7
      %v4204 = vsel %vm3210, %v4202, %v4203
      %v4205 = vrot.slane %v4203, 2
      %v4206 = vrot.slane %v2715, 7
      %v4207 = vsel %vm3210, %v4205, %v4206
      %v4208 = vrot.slane %v4206, 2
      %v4209 = vrot.slane %v3201, 7
      %v4210 = vsel %vm3210, %v4208, %v4209
      %v4211 = vrot.slane %v2722, 7
      %v4212 = vrot.slane %v4211, 2
      %v4213 = vrot.slane %v2723, 7
      %v4214 = vsel %vm3210, %v4212, %v4213
      %v4215 = vrot.slane %v4213, 2
      %v4216 = vrot.slane %v2730, 7
      %v4217 = vsel %vm3210, %v4215, %v4216
      %v4218 = vrot.slane %v4216, 2
      %v4219 = vrot.slane %v2731, 7
      %v4220 = vsel %vm3210, %v4218, %v4219
      %v4221 = vrot.slane %v4219, 2
      %v4222 = vrot.slane %v2738, 7
      %v4223 = vsel %vm3210, %v4221, %v4222
      %v4224 = vrot.slane %v4222, 2
      %v4225 = vrot.slane %v2739, 7
      %v4226 = vsel %vm3210, %v4224, %v4225
      %v4227 = vrot.slane %v4225, 2
      %v4228 = vrot.slane %v2746, 7
      %v4229 = vsel %vm3210, %v4227, %v4228
      %v4230 = vrot.slane %v4228, 2
      %v4231 = vrot.slane %v2747, 7
      %v4232 = vsel %vm3210, %v4230, %v4231
      %v4233 = vrot.slane %v4231, 2
      %v4234 = vrot.slane %v2754, 7
      %v4235 = vsel %vm3210, %v4233, %v4234
      %v4236 = vrot.slane %v4234, 2
      %v4237 = vrot.slane %v2755, 7
      %v4238 = vsel %vm3210, %v4236, %v4237
      %v4239 = vrot.slane %v4237, 2
      %v4240 = vrot.slane %v2762, 7
      %v4241 = vsel %vm3210, %v4239, %v4240
      %v4242 = vrot.slane %v4240, 2
      %v4243 = vrot.slane %v2763, 7
      %v4244 = vsel %vm3210, %v4242, %v4243
      %v4245 = vrot.slane %v4243, 2
      %v4246 = vrot.slane %v2770, 7
      %v4247 = vsel %vm3210, %v4245, %v4246
      %v4248 = vrot.slane %v4246, 2
      %v4249 = vrot.slane %v3202, 7
      %v4250 = vsel %vm3210, %v4248, %v4249
      %v4251 = vrot.slane %v2777, 7
      %v4252 = vrot.slane %v4251, 2
      %v4253 = vrot.slane %v2778, 7
      %v4254 = vsel %vm3210, %v4252, %v4253
      %v4255 = vrot.slane %v4253, 2
      %v4256 = vrot.slane %v2785, 7
      %v4257 = vsel %vm3210, %v4255, %v4256
      %v4258 = vrot.slane %v4256, 2
      %v4259 = vrot.slane %v2786, 7
      %v4260 = vsel %vm3210, %v4258, %v4259
      %v4261 = vrot.slane %v4259, 2
      %v4262 = vrot.slane %v2793, 7
      %v4263 = vsel %vm3210, %v4261, %v4262
      %v4264 = vrot.slane %v4262, 2
      %v4265 = vrot.slane %v2794, 7
      %v4266 = vsel %vm3210, %v4264, %v4265
      %v4267 = vrot.slane %v4265, 2
      %v4268 = vrot.slane %v2801, 7
      %v4269 = vsel %vm3210, %v4267, %v4268
      %v4270 = vrot.slane %v4268, 2
      %v4271 = vrot.slane %v2802, 7
      %v4272 = vsel %vm3210, %v4270, %v4271
      %v4273 = vrot.slane %v4271, 2
      %v4274 = vrot.slane %v2809, 7
      %v4275 = vsel %vm3210, %v4273, %v4274
      %v4276 = vrot.slane %v4274, 2
      %v4277 = vrot.slane %v2810, 7
      %v4278 = vsel %vm3210, %v4276, %v4277
      %v4279 = vrot.slane %v4277, 2
      %v4280 = vrot.slane %v2817, 7
      %v4281 = vsel %vm3210, %v4279, %v4280
      %v4282 = vrot.slane %v4280, 2
      %v4283 = vrot.slane %v2818, 7
      %v4284 = vsel %vm3210, %v4282, %v4283
      %v4285 = vrot.slane %v4283, 2
      %v4286 = vrot.slane %v2825, 7
      %v4287 = vsel %vm3210, %v4285, %v4286
      %v4288 = vrot.slane %v4286, 2
      %v4289 = vrot.slane %v3203, 7
      %v4290 = vsel %vm3210, %v4288, %v4289
      %v4642 = vmax.f32 %v1347, %v3212
      %v4643 = vmax.f32 %v1348, %v3215
      %v4644 = vmax.f32 %v1355, %v3218
      %v4645 = vmax.f32 %v1356, %v3221
      %v4646 = vmax.f32 %v1363, %v3224
      %v4647 = vmax.f32 %v1364, %v3227
      %v4648 = vmax.f32 %v1371, %v3230
      %v4649 = vmax.f32 %v1372, %v3233
      %v4650 = vmax.f32 %v1379, %v3236
      %v4651 = vmax.f32 %v1380, %v3239
      %v4652 = vmax.f32 %v1387, %v3242
      %v4653 = vmax.f32 %v1388, %v3245
      %v4654 = vmax.f32 %v1395, %v3248
      %v4655 = vmax.f32 %v1402, %v3252
      %v4656 = vmax.f32 %v1403, %v3255
      %v4657 = vmax.f32 %v1410, %v3258
      %v4658 = vmax.f32 %v1411, %v3261
      %v4659 = vmax.f32 %v1418, %v3264
      %v4660 = vmax.f32 %v1419, %v3267
      %v4661 = vmax.f32 %v1426, %v3270
      %v4662 = vmax.f32 %v1427, %v3273
      %v4663 = vmax.f32 %v1434, %v3276
      %v4664 = vmax.f32 %v1435, %v3279
      %v4665 = vmax.f32 %v1442, %v3282
      %v4666 = vmax.f32 %v1443, %v3285
      %v4667 = vmax.f32 %v1450, %v3288
      %v4668 = vmax.f32 %v1457, %v3292
      %v4669 = vmax.f32 %v1458, %v3295
      %v4670 = vmax.f32 %v1465, %v3298
      %v4671 = vmax.f32 %v1466, %v3301
      %v4672 = vmax.f32 %v1473, %v3304
      %v4673 = vmax.f32 %v1474, %v3307
      %v4674 = vmax.f32 %v1481, %v3310
      %v4675 = vmax.f32 %v1482, %v3313
      %v4676 = vmax.f32 %v1489, %v3316
      %v4677 = vmax.f32 %v1490, %v3319
      %v4678 = vmax.f32 %v1497, %v3322
      %v4679 = vmax.f32 %v1498, %v3325
      %v4680 = vmax.f32 %v1505, %v3328
      %v4681 = vmax.f32 %v1512, %v3332
      %v4682 = vmax.f32 %v1513, %v3335
      %v4683 = vmax.f32 %v1520, %v3338
      %v4684 = vmax.f32 %v1521, %v3341
      %v4685 = vmax.f32 %v1528, %v3344
      %v4686 = vmax.f32 %v1529, %v3347
      %v4687 = vmax.f32 %v1536, %v3350
      %v4688 = vmax.f32 %v1537, %v3353
      %v4689 = vmax.f32 %v1544, %v3356
      %v4690 = vmax.f32 %v1545, %v3359
      %v4691 = vmax.f32 %v1552, %v3362
      %v4692 = vmax.f32 %v1553, %v3365
      %v4693 = vmax.f32 %v1560, %v3368
      %v4694 = vmax.f32 %v1567, %v3372
      %v4695 = vmax.f32 %v1568, %v3375
      %v4696 = vmax.f32 %v1575, %v3378
      %v4697 = vmax.f32 %v1576, %v3381
      %v4698 = vmax.f32 %v1583, %v3384
      %v4699 = vmax.f32 %v1584, %v3387
      %v4700 = vmax.f32 %v1591, %v3390
      %v4701 = vmax.f32 %v1592, %v3393
      %v4702 = vmax.f32 %v1599, %v3396
      %v4703 = vmax.f32 %v1600, %v3399
      %v4704 = vmax.f32 %v1607, %v3402
      %v4705 = vmax.f32 %v1608, %v3405
      %v4706 = vmax.f32 %v1615, %v3408
      %v4707 = vmax.f32 %v1622, %v3412
      %v4708 = vmax.f32 %v1623, %v3415
      %v4709 = vmax.f32 %v1630, %v3418
      %v4710 = vmax.f32 %v1631, %v3421
      %v4711 = vmax.f32 %v1638, %v3424
      %v4712 = vmax.f32 %v1639, %v3427
      %v4713 = vmax.f32 %v1646, %v3430
      %v4714 = vmax.f32 %v1647, %v3433
      %v4715 = vmax.f32 %v1654, %v3436
      %v4716 = vmax.f32 %v1655, %v3439
      %v4717 = vmax.f32 %v1662, %v3442
      %v4718 = vmax.f32 %v1663, %v3445
      %v4719 = vmax.f32 %v1670, %v3448
      %v4720 = vmax.f32 %v1677, %v3452
      %v4721 = vmax.f32 %v1678, %v3455
      %v4722 = vmax.f32 %v1685, %v3458
      %v4723 = vmax.f32 %v1686, %v3461
      %v4724 = vmax.f32 %v1693, %v3464
      %v4725 = vmax.f32 %v1694, %v3467
      %v4726 = vmax.f32 %v1701, %v3470
      %v4727 = vmax.f32 %v1702, %v3473
      %v4728 = vmax.f32 %v1709, %v3476
      %v4729 = vmax.f32 %v1710, %v3479
      %v4730 = vmax.f32 %v1717, %v3482
      %v4731 = vmax.f32 %v1718, %v3485
      %v4732 = vmax.f32 %v1725, %v3488
      %v4733 = vmax.f32 %v1732, %v3492
      %v4734 = vmax.f32 %v1733, %v3495
      %v4735 = vmax.f32 %v1740, %v3498
      %v4736 = vmax.f32 %v1741, %v3501
      %v4737 = vmax.f32 %v1748, %v3504
      %v4738 = vmax.f32 %v1749, %v3507
      %v4739 = vmax.f32 %v1756, %v3510
      %v4740 = vmax.f32 %v1757, %v3513
      %v4741 = vmax.f32 %v1764, %v3516
      %v4742 = vmax.f32 %v1765, %v3519
      %v4743 = vmax.f32 %v1772, %v3522
      %v4744 = vmax.f32 %v1773, %v3525
      %v4745 = vmax.f32 %v1780, %v3528
      %v4746 = vmax.f32 %v1787, %v3532
      %v4747 = vmax.f32 %v1788, %v3535
      %v4748 = vmax.f32 %v1795, %v3538
      %v4749 = vmax.f32 %v1796, %v3541
      %v4750 = vmax.f32 %v1803, %v3544
      %v4751 = vmax.f32 %v1804, %v3547
      %v4752 = vmax.f32 %v1811, %v3550
      %v4753 = vmax.f32 %v1812, %v3553
      %v4754 = vmax.f32 %v1819, %v3556
      %v4755 = vmax.f32 %v1820, %v3559
      %v4756 = vmax.f32 %v1827, %v3562
      %v4757 = vmax.f32 %v1828, %v3565
      %v4758 = vmax.f32 %v1835, %v3568
      %v4759 = vmax.f32 %v1842, %v3572
      %v4760 = vmax.f32 %v1843, %v3575
      %v4761 = vmax.f32 %v1850, %v3578
      %v4762 = vmax.f32 %v1851, %v3581
      %v4763 = vmax.f32 %v1858, %v3584
      %v4764 = vmax.f32 %v1859, %v3587
      %v4765 = vmax.f32 %v1866, %v3590
      %v4766 = vmax.f32 %v1867, %v3593
      %v4767 = vmax.f32 %v1874, %v3596
      %v4768 = vmax.f32 %v1875, %v3599
      %v4769 = vmax.f32 %v1882, %v3602
      %v4770 = vmax.f32 %v1883, %v3605
      %v4771 = vmax.f32 %v1890, %v3608
      %v4772 = vmax.f32 %v1897, %v3612
      %v4773 = vmax.f32 %v1898, %v3615
      %v4774 = vmax.f32 %v1905, %v3618
      %v4775 = vmax.f32 %v1906, %v3621
      %v4776 = vmax.f32 %v1913, %v3624
      %v4777 = vmax.f32 %v1914, %v3627
      %v4778 = vmax.f32 %v1921, %v3630
      %v4779 = vmax.f32 %v1922, %v3633
      %v4780 = vmax.f32 %v1929, %v3636
      %v4781 = vmax.f32 %v1930, %v3639
      %v4782 = vmax.f32 %v1937, %v3642
      %v4783 = vmax.f32 %v1938, %v3645
      %v4784 = vmax.f32 %v1945, %v3648
      %v4785 = vmax.f32 %v1952, %v3652
      %v4786 = vmax.f32 %v1953, %v3655
      %v4787 = vmax.f32 %v1960, %v3658
      %v4788 = vmax.f32 %v1961, %v3661
      %v4789 = vmax.f32 %v1968, %v3664
      %v4790 = vmax.f32 %v1969, %v3667
      %v4791 = vmax.f32 %v1976, %v3670
      %v4792 = vmax.f32 %v1977, %v3673
      %v4793 = vmax.f32 %v1984, %v3676
      %v4794 = vmax.f32 %v1985, %v3679
      %v4795 = vmax.f32 %v1992, %v3682
      %v4796 = vmax.f32 %v1993, %v3685
      %v4797 = vmax.f32 %v2000, %v3688
      %v4798 = vmax.f32 %v2007, %v3692
      %v4799 = vmax.f32 %v2008, %v3695
      %v4800 = vmax.f32 %v2015, %v3698
      %v4801 = vmax.f32 %v2016, %v3701
      %v4802 = vmax.f32 %v2023, %v3704
      %v4803 = vmax.f32 %v2024, %v3707
      %v4804 = vmax.f32 %v2031, %v3710
      %v4805 = vmax.f32 %v2032, %v3713
      %v4806 = vmax.f32 %v2039, %v3716
      %v4807 = vmax.f32 %v2040, %v3719
      %v4808 = vmax.f32 %v2047, %v3722
      %v4809 = vmax.f32 %v2048, %v3725
      %v4810 = vmax.f32 %v2055, %v3728
      %v4811 = vmax.f32 %v2062, %v3732
      %v4812 = vmax.f32 %v2063, %v3735
      %v4813 = vmax.f32 %v2070, %v3738
      %v4814 = vmax.f32 %v2071, %v3741
      %v4815 = vmax.f32 %v2078, %v3744
      %v4816 = vmax.f32 %v2079, %v3747
      %v4817 = vmax.f32 %v2086, %v3750
      %v4818 = vmax.f32 %v2087, %v3753
      %v4819 = vmax.f32 %v2094, %v3756
      %v4820 = vmax.f32 %v2095, %v3759
      %v4821 = vmax.f32 %v2102, %v3762
      %v4822 = vmax.f32 %v2103, %v3765
      %v4823 = vmax.f32 %v2110, %v3768
      %v4824 = vmax.f32 %v2117, %v3772
      %v4825 = vmax.f32 %v2118, %v3775
      %v4826 = vmax.f32 %v2125, %v3778
      %v4827 = vmax.f32 %v2126, %v3781
      %v4828 = vmax.f32 %v2133, %v3784
      %v4829 = vmax.f32 %v2134, %v3787
      %v4830 = vmax.f32 %v2141, %v3790
      %v4831 = vmax.f32 %v2142, %v3793
      %v4832 = vmax.f32 %v2149, %v3796
      %v4833 = vmax.f32 %v2150, %v3799
      %v4834 = vmax.f32 %v2157, %v3802
      %v4835 = vmax.f32 %v2158, %v3805
      %v4836 = vmax.f32 %v2165, %v3808
      %v4837 = vmax.f32 %v2172, %v3812
      %v4838 = vmax.f32 %v2173, %v3815
      %v4839 = vmax.f32 %v2180, %v3818
      %v4840 = vmax.f32 %v2181, %v3821
      %v4841 = vmax.f32 %v2188, %v3824
      %v4842 = vmax.f32 %v2189, %v3827
      %v4843 = vmax.f32 %v2196, %v3830
      %v4844 = vmax.f32 %v2197, %v3833
      %v4845 = vmax.f32 %v2204, %v3836
      %v4846 = vmax.f32 %v2205, %v3839
      %v4847 = vmax.f32 %v2212, %v3842
      %v4848 = vmax.f32 %v2213, %v3845
      %v4849 = vmax.f32 %v2220, %v3848
      %v4850 = vmax.f32 %v2227, %v3852
      %v4851 = vmax.f32 %v2228, %v3855
      %v4852 = vmax.f32 %v2235, %v3858
      %v4853 = vmax.f32 %v2236, %v3861
      %v4854 = vmax.f32 %v2243, %v3864
      %v4855 = vmax.f32 %v2244, %v3867
      %v4856 = vmax.f32 %v2251, %v3870
      %v4857 = vmax.f32 %v2252, %v3873
      %v4858 = vmax.f32 %v2259, %v3876
      %v4859 = vmax.f32 %v2260, %v3879
      %v4860 = vmax.f32 %v2267, %v3882
      %v4861 = vmax.f32 %v2268, %v3885
      %v4862 = vmax.f32 %v2275, %v3888
      %v4863 = vmax.f32 %v2282, %v3892
      %v4864 = vmax.f32 %v2283, %v3895
      %v4865 = vmax.f32 %v2290, %v3898
      %v4866 = vmax.f32 %v2291, %v3901
      %v4867 = vmax.f32 %v2298, %v3904
      %v4868 = vmax.f32 %v2299, %v3907
      %v4869 = vmax.f32 %v2306, %v3910
      %v4870 = vmax.f32 %v2307, %v3913
      %v4871 = vmax.f32 %v2314, %v3916
      %v4872 = vmax.f32 %v2315, %v3919
      %v4873 = vmax.f32 %v2322, %v3922
      %v4874 = vmax.f32 %v2323, %v3925
      %v4875 = vmax.f32 %v2330, %v3928
      %v4876 = vmax.f32 %v2337, %v3932
      %v4877 = vmax.f32 %v2338, %v3935
      %v4878 = vmax.f32 %v2345, %v3938
      %v4879 = vmax.f32 %v2346, %v3941
      %v4880 = vmax.f32 %v2353, %v3944
      %v4881 = vmax.f32 %v2354, %v3947
      %v4882 = vmax.f32 %v2361, %v3950
      %v4883 = vmax.f32 %v2362, %v3953
      %v4884 = vmax.f32 %v2369, %v3956
      %v4885 = vmax.f32 %v2370, %v3959
      %v4886 = vmax.f32 %v2377, %v3962
      %v4887 = vmax.f32 %v2378, %v3965
      %v4888 = vmax.f32 %v2385, %v3968
      %v4889 = vmax.f32 %v2392, %v3972
      %v4890 = vmax.f32 %v2393, %v3975
      %v4891 = vmax.f32 %v2400, %v3978
      %v4892 = vmax.f32 %v2401, %v3981
      %v4893 = vmax.f32 %v2408, %v3984
      %v4894 = vmax.f32 %v2409, %v3987
      %v4895 = vmax.f32 %v2416, %v3990
      %v4896 = vmax.f32 %v2417, %v3993
      %v4897 = vmax.f32 %v2424, %v3996
      %v4898 = vmax.f32 %v2425, %v3999
      %v4899 = vmax.f32 %v2432, %v4002
      %v4900 = vmax.f32 %v2433, %v4005
      %v4901 = vmax.f32 %v2440, %v4008
      %v4902 = vmax.f32 %v2447, %v4012
      %v4903 = vmax.f32 %v2448, %v4015
      %v4904 = vmax.f32 %v2455, %v4018
      %v4905 = vmax.f32 %v2456, %v4021
      %v4906 = vmax.f32 %v2463, %v4024
      %v4907 = vmax.f32 %v2464, %v4027
      %v4908 = vmax.f32 %v2471, %v4030
      %v4909 = vmax.f32 %v2472, %v4033
      %v4910 = vmax.f32 %v2479, %v4036
      %v4911 = vmax.f32 %v2480, %v4039
      %v4912 = vmax.f32 %v2487, %v4042
      %v4913 = vmax.f32 %v2488, %v4045
      %v4914 = vmax.f32 %v2495, %v4048
      %v4915 = vmax.f32 %v2502, %v4052
      %v4916 = vmax.f32 %v2503, %v4055
      %v4917 = vmax.f32 %v2510, %v4058
      %v4918 = vmax.f32 %v2511, %v4061
      %v4919 = vmax.f32 %v2518, %v4064
      %v4920 = vmax.f32 %v2519, %v4067
      %v4921 = vmax.f32 %v2526, %v4070
      %v4922 = vmax.f32 %v2527, %v4073
      %v4923 = vmax.f32 %v2534, %v4076
      %v4924 = vmax.f32 %v2535, %v4079
      %v4925 = vmax.f32 %v2542, %v4082
      %v4926 = vmax.f32 %v2543, %v4085
      %v4927 = vmax.f32 %v2550, %v4088
      %v4928 = vmax.f32 %v2557, %v4092
      %v4929 = vmax.f32 %v2558, %v4095
      %v4930 = vmax.f32 %v2565, %v4098
      %v4931 = vmax.f32 %v2566, %v4101
      %v4932 = vmax.f32 %v2573, %v4104
      %v4933 = vmax.f32 %v2574, %v4107
      %v4934 = vmax.f32 %v2581, %v4110
      %v4935 = vmax.f32 %v2582, %v4113
      %v4936 = vmax.f32 %v2589, %v4116
      %v4937 = vmax.f32 %v2590, %v4119
      %v4938 = vmax.f32 %v2597, %v4122
      %v4939 = vmax.f32 %v2598, %v4125
      %v4940 = vmax.f32 %v2605, %v4128
      %v4941 = vmax.f32 %v2612, %v4132
      %v4942 = vmax.f32 %v2613, %v4135
      %v4943 = vmax.f32 %v2620, %v4138
      %v4944 = vmax.f32 %v2621, %v4141
      %v4945 = vmax.f32 %v2628, %v4144
      %v4946 = vmax.f32 %v2629, %v4147
      %v4947 = vmax.f32 %v2636, %v4150
      %v4948 = vmax.f32 %v2637, %v4153
      %v4949 = vmax.f32 %v2644, %v4156
      %v4950 = vmax.f32 %v2645, %v4159
      %v4951 = vmax.f32 %v2652, %v4162
      %v4952 = vmax.f32 %v2653, %v4165
      %v4953 = vmax.f32 %v2660, %v4168
      %v4954 = vmax.f32 %v2667, %v4172
      %v4955 = vmax.f32 %v2668, %v4175
      %v4956 = vmax.f32 %v2675, %v4178
      %v4957 = vmax.f32 %v2676, %v4181
      %v4958 = vmax.f32 %v2683, %v4184
      %v4959 = vmax.f32 %v2684, %v4187
      %v4960 = vmax.f32 %v2691, %v4190
      %v4961 = vmax.f32 %v2692, %v4193
      %v4962 = vmax.f32 %v2699, %v4196
      %v4963 = vmax.f32 %v2700, %v4199
      %v4964 = vmax.f32 %v2707, %v4202
      %v4965 = vmax.f32 %v2708, %v4205
      %v4966 = vmax.f32 %v2715, %v4208
      %v4967 = vmax.f32 %v2722, %v4212
      %v4968 = vmax.f32 %v2723, %v4215
      %v4969 = vmax.f32 %v2730, %v4218
      %v4970 = vmax.f32 %v2731, %v4221
      %v4971 = vmax.f32 %v2738, %v4224
      %v4972 = vmax.f32 %v2739, %v4227
      %v4973 = vmax.f32 %v2746, %v4230
      %v4974 = vmax.f32 %v2747, %v4233
      %v4975 = vmax.f32 %v2754, %v4236
      %v4976 = vmax.f32 %v2755, %v4239
      %v4977 = vmax.f32 %v2762, %v4242
      %v4978 = vmax.f32 %v2763, %v4245
      %v4979 = vmax.f32 %v2770, %v4248
      %v4980 = vmax.f32 %v2777, %v4252
      %v4981 = vmax.f32 %v2778, %v4255
      %v4982 = vmax.f32 %v2785, %v4258
      %v4983 = vmax.f32 %v2786, %v4261
      %v4984 = vmax.f32 %v2793, %v4264
      %v4985 = vmax.f32 %v2794, %v4267
      %v4986 = vmax.f32 %v2801, %v4270
      %v4987 = vmax.f32 %v2802, %v4273
      %v4988 = vmax.f32 %v2809, %v4276
      %v4989 = vmax.f32 %v2810, %v4279
      %v4990 = vmax.f32 %v2817, %v4282
      %v4991 = vmax.f32 %v2818, %v4285
      %v4992 = vmax.f32 %v2825, %v4288
      %v4993 = vrot.slane %v3214, 7
      %v4994 = vrot.slane %v4993, 2
      %v4995 = vrot.slane %v3217, 7
      %v4996 = vrot.slane %v4995, 2
      %v4997 = vrot.slane %v3220, 7
      %v4998 = vrot.slane %v4997, 2
      %v4999 = vrot.slane %v3223, 7
      %v5000 = vrot.slane %v4999, 2
      %v5001 = vrot.slane %v3226, 7
      %v5002 = vrot.slane %v5001, 2
      %v5003 = vrot.slane %v3229, 7
      %v5004 = vrot.slane %v5003, 2
      %v5005 = vrot.slane %v3232, 7
      %v5006 = vrot.slane %v5005, 2
      %v5007 = vrot.slane %v3235, 7
      %v5008 = vrot.slane %v5007, 2
      %v5009 = vrot.slane %v3238, 7
      %v5010 = vrot.slane %v5009, 2
      %v5011 = vrot.slane %v3241, 7
      %v5012 = vrot.slane %v5011, 2
      %v5013 = vrot.slane %v3244, 7
      %v5014 = vrot.slane %v5013, 2
      %v5015 = vrot.slane %v3247, 7
      %v5016 = vrot.slane %v5015, 2
      %v5017 = vrot.slane %v3250, 7
      %v5018 = vrot.slane %v5017, 2
      %v5019 = vrot.slane %v3254, 7
      %v5020 = vrot.slane %v5019, 2
      %v5021 = vrot.slane %v3257, 7
      %v5022 = vrot.slane %v5021, 2
      %v5023 = vrot.slane %v3260, 7
      %v5024 = vrot.slane %v5023, 2
      %v5025 = vrot.slane %v3263, 7
      %v5026 = vrot.slane %v5025, 2
      %v5027 = vrot.slane %v3266, 7
      %v5028 = vrot.slane %v5027, 2
      %v5029 = vrot.slane %v3269, 7
      %v5030 = vrot.slane %v5029, 2
      %v5031 = vrot.slane %v3272, 7
      %v5032 = vrot.slane %v5031, 2
      %v5033 = vrot.slane %v3275, 7
      %v5034 = vrot.slane %v5033, 2
      %v5035 = vrot.slane %v3278, 7
      %v5036 = vrot.slane %v5035, 2
      %v5037 = vrot.slane %v3281, 7
      %v5038 = vrot.slane %v5037, 2
      %v5039 = vrot.slane %v3284, 7
      %v5040 = vrot.slane %v5039, 2
      %v5041 = vrot.slane %v3287, 7
      %v5042 = vrot.slane %v5041, 2
      %v5043 = vrot.slane %v3290, 7
      %v5044 = vrot.slane %v5043, 2
      %v5045 = vrot.slane %v3294, 7
      %v5046 = vrot.slane %v5045, 2
      %v5047 = vrot.slane %v3297, 7
      %v5048 = vrot.slane %v5047, 2
      %v5049 = vrot.slane %v3300, 7
      %v5050 = vrot.slane %v5049, 2
      %v5051 = vrot.slane %v3303, 7
      %v5052 = vrot.slane %v5051, 2
      %v5053 = vrot.slane %v3306, 7
      %v5054 = vrot.slane %v5053, 2
      %v5055 = vrot.slane %v3309, 7
      %v5056 = vrot.slane %v5055, 2
      %v5057 = vrot.slane %v3312, 7
      %v5058 = vrot.slane %v5057, 2
      %v5059 = vrot.slane %v3315, 7
      %v5060 = vrot.slane %v5059, 2
      %v5061 = vrot.slane %v3318, 7
      %v5062 = vrot.slane %v5061, 2
      %v5063 = vrot.slane %v3321, 7
      %v5064 = vrot.slane %v5063, 2
      %v5065 = vrot.slane %v3324, 7
      %v5066 = vrot.slane %v5065, 2
      %v5067 = vrot.slane %v3327, 7
      %v5068 = vrot.slane %v5067, 2
      %v5069 = vrot.slane %v3330, 7
      %v5070 = vrot.slane %v5069, 2
      %v5071 = vrot.slane %v3334, 7
      %v5072 = vrot.slane %v5071, 2
      %v5073 = vrot.slane %v3337, 7
      %v5074 = vrot.slane %v5073, 2
      %v5075 = vrot.slane %v3340, 7
      %v5076 = vrot.slane %v5075, 2
      %v5077 = vrot.slane %v3343, 7
      %v5078 = vrot.slane %v5077, 2
      %v5079 = vrot.slane %v3346, 7
      %v5080 = vrot.slane %v5079, 2
      %v5081 = vrot.slane %v3349, 7
      %v5082 = vrot.slane %v5081, 2
      %v5083 = vrot.slane %v3352, 7
      %v5084 = vrot.slane %v5083, 2
      %v5085 = vrot.slane %v3355, 7
      %v5086 = vrot.slane %v5085, 2
      %v5087 = vrot.slane %v3358, 7
      %v5088 = vrot.slane %v5087, 2
      %v5089 = vrot.slane %v3361, 7
      %v5090 = vrot.slane %v5089, 2
      %v5091 = vrot.slane %v3364, 7
      %v5092 = vrot.slane %v5091, 2
      %v5093 = vrot.slane %v3367, 7
      %v5094 = vrot.slane %v5093, 2
      %v5095 = vrot.slane %v3370, 7
      %v5096 = vrot.slane %v5095, 2
      %v5097 = vrot.slane %v3374, 7
      %v5098 = vrot.slane %v5097, 2
      %v5099 = vrot.slane %v3377, 7
      %v5100 = vrot.slane %v5099, 2
      %v5101 = vrot.slane %v3380, 7
      %v5102 = vrot.slane %v5101, 2
      %v5103 = vrot.slane %v3383, 7
      %v5104 = vrot.slane %v5103, 2
      %v5105 = vrot.slane %v3386, 7
      %v5106 = vrot.slane %v5105, 2
      %v5107 = vrot.slane %v3389, 7
      %v5108 = vrot.slane %v5107, 2
      %v5109 = vrot.slane %v3392, 7
      %v5110 = vrot.slane %v5109, 2
      %v5111 = vrot.slane %v3395, 7
      %v5112 = vrot.slane %v5111, 2
      %v5113 = vrot.slane %v3398, 7
      %v5114 = vrot.slane %v5113, 2
      %v5115 = vrot.slane %v3401, 7
      %v5116 = vrot.slane %v5115, 2
      %v5117 = vrot.slane %v3404, 7
      %v5118 = vrot.slane %v5117, 2
      %v5119 = vrot.slane %v3407, 7
      %v5120 = vrot.slane %v5119, 2
      %v5121 = vrot.slane %v3410, 7
      %v5122 = vrot.slane %v5121, 2
      %v5123 = vrot.slane %v3414, 7
      %v5124 = vrot.slane %v5123, 2
      %v5125 = vrot.slane %v3417, 7
      %v5126 = vrot.slane %v5125, 2
      %v5127 = vrot.slane %v3420, 7
      %v5128 = vrot.slane %v5127, 2
      %v5129 = vrot.slane %v3423, 7
      %v5130 = vrot.slane %v5129, 2
      %v5131 = vrot.slane %v3426, 7
      %v5132 = vrot.slane %v5131, 2
      %v5133 = vrot.slane %v3429, 7
      %v5134 = vrot.slane %v5133, 2
      %v5135 = vrot.slane %v3432, 7
      %v5136 = vrot.slane %v5135, 2
      %v5137 = vrot.slane %v3435, 7
      %v5138 = vrot.slane %v5137, 2
      %v5139 = vrot.slane %v3438, 7
      %v5140 = vrot.slane %v5139, 2
      %v5141 = vrot.slane %v3441, 7
      %v5142 = vrot.slane %v5141, 2
      %v5143 = vrot.slane %v3444, 7
      %v5144 = vrot.slane %v5143, 2
      %v5145 = vrot.slane %v3447, 7
      %v5146 = vrot.slane %v5145, 2
      %v5147 = vrot.slane %v3450, 7
      %v5148 = vrot.slane %v5147, 2
      %v5149 = vrot.slane %v3454, 7
      %v5150 = vrot.slane %v5149, 2
      %v5151 = vrot.slane %v3457, 7
      %v5152 = vrot.slane %v5151, 2
      %v5153 = vrot.slane %v3460, 7
      %v5154 = vrot.slane %v5153, 2
      %v5155 = vrot.slane %v3463, 7
      %v5156 = vrot.slane %v5155, 2
      %v5157 = vrot.slane %v3466, 7
      %v5158 = vrot.slane %v5157, 2
      %v5159 = vrot.slane %v3469, 7
      %v5160 = vrot.slane %v5159, 2
      %v5161 = vrot.slane %v3472, 7
      %v5162 = vrot.slane %v5161, 2
      %v5163 = vrot.slane %v3475, 7
      %v5164 = vrot.slane %v5163, 2
      %v5165 = vrot.slane %v3478, 7
      %v5166 = vrot.slane %v5165, 2
      %v5167 = vrot.slane %v3481, 7
      %v5168 = vrot.slane %v5167, 2
      %v5169 = vrot.slane %v3484, 7
      %v5170 = vrot.slane %v5169, 2
      %v5171 = vrot.slane %v3487, 7
      %v5172 = vrot.slane %v5171, 2
      %v5173 = vrot.slane %v3490, 7
      %v5174 = vrot.slane %v5173, 2
      %v5175 = vrot.slane %v3494, 7
      %v5176 = vrot.slane %v5175, 2
      %v5177 = vrot.slane %v3497, 7
      %v5178 = vrot.slane %v5177, 2
      %v5179 = vrot.slane %v3500, 7
      %v5180 = vrot.slane %v5179, 2
      %v5181 = vrot.slane %v3503, 7
      %v5182 = vrot.slane %v5181, 2
      %v5183 = vrot.slane %v3506, 7
      %v5184 = vrot.slane %v5183, 2
      %v5185 = vrot.slane %v3509, 7
      %v5186 = vrot.slane %v5185, 2
      %v5187 = vrot.slane %v3512, 7
      %v5188 = vrot.slane %v5187, 2
      %v5189 = vrot.slane %v3515, 7
      %v5190 = vrot.slane %v5189, 2
      %v5191 = vrot.slane %v3518, 7
      %v5192 = vrot.slane %v5191, 2
      %v5193 = vrot.slane %v3521, 7
      %v5194 = vrot.slane %v5193, 2
      %v5195 = vrot.slane %v3524, 7
      %v5196 = vrot.slane %v5195, 2
      %v5197 = vrot.slane %v3527, 7
      %v5198 = vrot.slane %v5197, 2
      %v5199 = vrot.slane %v3530, 7
      %v5200 = vrot.slane %v5199, 2
      %v5201 = vrot.slane %v3534, 7
      %v5202 = vrot.slane %v5201, 2
      %v5203 = vrot.slane %v3537, 7
      %v5204 = vrot.slane %v5203, 2
      %v5205 = vrot.slane %v3540, 7
      %v5206 = vrot.slane %v5205, 2
      %v5207 = vrot.slane %v3543, 7
      %v5208 = vrot.slane %v5207, 2
      %v5209 = vrot.slane %v3546, 7
      %v5210 = vrot.slane %v5209, 2
      %v5211 = vrot.slane %v3549, 7
      %v5212 = vrot.slane %v5211, 2
      %v5213 = vrot.slane %v3552, 7
      %v5214 = vrot.slane %v5213, 2
      %v5215 = vrot.slane %v3555, 7
      %v5216 = vrot.slane %v5215, 2
      %v5217 = vrot.slane %v3558, 7
      %v5218 = vrot.slane %v5217, 2
      %v5219 = vrot.slane %v3561, 7
      %v5220 = vrot.slane %v5219, 2
      %v5221 = vrot.slane %v3564, 7
      %v5222 = vrot.slane %v5221, 2
      %v5223 = vrot.slane %v3567, 7
      %v5224 = vrot.slane %v5223, 2
      %v5225 = vrot.slane %v3570, 7
      %v5226 = vrot.slane %v5225, 2
      %v5227 = vrot.slane %v3574, 7
      %v5228 = vrot.slane %v5227, 2
      %v5229 = vrot.slane %v3577, 7
      %v5230 = vrot.slane %v5229, 2
      %v5231 = vrot.slane %v3580, 7
      %v5232 = vrot.slane %v5231, 2
      %v5233 = vrot.slane %v3583, 7
      %v5234 = vrot.slane %v5233, 2
      %v5235 = vrot.slane %v3586, 7
      %v5236 = vrot.slane %v5235, 2
      %v5237 = vrot.slane %v3589, 7
      %v5238 = vrot.slane %v5237, 2
      %v5239 = vrot.slane %v3592, 7
      %v5240 = vrot.slane %v5239, 2
      %v5241 = vrot.slane %v3595, 7
      %v5242 = vrot.slane %v5241, 2
      %v5243 = vrot.slane %v3598, 7
      %v5244 = vrot.slane %v5243, 2
      %v5245 = vrot.slane %v3601, 7
      %v5246 = vrot.slane %v5245, 2
      %v5247 = vrot.slane %v3604, 7
      %v5248 = vrot.slane %v5247, 2
      %v5249 = vrot.slane %v3607, 7
      %v5250 = vrot.slane %v5249, 2
      %v5251 = vrot.slane %v3610, 7
      %v5252 = vrot.slane %v5251, 2
      %v5253 = vrot.slane %v3614, 7
      %v5254 = vrot.slane %v5253, 2
      %v5255 = vrot.slane %v3617, 7
      %v5256 = vrot.slane %v5255, 2
      %v5257 = vrot.slane %v3620, 7
      %v5258 = vrot.slane %v5257, 2
      %v5259 = vrot.slane %v3623, 7
      %v5260 = vrot.slane %v5259, 2
      %v5261 = vrot.slane %v3626, 7
      %v5262 = vrot.slane %v5261, 2
      %v5263 = vrot.slane %v3629, 7
      %v5264 = vrot.slane %v5263, 2
      %v5265 = vrot.slane %v3632, 7
      %v5266 = vrot.slane %v5265, 2
      %v5267 = vrot.slane %v3635, 7
      %v5268 = vrot.slane %v5267, 2
      %v5269 = vrot.slane %v3638, 7
      %v5270 = vrot.slane %v5269, 2
      %v5271 = vrot.slane %v3641, 7
      %v5272 = vrot.slane %v5271, 2
      %v5273 = vrot.slane %v3644, 7
      %v5274 = vrot.slane %v5273, 2
      %v5275 = vrot.slane %v3647, 7
      %v5276 = vrot.slane %v5275, 2
      %v5277 = vrot.slane %v3650, 7
      %v5278 = vrot.slane %v5277, 2
      %v5279 = vrot.slane %v3654, 7
      %v5280 = vrot.slane %v5279, 2
      %v5281 = vrot.slane %v3657, 7
      %v5282 = vrot.slane %v5281, 2
      %v5283 = vrot.slane %v3660, 7
      %v5284 = vrot.slane %v5283, 2
      %v5285 = vrot.slane %v3663, 7
      %v5286 = vrot.slane %v5285, 2
      %v5287 = vrot.slane %v3666, 7
      %v5288 = vrot.slane %v5287, 2
      %v5289 = vrot.slane %v3669, 7
      %v5290 = vrot.slane %v5289, 2
      %v5291 = vrot.slane %v3672, 7
      %v5292 = vrot.slane %v5291, 2
      %v5293 = vrot.slane %v3675, 7
      %v5294 = vrot.slane %v5293, 2
      %v5295 = vrot.slane %v3678, 7
      %v5296 = vrot.slane %v5295, 2
      %v5297 = vrot.slane %v3681, 7
      %v5298 = vrot.slane %v5297, 2
      %v5299 = vrot.slane %v3684, 7
      %v5300 = vrot.slane %v5299, 2
      %v5301 = vrot.slane %v3687, 7
      %v5302 = vrot.slane %v5301, 2
      %v5303 = vrot.slane %v3690, 7
      %v5304 = vrot.slane %v5303, 2
      %v5305 = vrot.slane %v3694, 7
      %v5306 = vrot.slane %v5305, 2
      %v5307 = vrot.slane %v3697, 7
      %v5308 = vrot.slane %v5307, 2
      %v5309 = vrot.slane %v3700, 7
      %v5310 = vrot.slane %v5309, 2
      %v5311 = vrot.slane %v3703, 7
      %v5312 = vrot.slane %v5311, 2
      %v5313 = vrot.slane %v3706, 7
      %v5314 = vrot.slane %v5313, 2
      %v5315 = vrot.slane %v3709, 7
      %v5316 = vrot.slane %v5315, 2
      %v5317 = vrot.slane %v3712, 7
      %v5318 = vrot.slane %v5317, 2
      %v5319 = vrot.slane %v3715, 7
      %v5320 = vrot.slane %v5319, 2
      %v5321 = vrot.slane %v3718, 7
      %v5322 = vrot.slane %v5321, 2
      %v5323 = vrot.slane %v3721, 7
      %v5324 = vrot.slane %v5323, 2
      %v5325 = vrot.slane %v3724, 7
      %v5326 = vrot.slane %v5325, 2
      %v5327 = vrot.slane %v3727, 7
      %v5328 = vrot.slane %v5327, 2
      %v5329 = vrot.slane %v3730, 7
      %v5330 = vrot.slane %v5329, 2
      %v5331 = vrot.slane %v3734, 7
      %v5332 = vrot.slane %v5331, 2
      %v5333 = vrot.slane %v3737, 7
      %v5334 = vrot.slane %v5333, 2
      %v5335 = vrot.slane %v3740, 7
      %v5336 = vrot.slane %v5335, 2
      %v5337 = vrot.slane %v3743, 7
      %v5338 = vrot.slane %v5337, 2
      %v5339 = vrot.slane %v3746, 7
      %v5340 = vrot.slane %v5339, 2
      %v5341 = vrot.slane %v3749, 7
      %v5342 = vrot.slane %v5341, 2
      %v5343 = vrot.slane %v3752, 7
      %v5344 = vrot.slane %v5343, 2
      %v5345 = vrot.slane %v3755, 7
      %v5346 = vrot.slane %v5345, 2
      %v5347 = vrot.slane %v3758, 7
      %v5348 = vrot.slane %v5347, 2
      %v5349 = vrot.slane %v3761, 7
      %v5350 = vrot.slane %v5349, 2
      %v5351 = vrot.slane %v3764, 7
      %v5352 = vrot.slane %v5351, 2
      %v5353 = vrot.slane %v3767, 7
      %v5354 = vrot.slane %v5353, 2
      %v5355 = vrot.slane %v3770, 7
      %v5356 = vrot.slane %v5355, 2
      %v5357 = vrot.slane %v3774, 7
      %v5358 = vrot.slane %v5357, 2
      %v5359 = vrot.slane %v3777, 7
      %v5360 = vrot.slane %v5359, 2
      %v5361 = vrot.slane %v3780, 7
      %v5362 = vrot.slane %v5361, 2
      %v5363 = vrot.slane %v3783, 7
      %v5364 = vrot.slane %v5363, 2
      %v5365 = vrot.slane %v3786, 7
      %v5366 = vrot.slane %v5365, 2
      %v5367 = vrot.slane %v3789, 7
      %v5368 = vrot.slane %v5367, 2
      %v5369 = vrot.slane %v3792, 7
      %v5370 = vrot.slane %v5369, 2
      %v5371 = vrot.slane %v3795, 7
      %v5372 = vrot.slane %v5371, 2
      %v5373 = vrot.slane %v3798, 7
      %v5374 = vrot.slane %v5373, 2
      %v5375 = vrot.slane %v3801, 7
      %v5376 = vrot.slane %v5375, 2
      %v5377 = vrot.slane %v3804, 7
      %v5378 = vrot.slane %v5377, 2
      %v5379 = vrot.slane %v3807, 7
      %v5380 = vrot.slane %v5379, 2
      %v5381 = vrot.slane %v3810, 7
      %v5382 = vrot.slane %v5381, 2
      %v5383 = vrot.slane %v3814, 7
      %v5384 = vrot.slane %v5383, 2
      %v5385 = vrot.slane %v3817, 7
      %v5386 = vrot.slane %v5385, 2
      %v5387 = vrot.slane %v3820, 7
      %v5388 = vrot.slane %v5387, 2
      %v5389 = vrot.slane %v3823, 7
      %v5390 = vrot.slane %v5389, 2
      %v5391 = vrot.slane %v3826, 7
      %v5392 = vrot.slane %v5391, 2
      %v5393 = vrot.slane %v3829, 7
      %v5394 = vrot.slane %v5393, 2
      %v5395 = vrot.slane %v3832, 7
      %v5396 = vrot.slane %v5395, 2
      %v5397 = vrot.slane %v3835, 7
      %v5398 = vrot.slane %v5397, 2
      %v5399 = vrot.slane %v3838, 7
      %v5400 = vrot.slane %v5399, 2
      %v5401 = vrot.slane %v3841, 7
      %v5402 = vrot.slane %v5401, 2
      %v5403 = vrot.slane %v3844, 7
      %v5404 = vrot.slane %v5403, 2
      %v5405 = vrot.slane %v3847, 7
      %v5406 = vrot.slane %v5405, 2
      %v5407 = vrot.slane %v3850, 7
      %v5408 = vrot.slane %v5407, 2
      %v5409 = vrot.slane %v3854, 7
      %v5410 = vrot.slane %v5409, 2
      %v5411 = vrot.slane %v3857, 7
      %v5412 = vrot.slane %v5411, 2
      %v5413 = vrot.slane %v3860, 7
      %v5414 = vrot.slane %v5413, 2
      %v5415 = vrot.slane %v3863, 7
      %v5416 = vrot.slane %v5415, 2
      %v5417 = vrot.slane %v3866, 7
      %v5418 = vrot.slane %v5417, 2
      %v5419 = vrot.slane %v3869, 7
      %v5420 = vrot.slane %v5419, 2
      %v5421 = vrot.slane %v3872, 7
      %v5422 = vrot.slane %v5421, 2
      %v5423 = vrot.slane %v3875, 7
      %v5424 = vrot.slane %v5423, 2
      %v5425 = vrot.slane %v3878, 7
      %v5426 = vrot.slane %v5425, 2
      %v5427 = vrot.slane %v3881, 7
      %v5428 = vrot.slane %v5427, 2
      %v5429 = vrot.slane %v3884, 7
      %v5430 = vrot.slane %v5429, 2
      %v5431 = vrot.slane %v3887, 7
      %v5432 = vrot.slane %v5431, 2
      %v5433 = vrot.slane %v3890, 7
      %v5434 = vrot.slane %v5433, 2
      %v5435 = vrot.slane %v3894, 7
      %v5436 = vrot.slane %v5435, 2
      %v5437 = vrot.slane %v3897, 7
      %v5438 = vrot.slane %v5437, 2
      %v5439 = vrot.slane %v3900, 7
      %v5440 = vrot.slane %v5439, 2
      %v5441 = vrot.slane %v3903, 7
      %v5442 = vrot.slane %v5441, 2
      %v5443 = vrot.slane %v3906, 7
      %v5444 = vrot.slane %v5443, 2
      %v5445 = vrot.slane %v3909, 7
      %v5446 = vrot.slane %v5445, 2
      %v5447 = vrot.slane %v3912, 7
      %v5448 = vrot.slane %v5447, 2
      %v5449 = vrot.slane %v3915, 7
      %v5450 = vrot.slane %v5449, 2
      %v5451 = vrot.slane %v3918, 7
      %v5452 = vrot.slane %v5451, 2
      %v5453 = vrot.slane %v3921, 7
      %v5454 = vrot.slane %v5453, 2
      %v5455 = vrot.slane %v3924, 7
      %v5456 = vrot.slane %v5455, 2
      %v5457 = vrot.slane %v3927, 7
      %v5458 = vrot.slane %v5457, 2
      %v5459 = vrot.slane %v3930, 7
      %v5460 = vrot.slane %v5459, 2
      %v5461 = vrot.slane %v3934, 7
      %v5462 = vrot.slane %v5461, 2
      %v5463 = vrot.slane %v3937, 7
      %v5464 = vrot.slane %v5463, 2
      %v5465 = vrot.slane %v3940, 7
      %v5466 = vrot.slane %v5465, 2
      %v5467 = vrot.slane %v3943, 7
      %v5468 = vrot.slane %v5467, 2
      %v5469 = vrot.slane %v3946, 7
      %v5470 = vrot.slane %v5469, 2
      %v5471 = vrot.slane %v3949, 7
      %v5472 = vrot.slane %v5471, 2
      %v5473 = vrot.slane %v3952, 7
      %v5474 = vrot.slane %v5473, 2
      %v5475 = vrot.slane %v3955, 7
      %v5476 = vrot.slane %v5475, 2
      %v5477 = vrot.slane %v3958, 7
      %v5478 = vrot.slane %v5477, 2
      %v5479 = vrot.slane %v3961, 7
      %v5480 = vrot.slane %v5479, 2
      %v5481 = vrot.slane %v3964, 7
      %v5482 = vrot.slane %v5481, 2
      %v5483 = vrot.slane %v3967, 7
      %v5484 = vrot.slane %v5483, 2
      %v5485 = vrot.slane %v3970, 7
      %v5486 = vrot.slane %v5485, 2
      %v5487 = vrot.slane %v3974, 7
      %v5488 = vrot.slane %v5487, 2
      %v5489 = vrot.slane %v3977, 7
      %v5490 = vrot.slane %v5489, 2
      %v5491 = vrot.slane %v3980, 7
      %v5492 = vrot.slane %v5491, 2
      %v5493 = vrot.slane %v3983, 7
      %v5494 = vrot.slane %v5493, 2
      %v5495 = vrot.slane %v3986, 7
      %v5496 = vrot.slane %v5495, 2
      %v5497 = vrot.slane %v3989, 7
      %v5498 = vrot.slane %v5497, 2
      %v5499 = vrot.slane %v3992, 7
      %v5500 = vrot.slane %v5499, 2
      %v5501 = vrot.slane %v3995, 7
      %v5502 = vrot.slane %v5501, 2
      %v5503 = vrot.slane %v3998, 7
      %v5504 = vrot.slane %v5503, 2
      %v5505 = vrot.slane %v4001, 7
      %v5506 = vrot.slane %v5505, 2
      %v5507 = vrot.slane %v4004, 7
      %v5508 = vrot.slane %v5507, 2
      %v5509 = vrot.slane %v4007, 7
      %v5510 = vrot.slane %v5509, 2
      %v5511 = vrot.slane %v4010, 7
      %v5512 = vrot.slane %v5511, 2
      %v5513 = vrot.slane %v4014, 7
      %v5514 = vrot.slane %v5513, 2
      %v5515 = vrot.slane %v4017, 7
      %v5516 = vrot.slane %v5515, 2
      %v5517 = vrot.slane %v4020, 7
      %v5518 = vrot.slane %v5517, 2
      %v5519 = vrot.slane %v4023, 7
      %v5520 = vrot.slane %v5519, 2
      %v5521 = vrot.slane %v4026, 7
      %v5522 = vrot.slane %v5521, 2
      %v5523 = vrot.slane %v4029, 7
      %v5524 = vrot.slane %v5523, 2
      %v5525 = vrot.slane %v4032, 7
      %v5526 = vrot.slane %v5525, 2
      %v5527 = vrot.slane %v4035, 7
      %v5528 = vrot.slane %v5527, 2
      %v5529 = vrot.slane %v4038, 7
      %v5530 = vrot.slane %v5529, 2
      %v5531 = vrot.slane %v4041, 7
      %v5532 = vrot.slane %v5531, 2
      %v5533 = vrot.slane %v4044, 7
      %v5534 = vrot.slane %v5533, 2
      %v5535 = vrot.slane %v4047, 7
      %v5536 = vrot.slane %v5535, 2
      %v5537 = vrot.slane %v4050, 7
      %v5538 = vrot.slane %v5537, 2
      %v5539 = vrot.slane %v4054, 7
      %v5540 = vrot.slane %v5539, 2
      %v5541 = vrot.slane %v4057, 7
      %v5542 = vrot.slane %v5541, 2
      %v5543 = vrot.slane %v4060, 7
      %v5544 = vrot.slane %v5543, 2
      %v5545 = vrot.slane %v4063, 7
      %v5546 = vrot.slane %v5545, 2
      %v5547 = vrot.slane %v4066, 7
      %v5548 = vrot.slane %v5547, 2
      %v5549 = vrot.slane %v4069, 7
      %v5550 = vrot.slane %v5549, 2
      %v5551 = vrot.slane %v4072, 7
      %v5552 = vrot.slane %v5551, 2
      %v5553 = vrot.slane %v4075, 7
      %v5554 = vrot.slane %v5553, 2
      %v5555 = vrot.slane %v4078, 7
      %v5556 = vrot.slane %v5555, 2
      %v5557 = vrot.slane %v4081, 7
      %v5558 = vrot.slane %v5557, 2
      %v5559 = vrot.slane %v4084, 7
      %v5560 = vrot.slane %v5559, 2
      %v5561 = vrot.slane %v4087, 7
      %v5562 = vrot.slane %v5561, 2
      %v5563 = vrot.slane %v4090, 7
      %v5564 = vrot.slane %v5563, 2
      %v5565 = vrot.slane %v4094, 7
      %v5566 = vrot.slane %v5565, 2
      %v5567 = vrot.slane %v4097, 7
      %v5568 = vrot.slane %v5567, 2
      %v5569 = vrot.slane %v4100, 7
      %v5570 = vrot.slane %v5569, 2
      %v5571 = vrot.slane %v4103, 7
      %v5572 = vrot.slane %v5571, 2
      %v5573 = vrot.slane %v4106, 7
      %v5574 = vrot.slane %v5573, 2
      %v5575 = vrot.slane %v4109, 7
      %v5576 = vrot.slane %v5575, 2
      %v5577 = vrot.slane %v4112, 7
      %v5578 = vrot.slane %v5577, 2
      %v5579 = vrot.slane %v4115, 7
      %v5580 = vrot.slane %v5579, 2
      %v5581 = vrot.slane %v4118, 7
      %v5582 = vrot.slane %v5581, 2
      %v5583 = vrot.slane %v4121, 7
      %v5584 = vrot.slane %v5583, 2
      %v5585 = vrot.slane %v4124, 7
      %v5586 = vrot.slane %v5585, 2
      %v5587 = vrot.slane %v4127, 7
      %v5588 = vrot.slane %v5587, 2
      %v5589 = vrot.slane %v4130, 7
      %v5590 = vrot.slane %v5589, 2
      %v5591 = vrot.slane %v4134, 7
      %v5592 = vrot.slane %v5591, 2
      %v5593 = vrot.slane %v4137, 7
      %v5594 = vrot.slane %v5593, 2
      %v5595 = vrot.slane %v4140, 7
      %v5596 = vrot.slane %v5595, 2
      %v5597 = vrot.slane %v4143, 7
      %v5598 = vrot.slane %v5597, 2
      %v5599 = vrot.slane %v4146, 7
      %v5600 = vrot.slane %v5599, 2
      %v5601 = vrot.slane %v4149, 7
      %v5602 = vrot.slane %v5601, 2
      %v5603 = vrot.slane %v4152, 7
      %v5604 = vrot.slane %v5603, 2
      %v5605 = vrot.slane %v4155, 7
      %v5606 = vrot.slane %v5605, 2
      %v5607 = vrot.slane %v4158, 7
      %v5608 = vrot.slane %v5607, 2
      %v5609 = vrot.slane %v4161, 7
      %v5610 = vrot.slane %v5609, 2
      %v5611 = vrot.slane %v4164, 7
      %v5612 = vrot.slane %v5611, 2
      %v5613 = vrot.slane %v4167, 7
      %v5614 = vrot.slane %v5613, 2
      %v5615 = vrot.slane %v4170, 7
      %v5616 = vrot.slane %v5615, 2
      %v5617 = vrot.slane %v4174, 7
      %v5618 = vrot.slane %v5617, 2
      %v5619 = vrot.slane %v4177, 7
      %v5620 = vrot.slane %v5619, 2
      %v5621 = vrot.slane %v4180, 7
      %v5622 = vrot.slane %v5621, 2
      %v5623 = vrot.slane %v4183, 7
      %v5624 = vrot.slane %v5623, 2
      %v5625 = vrot.slane %v4186, 7
      %v5626 = vrot.slane %v5625, 2
      %v5627 = vrot.slane %v4189, 7
      %v5628 = vrot.slane %v5627, 2
      %v5629 = vrot.slane %v4192, 7
      %v5630 = vrot.slane %v5629, 2
      %v5631 = vrot.slane %v4195, 7
      %v5632 = vrot.slane %v5631, 2
      %v5633 = vrot.slane %v4198, 7
      %v5634 = vrot.slane %v5633, 2
      %v5635 = vrot.slane %v4201, 7
      %v5636 = vrot.slane %v5635, 2
      %v5637 = vrot.slane %v4204, 7
      %v5638 = vrot.slane %v5637, 2
      %v5639 = vrot.slane %v4207, 7
      %v5640 = vrot.slane %v5639, 2
      %v5641 = vrot.slane %v4210, 7
      %v5642 = vrot.slane %v5641, 2
      %v5643 = vrot.slane %v4214, 7
      %v5644 = vrot.slane %v5643, 2
      %v5645 = vrot.slane %v4217, 7
      %v5646 = vrot.slane %v5645, 2
      %v5647 = vrot.slane %v4220, 7
      %v5648 = vrot.slane %v5647, 2
      %v5649 = vrot.slane %v4223, 7
      %v5650 = vrot.slane %v5649, 2
      %v5651 = vrot.slane %v4226, 7
      %v5652 = vrot.slane %v5651, 2
      %v5653 = vrot.slane %v4229, 7
      %v5654 = vrot.slane %v5653, 2
      %v5655 = vrot.slane %v4232, 7
      %v5656 = vrot.slane %v5655, 2
      %v5657 = vrot.slane %v4235, 7
      %v5658 = vrot.slane %v5657, 2
      %v5659 = vrot.slane %v4238, 7
      %v5660 = vrot.slane %v5659, 2
      %v5661 = vrot.slane %v4241, 7
      %v5662 = vrot.slane %v5661, 2
      %v5663 = vrot.slane %v4244, 7
      %v5664 = vrot.slane %v5663, 2
      %v5665 = vrot.slane %v4247, 7
      %v5666 = vrot.slane %v5665, 2
      %v5667 = vrot.slane %v4250, 7
      %v5668 = vrot.slane %v5667, 2
      %v5669 = vrot.slane %v4254, 7
      %v5670 = vrot.slane %v5669, 2
      %v5671 = vrot.slane %v4257, 7
      %v5672 = vrot.slane %v5671, 2
      %v5673 = vrot.slane %v4260, 7
      %v5674 = vrot.slane %v5673, 2
      %v5675 = vrot.slane %v4263, 7
      %v5676 = vrot.slane %v5675, 2
      %v5677 = vrot.slane %v4266, 7
      %v5678 = vrot.slane %v5677, 2
      %v5679 = vrot.slane %v4269, 7
      %v5680 = vrot.slane %v5679, 2
      %v5681 = vrot.slane %v4272, 7
      %v5682 = vrot.slane %v5681, 2
      %v5683 = vrot.slane %v4275, 7
      %v5684 = vrot.slane %v5683, 2
      %v5685 = vrot.slane %v4278, 7
      %v5686 = vrot.slane %v5685, 2
      %v5687 = vrot.slane %v4281, 7
      %v5688 = vrot.slane %v5687, 2
      %v5689 = vrot.slane %v4284, 7
      %v5690 = vrot.slane %v5689, 2
      %v5691 = vrot.slane %v4287, 7
      %v5692 = vrot.slane %v5691, 2
      %v5693 = vrot.slane %v4290, 7
      %v5694 = vrot.slane %v5693, 2
      %v6046 = vmax.f32 %v4642, %v4994
      %v6047 = vmax.f32 %v4643, %v4996
      %v6048 = vmax.f32 %v4644, %v4998
      %v6049 = vmax.f32 %v4645, %v5000
      %v6050 = vmax.f32 %v4646, %v5002
      %v6051 = vmax.f32 %v4647, %v5004
      %v6052 = vmax.f32 %v4648, %v5006
      %v6053 = vmax.f32 %v4649, %v5008
      %v6054 = vmax.f32 %v4650, %v5010
      %v6055 = vmax.f32 %v4651, %v5012
      %v6056 = vmax.f32 %v4652, %v5014
      %v6057 = vmax.f32 %v4653, %v5016
      %v6058 = vmax.f32 %v4654, %v5018
      %v6059 = vmax.f32 %v4655, %v5020
      %v6060 = vmax.f32 %v4656, %v5022
      %v6061 = vmax.f32 %v4657, %v5024
      %v6062 = vmax.f32 %v4658, %v5026
      %v6063 = vmax.f32 %v4659, %v5028
      %v6064 = vmax.f32 %v4660, %v5030
      %v6065 = vmax.f32 %v4661, %v5032
      %v6066 = vmax.f32 %v4662, %v5034
      %v6067 = vmax.f32 %v4663, %v5036
      %v6068 = vmax.f32 %v4664, %v5038
      %v6069 = vmax.f32 %v4665, %v5040
      %v6070 = vmax.f32 %v4666, %v5042
      %v6071 = vmax.f32 %v4667, %v5044
      %v6072 = vmax.f32 %v4668, %v5046
      %v6073 = vmax.f32 %v4669, %v5048
      %v6074 = vmax.f32 %v4670, %v5050
      %v6075 = vmax.f32 %v4671, %v5052
      %v6076 = vmax.f32 %v4672, %v5054
      %v6077 = vmax.f32 %v4673, %v5056
      %v6078 = vmax.f32 %v4674, %v5058
      %v6079 = vmax.f32 %v4675, %v5060
      %v6080 = vmax.f32 %v4676, %v5062
      %v6081 = vmax.f32 %v4677, %v5064
      %v6082 = vmax.f32 %v4678, %v5066
      %v6083 = vmax.f32 %v4679, %v5068
      %v6084 = vmax.f32 %v4680, %v5070
      %v6085 = vmax.f32 %v4681, %v5072
      %v6086 = vmax.f32 %v4682, %v5074
      %v6087 = vmax.f32 %v4683, %v5076
      %v6088 = vmax.f32 %v4684, %v5078
      %v6089 = vmax.f32 %v4685, %v5080
      %v6090 = vmax.f32 %v4686, %v5082
      %v6091 = vmax.f32 %v4687, %v5084
      %v6092 = vmax.f32 %v4688, %v5086
      %v6093 = vmax.f32 %v4689, %v5088
      %v6094 = vmax.f32 %v4690, %v5090
      %v6095 = vmax.f32 %v4691, %v5092
      %v6096 = vmax.f32 %v4692, %v5094
      %v6097 = vmax.f32 %v4693, %v5096
      %v6098 = vmax.f32 %v4694, %v5098
      %v6099 = vmax.f32 %v4695, %v5100
      %v6100 = vmax.f32 %v4696, %v5102
      %v6101 = vmax.f32 %v4697, %v5104
      %v6102 = vmax.f32 %v4698, %v5106
      %v6103 = vmax.f32 %v4699, %v5108
      %v6104 = vmax.f32 %v4700, %v5110
      %v6105 = vmax.f32 %v4701, %v5112
      %v6106 = vmax.f32 %v4702, %v5114
      %v6107 = vmax.f32 %v4703, %v5116
      %v6108 = vmax.f32 %v4704, %v5118
      %v6109 = vmax.f32 %v4705, %v5120
      %v6110 = vmax.f32 %v4706, %v5122
      %v6111 = vmax.f32 %v4707, %v5124
      %v6112 = vmax.f32 %v4708, %v5126
      %v6113 = vmax.f32 %v4709, %v5128
      %v6114 = vmax.f32 %v4710, %v5130
      %v6115 = vmax.f32 %v4711, %v5132
      %v6116 = vmax.f32 %v4712, %v5134
      %v6117 = vmax.f32 %v4713, %v5136
      %v6118 = vmax.f32 %v4714, %v5138
      %v6119 = vmax.f32 %v4715, %v5140
      %v6120 = vmax.f32 %v4716, %v5142
      %v6121 = vmax.f32 %v4717, %v5144
      %v6122 = vmax.f32 %v4718, %v5146
      %v6123 = vmax.f32 %v4719, %v5148
      %v6124 = vmax.f32 %v4720, %v5150
      %v6125 = vmax.f32 %v4721, %v5152
      %v6126 = vmax.f32 %v4722, %v5154
      %v6127 = vmax.f32 %v4723, %v5156
      %v6128 = vmax.f32 %v4724, %v5158
      %v6129 = vmax.f32 %v4725, %v5160
      %v6130 = vmax.f32 %v4726, %v5162
      %v6131 = vmax.f32 %v4727, %v5164
      %v6132 = vmax.f32 %v4728, %v5166
      %v6133 = vmax.f32 %v4729, %v5168
      %v6134 = vmax.f32 %v4730, %v5170
      %v6135 = vmax.f32 %v4731, %v5172
      %v6136 = vmax.f32 %v4732, %v5174
      %v6137 = vmax.f32 %v4733, %v5176
      %v6138 = vmax.f32 %v4734, %v5178
      %v6139 = vmax.f32 %v4735, %v5180
      %v6140 = vmax.f32 %v4736, %v5182
      %v6141 = vmax.f32 %v4737, %v5184
      %v6142 = vmax.f32 %v4738, %v5186
      %v6143 = vmax.f32 %v4739, %v5188
      %v6144 = vmax.f32 %v4740, %v5190
      %v6145 = vmax.f32 %v4741, %v5192
      %v6146 = vmax.f32 %v4742, %v5194
      %v6147 = vmax.f32 %v4743, %v5196
      %v6148 = vmax.f32 %v4744, %v5198
      %v6149 = vmax.f32 %v4745, %v5200
      %v6150 = vmax.f32 %v4746, %v5202
      %v6151 = vmax.f32 %v4747, %v5204
      %v6152 = vmax.f32 %v4748, %v5206
      %v6153 = vmax.f32 %v4749, %v5208
      %v6154 = vmax.f32 %v4750, %v5210
      %v6155 = vmax.f32 %v4751, %v5212
      %v6156 = vmax.f32 %v4752, %v5214
      %v6157 = vmax.f32 %v4753, %v5216
      %v6158 = vmax.f32 %v4754, %v5218
      %v6159 = vmax.f32 %v4755, %v5220
      %v6160 = vmax.f32 %v4756, %v5222
      %v6161 = vmax.f32 %v4757, %v5224
      %v6162 = vmax.f32 %v4758, %v5226
      %v6163 = vmax.f32 %v4759, %v5228
      %v6164 = vmax.f32 %v4760, %v5230
      %v6165 = vmax.f32 %v4761, %v5232
      %v6166 = vmax.f32 %v4762, %v5234
      %v6167 = vmax.f32 %v4763, %v5236
      %v6168 = vmax.f32 %v4764, %v5238
      %v6169 = vmax.f32 %v4765, %v5240
      %v6170 = vmax.f32 %v4766, %v5242
      %v6171 = vmax.f32 %v4767, %v5244
      %v6172 = vmax.f32 %v4768, %v5246
      %v6173 = vmax.f32 %v4769, %v5248
      %v6174 = vmax.f32 %v4770, %v5250
      %v6175 = vmax.f32 %v4771, %v5252
      %v6176 = vmax.f32 %v4772, %v5254
      %v6177 = vmax.f32 %v4773, %v5256
      %v6178 = vmax.f32 %v4774, %v5258
      %v6179 = vmax.f32 %v4775, %v5260
      %v6180 = vmax.f32 %v4776, %v5262
      %v6181 = vmax.f32 %v4777, %v5264
      %v6182 = vmax.f32 %v4778, %v5266
      %v6183 = vmax.f32 %v4779, %v5268
      %v6184 = vmax.f32 %v4780, %v5270
      %v6185 = vmax.f32 %v4781, %v5272
      %v6186 = vmax.f32 %v4782, %v5274
      %v6187 = vmax.f32 %v4783, %v5276
      %v6188 = vmax.f32 %v4784, %v5278
      %v6189 = vmax.f32 %v4785, %v5280
      %v6190 = vmax.f32 %v4786, %v5282
      %v6191 = vmax.f32 %v4787, %v5284
      %v6192 = vmax.f32 %v4788, %v5286
      %v6193 = vmax.f32 %v4789, %v5288
      %v6194 = vmax.f32 %v4790, %v5290
      %v6195 = vmax.f32 %v4791, %v5292
      %v6196 = vmax.f32 %v4792, %v5294
      %v6197 = vmax.f32 %v4793, %v5296
      %v6198 = vmax.f32 %v4794, %v5298
      %v6199 = vmax.f32 %v4795, %v5300
      %v6200 = vmax.f32 %v4796, %v5302
      %v6201 = vmax.f32 %v4797, %v5304
      %v6202 = vmax.f32 %v4798, %v5306
      %v6203 = vmax.f32 %v4799, %v5308
      %v6204 = vmax.f32 %v4800, %v5310
      %v6205 = vmax.f32 %v4801, %v5312
      %v6206 = vmax.f32 %v4802, %v5314
      %v6207 = vmax.f32 %v4803, %v5316
      %v6208 = vmax.f32 %v4804, %v5318
      %v6209 = vmax.f32 %v4805, %v5320
      %v6210 = vmax.f32 %v4806, %v5322
      %v6211 = vmax.f32 %v4807, %v5324
      %v6212 = vmax.f32 %v4808, %v5326
      %v6213 = vmax.f32 %v4809, %v5328
      %v6214 = vmax.f32 %v4810, %v5330
      %v6215 = vmax.f32 %v4811, %v5332
      %v6216 = vmax.f32 %v4812, %v5334
      %v6217 = vmax.f32 %v4813, %v5336
      %v6218 = vmax.f32 %v4814, %v5338
      %v6219 = vmax.f32 %v4815, %v5340
      %v6220 = vmax.f32 %v4816, %v5342
      %v6221 = vmax.f32 %v4817, %v5344
      %v6222 = vmax.f32 %v4818, %v5346
      %v6223 = vmax.f32 %v4819, %v5348
      %v6224 = vmax.f32 %v4820, %v5350
      %v6225 = vmax.f32 %v4821, %v5352
      %v6226 = vmax.f32 %v4822, %v5354
      %v6227 = vmax.f32 %v4823, %v5356
      %v6228 = vmax.f32 %v4824, %v5358
      %v6229 = vmax.f32 %v4825, %v5360
      %v6230 = vmax.f32 %v4826, %v5362
      %v6231 = vmax.f32 %v4827, %v5364
      %v6232 = vmax.f32 %v4828, %v5366
      %v6233 = vmax.f32 %v4829, %v5368
      %v6234 = vmax.f32 %v4830, %v5370
      %v6235 = vmax.f32 %v4831, %v5372
      %v6236 = vmax.f32 %v4832, %v5374
      %v6237 = vmax.f32 %v4833, %v5376
      %v6238 = vmax.f32 %v4834, %v5378
      %v6239 = vmax.f32 %v4835, %v5380
      %v6240 = vmax.f32 %v4836, %v5382
      %v6241 = vmax.f32 %v4837, %v5384
      %v6242 = vmax.f32 %v4838, %v5386
      %v6243 = vmax.f32 %v4839, %v5388
      %v6244 = vmax.f32 %v4840, %v5390
      %v6245 = vmax.f32 %v4841, %v5392
      %v6246 = vmax.f32 %v4842, %v5394
      %v6247 = vmax.f32 %v4843, %v5396
      %v6248 = vmax.f32 %v4844, %v5398
      %v6249 = vmax.f32 %v4845, %v5400
      %v6250 = vmax.f32 %v4846, %v5402
      %v6251 = vmax.f32 %v4847, %v5404
      %v6252 = vmax.f32 %v4848, %v5406
      %v6253 = vmax.f32 %v4849, %v5408
      %v6254 = vmax.f32 %v4850, %v5410
      %v6255 = vmax.f32 %v4851, %v5412
      %v6256 = vmax.f32 %v4852, %v5414
      %v6257 = vmax.f32 %v4853, %v5416
      %v6258 = vmax.f32 %v4854, %v5418
      %v6259 = vmax.f32 %v4855, %v5420
      %v6260 = vmax.f32 %v4856, %v5422
      %v6261 = vmax.f32 %v4857, %v5424
      %v6262 = vmax.f32 %v4858, %v5426
      %v6263 = vmax.f32 %v4859, %v5428
      %v6264 = vmax.f32 %v4860, %v5430
      %v6265 = vmax.f32 %v4861, %v5432
      %v6266 = vmax.f32 %v4862, %v5434
      %v6267 = vmax.f32 %v4863, %v5436
      %v6268 = vmax.f32 %v4864, %v5438
      %v6269 = vmax.f32 %v4865, %v5440
      %v6270 = vmax.f32 %v4866, %v5442
      %v6271 = vmax.f32 %v4867, %v5444
      %v6272 = vmax.f32 %v4868, %v5446
      %v6273 = vmax.f32 %v4869, %v5448
      %v6274 = vmax.f32 %v4870, %v5450
      %v6275 = vmax.f32 %v4871, %v5452
      %v6276 = vmax.f32 %v4872, %v5454
      %v6277 = vmax.f32 %v4873, %v5456
      %v6278 = vmax.f32 %v4874, %v5458
      %v6279 = vmax.f32 %v4875, %v5460
      %v6280 = vmax.f32 %v4876, %v5462
      %v6281 = vmax.f32 %v4877, %v5464
      %v6282 = vmax.f32 %v4878, %v5466
      %v6283 = vmax.f32 %v4879, %v5468
      %v6284 = vmax.f32 %v4880, %v5470
      %v6285 = vmax.f32 %v4881, %v5472
      %v6286 = vmax.f32 %v4882, %v5474
      %v6287 = vmax.f32 %v4883, %v5476
      %v6288 = vmax.f32 %v4884, %v5478
      %v6289 = vmax.f32 %v4885, %v5480
      %v6290 = vmax.f32 %v4886, %v5482
      %v6291 = vmax.f32 %v4887, %v5484
      %v6292 = vmax.f32 %v4888, %v5486
      %v6293 = vmax.f32 %v4889, %v5488
      %v6294 = vmax.f32 %v4890, %v5490
      %v6295 = vmax.f32 %v4891, %v5492
      %v6296 = vmax.f32 %v4892, %v5494
      %v6297 = vmax.f32 %v4893, %v5496
      %v6298 = vmax.f32 %v4894, %v5498
      %v6299 = vmax.f32 %v4895, %v5500
      %v6300 = vmax.f32 %v4896, %v5502
      %v6301 = vmax.f32 %v4897, %v5504
      %v6302 = vmax.f32 %v4898, %v5506
      %v6303 = vmax.f32 %v4899, %v5508
      %v6304 = vmax.f32 %v4900, %v5510
      %v6305 = vmax.f32 %v4901, %v5512
      %v6306 = vmax.f32 %v4902, %v5514
      %v6307 = vmax.f32 %v4903, %v5516
      %v6308 = vmax.f32 %v4904, %v5518
      %v6309 = vmax.f32 %v4905, %v5520
      %v6310 = vmax.f32 %v4906, %v5522
      %v6311 = vmax.f32 %v4907, %v5524
      %v6312 = vmax.f32 %v4908, %v5526
      %v6313 = vmax.f32 %v4909, %v5528
      %v6314 = vmax.f32 %v4910, %v5530
      %v6315 = vmax.f32 %v4911, %v5532
      %v6316 = vmax.f32 %v4912, %v5534
      %v6317 = vmax.f32 %v4913, %v5536
      %v6318 = vmax.f32 %v4914, %v5538
      %v6319 = vmax.f32 %v4915, %v5540
      %v6320 = vmax.f32 %v4916, %v5542
      %v6321 = vmax.f32 %v4917, %v5544
      %v6322 = vmax.f32 %v4918, %v5546
      %v6323 = vmax.f32 %v4919, %v5548
      %v6324 = vmax.f32 %v4920, %v5550
      %v6325 = vmax.f32 %v4921, %v5552
      %v6326 = vmax.f32 %v4922, %v5554
      %v6327 = vmax.f32 %v4923, %v5556
      %v6328 = vmax.f32 %v4924, %v5558
      %v6329 = vmax.f32 %v4925, %v5560
      %v6330 = vmax.f32 %v4926, %v5562
      %v6331 = vmax.f32 %v4927, %v5564
      %v6332 = vmax.f32 %v4928, %v5566
      %v6333 = vmax.f32 %v4929, %v5568
      %v6334 = vmax.f32 %v4930, %v5570
      %v6335 = vmax.f32 %v4931, %v5572
      %v6336 = vmax.f32 %v4932, %v5574
      %v6337 = vmax.f32 %v4933, %v5576
      %v6338 = vmax.f32 %v4934, %v5578
      %v6339 = vmax.f32 %v4935, %v5580
      %v6340 = vmax.f32 %v4936, %v5582
      %v6341 = vmax.f32 %v4937, %v5584
      %v6342 = vmax.f32 %v4938, %v5586
      %v6343 = vmax.f32 %v4939, %v5588
      %v6344 = vmax.f32 %v4940, %v5590
      %v6345 = vmax.f32 %v4941, %v5592
      %v6346 = vmax.f32 %v4942, %v5594
      %v6347 = vmax.f32 %v4943, %v5596
      %v6348 = vmax.f32 %v4944, %v5598
      %v6349 = vmax.f32 %v4945, %v5600
      %v6350 = vmax.f32 %v4946, %v5602
      %v6351 = vmax.f32 %v4947, %v5604
      %v6352 = vmax.f32 %v4948, %v5606
      %v6353 = vmax.f32 %v4949, %v5608
      %v6354 = vmax.f32 %v4950, %v5610
      %v6355 = vmax.f32 %v4951, %v5612
      %v6356 = vmax.f32 %v4952, %v5614
      %v6357 = vmax.f32 %v4953, %v5616
      %v6358 = vmax.f32 %v4954, %v5618
      %v6359 = vmax.f32 %v4955, %v5620
      %v6360 = vmax.f32 %v4956, %v5622
      %v6361 = vmax.f32 %v4957, %v5624
      %v6362 = vmax.f32 %v4958, %v5626
      %v6363 = vmax.f32 %v4959, %v5628
      %v6364 = vmax.f32 %v4960, %v5630
      %v6365 = vmax.f32 %v4961, %v5632
      %v6366 = vmax.f32 %v4962, %v5634
      %v6367 = vmax.f32 %v4963, %v5636
      %v6368 = vmax.f32 %v4964, %v5638
      %v6369 = vmax.f32 %v4965, %v5640
      %v6370 = vmax.f32 %v4966, %v5642
      %v6371 = vmax.f32 %v4967, %v5644
      %v6372 = vmax.f32 %v4968, %v5646
      %v6373 = vmax.f32 %v4969, %v5648
      %v6374 = vmax.f32 %v4970, %v5650
      %v6375 = vmax.f32 %v4971, %v5652
      %v6376 = vmax.f32 %v4972, %v5654
      %v6377 = vmax.f32 %v4973, %v5656
      %v6378 = vmax.f32 %v4974, %v5658
      %v6379 = vmax.f32 %v4975, %v5660
      %v6380 = vmax.f32 %v4976, %v5662
      %v6381 = vmax.f32 %v4977, %v5664
      %v6382 = vmax.f32 %v4978, %v5666
      %v6383 = vmax.f32 %v4979, %v5668
      %v6384 = vmax.f32 %v4980, %v5670
      %v6385 = vmax.f32 %v4981, %v5672
      %v6386 = vmax.f32 %v4982, %v5674
      %v6387 = vmax.f32 %v4983, %v5676
      %v6388 = vmax.f32 %v4984, %v5678
      %v6389 = vmax.f32 %v4985, %v5680
      %v6390 = vmax.f32 %v4986, %v5682
      %v6391 = vmax.f32 %v4987, %v5684
      %v6392 = vmax.f32 %v4988, %v5686
      %v6393 = vmax.f32 %v4989, %v5688
      %v6394 = vmax.f32 %v4990, %v5690
      %v6395 = vmax.f32 %v4991, %v5692
      %v6396 = vmax.f32 %v4992, %v5694
      %v6397 = vmax.f32 %v6046, %v6059
      %v6398 = vmax.f32 %v6047, %v6060
      %v6399 = vmax.f32 %v6048, %v6061
      %v6400 = vmax.f32 %v6049, %v6062
      %v6401 = vmax.f32 %v6050, %v6063
      %v6402 = vmax.f32 %v6051, %v6064
      %v6403 = vmax.f32 %v6052, %v6065
      %v6404 = vmax.f32 %v6053, %v6066
      %v6405 = vmax.f32 %v6054, %v6067
      %v6406 = vmax.f32 %v6055, %v6068
      %v6407 = vmax.f32 %v6056, %v6069
      %v6408 = vmax.f32 %v6057, %v6070
      %v6409 = vmax.f32 %v6058, %v6071
      %v6410 = vmax.f32 %v6072, %v6085
      %v6411 = vmax.f32 %v6073, %v6086
      %v6412 = vmax.f32 %v6074, %v6087
      %v6413 = vmax.f32 %v6075, %v6088
      %v6414 = vmax.f32 %v6076, %v6089
      %v6415 = vmax.f32 %v6077, %v6090
      %v6416 = vmax.f32 %v6078, %v6091
      %v6417 = vmax.f32 %v6079, %v6092
      %v6418 = vmax.f32 %v6080, %v6093
      %v6419 = vmax.f32 %v6081, %v6094
      %v6420 = vmax.f32 %v6082, %v6095
      %v6421 = vmax.f32 %v6083, %v6096
      %v6422 = vmax.f32 %v6084, %v6097
      %v6423 = vmax.f32 %v6098, %v6111
      %v6424 = vmax.f32 %v6099, %v6112
      %v6425 = vmax.f32 %v6100, %v6113
      %v6426 = vmax.f32 %v6101, %v6114
      %v6427 = vmax.f32 %v6102, %v6115
      %v6428 = vmax.f32 %v6103, %v6116
      %v6429 = vmax.f32 %v6104, %v6117
      %v6430 = vmax.f32 %v6105, %v6118
      %v6431 = vmax.f32 %v6106, %v6119
      %v6432 = vmax.f32 %v6107, %v6120
      %v6433 = vmax.f32 %v6108, %v6121
      %v6434 = vmax.f32 %v6109, %v6122
      %v6435 = vmax.f32 %v6110, %v6123
      %v6436 = vmax.f32 %v6124, %v6137
      %v6437 = vmax.f32 %v6125, %v6138
      %v6438 = vmax.f32 %v6126, %v6139
      %v6439 = vmax.f32 %v6127, %v6140
      %v6440 = vmax.f32 %v6128, %v6141
      %v6441 = vmax.f32 %v6129, %v6142
      %v6442 = vmax.f32 %v6130, %v6143
      %v6443 = vmax.f32 %v6131, %v6144
      %v6444 = vmax.f32 %v6132, %v6145
      %v6445 = vmax.f32 %v6133, %v6146
      %v6446 = vmax.f32 %v6134, %v6147
      %v6447 = vmax.f32 %v6135, %v6148
      %v6448 = vmax.f32 %v6136, %v6149
      %v6449 = vmax.f32 %v6150, %v6163
      %v6450 = vmax.f32 %v6151, %v6164
      %v6451 = vmax.f32 %v6152, %v6165
      %v6452 = vmax.f32 %v6153, %v6166
      %v6453 = vmax.f32 %v6154, %v6167
      %v6454 = vmax.f32 %v6155, %v6168
      %v6455 = vmax.f32 %v6156, %v6169
      %v6456 = vmax.f32 %v6157, %v6170
      %v6457 = vmax.f32 %v6158, %v6171
      %v6458 = vmax.f32 %v6159, %v6172
      %v6459 = vmax.f32 %v6160, %v6173
      %v6460 = vmax.f32 %v6161, %v6174
      %v6461 = vmax.f32 %v6162, %v6175
      %v6462 = vmax.f32 %v6176, %v6189
      %v6463 = vmax.f32 %v6177, %v6190
      %v6464 = vmax.f32 %v6178, %v6191
      %v6465 = vmax.f32 %v6179, %v6192
      %v6466 = vmax.f32 %v6180, %v6193
      %v6467 = vmax.f32 %v6181, %v6194
      %v6468 = vmax.f32 %v6182, %v6195
      %v6469 = vmax.f32 %v6183, %v6196
      %v6470 = vmax.f32 %v6184, %v6197
      %v6471 = vmax.f32 %v6185, %v6198
      %v6472 = vmax.f32 %v6186, %v6199
      %v6473 = vmax.f32 %v6187, %v6200
      %v6474 = vmax.f32 %v6188, %v6201
      %v6475 = vmax.f32 %v6202, %v6215
      %v6476 = vmax.f32 %v6203, %v6216
      %v6477 = vmax.f32 %v6204, %v6217
      %v6478 = vmax.f32 %v6205, %v6218
      %v6479 = vmax.f32 %v6206, %v6219
      %v6480 = vmax.f32 %v6207, %v6220
      %v6481 = vmax.f32 %v6208, %v6221
      %v6482 = vmax.f32 %v6209, %v6222
      %v6483 = vmax.f32 %v6210, %v6223
      %v6484 = vmax.f32 %v6211, %v6224
      %v6485 = vmax.f32 %v6212, %v6225
      %v6486 = vmax.f32 %v6213, %v6226
      %v6487 = vmax.f32 %v6214, %v6227
      %v6488 = vmax.f32 %v6228, %v6241
      %v6489 = vmax.f32 %v6229, %v6242
      %v6490 = vmax.f32 %v6230, %v6243
      %v6491 = vmax.f32 %v6231, %v6244
      %v6492 = vmax.f32 %v6232, %v6245
      %v6493 = vmax.f32 %v6233, %v6246
      %v6494 = vmax.f32 %v6234, %v6247
      %v6495 = vmax.f32 %v6235, %v6248
      %v6496 = vmax.f32 %v6236, %v6249
      %v6497 = vmax.f32 %v6237, %v6250
      %v6498 = vmax.f32 %v6238, %v6251
      %v6499 = vmax.f32 %v6239, %v6252
      %v6500 = vmax.f32 %v6240, %v6253
      %v6501 = vmax.f32 %v6254, %v6267
      %v6502 = vmax.f32 %v6255, %v6268
      %v6503 = vmax.f32 %v6256, %v6269
      %v6504 = vmax.f32 %v6257, %v6270
      %v6505 = vmax.f32 %v6258, %v6271
      %v6506 = vmax.f32 %v6259, %v6272
      %v6507 = vmax.f32 %v6260, %v6273
      %v6508 = vmax.f32 %v6261, %v6274
      %v6509 = vmax.f32 %v6262, %v6275
      %v6510 = vmax.f32 %v6263, %v6276
      %v6511 = vmax.f32 %v6264, %v6277
      %v6512 = vmax.f32 %v6265, %v6278
      %v6513 = vmax.f32 %v6266, %v6279
      %v6514 = vmax.f32 %v6280, %v6293
      %v6515 = vmax.f32 %v6281, %v6294
      %v6516 = vmax.f32 %v6282, %v6295
      %v6517 = vmax.f32 %v6283, %v6296
      %v6518 = vmax.f32 %v6284, %v6297
      %v6519 = vmax.f32 %v6285, %v6298
      %v6520 = vmax.f32 %v6286, %v6299
      %v6521 = vmax.f32 %v6287, %v6300
      %v6522 = vmax.f32 %v6288, %v6301
      %v6523 = vmax.f32 %v6289, %v6302
      %v6524 = vmax.f32 %v6290, %v6303
      %v6525 = vmax.f32 %v6291, %v6304
      %v6526 = vmax.f32 %v6292, %v6305
      %v6527 = vmax.f32 %v6306, %v6319
      %v6528 = vmax.f32 %v6307, %v6320
      %v6529 = vmax.f32 %v6308, %v6321
      %v6530 = vmax.f32 %v6309, %v6322
      %v6531 = vmax.f32 %v6310, %v6323
      %v6532 = vmax.f32 %v6311, %v6324
      %v6533 = vmax.f32 %v6312, %v6325
      %v6534 = vmax.f32 %v6313, %v6326
      %v6535 = vmax.f32 %v6314, %v6327
      %v6536 = vmax.f32 %v6315, %v6328
      %v6537 = vmax.f32 %v6316, %v6329
      %v6538 = vmax.f32 %v6317, %v6330
      %v6539 = vmax.f32 %v6318, %v6331
      %v6540 = vmax.f32 %v6332, %v6345
      %v6541 = vmax.f32 %v6333, %v6346
      %v6542 = vmax.f32 %v6334, %v6347
      %v6543 = vmax.f32 %v6335, %v6348
      %v6544 = vmax.f32 %v6336, %v6349
      %v6545 = vmax.f32 %v6337, %v6350
      %v6546 = vmax.f32 %v6338, %v6351
      %v6547 = vmax.f32 %v6339, %v6352
      %v6548 = vmax.f32 %v6340, %v6353
      %v6549 = vmax.f32 %v6341, %v6354
      %v6550 = vmax.f32 %v6342, %v6355
      %v6551 = vmax.f32 %v6343, %v6356
      %v6552 = vmax.f32 %v6344, %v6357
      %v6553 = vmax.f32 %v6358, %v6371
      %v6554 = vmax.f32 %v6359, %v6372
      %v6555 = vmax.f32 %v6360, %v6373
      %v6556 = vmax.f32 %v6361, %v6374
      %v6557 = vmax.f32 %v6362, %v6375
      %v6558 = vmax.f32 %v6363, %v6376
      %v6559 = vmax.f32 %v6364, %v6377
      %v6560 = vmax.f32 %v6365, %v6378
      %v6561 = vmax.f32 %v6366, %v6379
      %v6562 = vmax.f32 %v6367, %v6380
      %v6563 = vmax.f32 %v6368, %v6381
      %v6564 = vmax.f32 %v6369, %v6382
      %v6565 = vmax.f32 %v6370, %v6383
      %v6566 = vmax.f32 %v6397, %v6072
      %v6567 = vmax.f32 %v6398, %v6073
      %v6568 = vmax.f32 %v6399, %v6074
      %v6569 = vmax.f32 %v6400, %v6075
      %v6570 = vmax.f32 %v6401, %v6076
      %v6571 = vmax.f32 %v6402, %v6077
      %v6572 = vmax.f32 %v6403, %v6078
      %v6573 = vmax.f32 %v6404, %v6079
      %v6574 = vmax.f32 %v6405, %v6080
      %v6575 = vmax.f32 %v6406, %v6081
      %v6576 = vmax.f32 %v6407, %v6082
      %v6577 = vmax.f32 %v6408, %v6083
      %v6578 = vmax.f32 %v6409, %v6084
      %v6579 = vmax.f32 %v6410, %v6098
      %v6580 = vmax.f32 %v6411, %v6099
      %v6581 = vmax.f32 %v6412, %v6100
      %v6582 = vmax.f32 %v6413, %v6101
      %v6583 = vmax.f32 %v6414, %v6102
      %v6584 = vmax.f32 %v6415, %v6103
      %v6585 = vmax.f32 %v6416, %v6104
      %v6586 = vmax.f32 %v6417, %v6105
      %v6587 = vmax.f32 %v6418, %v6106
      %v6588 = vmax.f32 %v6419, %v6107
      %v6589 = vmax.f32 %v6420, %v6108
      %v6590 = vmax.f32 %v6421, %v6109
      %v6591 = vmax.f32 %v6422, %v6110
      %v6592 = vmax.f32 %v6423, %v6124
      %v6593 = vmax.f32 %v6424, %v6125
      %v6594 = vmax.f32 %v6425, %v6126
      %v6595 = vmax.f32 %v6426, %v6127
      %v6596 = vmax.f32 %v6427, %v6128
      %v6597 = vmax.f32 %v6428, %v6129
      %v6598 = vmax.f32 %v6429, %v6130
      %v6599 = vmax.f32 %v6430, %v6131
      %v6600 = vmax.f32 %v6431, %v6132
      %v6601 = vmax.f32 %v6432, %v6133
      %v6602 = vmax.f32 %v6433, %v6134
      %v6603 = vmax.f32 %v6434, %v6135
      %v6604 = vmax.f32 %v6435, %v6136
      %v6605 = vmax.f32 %v6436, %v6150
      %v6606 = vmax.f32 %v6437, %v6151
      %v6607 = vmax.f32 %v6438, %v6152
      %v6608 = vmax.f32 %v6439, %v6153
      %v6609 = vmax.f32 %v6440, %v6154
      %v6610 = vmax.f32 %v6441, %v6155
      %v6611 = vmax.f32 %v6442, %v6156
      %v6612 = vmax.f32 %v6443, %v6157
      %v6613 = vmax.f32 %v6444, %v6158
      %v6614 = vmax.f32 %v6445, %v6159
      %v6615 = vmax.f32 %v6446, %v6160
      %v6616 = vmax.f32 %v6447, %v6161
      %v6617 = vmax.f32 %v6448, %v6162
      %v6618 = vmax.f32 %v6449, %v6176
      %v6619 = vmax.f32 %v6450, %v6177
      %v6620 = vmax.f32 %v6451, %v6178
      %v6621 = vmax.f32 %v6452, %v6179
      %v6622 = vmax.f32 %v6453, %v6180
      %v6623 = vmax.f32 %v6454, %v6181
      %v6624 = vmax.f32 %v6455, %v6182
      %v6625 = vmax.f32 %v6456, %v6183
      %v6626 = vmax.f32 %v6457, %v6184
      %v6627 = vmax.f32 %v6458, %v6185
      %v6628 = vmax.f32 %v6459, %v6186
      %v6629 = vmax.f32 %v6460, %v6187
      %v6630 = vmax.f32 %v6461, %v6188
      %v6631 = vmax.f32 %v6462, %v6202
      %v6632 = vmax.f32 %v6463, %v6203
      %v6633 = vmax.f32 %v6464, %v6204
      %v6634 = vmax.f32 %v6465, %v6205
      %v6635 = vmax.f32 %v6466, %v6206
      %v6636 = vmax.f32 %v6467, %v6207
      %v6637 = vmax.f32 %v6468, %v6208
      %v6638 = vmax.f32 %v6469, %v6209
      %v6639 = vmax.f32 %v6470, %v6210
      %v6640 = vmax.f32 %v6471, %v6211
      %v6641 = vmax.f32 %v6472, %v6212
      %v6642 = vmax.f32 %v6473, %v6213
      %v6643 = vmax.f32 %v6474, %v6214
      %v6644 = vmax.f32 %v6475, %v6228
      %v6645 = vmax.f32 %v6476, %v6229
      %v6646 = vmax.f32 %v6477, %v6230
      %v6647 = vmax.f32 %v6478, %v6231
      %v6648 = vmax.f32 %v6479, %v6232
      %v6649 = vmax.f32 %v6480, %v6233
      %v6650 = vmax.f32 %v6481, %v6234
      %v6651 = vmax.f32 %v6482, %v6235
      %v6652 = vmax.f32 %v6483, %v6236
      %v6653 = vmax.f32 %v6484, %v6237
      %v6654 = vmax.f32 %v6485, %v6238
      %v6655 = vmax.f32 %v6486, %v6239
      %v6656 = vmax.f32 %v6487, %v6240
      %v6657 = vmax.f32 %v6488, %v6254
      %v6658 = vmax.f32 %v6489, %v6255
      %v6659 = vmax.f32 %v6490, %v6256
      %v6660 = vmax.f32 %v6491, %v6257
      %v6661 = vmax.f32 %v6492, %v6258
      %v6662 = vmax.f32 %v6493, %v6259
      %v6663 = vmax.f32 %v6494, %v6260
      %v6664 = vmax.f32 %v6495, %v6261
      %v6665 = vmax.f32 %v6496, %v6262
      %v6666 = vmax.f32 %v6497, %v6263
      %v6667 = vmax.f32 %v6498, %v6264
      %v6668 = vmax.f32 %v6499, %v6265
      %v6669 = vmax.f32 %v6500, %v6266
      %v6670 = vmax.f32 %v6501, %v6280
      %v6671 = vmax.f32 %v6502, %v6281
      %v6672 = vmax.f32 %v6503, %v6282
      %v6673 = vmax.f32 %v6504, %v6283
      %v6674 = vmax.f32 %v6505, %v6284
      %v6675 = vmax.f32 %v6506, %v6285
      %v6676 = vmax.f32 %v6507, %v6286
      %v6677 = vmax.f32 %v6508, %v6287
      %v6678 = vmax.f32 %v6509, %v6288
      %v6679 = vmax.f32 %v6510, %v6289
      %v6680 = vmax.f32 %v6511, %v6290
      %v6681 = vmax.f32 %v6512, %v6291
      %v6682 = vmax.f32 %v6513, %v6292
      %v6683 = vmax.f32 %v6514, %v6306
      %v6684 = vmax.f32 %v6515, %v6307
      %v6685 = vmax.f32 %v6516, %v6308
      %v6686 = vmax.f32 %v6517, %v6309
      %v6687 = vmax.f32 %v6518, %v6310
      %v6688 = vmax.f32 %v6519, %v6311
      %v6689 = vmax.f32 %v6520, %v6312
      %v6690 = vmax.f32 %v6521, %v6313
      %v6691 = vmax.f32 %v6522, %v6314
      %v6692 = vmax.f32 %v6523, %v6315
      %v6693 = vmax.f32 %v6524, %v6316
      %v6694 = vmax.f32 %v6525, %v6317
      %v6695 = vmax.f32 %v6526, %v6318
      %v6696 = vmax.f32 %v6527, %v6332
      %v6697 = vmax.f32 %v6528, %v6333
      %v6698 = vmax.f32 %v6529, %v6334
      %v6699 = vmax.f32 %v6530, %v6335
      %v6700 = vmax.f32 %v6531, %v6336
      %v6701 = vmax.f32 %v6532, %v6337
      %v6702 = vmax.f32 %v6533, %v6338
      %v6703 = vmax.f32 %v6534, %v6339
      %v6704 = vmax.f32 %v6535, %v6340
      %v6705 = vmax.f32 %v6536, %v6341
      %v6706 = vmax.f32 %v6537, %v6342
      %v6707 = vmax.f32 %v6538, %v6343
      %v6708 = vmax.f32 %v6539, %v6344
      %v6709 = vmax.f32 %v6540, %v6358
      %v6710 = vmax.f32 %v6541, %v6359
      %v6711 = vmax.f32 %v6542, %v6360
      %v6712 = vmax.f32 %v6543, %v6361
      %v6713 = vmax.f32 %v6544, %v6362
      %v6714 = vmax.f32 %v6545, %v6363
      %v6715 = vmax.f32 %v6546, %v6364
      %v6716 = vmax.f32 %v6547, %v6365
      %v6717 = vmax.f32 %v6548, %v6366
      %v6718 = vmax.f32 %v6549, %v6367
      %v6719 = vmax.f32 %v6550, %v6368
      %v6720 = vmax.f32 %v6551, %v6369
      %v6721 = vmax.f32 %v6552, %v6370
      %v6722 = vmax.f32 %v6553, %v6384
      %v6723 = vmax.f32 %v6554, %v6385
      %v6724 = vmax.f32 %v6555, %v6386
      %v6725 = vmax.f32 %v6556, %v6387
      %v6726 = vmax.f32 %v6557, %v6388
      %v6727 = vmax.f32 %v6558, %v6389
      %v6728 = vmax.f32 %v6559, %v6390
      %v6729 = vmax.f32 %v6560, %v6391
      %v6730 = vmax.f32 %v6561, %v6392
      %v6731 = vmax.f32 %v6562, %v6393
      %v6732 = vmax.f32 %v6563, %v6394
      %v6733 = vmax.f32 %v6564, %v6395
      %v6734 = vmax.f32 %v6565, %v6396
      %v6735 = vpack.c.bf16 %v6566, %v6566
      %v6736 = vpack.c.bf16 %v6567, %v6567
      %v6737 = vpack.c.bf16 %v6568, %v6568
      %v6738 = vpack.c.bf16 %v6569, %v6569
      %v6739 = vpack.c.bf16 %v6570, %v6570
      %v6740 = vpack.c.bf16 %v6571, %v6571
      %v6741 = vpack.c.bf16 %v6572, %v6572
      %v6742 = vpack.c.bf16 %v6573, %v6573
      %v6743 = vpack.c.bf16 %v6574, %v6574
      %v6744 = vpack.c.bf16 %v6575, %v6575
      %v6745 = vpack.c.bf16 %v6576, %v6576
      %v6746 = vpack.c.bf16 %v6577, %v6577
      %v6747 = vpack.c.bf16 %v6578, %v6578
      %v6748 = vpack.c.bf16 %v6579, %v6579
      %v6749 = vpack.c.bf16 %v6580, %v6580
      %v6750 = vpack.c.bf16 %v6581, %v6581
      %v6751 = vpack.c.bf16 %v6582, %v6582
      %v6752 = vpack.c.bf16 %v6583, %v6583
      %v6753 = vpack.c.bf16 %v6584, %v6584
      %v6754 = vpack.c.bf16 %v6585, %v6585
      %v6755 = vpack.c.bf16 %v6586, %v6586
      %v6756 = vpack.c.bf16 %v6587, %v6587
      %v6757 = vpack.c.bf16 %v6588, %v6588
      %v6758 = vpack.c.bf16 %v6589, %v6589
      %v6759 = vpack.c.bf16 %v6590, %v6590
      %v6760 = vpack.c.bf16 %v6591, %v6591
      %v6761 = vpack.c.bf16 %v6592, %v6592
      %v6762 = vpack.c.bf16 %v6593, %v6593
      %v6763 = vpack.c.bf16 %v6594, %v6594
      %v6764 = vpack.c.bf16 %v6595, %v6595
      %v6765 = vpack.c.bf16 %v6596, %v6596
      %v6766 = vpack.c.bf16 %v6597, %v6597
      %v6767 = vpack.c.bf16 %v6598, %v6598
      %v6768 = vpack.c.bf16 %v6599, %v6599
      %v6769 = vpack.c.bf16 %v6600, %v6600
      %v6770 = vpack.c.bf16 %v6601, %v6601
      %v6771 = vpack.c.bf16 %v6602, %v6602
      %v6772 = vpack.c.bf16 %v6603, %v6603
      %v6773 = vpack.c.bf16 %v6604, %v6604
      %v6774 = vpack.c.bf16 %v6605, %v6605
      %v6775 = vpack.c.bf16 %v6606, %v6606
      %v6776 = vpack.c.bf16 %v6607, %v6607
      %v6777 = vpack.c.bf16 %v6608, %v6608
      %v6778 = vpack.c.bf16 %v6609, %v6609
      %v6779 = vpack.c.bf16 %v6610, %v6610
      %v6780 = vpack.c.bf16 %v6611, %v6611
      %v6781 = vpack.c.bf16 %v6612, %v6612
      %v6782 = vpack.c.bf16 %v6613, %v6613
      %v6783 = vpack.c.bf16 %v6614, %v6614
      %v6784 = vpack.c.bf16 %v6615, %v6615
      %v6785 = vpack.c.bf16 %v6616, %v6616
      %v6786 = vpack.c.bf16 %v6617, %v6617
      %v6787 = vpack.c.bf16 %v6618, %v6618
      %v6788 = vpack.c.bf16 %v6619, %v6619
      %v6789 = vpack.c.bf16 %v6620, %v6620
      %v6790 = vpack.c.bf16 %v6621, %v6621
      %v6791 = vpack.c.bf16 %v6622, %v6622
      %v6792 = vpack.c.bf16 %v6623, %v6623
      %v6793 = vpack.c.bf16 %v6624, %v6624
      %v6794 = vpack.c.bf16 %v6625, %v6625
      %v6795 = vpack.c.bf16 %v6626, %v6626
      %v6796 = vpack.c.bf16 %v6627, %v6627
      %v6797 = vpack.c.bf16 %v6628, %v6628
      %v6798 = vpack.c.bf16 %v6629, %v6629
      %v6799 = vpack.c.bf16 %v6630, %v6630
      %v6800 = vpack.c.bf16 %v6631, %v6631
      %v6801 = vpack.c.bf16 %v6632, %v6632
      %v6802 = vpack.c.bf16 %v6633, %v6633
      %v6803 = vpack.c.bf16 %v6634, %v6634
      %v6804 = vpack.c.bf16 %v6635, %v6635
      %v6805 = vpack.c.bf16 %v6636, %v6636
      %v6806 = vpack.c.bf16 %v6637, %v6637
      %v6807 = vpack.c.bf16 %v6638, %v6638
      %v6808 = vpack.c.bf16 %v6639, %v6639
      %v6809 = vpack.c.bf16 %v6640, %v6640
      %v6810 = vpack.c.bf16 %v6641, %v6641
      %v6811 = vpack.c.bf16 %v6642, %v6642
      %v6812 = vpack.c.bf16 %v6643, %v6643
      %v6813 = vpack.c.bf16 %v6644, %v6644
      %v6814 = vpack.c.bf16 %v6645, %v6645
      %v6815 = vpack.c.bf16 %v6646, %v6646
      %v6816 = vpack.c.bf16 %v6647, %v6647
      %v6817 = vpack.c.bf16 %v6648, %v6648
      %v6818 = vpack.c.bf16 %v6649, %v6649
      %v6819 = vpack.c.bf16 %v6650, %v6650
      %v6820 = vpack.c.bf16 %v6651, %v6651
      %v6821 = vpack.c.bf16 %v6652, %v6652
      %v6822 = vpack.c.bf16 %v6653, %v6653
      %v6823 = vpack.c.bf16 %v6654, %v6654
      %v6824 = vpack.c.bf16 %v6655, %v6655
      %v6825 = vpack.c.bf16 %v6656, %v6656
      %v6826 = vpack.c.bf16 %v6657, %v6657
      %v6827 = vpack.c.bf16 %v6658, %v6658
      %v6828 = vpack.c.bf16 %v6659, %v6659
      %v6829 = vpack.c.bf16 %v6660, %v6660
      %v6830 = vpack.c.bf16 %v6661, %v6661
      %v6831 = vpack.c.bf16 %v6662, %v6662
      %v6832 = vpack.c.bf16 %v6663, %v6663
      %v6833 = vpack.c.bf16 %v6664, %v6664
      %v6834 = vpack.c.bf16 %v6665, %v6665
      %v6835 = vpack.c.bf16 %v6666, %v6666
      %v6836 = vpack.c.bf16 %v6667, %v6667
      %v6837 = vpack.c.bf16 %v6668, %v6668
      %v6838 = vpack.c.bf16 %v6669, %v6669
      %v6839 = vpack.c.bf16 %v6670, %v6670
      %v6840 = vpack.c.bf16 %v6671, %v6671
      %v6841 = vpack.c.bf16 %v6672, %v6672
      %v6842 = vpack.c.bf16 %v6673, %v6673
      %v6843 = vpack.c.bf16 %v6674, %v6674
      %v6844 = vpack.c.bf16 %v6675, %v6675
      %v6845 = vpack.c.bf16 %v6676, %v6676
      %v6846 = vpack.c.bf16 %v6677, %v6677
      %v6847 = vpack.c.bf16 %v6678, %v6678
      %v6848 = vpack.c.bf16 %v6679, %v6679
      %v6849 = vpack.c.bf16 %v6680, %v6680
      %v6850 = vpack.c.bf16 %v6681, %v6681
      %v6851 = vpack.c.bf16 %v6682, %v6682
      %v6852 = vpack.c.bf16 %v6683, %v6683
      %v6853 = vpack.c.bf16 %v6684, %v6684
      %v6854 = vpack.c.bf16 %v6685, %v6685
      %v6855 = vpack.c.bf16 %v6686, %v6686
      %v6856 = vpack.c.bf16 %v6687, %v6687
      %v6857 = vpack.c.bf16 %v6688, %v6688
      %v6858 = vpack.c.bf16 %v6689, %v6689
      %v6859 = vpack.c.bf16 %v6690, %v6690
      %v6860 = vpack.c.bf16 %v6691, %v6691
      %v6861 = vpack.c.bf16 %v6692, %v6692
      %v6862 = vpack.c.bf16 %v6693, %v6693
      %v6863 = vpack.c.bf16 %v6694, %v6694
      %v6864 = vpack.c.bf16 %v6695, %v6695
      %v6865 = vpack.c.bf16 %v6696, %v6696
      %v6866 = vpack.c.bf16 %v6697, %v6697
      %v6867 = vpack.c.bf16 %v6698, %v6698
      %v6868 = vpack.c.bf16 %v6699, %v6699
      %v6869 = vpack.c.bf16 %v6700, %v6700
      %v6870 = vpack.c.bf16 %v6701, %v6701
      %v6871 = vpack.c.bf16 %v6702, %v6702
      %v6872 = vpack.c.bf16 %v6703, %v6703
      %v6873 = vpack.c.bf16 %v6704, %v6704
      %v6874 = vpack.c.bf16 %v6705, %v6705
      %v6875 = vpack.c.bf16 %v6706, %v6706
      %v6876 = vpack.c.bf16 %v6707, %v6707
      %v6877 = vpack.c.bf16 %v6708, %v6708
      %v6878 = vpack.c.bf16 %v6709, %v6709
      %v6879 = vpack.c.bf16 %v6710, %v6710
      %v6880 = vpack.c.bf16 %v6711, %v6711
      %v6881 = vpack.c.bf16 %v6712, %v6712
      %v6882 = vpack.c.bf16 %v6713, %v6713
      %v6883 = vpack.c.bf16 %v6714, %v6714
      %v6884 = vpack.c.bf16 %v6715, %v6715
      %v6885 = vpack.c.bf16 %v6716, %v6716
      %v6886 = vpack.c.bf16 %v6717, %v6717
      %v6887 = vpack.c.bf16 %v6718, %v6718
      %v6888 = vpack.c.bf16 %v6719, %v6719
      %v6889 = vpack.c.bf16 %v6720, %v6720
      %v6890 = vpack.c.bf16 %v6721, %v6721
      %v6891 = vpack.c.bf16 %v6722, %v6722
      %v6892 = vpack.c.bf16 %v6723, %v6723
      %v6893 = vpack.c.bf16 %v6724, %v6724
      %v6894 = vpack.c.bf16 %v6725, %v6725
      %v6895 = vpack.c.bf16 %v6726, %v6726
      %v6896 = vpack.c.bf16 %v6727, %v6727
      %v6897 = vpack.c.bf16 %v6728, %v6728
      %v6898 = vpack.c.bf16 %v6729, %v6729
      %v6899 = vpack.c.bf16 %v6730, %v6730
      %v6900 = vpack.c.bf16 %v6731, %v6731
      %v6901 = vpack.c.bf16 %v6732, %v6732
      %v6902 = vpack.c.bf16 %v6733, %v6733
      %v6903 = vpack.c.bf16 %v6734, %v6734
      %v7073 = vunpack.c.l.b16 %v6735
      %v7074 = vunpack.c.l.b16 %v6736
      %v7075 = vunpack.c.l.b16 %v6737
      %v7076 = vunpack.c.l.b16 %v6738
      %v7077 = vunpack.c.l.b16 %v6739
      %v7078 = vunpack.c.l.b16 %v6740
      %v7079 = vunpack.c.l.b16 %v6741
      %v7080 = vunpack.c.l.b16 %v6742
      %v7081 = vunpack.c.l.b16 %v6743
      %v7082 = vunpack.c.l.b16 %v6744
      %v7083 = vunpack.c.l.b16 %v6745
      %v7084 = vunpack.c.l.b16 %v6746
      %v7085 = vunpack.c.l.b16 %v6747
      %v7086 = vunpack.c.l.b16 %v6748
      %v7087 = vunpack.c.l.b16 %v6749
      %v7088 = vunpack.c.l.b16 %v6750
      %v7089 = vunpack.c.l.b16 %v6751
      %v7090 = vunpack.c.l.b16 %v6752
      %v7091 = vunpack.c.l.b16 %v6753
      %v7092 = vunpack.c.l.b16 %v6754
      %v7093 = vunpack.c.l.b16 %v6755
      %v7094 = vunpack.c.l.b16 %v6756
      %v7095 = vunpack.c.l.b16 %v6757
      %v7096 = vunpack.c.l.b16 %v6758
      %v7097 = vunpack.c.l.b16 %v6759
      %v7098 = vunpack.c.l.b16 %v6760
      %v7099 = vunpack.c.l.b16 %v6761
      %v7100 = vunpack.c.l.b16 %v6762
      %v7101 = vunpack.c.l.b16 %v6763
      %v7102 = vunpack.c.l.b16 %v6764
      %v7103 = vunpack.c.l.b16 %v6765
      %v7104 = vunpack.c.l.b16 %v6766
      %v7105 = vunpack.c.l.b16 %v6767
      %v7106 = vunpack.c.l.b16 %v6768
      %v7107 = vunpack.c.l.b16 %v6769
      %v7108 = vunpack.c.l.b16 %v6770
      %v7109 = vunpack.c.l.b16 %v6771
      %v7110 = vunpack.c.l.b16 %v6772
      %v7111 = vunpack.c.l.b16 %v6773
      %v7112 = vunpack.c.l.b16 %v6774
      %v7113 = vunpack.c.l.b16 %v6775
      %v7114 = vunpack.c.l.b16 %v6776
      %v7115 = vunpack.c.l.b16 %v6777
      %v7116 = vunpack.c.l.b16 %v6778
      %v7117 = vunpack.c.l.b16 %v6779
      %v7118 = vunpack.c.l.b16 %v6780
      %v7119 = vunpack.c.l.b16 %v6781
      %v7120 = vunpack.c.l.b16 %v6782
      %v7121 = vunpack.c.l.b16 %v6783
      %v7122 = vunpack.c.l.b16 %v6784
      %v7123 = vunpack.c.l.b16 %v6785
      %v7124 = vunpack.c.l.b16 %v6786
      %v7125 = vunpack.c.l.b16 %v6787
      %v7126 = vunpack.c.l.b16 %v6788
      %v7127 = vunpack.c.l.b16 %v6789
      %v7128 = vunpack.c.l.b16 %v6790
      %v7129 = vunpack.c.l.b16 %v6791
      %v7130 = vunpack.c.l.b16 %v6792
      %v7131 = vunpack.c.l.b16 %v6793
      %v7132 = vunpack.c.l.b16 %v6794
      %v7133 = vunpack.c.l.b16 %v6795
      %v7134 = vunpack.c.l.b16 %v6796
      %v7135 = vunpack.c.l.b16 %v6797
      %v7136 = vunpack.c.l.b16 %v6798
      %v7137 = vunpack.c.l.b16 %v6799
      %v7138 = vunpack.c.l.b16 %v6800
      %v7139 = vunpack.c.l.b16 %v6801
      %v7140 = vunpack.c.l.b16 %v6802
      %v7141 = vunpack.c.l.b16 %v6803
      %v7142 = vunpack.c.l.b16 %v6804
      %v7143 = vunpack.c.l.b16 %v6805
      %v7144 = vunpack.c.l.b16 %v6806
      %v7145 = vunpack.c.l.b16 %v6807
      %v7146 = vunpack.c.l.b16 %v6808
      %v7147 = vunpack.c.l.b16 %v6809
      %v7148 = vunpack.c.l.b16 %v6810
      %v7149 = vunpack.c.l.b16 %v6811
      %v7150 = vunpack.c.l.b16 %v6812
      %v7151 = vunpack.c.l.b16 %v6813
      %v7152 = vunpack.c.l.b16 %v6814
      %v7153 = vunpack.c.l.b16 %v6815
      %v7154 = vunpack.c.l.b16 %v6816
      %v7155 = vunpack.c.l.b16 %v6817
      %v7156 = vunpack.c.l.b16 %v6818
      %v7157 = vunpack.c.l.b16 %v6819
      %v7158 = vunpack.c.l.b16 %v6820
      %v7159 = vunpack.c.l.b16 %v6821
      %v7160 = vunpack.c.l.b16 %v6822
      %v7161 = vunpack.c.l.b16 %v6823
      %v7162 = vunpack.c.l.b16 %v6824
      %v7163 = vunpack.c.l.b16 %v6825
      %v7164 = vunpack.c.l.b16 %v6826
      %v7165 = vunpack.c.l.b16 %v6827
      %v7166 = vunpack.c.l.b16 %v6828
      %v7167 = vunpack.c.l.b16 %v6829
      %v7168 = vunpack.c.l.b16 %v6830
      %v7169 = vunpack.c.l.b16 %v6831
      %v7170 = vunpack.c.l.b16 %v6832
      %v7171 = vunpack.c.l.b16 %v6833
      %v7172 = vunpack.c.l.b16 %v6834
      %v7173 = vunpack.c.l.b16 %v6835
      %v7174 = vunpack.c.l.b16 %v6836
      %v7175 = vunpack.c.l.b16 %v6837
      %v7176 = vunpack.c.l.b16 %v6838
      %v7177 = vunpack.c.l.b16 %v6839
      %v7178 = vunpack.c.l.b16 %v6840
      %v7179 = vunpack.c.l.b16 %v6841
      %v7180 = vunpack.c.l.b16 %v6842
      %v7181 = vunpack.c.l.b16 %v6843
      %v7182 = vunpack.c.l.b16 %v6844
      %v7183 = vunpack.c.l.b16 %v6845
      %v7184 = vunpack.c.l.b16 %v6846
      %v7185 = vunpack.c.l.b16 %v6847
      %v7186 = vunpack.c.l.b16 %v6848
      %v7187 = vunpack.c.l.b16 %v6849
      %v7188 = vunpack.c.l.b16 %v6850
      %v7189 = vunpack.c.l.b16 %v6851
      %v7190 = vunpack.c.l.b16 %v6852
      %v7191 = vunpack.c.l.b16 %v6853
      %v7192 = vunpack.c.l.b16 %v6854
      %v7193 = vunpack.c.l.b16 %v6855
      %v7194 = vunpack.c.l.b16 %v6856
      %v7195 = vunpack.c.l.b16 %v6857
      %v7196 = vunpack.c.l.b16 %v6858
      %v7197 = vunpack.c.l.b16 %v6859
      %v7198 = vunpack.c.l.b16 %v6860
      %v7199 = vunpack.c.l.b16 %v6861
      %v7200 = vunpack.c.l.b16 %v6862
      %v7201 = vunpack.c.l.b16 %v6863
      %v7202 = vunpack.c.l.b16 %v6864
      %v7203 = vunpack.c.l.b16 %v6865
      %v7204 = vunpack.c.l.b16 %v6866
      %v7205 = vunpack.c.l.b16 %v6867
      %v7206 = vunpack.c.l.b16 %v6868
      %v7207 = vunpack.c.l.b16 %v6869
      %v7208 = vunpack.c.l.b16 %v6870
      %v7209 = vunpack.c.l.b16 %v6871
      %v7210 = vunpack.c.l.b16 %v6872
      %v7211 = vunpack.c.l.b16 %v6873
      %v7212 = vunpack.c.l.b16 %v6874
      %v7213 = vunpack.c.l.b16 %v6875
      %v7214 = vunpack.c.l.b16 %v6876
      %v7215 = vunpack.c.l.b16 %v6877
      %v7216 = vunpack.c.l.b16 %v6878
      %v7217 = vunpack.c.l.b16 %v6879
      %v7218 = vunpack.c.l.b16 %v6880
      %v7219 = vunpack.c.l.b16 %v6881
      %v7220 = vunpack.c.l.b16 %v6882
      %v7221 = vunpack.c.l.b16 %v6883
      %v7222 = vunpack.c.l.b16 %v6884
      %v7223 = vunpack.c.l.b16 %v6885
      %v7224 = vunpack.c.l.b16 %v6886
      %v7225 = vunpack.c.l.b16 %v6887
      %v7226 = vunpack.c.l.b16 %v6888
      %v7227 = vunpack.c.l.b16 %v6889
      %v7228 = vunpack.c.l.b16 %v6890
      %v7229 = vunpack.c.l.b16 %v6891
      %v7230 = vunpack.c.l.b16 %v6892
      %v7231 = vunpack.c.l.b16 %v6893
      %v7232 = vunpack.c.l.b16 %v6894
      %v7233 = vunpack.c.l.b16 %v6895
      %v7234 = vunpack.c.l.b16 %v6896
      %v7235 = vunpack.c.l.b16 %v6897
      %v7236 = vunpack.c.l.b16 %v6898
      %v7237 = vunpack.c.l.b16 %v6899
      %v7238 = vunpack.c.l.b16 %v6900
      %v7239 = vunpack.c.l.b16 %v6901
      %v7240 = vunpack.c.l.b16 %v6902
      %v7241 = vunpack.c.l.b16 %v6903
      %v7242 = vpack.c.b16 %v7073, %v7073
      %v7243 = vpack.c.b16 %v7074, %v7074
      %v7244 = vpack.c.b16 %v7075, %v7075
      %v7245 = vpack.c.b16 %v7076, %v7076
      %v7246 = vpack.c.b16 %v7077, %v7077
      %v7247 = vpack.c.b16 %v7078, %v7078
      %v7248 = vpack.c.b16 %v7079, %v7079
      %v7249 = vpack.c.b16 %v7080, %v7080
      %v7250 = vpack.c.b16 %v7081, %v7081
      %v7251 = vpack.c.b16 %v7082, %v7082
      %v7252 = vpack.c.b16 %v7083, %v7083
      %v7253 = vpack.c.b16 %v7084, %v7084
      %v7254 = vpack.c.b16 %v7085, %v7085
      %v7255 = vpack.c.b16 %v7086, %v7086
      %v7256 = vpack.c.b16 %v7087, %v7087
      %v7257 = vpack.c.b16 %v7088, %v7088
      %v7258 = vpack.c.b16 %v7089, %v7089
      %v7259 = vpack.c.b16 %v7090, %v7090
      %v7260 = vpack.c.b16 %v7091, %v7091
      %v7261 = vpack.c.b16 %v7092, %v7092
      %v7262 = vpack.c.b16 %v7093, %v7093
      %v7263 = vpack.c.b16 %v7094, %v7094
      %v7264 = vpack.c.b16 %v7095, %v7095
      %v7265 = vpack.c.b16 %v7096, %v7096
      %v7266 = vpack.c.b16 %v7097, %v7097
      %v7267 = vpack.c.b16 %v7098, %v7098
      %v7268 = vpack.c.b16 %v7099, %v7099
      %v7269 = vpack.c.b16 %v7100, %v7100
      %v7270 = vpack.c.b16 %v7101, %v7101
      %v7271 = vpack.c.b16 %v7102, %v7102
      %v7272 = vpack.c.b16 %v7103, %v7103
      %v7273 = vpack.c.b16 %v7104, %v7104
      %v7274 = vpack.c.b16 %v7105, %v7105
      %v7275 = vpack.c.b16 %v7106, %v7106
      %v7276 = vpack.c.b16 %v7107, %v7107
      %v7277 = vpack.c.b16 %v7108, %v7108
      %v7278 = vpack.c.b16 %v7109, %v7109
      %v7279 = vpack.c.b16 %v7110, %v7110
      %v7280 = vpack.c.b16 %v7111, %v7111
      %v7281 = vpack.c.b16 %v7112, %v7112
      %v7282 = vpack.c.b16 %v7113, %v7113
      %v7283 = vpack.c.b16 %v7114, %v7114
      %v7284 = vpack.c.b16 %v7115, %v7115
      %v7285 = vpack.c.b16 %v7116, %v7116
      %v7286 = vpack.c.b16 %v7117, %v7117
      %v7287 = vpack.c.b16 %v7118, %v7118
      %v7288 = vpack.c.b16 %v7119, %v7119
      %v7289 = vpack.c.b16 %v7120, %v7120
      %v7290 = vpack.c.b16 %v7121, %v7121
      %v7291 = vpack.c.b16 %v7122, %v7122
      %v7292 = vpack.c.b16 %v7123, %v7123
      %v7293 = vpack.c.b16 %v7124, %v7124
      %v7294 = vpack.c.b16 %v7125, %v7125
      %v7295 = vpack.c.b16 %v7126, %v7126
      %v7296 = vpack.c.b16 %v7127, %v7127
      %v7297 = vpack.c.b16 %v7128, %v7128
      %v7298 = vpack.c.b16 %v7129, %v7129
      %v7299 = vpack.c.b16 %v7130, %v7130
      %v7300 = vpack.c.b16 %v7131, %v7131
      %v7301 = vpack.c.b16 %v7132, %v7132
      %v7302 = vpack.c.b16 %v7133, %v7133
      %v7303 = vpack.c.b16 %v7134, %v7134
      %v7304 = vpack.c.b16 %v7135, %v7135
      %v7305 = vpack.c.b16 %v7136, %v7136
      %v7306 = vpack.c.b16 %v7137, %v7137
      %v7307 = vpack.c.b16 %v7138, %v7138
      %v7308 = vpack.c.b16 %v7139, %v7139
      %v7309 = vpack.c.b16 %v7140, %v7140
      %v7310 = vpack.c.b16 %v7141, %v7141
      %v7311 = vpack.c.b16 %v7142, %v7142
      %v7312 = vpack.c.b16 %v7143, %v7143
      %v7313 = vpack.c.b16 %v7144, %v7144
      %v7314 = vpack.c.b16 %v7145, %v7145
      %v7315 = vpack.c.b16 %v7146, %v7146
      %v7316 = vpack.c.b16 %v7147, %v7147
      %v7317 = vpack.c.b16 %v7148, %v7148
      %v7318 = vpack.c.b16 %v7149, %v7149
      %v7319 = vpack.c.b16 %v7150, %v7150
      %v7320 = vpack.c.b16 %v7151, %v7151
      %v7321 = vpack.c.b16 %v7152, %v7152
      %v7322 = vpack.c.b16 %v7153, %v7153
      %v7323 = vpack.c.b16 %v7154, %v7154
      %v7324 = vpack.c.b16 %v7155, %v7155
      %v7325 = vpack.c.b16 %v7156, %v7156
      %v7326 = vpack.c.b16 %v7157, %v7157
      %v7327 = vpack.c.b16 %v7158, %v7158
      %v7328 = vpack.c.b16 %v7159, %v7159
      %v7329 = vpack.c.b16 %v7160, %v7160
      %v7330 = vpack.c.b16 %v7161, %v7161
      %v7331 = vpack.c.b16 %v7162, %v7162
      %v7332 = vpack.c.b16 %v7163, %v7163
      %v7333 = vpack.c.b16 %v7164, %v7164
      %v7334 = vpack.c.b16 %v7165, %v7165
      %v7335 = vpack.c.b16 %v7166, %v7166
      %v7336 = vpack.c.b16 %v7167, %v7167
      %v7337 = vpack.c.b16 %v7168, %v7168
      %v7338 = vpack.c.b16 %v7169, %v7169
      %v7339 = vpack.c.b16 %v7170, %v7170
      %v7340 = vpack.c.b16 %v7171, %v7171
      %v7341 = vpack.c.b16 %v7172, %v7172
      %v7342 = vpack.c.b16 %v7173, %v7173
      %v7343 = vpack.c.b16 %v7174, %v7174
      %v7344 = vpack.c.b16 %v7175, %v7175
      %v7345 = vpack.c.b16 %v7176, %v7176
      %v7346 = vpack.c.b16 %v7177, %v7177
      %v7347 = vpack.c.b16 %v7178, %v7178
      %v7348 = vpack.c.b16 %v7179, %v7179
      %v7349 = vpack.c.b16 %v7180, %v7180
      %v7350 = vpack.c.b16 %v7181, %v7181
      %v7351 = vpack.c.b16 %v7182, %v7182
      %v7352 = vpack.c.b16 %v7183, %v7183
      %v7353 = vpack.c.b16 %v7184, %v7184
      %v7354 = vpack.c.b16 %v7185, %v7185
      %v7355 = vpack.c.b16 %v7186, %v7186
      %v7356 = vpack.c.b16 %v7187, %v7187
      %v7357 = vpack.c.b16 %v7188, %v7188
      %v7358 = vpack.c.b16 %v7189, %v7189
      %v7359 = vpack.c.b16 %v7190, %v7190
      %v7360 = vpack.c.b16 %v7191, %v7191
      %v7361 = vpack.c.b16 %v7192, %v7192
      %v7362 = vpack.c.b16 %v7193, %v7193
      %v7363 = vpack.c.b16 %v7194, %v7194
      %v7364 = vpack.c.b16 %v7195, %v7195
      %v7365 = vpack.c.b16 %v7196, %v7196
      %v7366 = vpack.c.b16 %v7197, %v7197
      %v7367 = vpack.c.b16 %v7198, %v7198
      %v7368 = vpack.c.b16 %v7199, %v7199
      %v7369 = vpack.c.b16 %v7200, %v7200
      %v7370 = vpack.c.b16 %v7201, %v7201
      %v7371 = vpack.c.b16 %v7202, %v7202
      %v7372 = vpack.c.b16 %v7203, %v7203
      %v7373 = vpack.c.b16 %v7204, %v7204
      %v7374 = vpack.c.b16 %v7205, %v7205
      %v7375 = vpack.c.b16 %v7206, %v7206
      %v7376 = vpack.c.b16 %v7207, %v7207
      %v7377 = vpack.c.b16 %v7208, %v7208
      %v7378 = vpack.c.b16 %v7209, %v7209
      %v7379 = vpack.c.b16 %v7210, %v7210
      %v7380 = vpack.c.b16 %v7211, %v7211
      %v7381 = vpack.c.b16 %v7212, %v7212
      %v7382 = vpack.c.b16 %v7213, %v7213
      %v7383 = vpack.c.b16 %v7214, %v7214
      %v7384 = vpack.c.b16 %v7215, %v7215
      %v7385 = vpack.c.b16 %v7216, %v7216
      %v7386 = vpack.c.b16 %v7217, %v7217
      %v7387 = vpack.c.b16 %v7218, %v7218
      %v7388 = vpack.c.b16 %v7219, %v7219
      %v7389 = vpack.c.b16 %v7220, %v7220
      %v7390 = vpack.c.b16 %v7221, %v7221
      %v7391 = vpack.c.b16 %v7222, %v7222
      %v7392 = vpack.c.b16 %v7223, %v7223
      %v7393 = vpack.c.b16 %v7224, %v7224
      %v7394 = vpack.c.b16 %v7225, %v7225
      %v7395 = vpack.c.b16 %v7226, %v7226
      %v7396 = vpack.c.b16 %v7227, %v7227
      %v7397 = vpack.c.b16 %v7228, %v7228
      %v7398 = vpack.c.b16 %v7229, %v7229
      %v7399 = vpack.c.b16 %v7230, %v7230
      %v7400 = vpack.c.b16 %v7231, %v7231
      %v7401 = vpack.c.b16 %v7232, %v7232
      %v7402 = vpack.c.b16 %v7233, %v7233
      %v7403 = vpack.c.b16 %v7234, %v7234
      %v7404 = vpack.c.b16 %v7235, %v7235
      %v7405 = vpack.c.b16 %v7236, %v7236
      %v7406 = vpack.c.b16 %v7237, %v7237
      %v7407 = vpack.c.b16 %v7238, %v7238
      %v7408 = vpack.c.b16 %v7239, %v7239
      %v7409 = vpack.c.b16 %v7240, %v7240
      %v7410 = vpack.c.b16 %v7241, %v7241
      %v7411 = vunpack.c.l.b16 %v7242
      %v7412 = vunpack.c.l.b16 %v7243
      %v7413 = vunpack.c.l.b16 %v7244
      %v7414 = vunpack.c.l.b16 %v7245
      %v7415 = vunpack.c.l.b16 %v7246
      %v7416 = vunpack.c.l.b16 %v7247
      %v7417 = vunpack.c.l.b16 %v7248
      %v7418 = vunpack.c.l.b16 %v7249
      %v7419 = vunpack.c.l.b16 %v7250
      %v7420 = vunpack.c.l.b16 %v7251
      %v7421 = vunpack.c.l.b16 %v7252
      %v7422 = vunpack.c.l.b16 %v7253
      %v7423 = vunpack.c.l.b16 %v7254
      %v7424 = vunpack.c.l.b16 %v7255
      %v7425 = vunpack.c.l.b16 %v7256
      %v7426 = vunpack.c.l.b16 %v7257
      %v7427 = vunpack.c.l.b16 %v7258
      %v7428 = vunpack.c.l.b16 %v7259
      %v7429 = vunpack.c.l.b16 %v7260
      %v7430 = vunpack.c.l.b16 %v7261
      %v7431 = vunpack.c.l.b16 %v7262
      %v7432 = vunpack.c.l.b16 %v7263
      %v7433 = vunpack.c.l.b16 %v7264
      %v7434 = vunpack.c.l.b16 %v7265
      %v7435 = vunpack.c.l.b16 %v7266
      %v7436 = vunpack.c.l.b16 %v7267
      %v7437 = vunpack.c.l.b16 %v7268
      %v7438 = vunpack.c.l.b16 %v7269
      %v7439 = vunpack.c.l.b16 %v7270
      %v7440 = vunpack.c.l.b16 %v7271
      %v7441 = vunpack.c.l.b16 %v7272
      %v7442 = vunpack.c.l.b16 %v7273
      %v7443 = vunpack.c.l.b16 %v7274
      %v7444 = vunpack.c.l.b16 %v7275
      %v7445 = vunpack.c.l.b16 %v7276
      %v7446 = vunpack.c.l.b16 %v7277
      %v7447 = vunpack.c.l.b16 %v7278
      %v7448 = vunpack.c.l.b16 %v7279
      %v7449 = vunpack.c.l.b16 %v7280
      %v7450 = vunpack.c.l.b16 %v7281
      %v7451 = vunpack.c.l.b16 %v7282
      %v7452 = vunpack.c.l.b16 %v7283
      %v7453 = vunpack.c.l.b16 %v7284
      %v7454 = vunpack.c.l.b16 %v7285
      %v7455 = vunpack.c.l.b16 %v7286
      %v7456 = vunpack.c.l.b16 %v7287
      %v7457 = vunpack.c.l.b16 %v7288
      %v7458 = vunpack.c.l.b16 %v7289
      %v7459 = vunpack.c.l.b16 %v7290
      %v7460 = vunpack.c.l.b16 %v7291
      %v7461 = vunpack.c.l.b16 %v7292
      %v7462 = vunpack.c.l.b16 %v7293
      %v7463 = vunpack.c.l.b16 %v7294
      %v7464 = vunpack.c.l.b16 %v7295
      %v7465 = vunpack.c.l.b16 %v7296
      %v7466 = vunpack.c.l.b16 %v7297
      %v7467 = vunpack.c.l.b16 %v7298
      %v7468 = vunpack.c.l.b16 %v7299
      %v7469 = vunpack.c.l.b16 %v7300
      %v7470 = vunpack.c.l.b16 %v7301
      %v7471 = vunpack.c.l.b16 %v7302
      %v7472 = vunpack.c.l.b16 %v7303
      %v7473 = vunpack.c.l.b16 %v7304
      %v7474 = vunpack.c.l.b16 %v7305
      %v7475 = vunpack.c.l.b16 %v7306
      %v7476 = vunpack.c.l.b16 %v7307
      %v7477 = vunpack.c.l.b16 %v7308
      %v7478 = vunpack.c.l.b16 %v7309
      %v7479 = vunpack.c.l.b16 %v7310
      %v7480 = vunpack.c.l.b16 %v7311
      %v7481 = vunpack.c.l.b16 %v7312
      %v7482 = vunpack.c.l.b16 %v7313
      %v7483 = vunpack.c.l.b16 %v7314
      %v7484 = vunpack.c.l.b16 %v7315
      %v7485 = vunpack.c.l.b16 %v7316
      %v7486 = vunpack.c.l.b16 %v7317
      %v7487 = vunpack.c.l.b16 %v7318
      %v7488 = vunpack.c.l.b16 %v7319
      %v7489 = vunpack.c.l.b16 %v7320
      %v7490 = vunpack.c.l.b16 %v7321
      %v7491 = vunpack.c.l.b16 %v7322
      %v7492 = vunpack.c.l.b16 %v7323
      %v7493 = vunpack.c.l.b16 %v7324
      %v7494 = vunpack.c.l.b16 %v7325
      %v7495 = vunpack.c.l.b16 %v7326
      %v7496 = vunpack.c.l.b16 %v7327
      %v7497 = vunpack.c.l.b16 %v7328
      %v7498 = vunpack.c.l.b16 %v7329
      %v7499 = vunpack.c.l.b16 %v7330
      %v7500 = vunpack.c.l.b16 %v7331
      %v7501 = vunpack.c.l.b16 %v7332
      %v7502 = vunpack.c.l.b16 %v7333
      %v7503 = vunpack.c.l.b16 %v7334
      %v7504 = vunpack.c.l.b16 %v7335
      %v7505 = vunpack.c.l.b16 %v7336
      %v7506 = vunpack.c.l.b16 %v7337
      %v7507 = vunpack.c.l.b16 %v7338
      %v7508 = vunpack.c.l.b16 %v7339
      %v7509 = vunpack.c.l.b16 %v7340
      %v7510 = vunpack.c.l.b16 %v7341
      %v7511 = vunpack.c.l.b16 %v7342
      %v7512 = vunpack.c.l.b16 %v7343
      %v7513 = vunpack.c.l.b16 %v7344
      %v7514 = vunpack.c.l.b16 %v7345
      %v7515 = vunpack.c.l.b16 %v7346
      %v7516 = vunpack.c.l.b16 %v7347
      %v7517 = vunpack.c.l.b16 %v7348
      %v7518 = vunpack.c.l.b16 %v7349
      %v7519 = vunpack.c.l.b16 %v7350
      %v7520 = vunpack.c.l.b16 %v7351
      %v7521 = vunpack.c.l.b16 %v7352
      %v7522 = vunpack.c.l.b16 %v7353
      %v7523 = vunpack.c.l.b16 %v7354
      %v7524 = vunpack.c.l.b16 %v7355
      %v7525 = vunpack.c.l.b16 %v7356
      %v7526 = vunpack.c.l.b16 %v7357
      %v7527 = vunpack.c.l.b16 %v7358
      %v7528 = vunpack.c.l.b16 %v7359
      %v7529 = vunpack.c.l.b16 %v7360
      %v7530 = vunpack.c.l.b16 %v7361
      %v7531 = vunpack.c.l.b16 %v7362
      %v7532 = vunpack.c.l.b16 %v7363
      %v7533 = vunpack.c.l.b16 %v7364
      %v7534 = vunpack.c.l.b16 %v7365
      %v7535 = vunpack.c.l.b16 %v7366
      %v7536 = vunpack.c.l.b16 %v7367
      %v7537 = vunpack.c.l.b16 %v7368
      %v7538 = vunpack.c.l.b16 %v7369
      %v7539 = vunpack.c.l.b16 %v7370
      %v7540 = vunpack.c.l.b16 %v7371
      %v7541 = vunpack.c.l.b16 %v7372
      %v7542 = vunpack.c.l.b16 %v7373
      %v7543 = vunpack.c.l.b16 %v7374
      %v7544 = vunpack.c.l.b16 %v7375
      %v7545 = vunpack.c.l.b16 %v7376
      %v7546 = vunpack.c.l.b16 %v7377
      %v7547 = vunpack.c.l.b16 %v7378
      %v7548 = vunpack.c.l.b16 %v7379
      %v7549 = vunpack.c.l.b16 %v7380
      %v7550 = vunpack.c.l.b16 %v7381
      %v7551 = vunpack.c.l.b16 %v7382
      %v7552 = vunpack.c.l.b16 %v7383
      %v7553 = vunpack.c.l.b16 %v7384
      %v7554 = vunpack.c.l.b16 %v7385
      %v7555 = vunpack.c.l.b16 %v7386
      %v7556 = vunpack.c.l.b16 %v7387
      %v7557 = vunpack.c.l.b16 %v7388
      %v7558 = vunpack.c.l.b16 %v7389
      %v7559 = vunpack.c.l.b16 %v7390
      %v7560 = vunpack.c.l.b16 %v7391
      %v7561 = vunpack.c.l.b16 %v7392
      %v7562 = vunpack.c.l.b16 %v7393
      %v7563 = vunpack.c.l.b16 %v7394
      %v7564 = vunpack.c.l.b16 %v7395
      %v7565 = vunpack.c.l.b16 %v7396
      %v7566 = vunpack.c.l.b16 %v7397
      %v7567 = vunpack.c.l.b16 %v7398
      %v7568 = vunpack.c.l.b16 %v7399
      %v7569 = vunpack.c.l.b16 %v7400
      %v7570 = vunpack.c.l.b16 %v7401
      %v7571 = vunpack.c.l.b16 %v7402
      %v7572 = vunpack.c.l.b16 %v7403
      %v7573 = vunpack.c.l.b16 %v7404
      %v7574 = vunpack.c.l.b16 %v7405
      %v7575 = vunpack.c.l.b16 %v7406
      %v7576 = vunpack.c.l.b16 %v7407
      %v7577 = vunpack.c.l.b16 %v7408
      %v7578 = vunpack.c.l.b16 %v7409
      %v7579 = vunpack.c.l.b16 %v7410
      %v7580 = vrot.slane %v7412, 7
      %vm7581 = vcmask 1041409
      %v7582 = vsel %vm7581, %v7580, %v7411
      %v7583 = vrot.slane %v7413, 6
      %v7584 = vsel %vm3205, %v7583, %v7582
      %v7585 = vrot.slane %v7414, 5
      %vm7586 = vcmask 1043459
      %v7587 = vsel %vm7586, %v7585, %v7584
      %v7588 = vrot.slane %v7415, 4
      %v7589 = vsel %vm3207, %v7588, %v7587
      %v7590 = vrot.slane %v7416, 3
      %vm7591 = vcmask 1045509
      %v7592 = vsel %vm7591, %v7590, %v7589
      %v7593 = vrot.slane %v7417, 2
      %v7594 = vsel %vm3209, %v7593, %v7592
      %v7595 = vrot.slane %v7418, 1
      %vm7596 = vcmask 1047559
      %v7597 = vsel %vm7596, %v7595, %v7594
      %v7598 = vrot.slane %v7420, 7
      %v7599 = vsel %vm7581, %v7598, %v7419
      %v7600 = vrot.slane %v7421, 6
      %v7601 = vsel %vm3205, %v7600, %v7599
      %v7602 = vrot.slane %v7422, 5
      %v7603 = vsel %vm7586, %v7602, %v7601
      %v7604 = vrot.slane %v7423, 4
      %v7605 = vsel %vm3207, %v7604, %v7603
      %v7606 = vrot.slane %v7425, 7
      %v7607 = vsel %vm7581, %v7606, %v7424
      %v7608 = vrot.slane %v7426, 6
      %v7609 = vsel %vm3205, %v7608, %v7607
      %v7610 = vrot.slane %v7427, 5
      %v7611 = vsel %vm7586, %v7610, %v7609
      %v7612 = vrot.slane %v7428, 4
      %v7613 = vsel %vm3207, %v7612, %v7611
      %v7614 = vrot.slane %v7429, 3
      %v7615 = vsel %vm7591, %v7614, %v7613
      %v7616 = vrot.slane %v7430, 2
      %v7617 = vsel %vm3209, %v7616, %v7615
      %v7618 = vrot.slane %v7431, 1
      %v7619 = vsel %vm7596, %v7618, %v7617
      %v7620 = vrot.slane %v7433, 7
      %v7621 = vsel %vm7581, %v7620, %v7432
      %v7622 = vrot.slane %v7434, 6
      %v7623 = vsel %vm3205, %v7622, %v7621
      %v7624 = vrot.slane %v7435, 5
      %v7625 = vsel %vm7586, %v7624, %v7623
      %v7626 = vrot.slane %v7436, 4
      %v7627 = vsel %vm3207, %v7626, %v7625
      %v7628 = vrot.slane %v7438, 7
      %v7629 = vsel %vm7581, %v7628, %v7437
      %v7630 = vrot.slane %v7439, 6
      %v7631 = vsel %vm3205, %v7630, %v7629
      %v7632 = vrot.slane %v7440, 5
      %v7633 = vsel %vm7586, %v7632, %v7631
      %v7634 = vrot.slane %v7441, 4
      %v7635 = vsel %vm3207, %v7634, %v7633
      %v7636 = vrot.slane %v7442, 3
      %v7637 = vsel %vm7591, %v7636, %v7635
      %v7638 = vrot.slane %v7443, 2
      %v7639 = vsel %vm3209, %v7638, %v7637
      %v7640 = vrot.slane %v7444, 1
      %v7641 = vsel %vm7596, %v7640, %v7639
      %v7642 = vrot.slane %v7446, 7
      %v7643 = vsel %vm7581, %v7642, %v7445
      %v7644 = vrot.slane %v7447, 6
      %v7645 = vsel %vm3205, %v7644, %v7643
      %v7646 = vrot.slane %v7448, 5
      %v7647 = vsel %vm7586, %v7646, %v7645
      %v7648 = vrot.slane %v7449, 4
      %v7649 = vsel %vm3207, %v7648, %v7647
      %v7650 = vrot.slane %v7451, 7
      %v7651 = vsel %vm7581, %v7650, %v7450
      %v7652 = vrot.slane %v7452, 6
      %v7653 = vsel %vm3205, %v7652, %v7651
      %v7654 = vrot.slane %v7453, 5
      %v7655 = vsel %vm7586, %v7654, %v7653
      %v7656 = vrot.slane %v7454, 4
      %v7657 = vsel %vm3207, %v7656, %v7655
      %v7658 = vrot.slane %v7455, 3
      %v7659 = vsel %vm7591, %v7658, %v7657
      %v7660 = vrot.slane %v7456, 2
      %v7661 = vsel %vm3209, %v7660, %v7659
      %v7662 = vrot.slane %v7457, 1
      %v7663 = vsel %vm7596, %v7662, %v7661
      %v7664 = vrot.slane %v7459, 7
      %v7665 = vsel %vm7581, %v7664, %v7458
      %v7666 = vrot.slane %v7460, 6
      %v7667 = vsel %vm3205, %v7666, %v7665
      %v7668 = vrot.slane %v7461, 5
      %v7669 = vsel %vm7586, %v7668, %v7667
      %v7670 = vrot.slane %v7462, 4
      %v7671 = vsel %vm3207, %v7670, %v7669
      %v7672 = vrot.slane %v7464, 7
      %v7673 = vsel %vm7581, %v7672, %v7463
      %v7674 = vrot.slane %v7465, 6
      %v7675 = vsel %vm3205, %v7674, %v7673
      %v7676 = vrot.slane %v7466, 5
      %v7677 = vsel %vm7586, %v7676, %v7675
      %v7678 = vrot.slane %v7467, 4
      %v7679 = vsel %vm3207, %v7678, %v7677
      %v7680 = vrot.slane %v7468, 3
      %v7681 = vsel %vm7591, %v7680, %v7679
      %v7682 = vrot.slane %v7469, 2
      %v7683 = vsel %vm3209, %v7682, %v7681
      %v7684 = vrot.slane %v7470, 1
      %v7685 = vsel %vm7596, %v7684, %v7683
      %v7686 = vrot.slane %v7472, 7
      %v7687 = vsel %vm7581, %v7686, %v7471
      %v7688 = vrot.slane %v7473, 6
      %v7689 = vsel %vm3205, %v7688, %v7687
      %v7690 = vrot.slane %v7474, 5
      %v7691 = vsel %vm7586, %v7690, %v7689
      %v7692 = vrot.slane %v7475, 4
      %v7693 = vsel %vm3207, %v7692, %v7691
      %v7694 = vrot.slane %v7477, 7
      %v7695 = vsel %vm7581, %v7694, %v7476
      %v7696 = vrot.slane %v7478, 6
      %v7697 = vsel %vm3205, %v7696, %v7695
      %v7698 = vrot.slane %v7479, 5
      %v7699 = vsel %vm7586, %v7698, %v7697
      %v7700 = vrot.slane %v7480, 4
      %v7701 = vsel %vm3207, %v7700, %v7699
      %v7702 = vrot.slane %v7481, 3
      %v7703 = vsel %vm7591, %v7702, %v7701
      %v7704 = vrot.slane %v7482, 2
      %v7705 = vsel %vm3209, %v7704, %v7703
      %v7706 = vrot.slane %v7483, 1
      %v7707 = vsel %vm7596, %v7706, %v7705
      %v7708 = vrot.slane %v7485, 7
      %v7709 = vsel %vm7581, %v7708, %v7484
      %v7710 = vrot.slane %v7486, 6
      %v7711 = vsel %vm3205, %v7710, %v7709
      %v7712 = vrot.slane %v7487, 5
      %v7713 = vsel %vm7586, %v7712, %v7711
      %v7714 = vrot.slane %v7488, 4
      %v7715 = vsel %vm3207, %v7714, %v7713
      %v7716 = vrot.slane %v7490, 7
      %v7717 = vsel %vm7581, %v7716, %v7489
      %v7718 = vrot.slane %v7491, 6
      %v7719 = vsel %vm3205, %v7718, %v7717
      %v7720 = vrot.slane %v7492, 5
      %v7721 = vsel %vm7586, %v7720, %v7719
      %v7722 = vrot.slane %v7493, 4
      %v7723 = vsel %vm3207, %v7722, %v7721
      %v7724 = vrot.slane %v7494, 3
      %v7725 = vsel %vm7591, %v7724, %v7723
      %v7726 = vrot.slane %v7495, 2
      %v7727 = vsel %vm3209, %v7726, %v7725
      %v7728 = vrot.slane %v7496, 1
      %v7729 = vsel %vm7596, %v7728, %v7727
      %v7730 = vrot.slane %v7498, 7
      %v7731 = vsel %vm7581, %v7730, %v7497
      %v7732 = vrot.slane %v7499, 6
      %v7733 = vsel %vm3205, %v7732, %v7731
      %v7734 = vrot.slane %v7500, 5
      %v7735 = vsel %vm7586, %v7734, %v7733
      %v7736 = vrot.slane %v7501, 4
      %v7737 = vsel %vm3207, %v7736, %v7735
      %v7738 = vrot.slane %v7503, 7
      %v7739 = vsel %vm7581, %v7738, %v7502
      %v7740 = vrot.slane %v7504, 6
      %v7741 = vsel %vm3205, %v7740, %v7739
      %v7742 = vrot.slane %v7505, 5
      %v7743 = vsel %vm7586, %v7742, %v7741
      %v7744 = vrot.slane %v7506, 4
      %v7745 = vsel %vm3207, %v7744, %v7743
      %v7746 = vrot.slane %v7507, 3
      %v7747 = vsel %vm7591, %v7746, %v7745
      %v7748 = vrot.slane %v7508, 2
      %v7749 = vsel %vm3209, %v7748, %v7747
      %v7750 = vrot.slane %v7509, 1
      %v7751 = vsel %vm7596, %v7750, %v7749
      %v7752 = vrot.slane %v7511, 7
      %v7753 = vsel %vm7581, %v7752, %v7510
      %v7754 = vrot.slane %v7512, 6
      %v7755 = vsel %vm3205, %v7754, %v7753
      %v7756 = vrot.slane %v7513, 5
      %v7757 = vsel %vm7586, %v7756, %v7755
      %v7758 = vrot.slane %v7514, 4
      %v7759 = vsel %vm3207, %v7758, %v7757
      %v7760 = vrot.slane %v7516, 7
      %v7761 = vsel %vm7581, %v7760, %v7515
      %v7762 = vrot.slane %v7517, 6
      %v7763 = vsel %vm3205, %v7762, %v7761
      %v7764 = vrot.slane %v7518, 5
      %v7765 = vsel %vm7586, %v7764, %v7763
      %v7766 = vrot.slane %v7519, 4
      %v7767 = vsel %vm3207, %v7766, %v7765
      %v7768 = vrot.slane %v7520, 3
      %v7769 = vsel %vm7591, %v7768, %v7767
      %v7770 = vrot.slane %v7521, 2
      %v7771 = vsel %vm3209, %v7770, %v7769
      %v7772 = vrot.slane %v7522, 1
      %v7773 = vsel %vm7596, %v7772, %v7771
      %v7774 = vrot.slane %v7524, 7
      %v7775 = vsel %vm7581, %v7774, %v7523
      %v7776 = vrot.slane %v7525, 6
      %v7777 = vsel %vm3205, %v7776, %v7775
      %v7778 = vrot.slane %v7526, 5
      %v7779 = vsel %vm7586, %v7778, %v7777
      %v7780 = vrot.slane %v7527, 4
      %v7781 = vsel %vm3207, %v7780, %v7779
      %v7782 = vrot.slane %v7529, 7
      %v7783 = vsel %vm7581, %v7782, %v7528
      %v7784 = vrot.slane %v7530, 6
      %v7785 = vsel %vm3205, %v7784, %v7783
      %v7786 = vrot.slane %v7531, 5
      %v7787 = vsel %vm7586, %v7786, %v7785
      %v7788 = vrot.slane %v7532, 4
      %v7789 = vsel %vm3207, %v7788, %v7787
      %v7790 = vrot.slane %v7533, 3
      %v7791 = vsel %vm7591, %v7790, %v7789
      %v7792 = vrot.slane %v7534, 2
      %v7793 = vsel %vm3209, %v7792, %v7791
      %v7794 = vrot.slane %v7535, 1
      %v7795 = vsel %vm7596, %v7794, %v7793
      %v7796 = vrot.slane %v7537, 7
      %v7797 = vsel %vm7581, %v7796, %v7536
      %v7798 = vrot.slane %v7538, 6
      %v7799 = vsel %vm3205, %v7798, %v7797
      %v7800 = vrot.slane %v7539, 5
      %v7801 = vsel %vm7586, %v7800, %v7799
      %v7802 = vrot.slane %v7540, 4
      %v7803 = vsel %vm3207, %v7802, %v7801
      %v7804 = vrot.slane %v7542, 7
      %v7805 = vsel %vm7581, %v7804, %v7541
      %v7806 = vrot.slane %v7543, 6
      %v7807 = vsel %vm3205, %v7806, %v7805
      %v7808 = vrot.slane %v7544, 5
      %v7809 = vsel %vm7586, %v7808, %v7807
      %v7810 = vrot.slane %v7545, 4
      %v7811 = vsel %vm3207, %v7810, %v7809
      %v7812 = vrot.slane %v7546, 3
      %v7813 = vsel %vm7591, %v7812, %v7811
      %v7814 = vrot.slane %v7547, 2
      %v7815 = vsel %vm3209, %v7814, %v7813
      %v7816 = vrot.slane %v7548, 1
      %v7817 = vsel %vm7596, %v7816, %v7815
      %v7818 = vrot.slane %v7550, 7
      %v7819 = vsel %vm7581, %v7818, %v7549
      %v7820 = vrot.slane %v7551, 6
      %v7821 = vsel %vm3205, %v7820, %v7819
      %v7822 = vrot.slane %v7552, 5
      %v7823 = vsel %vm7586, %v7822, %v7821
      %v7824 = vrot.slane %v7553, 4
      %v7825 = vsel %vm3207, %v7824, %v7823
      %v7826 = vrot.slane %v7555, 7
      %v7827 = vsel %vm7581, %v7826, %v7554
      %v7828 = vrot.slane %v7556, 6
      %v7829 = vsel %vm3205, %v7828, %v7827
      %v7830 = vrot.slane %v7557, 5
      %v7831 = vsel %vm7586, %v7830, %v7829
      %v7832 = vrot.slane %v7558, 4
      %v7833 = vsel %vm3207, %v7832, %v7831
      %v7834 = vrot.slane %v7559, 3
      %v7835 = vsel %vm7591, %v7834, %v7833
      %v7836 = vrot.slane %v7560, 2
      %v7837 = vsel %vm3209, %v7836, %v7835
      %v7838 = vrot.slane %v7561, 1
      %v7839 = vsel %vm7596, %v7838, %v7837
      %v7840 = vrot.slane %v7563, 7
      %v7841 = vsel %vm7581, %v7840, %v7562
      %v7842 = vrot.slane %v7564, 6
      %v7843 = vsel %vm3205, %v7842, %v7841
      %v7844 = vrot.slane %v7565, 5
      %v7845 = vsel %vm7586, %v7844, %v7843
      %v7846 = vrot.slane %v7566, 4
      %v7847 = vsel %vm3207, %v7846, %v7845
      %v7848 = vrot.slane %v7568, 7
      %v7849 = vsel %vm7581, %v7848, %v7567
      %v7850 = vrot.slane %v7569, 6
      %v7851 = vsel %vm3205, %v7850, %v7849
      %v7852 = vrot.slane %v7570, 5
      %v7853 = vsel %vm7586, %v7852, %v7851
      %v7854 = vrot.slane %v7571, 4
      %v7855 = vsel %vm3207, %v7854, %v7853
      %v7856 = vrot.slane %v7572, 3
      %v7857 = vsel %vm7591, %v7856, %v7855
      %v7858 = vrot.slane %v7573, 2
      %v7859 = vsel %vm3209, %v7858, %v7857
      %v7860 = vrot.slane %v7574, 1
      %v7861 = vsel %vm7596, %v7860, %v7859
      %v7862 = vrot.slane %v7576, 7
      %v7863 = vsel %vm7581, %v7862, %v7575
      %v7864 = vrot.slane %v7577, 6
      %v7865 = vsel %vm3205, %v7864, %v7863
      %v7866 = vrot.slane %v7578, 5
      %v7867 = vsel %vm7586, %v7866, %v7865
      %v7868 = vrot.slane %v7579, 4
      %v7869 = vsel %vm3207, %v7868, %v7867
      %v7870 = vpack.c.b16 %v7597, %v7597
      %v7871 = vpack.c.b16 %v7605, %v7605
      %v7872 = vpack.c.b16 %v7619, %v7619
      %v7873 = vpack.c.b16 %v7627, %v7627
      %v7874 = vpack.c.b16 %v7641, %v7641
      %v7875 = vpack.c.b16 %v7649, %v7649
      %v7876 = vpack.c.b16 %v7663, %v7663
      %v7877 = vpack.c.b16 %v7671, %v7671
      %v7878 = vpack.c.b16 %v7685, %v7685
      %v7879 = vpack.c.b16 %v7693, %v7693
      %v7880 = vpack.c.b16 %v7707, %v7707
      %v7881 = vpack.c.b16 %v7715, %v7715
      %v7882 = vpack.c.b16 %v7729, %v7729
      %v7883 = vpack.c.b16 %v7737, %v7737
      %v7884 = vpack.c.b16 %v7751, %v7751
      %v7885 = vpack.c.b16 %v7759, %v7759
      %v7886 = vpack.c.b16 %v7773, %v7773
      %v7887 = vpack.c.b16 %v7781, %v7781
      %v7888 = vpack.c.b16 %v7795, %v7795
      %v7889 = vpack.c.b16 %v7803, %v7803
      %v7890 = vpack.c.b16 %v7817, %v7817
      %v7891 = vpack.c.b16 %v7825, %v7825
      %v7892 = vpack.c.b16 %v7839, %v7839
      %v7893 = vpack.c.b16 %v7847, %v7847
      %v7894 = vpack.c.b16 %v7861, %v7861
      %v7895 = vpack.c.b16 %v7869, %v7869
      %vm7922 = vcmask 519168
      %7923 = vst.msk [vmem:[%s170] sm:$0xf] %vm7922, %v7870
      %vm7924 = vcmask 518144
      %vm7925 = vsmask.f32 2304
      %vm7926 = vmand %vm7924, %vm7925
      %v7927 = vld [vmem:[%s170 + $0x4] sm:$0x7]
      %v7928 = vsel %vm7926, %v7871, %v7927
      %7929 = vst [vmem:[%s170 + $0x4] sm:$0x7] %v7928
      %7930 = vst.msk [vmem:[%s170 + $0x8] sm:$0xf] %vm7922, %v7872
      %v7931 = vld [vmem:[%s170 + $0xc] sm:$0x7]
      %v7932 = vsel %vm7926, %v7873, %v7931
      %7933 = vst [vmem:[%s170 + $0xc] sm:$0x7] %v7932
      %7934 = vst.msk [vmem:[%s170 + $0x10] sm:$0xf] %vm7922, %v7874
      %v7935 = vld [vmem:[%s170 + $0x14] sm:$0x7]
      %v7936 = vsel %vm7926, %v7875, %v7935
      %7937 = vst [vmem:[%s170 + $0x14] sm:$0x7] %v7936
      %7938 = vst.msk [vmem:[%s170 + $0x18] sm:$0xf] %vm7922, %v7876
      %v7939 = vld [vmem:[%s170 + $0x1c] sm:$0x7]
      %v7940 = vsel %vm7926, %v7877, %v7939
      %7941 = vst [vmem:[%s170 + $0x1c] sm:$0x7] %v7940
      %7942 = vst.msk [vmem:[%s170 + $0x20] sm:$0xf] %vm7922, %v7878
      %v7943 = vld [vmem:[%s170 + $0x24] sm:$0x7]
      %v7944 = vsel %vm7926, %v7879, %v7943
      %7945 = vst [vmem:[%s170 + $0x24] sm:$0x7] %v7944
      %7946 = vst.msk [vmem:[%s170 + $0x28] sm:$0xf] %vm7922, %v7880
      %v7947 = vld [vmem:[%s170 + $0x2c] sm:$0x7]
      %v7948 = vsel %vm7926, %v7881, %v7947
      %7949 = vst [vmem:[%s170 + $0x2c] sm:$0x7] %v7948
      %7950 = vst.msk [vmem:[%s170 + $0x30] sm:$0xf] %vm7922, %v7882
      %v7951 = vld [vmem:[%s170 + $0x34] sm:$0x7]
      %v7952 = vsel %vm7926, %v7883, %v7951
      %7953 = vst [vmem:[%s170 + $0x34] sm:$0x7] %v7952
      %7954 = vst.msk [vmem:[%s170 + $0x38] sm:$0xf] %vm7922, %v7884
      %v7955 = vld [vmem:[%s170 + $0x3c] sm:$0x7]
      %v7956 = vsel %vm7926, %v7885, %v7955
      %7957 = vst [vmem:[%s170 + $0x3c] sm:$0x7] %v7956
      %7958 = vst.msk [vmem:[%s170 + $0x40] sm:$0xf] %vm7922, %v7886
      %v7959 = vld [vmem:[%s170 + $0x44] sm:$0x7]
      %v7960 = vsel %vm7926, %v7887, %v7959
      %7961 = vst [vmem:[%s170 + $0x44] sm:$0x7] %v7960
      %7962 = vst.msk [vmem:[%s170 + $0x48] sm:$0xf] %vm7922, %v7888
      %v7963 = vld [vmem:[%s170 + $0x4c] sm:$0x7]
      %v7964 = vsel %vm7926, %v7889, %v7963
      %7965 = vst [vmem:[%s170 + $0x4c] sm:$0x7] %v7964
      %7966 = vst.msk [vmem:[%s170 + $0x50] sm:$0xf] %vm7922, %v7890
      %v7967 = vld [vmem:[%s170 + $0x54] sm:$0x7]
      %v7968 = vsel %vm7926, %v7891, %v7967
      %7969 = vst [vmem:[%s170 + $0x54] sm:$0x7] %v7968
      %7970 = vst.msk [vmem:[%s170 + $0x58] sm:$0xf] %vm7922, %v7892
      %v7971 = vld [vmem:[%s170 + $0x5c] sm:$0x7]
      %v7972 = vsel %vm7926, %v7893, %v7971
      %7973 = vst [vmem:[%s170 + $0x5c] sm:$0x7] %v7972
      %7974 = vst.msk [vmem:[%s170 + $0x60] sm:$0xf] %vm7922, %v7894
      %v7975 = vld [vmem:[%s170 + $0x64] sm:$0x7]
      %v7976 = vsel %vm7926, %v7895, %v7975
      %7977 = vst [vmem:[%s170 + $0x64] sm:$0x7] %v7976
      %p7978 = scmp.lt.s32.totalorder %s14, 1
      %s7979 = scalar_select %p7978, %s14, 1
      %s7980 = smul.addr %s7979, 26
      %s7981 = smul.addr %s7980, 4
      %s7982 = scalar_lea.vmem %s3, %s7981
      // Predicated region
      $region33: #{cnn_net_forward.3} parent=31 // pred_check
        %p7983 = pneg %p100
      $region34: #{cnn_net_forward.3} parent=31 // pred_check_branch
        %7985 = sbr.rel (%p7983) target = $region36
      $region35: #{cnn_net_forward.3} parent=31 // pred_region
        _
      $region36: #{cnn_net_forward.3} parent=31 // pred_fallthru
        _
    $region32: #{cnn_net_forward.3} parent=5 // pred_fallthru
      _
    %p7986 = scmp.le.s32.totalorder 2, %s9
    // Predicated region
    $region37: #{cnn_net_forward.3} parent=5 // pred_check
      %p7987 = pneg %p7986
    $region38: #{cnn_net_forward.3} parent=5 // pred_check_branch
      %7989 = sbr.rel (%p7987) target = $region40
    $region39: #{cnn_net_forward.3} parent=5 // pred_region
      %s7990 = ssub.s32 %s9, 2
      // Predicated region
      $region41: #{cnn_net_forward.3} parent=39 // pred_check
        %p7991 = pneg %p106
      $region42: #{cnn_net_forward.3} parent=39 // pred_check_branch
        %7993 = sbr.rel (%p7991) target = $region44
      $region43: #{cnn_net_forward.3} parent=39 // pred_region
        %p7994 = scmp.lt.s32.totalorder %s15, 1
        %s7995 = scalar_select %p7994, %s15, 1
        %s7996 = smul.addr %s7995, 26
        %s7997 = smul.addr %s7996, 4
        %s7998 = scalar_lea.vmem %s3, %s7997
      $region44: #{cnn_net_forward.3} parent=39 // pred_fallthru
        _
    $region40: #{cnn_net_forward.3} parent=5 // pred_fallthru
      _
  $region6: #{cnn_net_forward.3} parent=0 // loop_footer
    %s13 = sadd.s32 1, %s9
  $region7: #{cnn_net_forward.3} parent=0 // loop_footer_branch
    %8 = sbr.rel target = $region3
  $region8: #{cnn_net_forward.3} parent=0 // loop_exit
    _

// kernel: cnn_net_forward.4
$region0: #{cnn_net_forward.4}
  #allocation0 [shape = 'u32[]', space=smem, size = 0x4, offset = 0x4, fixed_abs, tag = 'smem constant byte address 0x4 - core index']
  #allocation1 [shape = 'u32[144,128]{1,0:T(1,128)}', space=vmem, size = 0x12000, scoped, tag = 'internal scratch']
  %s0 = inlined_call_operand.vmem [shape: bf16[2,81,1664], index: 0, kind: input, shape index: {}]
  %s1 = inlined_call_operand.vmem [shape: bf16[1664,64], index: 1, kind: input, shape index: {}]
  %s2 = inlined_call_operand.vmem [shape: f32[1,64], index: 2, kind: input, shape index: {}]
  %s3 = inlined_call_operand.vmem [shape: bf16[2,4,4,64], index: 3, kind: output, shape index: {}]
  %s4 = sld [smem:[#allocation0]]
  $region45: #{cnn_net_forward.4} parent=0
    _
  %s6 = ssub.s32 1, %s4
  %s7 = scalar_select 0, %s6, %s4
  loop: start=0, step=1, limit=4
  $region2: #{cnn_net_forward.4} parent=0 // loop_pre_header
    _
  $region3: #{cnn_net_forward.4} parent=0 // loop_header
    %s9 = sphi 0, %s13
    %p10 = scmp.ge.s32.totalorder %s9, 4
    %s19 = sphi 0, %s21
    %s22 = sphi 0, %s19
    %s23 = sphi 0, %s22
    %s39 = sphi 0, %s23
    %s43 = sphi 0, %s43
    %s45 = sphi 0, %s43
    %s46 = sphi 0, %s45
    %s60 = sphi 0, %s46
    %s64 = sphi 0, %s64
    %s66 = sphi 0, %s64
    %s67 = sphi 0, %s66
    %s81 = sphi 0, %s67
    %s87 = sphi 0, %s89
    %s90 = sphi 0, %s87
    %s91 = sphi 0, %s90
    %s107 = sphi 0, %s91
  $region4: #{cnn_net_forward.4} parent=0 // loop_header_branch
    %12 = sbr.rel (%p10) target = $region8
  $region5: #{cnn_net_forward.4} parent=0 // loop_body
    %s14 = ssub.s32 %s9, 1
    %s15 = ssub.s32 %s9, 2
    %s16 = sadd.s32 %s9, 1
    %s17 = ssub.s32 %s9, %s16
    %p18 = scmp.eq.s32.totalorder %s17, 0
    %s20 = sadd.s32 %s19, 1
    %s21 = scalar_select %p18, %s19, %s20
    %p24 = pneg %p18
    %p25 = scmp.eq.s32.totalorder %s9, 1
    %p26 = por %p24, %p25
    %p27 = scmp.ne.s32.totalorder %s19, %s22
    %p28 = scmp.eq.s32.totalorder %s9, 0
    %p29 = por %p27, %p28
    %p30 = scmp.ne.s32.totalorder %s19, %s22
    %p31 = scmp.eq.s32.totalorder %s14, 1
    %p32 = por %p30, %p31
    %p33 = scmp.ne.s32.totalorder %s22, %s23
    %p34 = scmp.eq.s32.totalorder %s14, 0
    %p35 = por %p33, %p34
    %p36 = scmp.ne.s32.totalorder %s22, %s23
    %p37 = scmp.eq.s32.totalorder %s15, 1
    %p38 = por %p36, %p37
    %p40 = scmp.ne.s32.totalorder %s23, %s39
    %p41 = scmp.eq.s32.totalorder %s15, 0
    %p42 = por %p40, %p41
    %s44 = sadd.s32 %s43, 1
    %p47 = scmp.eq.s32.totalorder %s9, 1
    %p48 = scmp.ne.s32.totalorder %s43, %s45
    %p49 = scmp.eq.s32.totalorder %s9, 0
    %p50 = por %p48, %p49
    %p51 = scmp.ne.s32.totalorder %s43, %s45
    %p52 = scmp.eq.s32.totalorder %s14, 1
    %p53 = por %p51, %p52
    %p54 = scmp.ne.s32.totalorder %s45, %s46
    %p55 = scmp.eq.s32.totalorder %s14, 0
    %p56 = por %p54, %p55
    %p57 = scmp.ne.s32.totalorder %s45, %s46
    %p58 = scmp.eq.s32.totalorder %s15, 1
    %p59 = por %p57, %p58
    %p61 = scmp.ne.s32.totalorder %s46, %s60
    %p62 = scmp.eq.s32.totalorder %s15, 0
    %p63 = por %p61, %p62
    %s65 = sadd.s32 %s64, 1
    %p68 = scmp.eq.s32.totalorder %s9, 1
    %p69 = scmp.ne.s32.totalorder %s64, %s66
    %p70 = scmp.eq.s32.totalorder %s9, 0
    %p71 = por %p69, %p70
    %p72 = scmp.ne.s32.totalorder %s64, %s66
    %p73 = scmp.eq.s32.totalorder %s14, 1
    %p74 = por %p72, %p73
    %p75 = scmp.ne.s32.totalorder %s66, %s67
    %p76 = scmp.eq.s32.totalorder %s14, 0
    %p77 = por %p75, %p76
    %p78 = scmp.ne.s32.totalorder %s66, %s67
    %p79 = scmp.eq.s32.totalorder %s15, 1
    %p80 = por %p78, %p79
    %p82 = scmp.ne.s32.totalorder %s67, %s81
    %p83 = scmp.eq.s32.totalorder %s15, 0
    %p84 = por %p82, %p83
    %s85 = ssub.s32 %s9, %s16
    %p86 = scmp.eq.s32.totalorder %s85, 0
    %s88 = sadd.s32 %s87, 1
    %s89 = scalar_select %p86, %s87, %s88
    %p92 = pneg %p86
    %p93 = scmp.eq.s32.totalorder %s9, 1
    %p94 = por %p92, %p93
    %p95 = scmp.ne.s32.totalorder %s87, %s90
    %p96 = scmp.eq.s32.totalorder %s9, 0
    %p97 = por %p95, %p96
    %p98 = scmp.ne.s32.totalorder %s87, %s90
    %p99 = scmp.eq.s32.totalorder %s14, 1
    %p100 = por %p98, %p99
    %p101 = scmp.ne.s32.totalorder %s90, %s91
    %p102 = scmp.eq.s32.totalorder %s14, 0
    %p103 = por %p101, %p102
    %p104 = scmp.ne.s32.totalorder %s90, %s91
    %p105 = scmp.eq.s32.totalorder %s15, 1
    %p106 = por %p104, %p105
    %p108 = scmp.ne.s32.totalorder %s91, %s107
    %p109 = scmp.eq.s32.totalorder %s15, 0
    %p110 = por %p108, %p109
    %p111 = scmp.le.s32.totalorder 1, %s9
    %p112 = scmp.lt.s32.totalorder %s9, 3
    %p113 = pnand %p111, %p112
    %p114 = pneg %p113
    // Predicated region
    $region9: #{cnn_net_forward.4} parent=5 // pred_check
      _
    $region10: #{cnn_net_forward.4} parent=5 // pred_check_branch
      %116 = sbr.rel (%p113) target = $region12
    $region11: #{cnn_net_forward.4} parent=5 // pred_region
      %s117 = ssub.s32 %s9, 1
      // Predicated region
      $region13: #{cnn_net_forward.4} parent=11 // pred_check
        %p118 = pneg %p56
      $region14: #{cnn_net_forward.4} parent=11 // pred_check_branch
        %120 = sbr.rel (%p118) target = $region16
      $region15: #{cnn_net_forward.4} parent=11 // pred_region
        _
      $region16: #{cnn_net_forward.4} parent=11 // pred_fallthru
        _
      // Predicated region
      $region17: #{cnn_net_forward.4} parent=11 // pred_check
        %p121 = pneg %p77
      $region18: #{cnn_net_forward.4} parent=11 // pred_check_branch
        %123 = sbr.rel (%p121) target = $region20
      $region19: #{cnn_net_forward.4} parent=11 // pred_region
        _
      $region20: #{cnn_net_forward.4} parent=11 // pred_fallthru
        _
    $region12: #{cnn_net_forward.4} parent=5 // pred_fallthru
      _
    %p124 = scmp.lt.s32.totalorder %s9, 2
    // Predicated region
    $region21: #{cnn_net_forward.4} parent=5 // pred_check
      %p125 = pneg %p124
    $region22: #{cnn_net_forward.4} parent=5 // pred_check_branch
      %127 = sbr.rel (%p125) target = $region24
    $region23: #{cnn_net_forward.4} parent=5 // pred_region
      // Predicated region
      $region25: #{cnn_net_forward.4} parent=23 // pred_check
        %p128 = pneg %p29
      $region26: #{cnn_net_forward.4} parent=23 // pred_check_branch
        %130 = sbr.rel (%p128) target = $region28
      $region27: #{cnn_net_forward.4} parent=23 // pred_region
        %p131 = scmp.lt.s32.totalorder %s9, 1
        %s132 = scalar_select %p131, %s9, 1
        %s133 = smul.addr %s132, 143
        %s134 = smul.addr %s133, 4
        %s135 = scalar_lea.vmem %s0, %s134
      $region28: #{cnn_net_forward.4} parent=23 // pred_fallthru
        _
    $region24: #{cnn_net_forward.4} parent=5 // pred_fallthru
      _
    %p136 = scmp.le.s32.totalorder 1, %s9
    %p137 = scmp.lt.s32.totalorder %s9, 3
    %p138 = pnand %p136, %p137
    %p139 = pneg %p138
    // Predicated region
    $region29: #{cnn_net_forward.4} parent=5 // pred_check
      _
    $region30: #{cnn_net_forward.4} parent=5 // pred_check_branch
      %141 = sbr.rel (%p138) target = $region32
    $region31: #{cnn_net_forward.4} parent=5 // pred_region
      %s142 = ssub.s32 %s9, 1
      %p143 = scmp.lt.s32.totalorder %s14, 1
      %s144 = scalar_select %p143, %s14, 1
      %s145 = smul.addr %s144, 143
      %s146 = smul.addr %s145, 4
      %s147 = scalar_lea.vmem %s0, %s146
      %p148 = pneg %p35
      %p149 = pneg %p32
      %p150 = pneg %p56
      %p151 = pneg %p53
      %p152 = pneg %p77
      %p153 = pneg %p74
      %p154 = pneg %p103
      %p155 = pneg %p100
      %p156 = scmp.lt.s32.totalorder %s14, 1
      %s157 = scalar_select %p156, %s14, 1
      %s158 = smul.addr %s157, 4
      %s159 = smul.addr %s158, 2
      %s160 = scalar_lea.vmem %s3, %s159
      %p161 = scmp.lt.s32.totalorder %s14, 1
      %s162 = scalar_select %p161, %s14, 1
      %s163 = smul.addr %s162, 143
      %s164 = smul.addr %s163, 4
      %s165 = scalar_lea.vmem %s0, %s164
      %p166 = scmp.lt.s32.totalorder %s14, 1
      %s167 = scalar_select %p166, %s14, 1
      %s168 = smul.addr %s167, 4
      %s169 = smul.addr %s168, 2
      %s170 = scalar_lea.vmem %s3, %s169
      %v172 = vld [vmem:[%s165] sm:$0xff]
      %v173 = vld [vmem:[%s165 + $0x8] sm:$0xff]
      %v174 = vld [vmem:[%s165 + $0x10] sm:$0xff]
      %v175 = vld [vmem:[%s165 + $0x18] sm:$0xff]
      %v176 = vld [vmem:[%s165 + $0x20] sm:$0xff]
      %v177 = vld [vmem:[%s165 + $0x28] sm:$0xff]
      %v178 = vld [vmem:[%s165 + $0x30] sm:$0xf]
      %v179 = vld [vmem:[%s165 + $0x34] sm:$0xff]
      %v180 = vld [vmem:[%s165 + $0x3c] sm:$0xff]
      %v181 = vld [vmem:[%s165 + $0x44] sm:$0xff]
      %v182 = vld [vmem:[%s165 + $0x4c] sm:$0xff]
      %v183 = vld [vmem:[%s165 + $0x54] sm:$0xff]
      %v184 = vld [vmem:[%s165 + $0x5c] sm:$0xff]
      %v185 = vld [vmem:[%s165 + $0x64] sm:$0xf]
      %v186 = vld [vmem:[%s165 + $0x68] sm:$0xff]
      %v187 = vld [vmem:[%s165 + $0x70] sm:$0xff]
      %v188 = vld [vmem:[%s165 + $0x78] sm:$0xff]
      %v189 = vld [vmem:[%s165 + $0x80] sm:$0xff]
      %v190 = vld [vmem:[%s165 + $0x88] sm:$0xff]
      %v191 = vld [vmem:[%s165 + $0x90] sm:$0xff]
      %v192 = vld [vmem:[%s165 + $0x98] sm:$0xf]
      %v193 = vld [vmem:[%s165 + $0x9c] sm:$0xff]
      %v194 = vld [vmem:[%s165 + $0xa4] sm:$0xff]
      %v195 = vld [vmem:[%s165 + $0xac] sm:$0xff]
      %v196 = vld [vmem:[%s165 + $0xb4] sm:$0xff]
      %v197 = vld [vmem:[%s165 + $0xbc] sm:$0xff]
      %v198 = vld [vmem:[%s165 + $0xc4] sm:$0xff]
      %v199 = vld [vmem:[%s165 + $0xcc] sm:$0xf]
      %v200 = vld [vmem:[%s165 + $0xd0] sm:$0xff]
      %v201 = vld [vmem:[%s165 + $0xd8] sm:$0xff]
      %v202 = vld [vmem:[%s165 + $0xe0] sm:$0xff]
      %v203 = vld [vmem:[%s165 + $0xe8] sm:$0xff]
      %v204 = vld [vmem:[%s165 + $0xf0] sm:$0xff]
      %v205 = vld [vmem:[%s165 + $0xf8] sm:$0xff]
      %v206 = vld [vmem:[%s165 + $0x100] sm:$0xf]
      %v207 = vld [vmem:[%s165 + $0x104] sm:$0xff]
      %v208 = vld [vmem:[%s165 + $0x10c] sm:$0xff]
      %v209 = vld [vmem:[%s165 + $0x114] sm:$0xff]
      %v210 = vld [vmem:[%s165 + $0x11c] sm:$0xff]
      %v211 = vld [vmem:[%s165 + $0x124] sm:$0xff]
      %v212 = vld [vmem:[%s165 + $0x12c] sm:$0xff]
      %v213 = vld [vmem:[%s165 + $0x134] sm:$0xf]
      %v214 = vld [vmem:[%s165 + $0x138] sm:$0xff]
      %v215 = vld [vmem:[%s165 + $0x140] sm:$0xff]
      %v216 = vld [vmem:[%s165 + $0x148] sm:$0xff]
      %v217 = vld [vmem:[%s165 + $0x150] sm:$0xff]
      %v218 = vld [vmem:[%s165 + $0x158] sm:$0xff]
      %v219 = vld [vmem:[%s165 + $0x160] sm:$0xff]
      %v220 = vld [vmem:[%s165 + $0x168] sm:$0xf]
      %v221 = vld [vmem:[%s165 + $0x16c] sm:$0xff]
      %v222 = vld [vmem:[%s165 + $0x174] sm:$0xff]
      %v223 = vld [vmem:[%s165 + $0x17c] sm:$0xff]
      %v224 = vld [vmem:[%s165 + $0x184] sm:$0xff]
      %v225 = vld [vmem:[%s165 + $0x18c] sm:$0xff]
      %v226 = vld [vmem:[%s165 + $0x194] sm:$0xff]
      %v227 = vld [vmem:[%s165 + $0x19c] sm:$0xf]
      %v228 = vld [vmem:[%s165 + $0x1a0] sm:$0xff]
      %v229 = vld [vmem:[%s165 + $0x1a8] sm:$0xff]
      %v230 = vld [vmem:[%s165 + $0x1b0] sm:$0xff]
      %v231 = vld [vmem:[%s165 + $0x1b8] sm:$0xff]
      %v232 = vld [vmem:[%s165 + $0x1c0] sm:$0xff]
      %v233 = vld [vmem:[%s165 + $0x1c8] sm:$0xff]
      %v234 = vld [vmem:[%s165 + $0x1d0] sm:$0xf]
      %v235 = vld [vmem:[%s165 + $0x1d4] sm:$0xff]
      %v236 = vld [vmem:[%s165 + $0x1dc] sm:$0xff]
      %v237 = vld [vmem:[%s165 + $0x1e4] sm:$0xff]
      %v238 = vld [vmem:[%s165 + $0x1ec] sm:$0xff]
      %v239 = vld [vmem:[%s165 + $0x1f4] sm:$0xff]
      %v240 = vld [vmem:[%s165 + $0x1fc] sm:$0xff]
      %v241 = vld [vmem:[%s165 + $0x204] sm:$0xf]
      %v242 = vld [vmem:[%s165 + $0x208] sm:$0x11]
      %v243 = vld [vmem:[%s165 + $0x210] sm:$0x11]
      %v244 = vld [vmem:[%s165 + $0x218] sm:$0x11]
      %v245 = vld [vmem:[%s165 + $0x220] sm:$0x11]
      %v246 = vld [vmem:[%s165 + $0x228] sm:$0x11]
      %v247 = vld [vmem:[%s165 + $0x230] sm:$0x11]
      %v248 = vld [vmem:[%s165 + $0x238] sm:$0x1]
      %v249 = vld [vmem:[%s1] sm:$0xf]
      %v250 = vld [vmem:[%s1 + $0x4] sm:$0xf]
      %v251 = vld [vmem:[%s1 + $0x8] sm:$0xf]
      %v252 = vld [vmem:[%s1 + $0xc] sm:$0xf]
      %v253 = vld [vmem:[%s1 + $0x10] sm:$0xf]
      %v254 = vld [vmem:[%s1 + $0x14] sm:$0xf]
      %v255 = vld [vmem:[%s1 + $0x18] sm:$0xf]
      %v256 = vld [vmem:[%s1 + $0x1c] sm:$0xf]
      %v257 = vld [vmem:[%s1 + $0x20] sm:$0xf]
      %v258 = vld [vmem:[%s1 + $0x24] sm:$0xf]
      %v259 = vld [vmem:[%s1 + $0x28] sm:$0xf]
      %v260 = vld [vmem:[%s1 + $0x2c] sm:$0xf]
      %v261 = vld [vmem:[%s1 + $0x30] sm:$0xf]
      %v262 = vld [vmem:[%s1 + $0x34] sm:$0xf]
      %v263 = vld [vmem:[%s1 + $0x38] sm:$0xf]
      %v264 = vld [vmem:[%s1 + $0x3c] sm:$0xf]
      %v265 = vld [vmem:[%s1 + $0x40] sm:$0xf]
      %v266 = vld [vmem:[%s1 + $0x44] sm:$0xf]
      %v267 = vld [vmem:[%s1 + $0x48] sm:$0xf]
      %v268 = vld [vmem:[%s1 + $0x4c] sm:$0xf]
      %v269 = vld [vmem:[%s1 + $0x50] sm:$0xf]
      %v270 = vld [vmem:[%s1 + $0x54] sm:$0xf]
      %v271 = vld [vmem:[%s1 + $0x58] sm:$0xf]
      %v272 = vld [vmem:[%s1 + $0x5c] sm:$0xf]
      %v273 = vld [vmem:[%s1 + $0x60] sm:$0xf]
      %v274 = vld [vmem:[%s1 + $0x64] sm:$0xf]
      %v275 = vld [vmem:[%s1 + $0x68] sm:$0xf]
      %v276 = vld [vmem:[%s1 + $0x6c] sm:$0xf]
      %v277 = vld [vmem:[%s1 + $0x70] sm:$0xf]
      %v278 = vld [vmem:[%s1 + $0x74] sm:$0xf]
      %v279 = vld [vmem:[%s1 + $0x78] sm:$0xf]
      %v280 = vld [vmem:[%s1 + $0x7c] sm:$0xf]
      %v281 = vld [vmem:[%s1 + $0x80] sm:$0xf]
      %v282 = vld [vmem:[%s1 + $0x84] sm:$0xf]
      %v283 = vld [vmem:[%s1 + $0x88] sm:$0xf]
      %v284 = vld [vmem:[%s1 + $0x8c] sm:$0xf]
      %v285 = vld [vmem:[%s1 + $0x90] sm:$0xf]
      %v286 = vld [vmem:[%s1 + $0x94] sm:$0xf]
      %v287 = vld [vmem:[%s1 + $0x98] sm:$0xf]
      %v288 = vld [vmem:[%s1 + $0x9c] sm:$0xf]
      %v289 = vld [vmem:[%s1 + $0xa0] sm:$0xf]
      %v290 = vld [vmem:[%s1 + $0xa4] sm:$0xf]
      %v291 = vld [vmem:[%s1 + $0xa8] sm:$0xf]
      %v292 = vld [vmem:[%s1 + $0xac] sm:$0xf]
      %v293 = vld [vmem:[%s1 + $0xb0] sm:$0xf]
      %v294 = vld [vmem:[%s1 + $0xb4] sm:$0xf]
      %v295 = vld [vmem:[%s1 + $0xb8] sm:$0xf]
      %v296 = vld [vmem:[%s1 + $0xbc] sm:$0xf]
      %v297 = vld [vmem:[%s1 + $0xc0] sm:$0xf]
      %v298 = vld [vmem:[%s1 + $0xc4] sm:$0xf]
      %v299 = vld [vmem:[%s1 + $0xc8] sm:$0xf]
      %v300 = vld [vmem:[%s1 + $0xcc] sm:$0xf]
      %v301 = vld [vmem:[%s1 + $0xd0] sm:$0xf]
      %v302 = vld [vmem:[%s1 + $0xd4] sm:$0xf]
      %v303 = vld [vmem:[%s1 + $0xd8] sm:$0xf]
      %v304 = vld [vmem:[%s1 + $0xdc] sm:$0xf]
      %v305 = vld [vmem:[%s1 + $0xe0] sm:$0xf]
      %v306 = vld [vmem:[%s1 + $0xe4] sm:$0xf]
      %v307 = vld [vmem:[%s1 + $0xe8] sm:$0xf]
      %v308 = vld [vmem:[%s1 + $0xec] sm:$0xf]
      %v309 = vld [vmem:[%s1 + $0xf0] sm:$0xf]
      %v310 = vld [vmem:[%s1 + $0xf4] sm:$0xf]
      %v311 = vld [vmem:[%s1 + $0xf8] sm:$0xf]
      %v312 = vld [vmem:[%s1 + $0xfc] sm:$0xf]
      %v313 = vld [vmem:[%s1 + $0x100] sm:$0xf]
      %v314 = vld [vmem:[%s1 + $0x104] sm:$0xf]
      %v315 = vld [vmem:[%s1 + $0x108] sm:$0xf]
      %v316 = vld [vmem:[%s1 + $0x10c] sm:$0xf]
      %v317 = vld [vmem:[%s1 + $0x110] sm:$0xf]
      %v318 = vld [vmem:[%s1 + $0x114] sm:$0xf]
      %v319 = vld [vmem:[%s1 + $0x118] sm:$0xf]
      %v320 = vld [vmem:[%s1 + $0x11c] sm:$0xf]
      %v321 = vld [vmem:[%s1 + $0x120] sm:$0xf]
      %v322 = vld [vmem:[%s1 + $0x124] sm:$0xf]
      %v323 = vld [vmem:[%s1 + $0x128] sm:$0xf]
      %v324 = vld [vmem:[%s1 + $0x12c] sm:$0xf]
      %v325 = vld [vmem:[%s1 + $0x130] sm:$0xf]
      %v326 = vld [vmem:[%s1 + $0x134] sm:$0xf]
      %v327 = vld [vmem:[%s1 + $0x138] sm:$0xf]
      %v328 = vld [vmem:[%s1 + $0x13c] sm:$0xf]
      %v329 = vld [vmem:[%s1 + $0x140] sm:$0xf]
      %v330 = vld [vmem:[%s1 + $0x144] sm:$0xf]
      %v331 = vld [vmem:[%s1 + $0x148] sm:$0xf]
      %v332 = vld [vmem:[%s1 + $0x14c] sm:$0xf]
      %v333 = vld [vmem:[%s1 + $0x150] sm:$0xf]
      %v334 = vld [vmem:[%s1 + $0x154] sm:$0xf]
      %v335 = vld [vmem:[%s1 + $0x158] sm:$0xf]
      %v336 = vld [vmem:[%s1 + $0x15c] sm:$0xf]
      %v337 = vld [vmem:[%s1 + $0x160] sm:$0xf]
      %v338 = vld [vmem:[%s1 + $0x164] sm:$0xf]
      %v339 = vld [vmem:[%s1 + $0x168] sm:$0xf]
      %v340 = vld [vmem:[%s1 + $0x16c] sm:$0xf]
      %v341 = vld [vmem:[%s1 + $0x170] sm:$0xf]
      %v342 = vld [vmem:[%s1 + $0x174] sm:$0xf]
      %v343 = vld [vmem:[%s1 + $0x178] sm:$0xf]
      %v344 = vld [vmem:[%s1 + $0x17c] sm:$0xf]
      %v345 = vld [vmem:[%s1 + $0x180] sm:$0xf]
      %v346 = vld [vmem:[%s1 + $0x184] sm:$0xf]
      %v347 = vld [vmem:[%s1 + $0x188] sm:$0xf]
      %v348 = vld [vmem:[%s1 + $0x18c] sm:$0xf]
      %v349 = vld [vmem:[%s1 + $0x190] sm:$0xf]
      %v350 = vld [vmem:[%s1 + $0x194] sm:$0xf]
      %v351 = vld [vmem:[%s1 + $0x198] sm:$0xf]
      %v352 = vld [vmem:[%s1 + $0x19c] sm:$0xf]
      %v353 = vld [vmem:[%s1 + $0x1a0] sm:$0xf]
      %v354 = vld [vmem:[%s1 + $0x1a4] sm:$0xf]
      %v355 = vld [vmem:[%s1 + $0x1a8] sm:$0xf]
      %v356 = vld [vmem:[%s1 + $0x1ac] sm:$0xf]
      %v357 = vld [vmem:[%s1 + $0x1b0] sm:$0xf]
      %v358 = vld [vmem:[%s1 + $0x1b4] sm:$0xf]
      %v359 = vld [vmem:[%s1 + $0x1b8] sm:$0xf]
      %v360 = vld [vmem:[%s1 + $0x1bc] sm:$0xf]
      %v361 = vld [vmem:[%s1 + $0x1c0] sm:$0xf]
      %v362 = vld [vmem:[%s1 + $0x1c4] sm:$0xf]
      %v363 = vld [vmem:[%s1 + $0x1c8] sm:$0xf]
      %v364 = vld [vmem:[%s1 + $0x1cc] sm:$0xf]
      %v365 = vld [vmem:[%s1 + $0x1d0] sm:$0xf]
      %v366 = vld [vmem:[%s1 + $0x1d4] sm:$0xf]
      %v367 = vld [vmem:[%s1 + $0x1d8] sm:$0xf]
      %v368 = vld [vmem:[%s1 + $0x1dc] sm:$0xf]
      %v369 = vld [vmem:[%s1 + $0x1e0] sm:$0xf]
      %v370 = vld [vmem:[%s1 + $0x1e4] sm:$0xf]
      %v371 = vld [vmem:[%s1 + $0x1e8] sm:$0xf]
      %v372 = vld [vmem:[%s1 + $0x1ec] sm:$0xf]
      %v373 = vld [vmem:[%s1 + $0x1f0] sm:$0xf]
      %v374 = vld [vmem:[%s1 + $0x1f4] sm:$0xf]
      %v375 = vld [vmem:[%s1 + $0x1f8] sm:$0xf]
      %v376 = vld [vmem:[%s1 + $0x1fc] sm:$0xf]
      %v377 = vld [vmem:[%s1 + $0x200] sm:$0xf]
      %v378 = vld [vmem:[%s1 + $0x204] sm:$0xf]
      %v379 = vld [vmem:[%s1 + $0x208] sm:$0xf]
      %v380 = vld [vmem:[%s1 + $0x20c] sm:$0xf]
      %v381 = vld [vmem:[%s1 + $0x210] sm:$0xf]
      %v382 = vld [vmem:[%s1 + $0x214] sm:$0xf]
      %v383 = vld [vmem:[%s1 + $0x218] sm:$0xf]
      %v384 = vld [vmem:[%s1 + $0x21c] sm:$0xf]
      %v385 = vld [vmem:[%s1 + $0x220] sm:$0xf]
      %v386 = vld [vmem:[%s1 + $0x224] sm:$0xf]
      %v387 = vld [vmem:[%s1 + $0x228] sm:$0xf]
      %v388 = vld [vmem:[%s1 + $0x22c] sm:$0xf]
      %v389 = vld [vmem:[%s1 + $0x230] sm:$0xf]
      %v390 = vld [vmem:[%s1 + $0x234] sm:$0xf]
      %v391 = vld [vmem:[%s1 + $0x238] sm:$0xf]
      %v392 = vld [vmem:[%s1 + $0x23c] sm:$0xf]
      %v393 = vld [vmem:[%s1 + $0x240] sm:$0xf]
      %v394 = vld [vmem:[%s1 + $0x244] sm:$0xf]
      %v395 = vld [vmem:[%s1 + $0x248] sm:$0xf]
      %v396 = vld [vmem:[%s1 + $0x24c] sm:$0xf]
      %v397 = vld [vmem:[%s1 + $0x250] sm:$0xf]
      %v398 = vld [vmem:[%s1 + $0x254] sm:$0xf]
      %v399 = vld [vmem:[%s1 + $0x258] sm:$0xf]
      %v400 = vld [vmem:[%s1 + $0x25c] sm:$0xf]
      %v401 = vld [vmem:[%s1 + $0x260] sm:$0xf]
      %v402 = vld [vmem:[%s1 + $0x264] sm:$0xf]
      %v403 = vld [vmem:[%s1 + $0x268] sm:$0xf]
      %v404 = vld [vmem:[%s1 + $0x26c] sm:$0xf]
      %v405 = vld [vmem:[%s1 + $0x270] sm:$0xf]
      %v406 = vld [vmem:[%s1 + $0x274] sm:$0xf]
      %v407 = vld [vmem:[%s1 + $0x278] sm:$0xf]
      %v408 = vld [vmem:[%s1 + $0x27c] sm:$0xf]
      %v409 = vld [vmem:[%s1 + $0x280] sm:$0xf]
      %v410 = vld [vmem:[%s1 + $0x284] sm:$0xf]
      %v411 = vld [vmem:[%s1 + $0x288] sm:$0xf]
      %v412 = vld [vmem:[%s1 + $0x28c] sm:$0xf]
      %v413 = vld [vmem:[%s1 + $0x290] sm:$0xf]
      %v414 = vld [vmem:[%s1 + $0x294] sm:$0xf]
      %v415 = vld [vmem:[%s1 + $0x298] sm:$0xf]
      %v416 = vld [vmem:[%s1 + $0x29c] sm:$0xf]
      %v417 = vld [vmem:[%s1 + $0x2a0] sm:$0xf]
      %v418 = vld [vmem:[%s1 + $0x2a4] sm:$0xf]
      %v419 = vld [vmem:[%s1 + $0x2a8] sm:$0xf]
      %v420 = vld [vmem:[%s1 + $0x2ac] sm:$0xf]
      %v421 = vld [vmem:[%s1 + $0x2b0] sm:$0xf]
      %v422 = vld [vmem:[%s1 + $0x2b4] sm:$0xf]
      %v423 = vld [vmem:[%s1 + $0x2b8] sm:$0xf]
      %v424 = vld [vmem:[%s1 + $0x2bc] sm:$0xf]
      %v425 = vld [vmem:[%s1 + $0x2c0] sm:$0xf]
      %v426 = vld [vmem:[%s1 + $0x2c4] sm:$0xf]
      %v427 = vld [vmem:[%s1 + $0x2c8] sm:$0xf]
      %v428 = vld [vmem:[%s1 + $0x2cc] sm:$0xf]
      %v429 = vld [vmem:[%s1 + $0x2d0] sm:$0xf]
      %v430 = vld [vmem:[%s1 + $0x2d4] sm:$0xf]
      %v431 = vld [vmem:[%s1 + $0x2d8] sm:$0xf]
      %v432 = vld [vmem:[%s1 + $0x2dc] sm:$0xf]
      %v433 = vld [vmem:[%s1 + $0x2e0] sm:$0xf]
      %v434 = vld [vmem:[%s1 + $0x2e4] sm:$0xf]
      %v435 = vld [vmem:[%s1 + $0x2e8] sm:$0xf]
      %v436 = vld [vmem:[%s1 + $0x2ec] sm:$0xf]
      %v437 = vld [vmem:[%s1 + $0x2f0] sm:$0xf]
      %v438 = vld [vmem:[%s1 + $0x2f4] sm:$0xf]
      %v439 = vld [vmem:[%s1 + $0x2f8] sm:$0xf]
      %v440 = vld [vmem:[%s1 + $0x2fc] sm:$0xf]
      %v441 = vld [vmem:[%s1 + $0x300] sm:$0xf]
      %v442 = vld [vmem:[%s1 + $0x304] sm:$0xf]
      %v443 = vld [vmem:[%s1 + $0x308] sm:$0xf]
      %v444 = vld [vmem:[%s1 + $0x30c] sm:$0xf]
      %v445 = vld [vmem:[%s1 + $0x310] sm:$0xf]
      %v446 = vld [vmem:[%s1 + $0x314] sm:$0xf]
      %v447 = vld [vmem:[%s1 + $0x318] sm:$0xf]
      %v448 = vld [vmem:[%s1 + $0x31c] sm:$0xf]
      %v449 = vld [vmem:[%s1 + $0x320] sm:$0xf]
      %v450 = vld [vmem:[%s1 + $0x324] sm:$0xf]
      %v451 = vld [vmem:[%s1 + $0x328] sm:$0xf]
      %v452 = vld [vmem:[%s1 + $0x32c] sm:$0xf]
      %v453 = vld [vmem:[%s1 + $0x330] sm:$0xf]
      %v454 = vld [vmem:[%s1 + $0x334] sm:$0xf]
      %v455 = vld [vmem:[%s1 + $0x338] sm:$0xf]
      %v456 = vld [vmem:[%s1 + $0x33c] sm:$0xf]
      %v457 = vld [vmem:[%s2] sm:$0x1]
      %v459 = vlaneseq
      %v460 = vshrl.u32 %v459, 7
      %v461 = vsub.s32 0, %v460
      %v462 = vrot.slane %v457, %v461
      %v541 = vunpack.c.l.b16 %v172
      %v542 = vunpack.c.h.b16 %v172
      %v543 = vunpack.c.l.b16 %v173
      %v544 = vunpack.c.h.b16 %v173
      %v545 = vunpack.c.l.b16 %v174
      %v546 = vunpack.c.h.b16 %v174
      %v547 = vunpack.c.l.b16 %v175
      %v548 = vunpack.c.h.b16 %v175
      %v549 = vunpack.c.l.b16 %v176
      %v550 = vunpack.c.h.b16 %v176
      %v551 = vunpack.c.l.b16 %v177
      %v552 = vunpack.c.h.b16 %v177
      %v553 = vunpack.c.l.b16 %v178
      %v554 = vunpack.c.l.b16 %v179
      %v555 = vunpack.c.h.b16 %v179
      %v556 = vunpack.c.l.b16 %v180
      %v557 = vunpack.c.h.b16 %v180
      %v558 = vunpack.c.l.b16 %v181
      %v559 = vunpack.c.h.b16 %v181
      %v560 = vunpack.c.l.b16 %v182
      %v561 = vunpack.c.h.b16 %v182
      %v562 = vunpack.c.l.b16 %v183
      %v563 = vunpack.c.h.b16 %v183
      %v564 = vunpack.c.l.b16 %v184
      %v565 = vunpack.c.h.b16 %v184
      %v566 = vunpack.c.l.b16 %v185
      %v567 = vunpack.c.l.b16 %v186
      %v568 = vunpack.c.h.b16 %v186
      %v569 = vunpack.c.l.b16 %v187
      %v570 = vunpack.c.h.b16 %v187
      %v571 = vunpack.c.l.b16 %v188
      %v572 = vunpack.c.h.b16 %v188
      %v573 = vunpack.c.l.b16 %v189
      %v574 = vunpack.c.h.b16 %v189
      %v575 = vunpack.c.l.b16 %v190
      %v576 = vunpack.c.h.b16 %v190
      %v577 = vunpack.c.l.b16 %v191
      %v578 = vunpack.c.h.b16 %v191
      %v579 = vunpack.c.l.b16 %v192
      %v580 = vunpack.c.l.b16 %v193
      %v581 = vunpack.c.h.b16 %v193
      %v582 = vunpack.c.l.b16 %v194
      %v583 = vunpack.c.h.b16 %v194
      %v584 = vunpack.c.l.b16 %v195
      %v585 = vunpack.c.h.b16 %v195
      %v586 = vunpack.c.l.b16 %v196
      %v587 = vunpack.c.h.b16 %v196
      %v588 = vunpack.c.l.b16 %v197
      %v589 = vunpack.c.h.b16 %v197
      %v590 = vunpack.c.l.b16 %v198
      %v591 = vunpack.c.h.b16 %v198
      %v592 = vunpack.c.l.b16 %v199
      %v593 = vunpack.c.l.b16 %v200
      %v594 = vunpack.c.h.b16 %v200
      %v595 = vunpack.c.l.b16 %v201
      %v596 = vunpack.c.h.b16 %v201
      %v597 = vunpack.c.l.b16 %v202
      %v598 = vunpack.c.h.b16 %v202
      %v599 = vunpack.c.l.b16 %v203
      %v600 = vunpack.c.h.b16 %v203
      %v601 = vunpack.c.l.b16 %v204
      %v602 = vunpack.c.h.b16 %v204
      %v603 = vunpack.c.l.b16 %v205
      %v604 = vunpack.c.h.b16 %v205
      %v605 = vunpack.c.l.b16 %v206
      %v606 = vunpack.c.l.b16 %v207
      %v607 = vunpack.c.h.b16 %v207
      %v608 = vunpack.c.l.b16 %v208
      %v609 = vunpack.c.h.b16 %v208
      %v610 = vunpack.c.l.b16 %v209
      %v611 = vunpack.c.h.b16 %v209
      %v612 = vunpack.c.l.b16 %v210
      %v613 = vunpack.c.h.b16 %v210
      %v614 = vunpack.c.l.b16 %v211
      %v615 = vunpack.c.h.b16 %v211
      %v616 = vunpack.c.l.b16 %v212
      %v617 = vunpack.c.h.b16 %v212
      %v618 = vunpack.c.l.b16 %v213
      %v619 = vunpack.c.l.b16 %v214
      %v620 = vunpack.c.h.b16 %v214
      %v621 = vunpack.c.l.b16 %v215
      %v622 = vunpack.c.h.b16 %v215
      %v623 = vunpack.c.l.b16 %v216
      %v624 = vunpack.c.h.b16 %v216
      %v625 = vunpack.c.l.b16 %v217
      %v626 = vunpack.c.h.b16 %v217
      %v627 = vunpack.c.l.b16 %v218
      %v628 = vunpack.c.h.b16 %v218
      %v629 = vunpack.c.l.b16 %v219
      %v630 = vunpack.c.h.b16 %v219
      %v631 = vunpack.c.l.b16 %v220
      %v632 = vunpack.c.l.b16 %v221
      %v633 = vunpack.c.h.b16 %v221
      %v634 = vunpack.c.l.b16 %v222
      %v635 = vunpack.c.h.b16 %v222
      %v636 = vunpack.c.l.b16 %v223
      %v637 = vunpack.c.h.b16 %v223
      %v638 = vunpack.c.l.b16 %v224
      %v639 = vunpack.c.h.b16 %v224
      %v640 = vunpack.c.l.b16 %v225
      %v641 = vunpack.c.h.b16 %v225
      %v642 = vunpack.c.l.b16 %v226
      %v643 = vunpack.c.h.b16 %v226
      %v644 = vunpack.c.l.b16 %v227
      %v645 = vunpack.c.l.b16 %v228
      %v646 = vunpack.c.h.b16 %v228
      %v647 = vunpack.c.l.b16 %v229
      %v648 = vunpack.c.h.b16 %v229
      %v649 = vunpack.c.l.b16 %v230
      %v650 = vunpack.c.h.b16 %v230
      %v651 = vunpack.c.l.b16 %v231
      %v652 = vunpack.c.h.b16 %v231
      %v653 = vunpack.c.l.b16 %v232
      %v654 = vunpack.c.h.b16 %v232
      %v655 = vunpack.c.l.b16 %v233
      %v656 = vunpack.c.h.b16 %v233
      %v657 = vunpack.c.l.b16 %v234
      %v658 = vunpack.c.l.b16 %v235
      %v659 = vunpack.c.h.b16 %v235
      %v660 = vunpack.c.l.b16 %v236
      %v661 = vunpack.c.h.b16 %v236
      %v662 = vunpack.c.l.b16 %v237
      %v663 = vunpack.c.h.b16 %v237
      %v664 = vunpack.c.l.b16 %v238
      %v665 = vunpack.c.h.b16 %v238
      %v666 = vunpack.c.l.b16 %v239
      %v667 = vunpack.c.h.b16 %v239
      %v668 = vunpack.c.l.b16 %v240
      %v669 = vunpack.c.h.b16 %v240
      %v670 = vunpack.c.l.b16 %v241
      %v671 = vunpack.c.l.b16 %v242
      %v672 = vunpack.c.h.b16 %v242
      %v673 = vunpack.c.l.b16 %v243
      %v674 = vunpack.c.h.b16 %v243
      %v675 = vunpack.c.l.b16 %v244
      %v676 = vunpack.c.h.b16 %v244
      %v677 = vunpack.c.l.b16 %v245
      %v678 = vunpack.c.h.b16 %v245
      %v679 = vunpack.c.l.b16 %v246
      %v680 = vunpack.c.h.b16 %v246
      %v681 = vunpack.c.l.b16 %v247
      %v682 = vunpack.c.h.b16 %v247
      %v683 = vunpack.c.l.b16 %v248
      %v684 = vpack.c.b16 %v554, %v541
      %v685 = vpack.c.b16 %v555, %v542
      %v686 = vpack.c.b16 %v556, %v543
      %v687 = vpack.c.b16 %v557, %v544
      %v688 = vpack.c.b16 %v558, %v545
      %v689 = vpack.c.b16 %v559, %v546
      %v690 = vpack.c.b16 %v560, %v547
      %v691 = vpack.c.b16 %v561, %v548
      %v692 = vpack.c.b16 %v562, %v549
      %v693 = vpack.c.b16 %v563, %v550
      %v694 = vpack.c.b16 %v564, %v551
      %v695 = vpack.c.b16 %v565, %v552
      %v696 = vpack.c.b16 %v566, %v553
      %v697 = vpack.c.b16 %v580, %v567
      %v698 = vpack.c.b16 %v581, %v568
      %v699 = vpack.c.b16 %v582, %v569
      %v700 = vpack.c.b16 %v583, %v570
      %v701 = vpack.c.b16 %v584, %v571
      %v702 = vpack.c.b16 %v585, %v572
      %v703 = vpack.c.b16 %v586, %v573
      %v704 = vpack.c.b16 %v587, %v574
      %v705 = vpack.c.b16 %v588, %v575
      %v706 = vpack.c.b16 %v589, %v576
      %v707 = vpack.c.b16 %v590, %v577
      %v708 = vpack.c.b16 %v591, %v578
      %v709 = vpack.c.b16 %v592, %v579
      %v710 = vpack.c.b16 %v606, %v593
      %v711 = vpack.c.b16 %v607, %v594
      %v712 = vpack.c.b16 %v608, %v595
      %v713 = vpack.c.b16 %v609, %v596
      %v714 = vpack.c.b16 %v610, %v597
      %v715 = vpack.c.b16 %v611, %v598
      %v716 = vpack.c.b16 %v612, %v599
      %v717 = vpack.c.b16 %v613, %v600
      %v718 = vpack.c.b16 %v614, %v601
      %v719 = vpack.c.b16 %v615, %v602
      %v720 = vpack.c.b16 %v616, %v603
      %v721 = vpack.c.b16 %v617, %v604
      %v722 = vpack.c.b16 %v618, %v605
      %v723 = vpack.c.b16 %v632, %v619
      %v724 = vpack.c.b16 %v633, %v620
      %v725 = vpack.c.b16 %v634, %v621
      %v726 = vpack.c.b16 %v635, %v622
      %v727 = vpack.c.b16 %v636, %v623
      %v728 = vpack.c.b16 %v637, %v624
      %v729 = vpack.c.b16 %v638, %v625
      %v730 = vpack.c.b16 %v639, %v626
      %v731 = vpack.c.b16 %v640, %v627
      %v732 = vpack.c.b16 %v641, %v628
      %v733 = vpack.c.b16 %v642, %v629
      %v734 = vpack.c.b16 %v643, %v630
      %v735 = vpack.c.b16 %v644, %v631
      %v736 = vpack.c.b16 %v658, %v645
      %v737 = vpack.c.b16 %v659, %v646
      %v738 = vpack.c.b16 %v660, %v647
      %v739 = vpack.c.b16 %v661, %v648
      %v740 = vpack.c.b16 %v662, %v649
      %v741 = vpack.c.b16 %v663, %v650
      %v742 = vpack.c.b16 %v664, %v651
      %v743 = vpack.c.b16 %v665, %v652
      %v744 = vpack.c.b16 %v666, %v653
      %v745 = vpack.c.b16 %v667, %v654
      %v746 = vpack.c.b16 %v668, %v655
      %v747 = vpack.c.b16 %v669, %v656
      %v748 = vpack.c.b16 %v670, %v657
      %v749 = vpack.c.b16 %v671, %v671
      %v750 = vpack.c.b16 %v672, %v672
      %v751 = vpack.c.b16 %v673, %v673
      %v752 = vpack.c.b16 %v674, %v674
      %v753 = vpack.c.b16 %v675, %v675
      %v754 = vpack.c.b16 %v676, %v676
      %v755 = vpack.c.b16 %v677, %v677
      %v756 = vpack.c.b16 %v678, %v678
      %v757 = vpack.c.b16 %v679, %v679
      %v758 = vpack.c.b16 %v680, %v680
      %v759 = vpack.c.b16 %v681, %v681
      %v760 = vpack.c.b16 %v682, %v682
      %v761 = vpack.c.b16 %v683, %v683
      %v1048 = vunpack.c.l.b16 %v249
      %v1049 = vunpack.c.l.b16 %v250
      %v1050 = vunpack.c.l.b16 %v251
      %v1051 = vunpack.c.l.b16 %v252
      %v1052 = vunpack.c.l.b16 %v253
      %v1053 = vunpack.c.l.b16 %v254
      %v1054 = vunpack.c.l.b16 %v255
      %v1055 = vunpack.c.l.b16 %v256
      %v1056 = vunpack.c.l.b16 %v257
      %v1057 = vunpack.c.l.b16 %v258
      %v1058 = vunpack.c.l.b16 %v259
      %v1059 = vunpack.c.l.b16 %v260
      %v1060 = vunpack.c.l.b16 %v261
      %v1061 = vunpack.c.l.b16 %v262
      %v1062 = vunpack.c.l.b16 %v263
      %v1063 = vunpack.c.l.b16 %v264
      %v1064 = vunpack.c.l.b16 %v265
      %v1065 = vunpack.c.l.b16 %v266
      %v1066 = vunpack.c.l.b16 %v267
      %v1067 = vunpack.c.l.b16 %v268
      %v1068 = vunpack.c.l.b16 %v269
      %v1069 = vunpack.c.l.b16 %v270
      %v1070 = vunpack.c.l.b16 %v271
      %v1071 = vunpack.c.l.b16 %v272
      %v1072 = vunpack.c.l.b16 %v273
      %v1073 = vunpack.c.l.b16 %v274
      %v1074 = vunpack.c.l.b16 %v275
      %v1075 = vunpack.c.l.b16 %v276
      %v1076 = vunpack.c.l.b16 %v277
      %v1077 = vunpack.c.l.b16 %v278
      %v1078 = vunpack.c.l.b16 %v279
      %v1079 = vunpack.c.l.b16 %v280
      %v1080 = vunpack.c.l.b16 %v281
      %v1081 = vunpack.c.l.b16 %v282
      %v1082 = vunpack.c.l.b16 %v283
      %v1083 = vunpack.c.l.b16 %v284
      %v1084 = vunpack.c.l.b16 %v285
      %v1085 = vunpack.c.l.b16 %v286
      %v1086 = vunpack.c.l.b16 %v287
      %v1087 = vunpack.c.l.b16 %v288
      %v1088 = vunpack.c.l.b16 %v289
      %v1089 = vunpack.c.l.b16 %v290
      %v1090 = vunpack.c.l.b16 %v291
      %v1091 = vunpack.c.l.b16 %v292
      %v1092 = vunpack.c.l.b16 %v293
      %v1093 = vunpack.c.l.b16 %v294
      %v1094 = vunpack.c.l.b16 %v295
      %v1095 = vunpack.c.l.b16 %v296
      %v1096 = vunpack.c.l.b16 %v297
      %v1097 = vunpack.c.l.b16 %v298
      %v1098 = vunpack.c.l.b16 %v299
      %v1099 = vunpack.c.l.b16 %v300
      %v1100 = vunpack.c.l.b16 %v301
      %v1101 = vunpack.c.l.b16 %v302
      %v1102 = vunpack.c.l.b16 %v303
      %v1103 = vunpack.c.l.b16 %v304
      %v1104 = vunpack.c.l.b16 %v305
      %v1105 = vunpack.c.l.b16 %v306
      %v1106 = vunpack.c.l.b16 %v307
      %v1107 = vunpack.c.l.b16 %v308
      %v1108 = vunpack.c.l.b16 %v309
      %v1109 = vunpack.c.l.b16 %v310
      %v1110 = vunpack.c.l.b16 %v311
      %v1111 = vunpack.c.l.b16 %v312
      %v1112 = vunpack.c.l.b16 %v313
      %v1113 = vunpack.c.l.b16 %v314
      %v1114 = vunpack.c.l.b16 %v315
      %v1115 = vunpack.c.l.b16 %v316
      %v1116 = vunpack.c.l.b16 %v317
      %v1117 = vunpack.c.l.b16 %v318
      %v1118 = vunpack.c.l.b16 %v319
      %v1119 = vunpack.c.l.b16 %v320
      %v1120 = vunpack.c.l.b16 %v321
      %v1121 = vunpack.c.l.b16 %v322
      %v1122 = vunpack.c.l.b16 %v323
      %v1123 = vunpack.c.l.b16 %v324
      %v1124 = vunpack.c.l.b16 %v325
      %v1125 = vunpack.c.l.b16 %v326
      %v1126 = vunpack.c.l.b16 %v327
      %v1127 = vunpack.c.l.b16 %v328
      %v1128 = vunpack.c.l.b16 %v329
      %v1129 = vunpack.c.l.b16 %v330
      %v1130 = vunpack.c.l.b16 %v331
      %v1131 = vunpack.c.l.b16 %v332
      %v1132 = vunpack.c.l.b16 %v333
      %v1133 = vunpack.c.l.b16 %v334
      %v1134 = vunpack.c.l.b16 %v335
      %v1135 = vunpack.c.l.b16 %v336
      %v1136 = vunpack.c.l.b16 %v337
      %v1137 = vunpack.c.l.b16 %v338
      %v1138 = vunpack.c.l.b16 %v339
      %v1139 = vunpack.c.l.b16 %v340
      %v1140 = vunpack.c.l.b16 %v341
      %v1141 = vunpack.c.l.b16 %v342
      %v1142 = vunpack.c.l.b16 %v343
      %v1143 = vunpack.c.l.b16 %v344
      %v1144 = vunpack.c.l.b16 %v345
      %v1145 = vunpack.c.l.b16 %v346
      %v1146 = vunpack.c.l.b16 %v347
      %v1147 = vunpack.c.l.b16 %v348
      %v1148 = vunpack.c.l.b16 %v349
      %v1149 = vunpack.c.l.b16 %v350
      %v1150 = vunpack.c.l.b16 %v351
      %v1151 = vunpack.c.l.b16 %v352
      %v1152 = vunpack.c.l.b16 %v353
      %v1153 = vunpack.c.l.b16 %v354
      %v1154 = vunpack.c.l.b16 %v355
      %v1155 = vunpack.c.l.b16 %v356
      %v1156 = vunpack.c.l.b16 %v357
      %v1157 = vunpack.c.l.b16 %v358
      %v1158 = vunpack.c.l.b16 %v359
      %v1159 = vunpack.c.l.b16 %v360
      %v1160 = vunpack.c.l.b16 %v361
      %v1161 = vunpack.c.l.b16 %v362
      %v1162 = vunpack.c.l.b16 %v363
      %v1163 = vunpack.c.l.b16 %v364
      %v1164 = vunpack.c.l.b16 %v365
      %v1165 = vunpack.c.l.b16 %v366
      %v1166 = vunpack.c.l.b16 %v367
      %v1167 = vunpack.c.l.b16 %v368
      %v1168 = vunpack.c.l.b16 %v369
      %v1169 = vunpack.c.l.b16 %v370
      %v1170 = vunpack.c.l.b16 %v371
      %v1171 = vunpack.c.l.b16 %v372
      %v1172 = vunpack.c.l.b16 %v373
      %v1173 = vunpack.c.l.b16 %v374
      %v1174 = vunpack.c.l.b16 %v375
      %v1175 = vunpack.c.l.b16 %v376
      %v1176 = vunpack.c.l.b16 %v377
      %v1177 = vunpack.c.l.b16 %v378
      %v1178 = vunpack.c.l.b16 %v379
      %v1179 = vunpack.c.l.b16 %v380
      %v1180 = vunpack.c.l.b16 %v381
      %v1181 = vunpack.c.l.b16 %v382
      %v1182 = vunpack.c.l.b16 %v383
      %v1183 = vunpack.c.l.b16 %v384
      %v1184 = vunpack.c.l.b16 %v385
      %v1185 = vunpack.c.l.b16 %v386
      %v1186 = vunpack.c.l.b16 %v387
      %v1187 = vunpack.c.l.b16 %v388
      %v1188 = vunpack.c.l.b16 %v389
      %v1189 = vunpack.c.l.b16 %v390
      %v1190 = vunpack.c.l.b16 %v391
      %v1191 = vunpack.c.l.b16 %v392
      %v1192 = vunpack.c.l.b16 %v393
      %v1193 = vunpack.c.l.b16 %v394
      %v1194 = vunpack.c.l.b16 %v395
      %v1195 = vunpack.c.l.b16 %v396
      %v1196 = vunpack.c.l.b16 %v397
      %v1197 = vunpack.c.l.b16 %v398
      %v1198 = vunpack.c.l.b16 %v399
      %v1199 = vunpack.c.l.b16 %v400
      %v1200 = vunpack.c.l.b16 %v401
      %v1201 = vunpack.c.l.b16 %v402
      %v1202 = vunpack.c.l.b16 %v403
      %v1203 = vunpack.c.l.b16 %v404
      %v1204 = vunpack.c.l.b16 %v405
      %v1205 = vunpack.c.l.b16 %v406
      %v1206 = vunpack.c.l.b16 %v407
      %v1207 = vunpack.c.l.b16 %v408
      %v1208 = vunpack.c.l.b16 %v409
      %v1209 = vunpack.c.l.b16 %v410
      %v1210 = vunpack.c.l.b16 %v411
      %v1211 = vunpack.c.l.b16 %v412
      %v1212 = vunpack.c.l.b16 %v413
      %v1213 = vunpack.c.l.b16 %v414
      %v1214 = vunpack.c.l.b16 %v415
      %v1215 = vunpack.c.l.b16 %v416
      %v1216 = vunpack.c.l.b16 %v417
      %v1217 = vunpack.c.l.b16 %v418
      %v1218 = vunpack.c.l.b16 %v419
      %v1219 = vunpack.c.l.b16 %v420
      %v1220 = vunpack.c.l.b16 %v421
      %v1221 = vunpack.c.l.b16 %v422
      %v1222 = vunpack.c.l.b16 %v423
      %v1223 = vunpack.c.l.b16 %v424
      %v1224 = vunpack.c.l.b16 %v425
      %v1225 = vunpack.c.l.b16 %v426
      %v1226 = vunpack.c.l.b16 %v427
      %v1227 = vunpack.c.l.b16 %v428
      %v1228 = vunpack.c.l.b16 %v429
      %v1229 = vunpack.c.l.b16 %v430
      %v1230 = vunpack.c.l.b16 %v431
      %v1231 = vunpack.c.l.b16 %v432
      %v1232 = vunpack.c.l.b16 %v433
      %v1233 = vunpack.c.l.b16 %v434
      %v1234 = vunpack.c.l.b16 %v435
      %v1235 = vunpack.c.l.b16 %v436
      %v1236 = vunpack.c.l.b16 %v437
      %v1237 = vunpack.c.l.b16 %v438
      %v1238 = vunpack.c.l.b16 %v439
      %v1239 = vunpack.c.l.b16 %v440
      %v1240 = vunpack.c.l.b16 %v441
      %v1241 = vunpack.c.l.b16 %v442
      %v1242 = vunpack.c.l.b16 %v443
      %v1243 = vunpack.c.l.b16 %v444
      %v1244 = vunpack.c.l.b16 %v445
      %v1245 = vunpack.c.l.b16 %v446
      %v1246 = vunpack.c.l.b16 %v447
      %v1247 = vunpack.c.l.b16 %v448
      %v1248 = vunpack.c.l.b16 %v449
      %v1249 = vunpack.c.l.b16 %v450
      %v1250 = vunpack.c.l.b16 %v451
      %v1251 = vunpack.c.l.b16 %v452
      %v1252 = vunpack.c.l.b16 %v453
      %v1253 = vunpack.c.l.b16 %v454
      %v1254 = vunpack.c.l.b16 %v455
      %v1255 = vunpack.c.l.b16 %v456
      %v1256 = vpack.c.b16 %v1049, %v1048
      %v1257 = vpack.c.b16 %v1051, %v1050
      %v1258 = vpack.c.b16 %v1053, %v1052
      %v1259 = vpack.c.b16 %v1055, %v1054
      %v1260 = vpack.c.b16 %v1057, %v1056
      %v1261 = vpack.c.b16 %v1059, %v1058
      %v1262 = vpack.c.b16 %v1061, %v1060
      %v1263 = vpack.c.b16 %v1063, %v1062
      %v1264 = vpack.c.b16 %v1065, %v1064
      %v1265 = vpack.c.b16 %v1067, %v1066
      %v1266 = vpack.c.b16 %v1069, %v1068
      %v1267 = vpack.c.b16 %v1071, %v1070
      %v1268 = vpack.c.b16 %v1073, %v1072
      %v1269 = vpack.c.b16 %v1075, %v1074
      %v1270 = vpack.c.b16 %v1077, %v1076
      %v1271 = vpack.c.b16 %v1079, %v1078
      %v1272 = vpack.c.b16 %v1081, %v1080
      %v1273 = vpack.c.b16 %v1083, %v1082
      %v1274 = vpack.c.b16 %v1085, %v1084
      %v1275 = vpack.c.b16 %v1087, %v1086
      %v1276 = vpack.c.b16 %v1089, %v1088
      %v1277 = vpack.c.b16 %v1091, %v1090
      %v1278 = vpack.c.b16 %v1093, %v1092
      %v1279 = vpack.c.b16 %v1095, %v1094
      %v1280 = vpack.c.b16 %v1097, %v1096
      %v1281 = vpack.c.b16 %v1099, %v1098
      %v1282 = vpack.c.b16 %v1101, %v1100
      %v1283 = vpack.c.b16 %v1103, %v1102
      %v1284 = vpack.c.b16 %v1105, %v1104
      %v1285 = vpack.c.b16 %v1107, %v1106
      %v1286 = vpack.c.b16 %v1109, %v1108
      %v1287 = vpack.c.b16 %v1111, %v1110
      %v1288 = vpack.c.b16 %v1113, %v1112
      %v1289 = vpack.c.b16 %v1115, %v1114
      %v1290 = vpack.c.b16 %v1117, %v1116
      %v1291 = vpack.c.b16 %v1119, %v1118
      %v1292 = vpack.c.b16 %v1121, %v1120
      %v1293 = vpack.c.b16 %v1123, %v1122
      %v1294 = vpack.c.b16 %v1125, %v1124
      %v1295 = vpack.c.b16 %v1127, %v1126
      %v1296 = vpack.c.b16 %v1129, %v1128
      %v1297 = vpack.c.b16 %v1131, %v1130
      %v1298 = vpack.c.b16 %v1133, %v1132
      %v1299 = vpack.c.b16 %v1135, %v1134
      %v1300 = vpack.c.b16 %v1137, %v1136
      %v1301 = vpack.c.b16 %v1139, %v1138
      %v1302 = vpack.c.b16 %v1141, %v1140
      %v1303 = vpack.c.b16 %v1143, %v1142
      %v1304 = vpack.c.b16 %v1145, %v1144
      %v1305 = vpack.c.b16 %v1147, %v1146
      %v1306 = vpack.c.b16 %v1149, %v1148
      %v1307 = vpack.c.b16 %v1151, %v1150
      %v1308 = vpack.c.b16 %v1153, %v1152
      %v1309 = vpack.c.b16 %v1155, %v1154
      %v1310 = vpack.c.b16 %v1157, %v1156
      %v1311 = vpack.c.b16 %v1159, %v1158
      %v1312 = vpack.c.b16 %v1161, %v1160
      %v1313 = vpack.c.b16 %v1163, %v1162
      %v1314 = vpack.c.b16 %v1165, %v1164
      %v1315 = vpack.c.b16 %v1167, %v1166
      %v1316 = vpack.c.b16 %v1169, %v1168
      %v1317 = vpack.c.b16 %v1171, %v1170
      %v1318 = vpack.c.b16 %v1173, %v1172
      %v1319 = vpack.c.b16 %v1175, %v1174
      %v1320 = vpack.c.b16 %v1177, %v1176
      %v1321 = vpack.c.b16 %v1179, %v1178
      %v1322 = vpack.c.b16 %v1181, %v1180
      %v1323 = vpack.c.b16 %v1183, %v1182
      %v1324 = vpack.c.b16 %v1185, %v1184
      %v1325 = vpack.c.b16 %v1187, %v1186
      %v1326 = vpack.c.b16 %v1189, %v1188
      %v1327 = vpack.c.b16 %v1191, %v1190
      %v1328 = vpack.c.b16 %v1193, %v1192
      %v1329 = vpack.c.b16 %v1195, %v1194
      %v1330 = vpack.c.b16 %v1197, %v1196
      %v1331 = vpack.c.b16 %v1199, %v1198
      %v1332 = vpack.c.b16 %v1201, %v1200
      %v1333 = vpack.c.b16 %v1203, %v1202
      %v1334 = vpack.c.b16 %v1205, %v1204
      %v1335 = vpack.c.b16 %v1207, %v1206
      %v1336 = vpack.c.b16 %v1209, %v1208
      %v1337 = vpack.c.b16 %v1211, %v1210
      %v1338 = vpack.c.b16 %v1213, %v1212
      %v1339 = vpack.c.b16 %v1215, %v1214
      %v1340 = vpack.c.b16 %v1217, %v1216
      %v1341 = vpack.c.b16 %v1219, %v1218
      %v1342 = vpack.c.b16 %v1221, %v1220
      %v1343 = vpack.c.b16 %v1223, %v1222
      %v1344 = vpack.c.b16 %v1225, %v1224
      %v1345 = vpack.c.b16 %v1227, %v1226
      %v1346 = vpack.c.b16 %v1229, %v1228
      %v1347 = vpack.c.b16 %v1231, %v1230
      %v1348 = vpack.c.b16 %v1233, %v1232
      %v1349 = vpack.c.b16 %v1235, %v1234
      %v1350 = vpack.c.b16 %v1237, %v1236
      %v1351 = vpack.c.b16 %v1239, %v1238
      %v1352 = vpack.c.b16 %v1241, %v1240
      %v1353 = vpack.c.b16 %v1243, %v1242
      %v1354 = vpack.c.b16 %v1245, %v1244
      %v1355 = vpack.c.b16 %v1247, %v1246
      %v1356 = vpack.c.b16 %v1249, %v1248
      %v1357 = vpack.c.b16 %v1251, %v1250
      %v1358 = vpack.c.b16 %v1253, %v1252
      %v1359 = vpack.c.b16 %v1255, %v1254
      %1464 = vmatprep.subr.bf16.mxu0 0
      %1465 = vmatpush1.bf16.msra.mxu0 %v1263
      %1466 = vmatprep.subr.bf16.mxu0 0
      %1467 = vmatpush1.bf16.msra.mxu0 %v1262
      %1468 = vmatprep.subr.bf16.mxu0 0
      %1469 = vmatpush1.bf16.msra.mxu0 %v1261
      %1470 = vmatprep.subr.bf16.mxu0 0
      %1471 = vmatpush1.bf16.msra.mxu0 %v1260
      %1472 = vmatprep.subr.bf16.mxu0 0
      %1473 = vmatpush1.bf16.msra.mxu0 %v1259
      %1474 = vmatprep.subr.bf16.mxu0 0
      %1475 = vmatpush1.bf16.msra.mxu0 %v1258
      %1476 = vmatprep.subr.bf16.mxu0 0
      %1477 = vmatpush1.bf16.msra.mxu0 %v1257
      %1478 = vmatprep.subr.bf16.mxu0 0
      %1479 = vmatpush1.bf16.msra.mxu0 %v1256
      %1480 = vmatprep.subr.bf16.mxu0 0
      %1481 = vmatpush2.bf16.msra.mxu0 %v1271
      %1482 = vmatprep.subr.bf16.mxu0 0
      %1483 = vmatpush2.bf16.msra.mxu0 %v1270
      %1484 = vmatprep.subr.bf16.mxu0 0
      %1485 = vmatpush2.bf16.msra.mxu0 %v1269
      %1486 = vmatprep.subr.bf16.mxu0 0
      %1487 = vmatpush2.bf16.msra.mxu0 %v1268
      %1488 = vmatprep.subr.bf16.mxu0 0
      %1489 = vmatpush2.bf16.msra.mxu0 %v1267
      %1490 = vmatprep.subr.bf16.mxu0 0
      %1491 = vmatpush2.bf16.msra.mxu0 %v1266
      %1492 = vmatprep.subr.bf16.mxu0 0
      %1493 = vmatpush2.bf16.msra.mxu0 %v1265
      %1494 = vmatprep.subr.bf16.mxu0 0
      %1495 = vmatpush2.bf16.msra.mxu0 %v1264
      %1496 = vmatprep.mubr.bf16.mxu0 %v685
      %1497 = vmatmul.mubr.bf16.gmra.mxu0 %v684
      %v1498 = vpop.f32.mrf.mxu0
      %v1499 = vadd.f32 %v462, %v1498
      %v1500 = vpop.f32.mrf.mxu0
      %v1501 = vpop.f32.mrf.mxu0
      %v1502 = vadd.f32 %v462, %v1501
      %v1503 = vpop.f32.mrf.mxu0
      %1504 = vmatprep.mubr.bf16.mxu0 %v698
      %1505 = vmatmul.mubr.bf16.gmra.mxu0 %v697
      %v1506 = vpop.f32.mrf.mxu0
      %v1507 = vadd.f32 %v462, %v1506
      %v1508 = vpop.f32.mrf.mxu0
      %v1509 = vpop.f32.mrf.mxu0
      %v1510 = vadd.f32 %v462, %v1509
      %v1511 = vpop.f32.mrf.mxu0
      %1512 = vmatprep.mubr.bf16.mxu0 %v711
      %1513 = vmatmul.mubr.bf16.gmra.mxu0 %v710
      %v1514 = vpop.f32.mrf.mxu0
      %v1515 = vadd.f32 %v462, %v1514
      %v1516 = vpop.f32.mrf.mxu0
      %v1517 = vpop.f32.mrf.mxu0
      %v1518 = vadd.f32 %v462, %v1517
      %v1519 = vpop.f32.mrf.mxu0
      %1520 = vmatprep.mubr.bf16.mxu0 %v724
      %1521 = vmatmul.mubr.bf16.gmra.mxu0 %v723
      %v1522 = vpop.f32.mrf.mxu0
      %v1523 = vadd.f32 %v462, %v1522
      %v1524 = vpop.f32.mrf.mxu0
      %v1525 = vpop.f32.mrf.mxu0
      %v1526 = vadd.f32 %v462, %v1525
      %v1527 = vpop.f32.mrf.mxu0
      %1528 = vmatprep.mubr.bf16.mxu0 %v737
      %1529 = vmatmul.mubr.bf16.gmra.mxu0 %v736
      %v1530 = vpop.f32.mrf.mxu0
      %v1531 = vadd.f32 %v462, %v1530
      %v1532 = vpop.f32.mrf.mxu0
      %v1533 = vpop.f32.mrf.mxu0
      %v1534 = vadd.f32 %v462, %v1533
      %v1535 = vpop.f32.mrf.mxu0
      %1536 = vmatprep.mubr.bf16.mxu0 %v750
      %1537 = vmatmul.mubr.bf16.gmra.mxu0 %v749
      %v1538 = vpop.f32.mrf.mxu0
      %v1539 = vadd.f32 %v462, %v1538
      %v1540 = vpop.f32.mrf.mxu0
      %v1541 = vpop.f32.mrf.mxu0
      %v1542 = vpop.f32.mrf.mxu0
      %1543 = vdwg.mxu0
      %1544 = vmatprep.subr.bf16.mxu0 0
      %1545 = vmatpush1.bf16.msra.mxu0 %v1279
      %1546 = vmatprep.subr.bf16.mxu0 0
      %1547 = vmatpush1.bf16.msra.mxu0 %v1278
      %1548 = vmatprep.subr.bf16.mxu0 0
      %1549 = vmatpush1.bf16.msra.mxu0 %v1277
      %1550 = vmatprep.subr.bf16.mxu0 0
      %1551 = vmatpush1.bf16.msra.mxu0 %v1276
      %1552 = vmatprep.subr.bf16.mxu0 0
      %1553 = vmatpush1.bf16.msra.mxu0 %v1275
      %1554 = vmatprep.subr.bf16.mxu0 0
      %1555 = vmatpush1.bf16.msra.mxu0 %v1274
      %1556 = vmatprep.subr.bf16.mxu0 0
      %1557 = vmatpush1.bf16.msra.mxu0 %v1273
      %1558 = vmatprep.subr.bf16.mxu0 0
      %1559 = vmatpush1.bf16.msra.mxu0 %v1272
      %1560 = vmatprep.subr.bf16.mxu0 0
      %1561 = vmatpush2.bf16.msra.mxu0 %v1287
      %1562 = vmatprep.subr.bf16.mxu0 0
      %1563 = vmatpush2.bf16.msra.mxu0 %v1286
      %1564 = vmatprep.subr.bf16.mxu0 0
      %1565 = vmatpush2.bf16.msra.mxu0 %v1285
      %1566 = vmatprep.subr.bf16.mxu0 0
      %1567 = vmatpush2.bf16.msra.mxu0 %v1284
      %1568 = vmatprep.subr.bf16.mxu0 0
      %1569 = vmatpush2.bf16.msra.mxu0 %v1283
      %1570 = vmatprep.subr.bf16.mxu0 0
      %1571 = vmatpush2.bf16.msra.mxu0 %v1282
      %1572 = vmatprep.subr.bf16.mxu0 0
      %1573 = vmatpush2.bf16.msra.mxu0 %v1281
      %1574 = vmatprep.subr.bf16.mxu0 0
      %1575 = vmatpush2.bf16.msra.mxu0 %v1280
      %1576 = vmatprep.mubr.bf16.mxu0 %v687
      %1577 = vmatmul.mubr.bf16.gmra.mxu0 %v686
      %v1578 = vpop.f32.mrf.mxu0
      %v1579 = vadd.f32 %v1499, %v1578
      %v1580 = vpop.f32.mrf.mxu0
      %v1581 = vpop.f32.mrf.mxu0
      %v1582 = vadd.f32 %v1502, %v1581
      %v1583 = vpop.f32.mrf.mxu0
      %1584 = vmatprep.mubr.bf16.mxu0 %v700
      %1585 = vmatmul.mubr.bf16.gmra.mxu0 %v699
      %v1586 = vpop.f32.mrf.mxu0
      %v1587 = vadd.f32 %v1507, %v1586
      %v1588 = vpop.f32.mrf.mxu0
      %v1589 = vpop.f32.mrf.mxu0
      %v1590 = vadd.f32 %v1510, %v1589
      %v1591 = vpop.f32.mrf.mxu0
      %1592 = vmatprep.mubr.bf16.mxu0 %v713
      %1593 = vmatmul.mubr.bf16.gmra.mxu0 %v712
      %v1594 = vpop.f32.mrf.mxu0
      %v1595 = vadd.f32 %v1515, %v1594
      %v1596 = vpop.f32.mrf.mxu0
      %v1597 = vpop.f32.mrf.mxu0
      %v1598 = vadd.f32 %v1518, %v1597
      %v1599 = vpop.f32.mrf.mxu0
      %1600 = vmatprep.mubr.bf16.mxu0 %v726
      %1601 = vmatmul.mubr.bf16.gmra.mxu0 %v725
      %v1602 = vpop.f32.mrf.mxu0
      %v1603 = vadd.f32 %v1523, %v1602
      %v1604 = vpop.f32.mrf.mxu0
      %v1605 = vpop.f32.mrf.mxu0
      %v1606 = vadd.f32 %v1526, %v1605
      %v1607 = vpop.f32.mrf.mxu0
      %1608 = vmatprep.mubr.bf16.mxu0 %v739
      %1609 = vmatmul.mubr.bf16.gmra.mxu0 %v738
      %v1610 = vpop.f32.mrf.mxu0
      %v1611 = vadd.f32 %v1531, %v1610
      %v1612 = vpop.f32.mrf.mxu0
      %v1613 = vpop.f32.mrf.mxu0
      %v1614 = vadd.f32 %v1534, %v1613
      %v1615 = vpop.f32.mrf.mxu0
      %1616 = vmatprep.mubr.bf16.mxu0 %v752
      %1617 = vmatmul.mubr.bf16.gmra.mxu0 %v751
      %v1618 = vpop.f32.mrf.mxu0
      %v1619 = vadd.f32 %v1539, %v1618
      %v1620 = vpop.f32.mrf.mxu0
      %v1621 = vpop.f32.mrf.mxu0
      %v1622 = vpop.f32.mrf.mxu0
      %1623 = vdwg.mxu0
      %1624 = vmatprep.subr.bf16.mxu0 0
      %1625 = vmatpush1.bf16.msra.mxu0 %v1295
      %1626 = vmatprep.subr.bf16.mxu0 0
      %1627 = vmatpush1.bf16.msra.mxu0 %v1294
      %1628 = vmatprep.subr.bf16.mxu0 0
      %1629 = vmatpush1.bf16.msra.mxu0 %v1293
      %1630 = vmatprep.subr.bf16.mxu0 0
      %1631 = vmatpush1.bf16.msra.mxu0 %v1292
      %1632 = vmatprep.subr.bf16.mxu0 0
      %1633 = vmatpush1.bf16.msra.mxu0 %v1291
      %1634 = vmatprep.subr.bf16.mxu0 0
      %1635 = vmatpush1.bf16.msra.mxu0 %v1290
      %1636 = vmatprep.subr.bf16.mxu0 0
      %1637 = vmatpush1.bf16.msra.mxu0 %v1289
      %1638 = vmatprep.subr.bf16.mxu0 0
      %1639 = vmatpush1.bf16.msra.mxu0 %v1288
      %1640 = vmatprep.subr.bf16.mxu0 0
      %1641 = vmatpush2.bf16.msra.mxu0 %v1303
      %1642 = vmatprep.subr.bf16.mxu0 0
      %1643 = vmatpush2.bf16.msra.mxu0 %v1302
      %1644 = vmatprep.subr.bf16.mxu0 0
      %1645 = vmatpush2.bf16.msra.mxu0 %v1301
      %1646 = vmatprep.subr.bf16.mxu0 0
      %1647 = vmatpush2.bf16.msra.mxu0 %v1300
      %1648 = vmatprep.subr.bf16.mxu0 0
      %1649 = vmatpush2.bf16.msra.mxu0 %v1299
      %1650 = vmatprep.subr.bf16.mxu0 0
      %1651 = vmatpush2.bf16.msra.mxu0 %v1298
      %1652 = vmatprep.subr.bf16.mxu0 0
      %1653 = vmatpush2.bf16.msra.mxu0 %v1297
      %1654 = vmatprep.subr.bf16.mxu0 0
      %1655 = vmatpush2.bf16.msra.mxu0 %v1296
      %1656 = vmatprep.mubr.bf16.mxu0 %v689
      %1657 = vmatmul.mubr.bf16.gmra.mxu0 %v688
      %v1658 = vpop.f32.mrf.mxu0
      %v1659 = vadd.f32 %v1579, %v1658
      %v1660 = vpop.f32.mrf.mxu0
      %v1661 = vpop.f32.mrf.mxu0
      %v1662 = vadd.f32 %v1582, %v1661
      %v1663 = vpop.f32.mrf.mxu0
      %1664 = vmatprep.mubr.bf16.mxu0 %v702
      %1665 = vmatmul.mubr.bf16.gmra.mxu0 %v701
      %v1666 = vpop.f32.mrf.mxu0
      %v1667 = vadd.f32 %v1587, %v1666
      %v1668 = vpop.f32.mrf.mxu0
      %v1669 = vpop.f32.mrf.mxu0
      %v1670 = vadd.f32 %v1590, %v1669
      %v1671 = vpop.f32.mrf.mxu0
      %1672 = vmatprep.mubr.bf16.mxu0 %v715
      %1673 = vmatmul.mubr.bf16.gmra.mxu0 %v714
      %v1674 = vpop.f32.mrf.mxu0
      %v1675 = vadd.f32 %v1595, %v1674
      %v1676 = vpop.f32.mrf.mxu0
      %v1677 = vpop.f32.mrf.mxu0
      %v1678 = vadd.f32 %v1598, %v1677
      %v1679 = vpop.f32.mrf.mxu0
      %1680 = vmatprep.mubr.bf16.mxu0 %v728
      %1681 = vmatmul.mubr.bf16.gmra.mxu0 %v727
      %v1682 = vpop.f32.mrf.mxu0
      %v1683 = vadd.f32 %v1603, %v1682
      %v1684 = vpop.f32.mrf.mxu0
      %v1685 = vpop.f32.mrf.mxu0
      %v1686 = vadd.f32 %v1606, %v1685
      %v1687 = vpop.f32.mrf.mxu0
      %1688 = vmatprep.mubr.bf16.mxu0 %v741
      %1689 = vmatmul.mubr.bf16.gmra.mxu0 %v740
      %v1690 = vpop.f32.mrf.mxu0
      %v1691 = vadd.f32 %v1611, %v1690
      %v1692 = vpop.f32.mrf.mxu0
      %v1693 = vpop.f32.mrf.mxu0
      %v1694 = vadd.f32 %v1614, %v1693
      %v1695 = vpop.f32.mrf.mxu0
      %1696 = vmatprep.mubr.bf16.mxu0 %v754
      %1697 = vmatmul.mubr.bf16.gmra.mxu0 %v753
      %v1698 = vpop.f32.mrf.mxu0
      %v1699 = vadd.f32 %v1619, %v1698
      %v1700 = vpop.f32.mrf.mxu0
      %v1701 = vpop.f32.mrf.mxu0
      %v1702 = vpop.f32.mrf.mxu0
      %1703 = vdwg.mxu0
      %1704 = vmatprep.subr.bf16.mxu0 0
      %1705 = vmatpush1.bf16.msra.mxu0 %v1311
      %1706 = vmatprep.subr.bf16.mxu0 0
      %1707 = vmatpush1.bf16.msra.mxu0 %v1310
      %1708 = vmatprep.subr.bf16.mxu0 0
      %1709 = vmatpush1.bf16.msra.mxu0 %v1309
      %1710 = vmatprep.subr.bf16.mxu0 0
      %1711 = vmatpush1.bf16.msra.mxu0 %v1308
      %1712 = vmatprep.subr.bf16.mxu0 0
      %1713 = vmatpush1.bf16.msra.mxu0 %v1307
      %1714 = vmatprep.subr.bf16.mxu0 0
      %1715 = vmatpush1.bf16.msra.mxu0 %v1306
      %1716 = vmatprep.subr.bf16.mxu0 0
      %1717 = vmatpush1.bf16.msra.mxu0 %v1305
      %1718 = vmatprep.subr.bf16.mxu0 0
      %1719 = vmatpush1.bf16.msra.mxu0 %v1304
      %1720 = vmatprep.subr.bf16.mxu0 0
      %1721 = vmatpush2.bf16.msra.mxu0 %v1319
      %1722 = vmatprep.subr.bf16.mxu0 0
      %1723 = vmatpush2.bf16.msra.mxu0 %v1318
      %1724 = vmatprep.subr.bf16.mxu0 0
      %1725 = vmatpush2.bf16.msra.mxu0 %v1317
      %1726 = vmatprep.subr.bf16.mxu0 0
      %1727 = vmatpush2.bf16.msra.mxu0 %v1316
      %1728 = vmatprep.subr.bf16.mxu0 0
      %1729 = vmatpush2.bf16.msra.mxu0 %v1315
      %1730 = vmatprep.subr.bf16.mxu0 0
      %1731 = vmatpush2.bf16.msra.mxu0 %v1314
      %1732 = vmatprep.subr.bf16.mxu0 0
      %1733 = vmatpush2.bf16.msra.mxu0 %v1313
      %1734 = vmatprep.subr.bf16.mxu0 0
      %1735 = vmatpush2.bf16.msra.mxu0 %v1312
      %1736 = vmatprep.mubr.bf16.mxu0 %v691
      %1737 = vmatmul.mubr.bf16.gmra.mxu0 %v690
      %v1738 = vpop.f32.mrf.mxu0
      %v1739 = vadd.f32 %v1659, %v1738
      %v1740 = vpop.f32.mrf.mxu0
      %v1741 = vpop.f32.mrf.mxu0
      %v1742 = vadd.f32 %v1662, %v1741
      %v1743 = vpop.f32.mrf.mxu0
      %1744 = vmatprep.mubr.bf16.mxu0 %v704
      %1745 = vmatmul.mubr.bf16.gmra.mxu0 %v703
      %v1746 = vpop.f32.mrf.mxu0
      %v1747 = vadd.f32 %v1667, %v1746
      %v1748 = vpop.f32.mrf.mxu0
      %v1749 = vpop.f32.mrf.mxu0
      %v1750 = vadd.f32 %v1670, %v1749
      %v1751 = vpop.f32.mrf.mxu0
      %1752 = vmatprep.mubr.bf16.mxu0 %v717
      %1753 = vmatmul.mubr.bf16.gmra.mxu0 %v716
      %v1754 = vpop.f32.mrf.mxu0
      %v1755 = vadd.f32 %v1675, %v1754
      %v1756 = vpop.f32.mrf.mxu0
      %v1757 = vpop.f32.mrf.mxu0
      %v1758 = vadd.f32 %v1678, %v1757
      %v1759 = vpop.f32.mrf.mxu0
      %1760 = vmatprep.mubr.bf16.mxu0 %v730
      %1761 = vmatmul.mubr.bf16.gmra.mxu0 %v729
      %v1762 = vpop.f32.mrf.mxu0
      %v1763 = vadd.f32 %v1683, %v1762
      %v1764 = vpop.f32.mrf.mxu0
      %v1765 = vpop.f32.mrf.mxu0
      %v1766 = vadd.f32 %v1686, %v1765
      %v1767 = vpop.f32.mrf.mxu0
      %1768 = vmatprep.mubr.bf16.mxu0 %v743
      %1769 = vmatmul.mubr.bf16.gmra.mxu0 %v742
      %v1770 = vpop.f32.mrf.mxu0
      %v1771 = vadd.f32 %v1691, %v1770
      %v1772 = vpop.f32.mrf.mxu0
      %v1773 = vpop.f32.mrf.mxu0
      %v1774 = vadd.f32 %v1694, %v1773
      %v1775 = vpop.f32.mrf.mxu0
      %1776 = vmatprep.mubr.bf16.mxu0 %v756
      %1777 = vmatmul.mubr.bf16.gmra.mxu0 %v755
      %v1778 = vpop.f32.mrf.mxu0
      %v1779 = vadd.f32 %v1699, %v1778
      %v1780 = vpop.f32.mrf.mxu0
      %v1781 = vpop.f32.mrf.mxu0
      %v1782 = vpop.f32.mrf.mxu0
      %1783 = vdwg.mxu0
      %1784 = vmatprep.subr.bf16.mxu0 0
      %1785 = vmatpush1.bf16.msra.mxu0 %v1327
      %1786 = vmatprep.subr.bf16.mxu0 0
      %1787 = vmatpush1.bf16.msra.mxu0 %v1326
      %1788 = vmatprep.subr.bf16.mxu0 0
      %1789 = vmatpush1.bf16.msra.mxu0 %v1325
      %1790 = vmatprep.subr.bf16.mxu0 0
      %1791 = vmatpush1.bf16.msra.mxu0 %v1324
      %1792 = vmatprep.subr.bf16.mxu0 0
      %1793 = vmatpush1.bf16.msra.mxu0 %v1323
      %1794 = vmatprep.subr.bf16.mxu0 0
      %1795 = vmatpush1.bf16.msra.mxu0 %v1322
      %1796 = vmatprep.subr.bf16.mxu0 0
      %1797 = vmatpush1.bf16.msra.mxu0 %v1321
      %1798 = vmatprep.subr.bf16.mxu0 0
      %1799 = vmatpush1.bf16.msra.mxu0 %v1320
      %1800 = vmatprep.subr.bf16.mxu0 0
      %1801 = vmatpush2.bf16.msra.mxu0 %v1335
      %1802 = vmatprep.subr.bf16.mxu0 0
      %1803 = vmatpush2.bf16.msra.mxu0 %v1334
      %1804 = vmatprep.subr.bf16.mxu0 0
      %1805 = vmatpush2.bf16.msra.mxu0 %v1333
      %1806 = vmatprep.subr.bf16.mxu0 0
      %1807 = vmatpush2.bf16.msra.mxu0 %v1332
      %1808 = vmatprep.subr.bf16.mxu0 0
      %1809 = vmatpush2.bf16.msra.mxu0 %v1331
      %1810 = vmatprep.subr.bf16.mxu0 0
      %1811 = vmatpush2.bf16.msra.mxu0 %v1330
      %1812 = vmatprep.subr.bf16.mxu0 0
      %1813 = vmatpush2.bf16.msra.mxu0 %v1329
      %1814 = vmatprep.subr.bf16.mxu0 0
      %1815 = vmatpush2.bf16.msra.mxu0 %v1328
      %1816 = vmatprep.mubr.bf16.mxu0 %v693
      %1817 = vmatmul.mubr.bf16.gmra.mxu0 %v692
      %v1818 = vpop.f32.mrf.mxu0
      %v1819 = vadd.f32 %v1739, %v1818
      %v1820 = vpop.f32.mrf.mxu0
      %v1821 = vpop.f32.mrf.mxu0
      %v1822 = vadd.f32 %v1742, %v1821
      %v1823 = vpop.f32.mrf.mxu0
      %1824 = vmatprep.mubr.bf16.mxu0 %v706
      %1825 = vmatmul.mubr.bf16.gmra.mxu0 %v705
      %v1826 = vpop.f32.mrf.mxu0
      %v1827 = vadd.f32 %v1747, %v1826
      %v1828 = vpop.f32.mrf.mxu0
      %v1829 = vpop.f32.mrf.mxu0
      %v1830 = vadd.f32 %v1750, %v1829
      %v1831 = vpop.f32.mrf.mxu0
      %1832 = vmatprep.mubr.bf16.mxu0 %v719
      %1833 = vmatmul.mubr.bf16.gmra.mxu0 %v718
      %v1834 = vpop.f32.mrf.mxu0
      %v1835 = vadd.f32 %v1755, %v1834
      %v1836 = vpop.f32.mrf.mxu0
      %v1837 = vpop.f32.mrf.mxu0
      %v1838 = vadd.f32 %v1758, %v1837
      %v1839 = vpop.f32.mrf.mxu0
      %1840 = vmatprep.mubr.bf16.mxu0 %v732
      %1841 = vmatmul.mubr.bf16.gmra.mxu0 %v731
      %v1842 = vpop.f32.mrf.mxu0
      %v1843 = vadd.f32 %v1763, %v1842
      %v1844 = vpop.f32.mrf.mxu0
      %v1845 = vpop.f32.mrf.mxu0
      %v1846 = vadd.f32 %v1766, %v1845
      %v1847 = vpop.f32.mrf.mxu0
      %1848 = vmatprep.mubr.bf16.mxu0 %v745
      %1849 = vmatmul.mubr.bf16.gmra.mxu0 %v744
      %v1850 = vpop.f32.mrf.mxu0
      %v1851 = vadd.f32 %v1771, %v1850
      %v1852 = vpop.f32.mrf.mxu0
      %v1853 = vpop.f32.mrf.mxu0
      %v1854 = vadd.f32 %v1774, %v1853
      %v1855 = vpop.f32.mrf.mxu0
      %1856 = vmatprep.mubr.bf16.mxu0 %v758
      %1857 = vmatmul.mubr.bf16.gmra.mxu0 %v757
      %v1858 = vpop.f32.mrf.mxu0
      %v1859 = vadd.f32 %v1779, %v1858
      %v1860 = vpop.f32.mrf.mxu0
      %v1861 = vpop.f32.mrf.mxu0
      %v1862 = vpop.f32.mrf.mxu0
      %1863 = vdwg.mxu0
      %1864 = vmatprep.subr.bf16.mxu0 0
      %1865 = vmatpush1.bf16.msra.mxu0 %v1343
      %1866 = vmatprep.subr.bf16.mxu0 0
      %1867 = vmatpush1.bf16.msra.mxu0 %v1342
      %1868 = vmatprep.subr.bf16.mxu0 0
      %1869 = vmatpush1.bf16.msra.mxu0 %v1341
      %1870 = vmatprep.subr.bf16.mxu0 0
      %1871 = vmatpush1.bf16.msra.mxu0 %v1340
      %1872 = vmatprep.subr.bf16.mxu0 0
      %1873 = vmatpush1.bf16.msra.mxu0 %v1339
      %1874 = vmatprep.subr.bf16.mxu0 0
      %1875 = vmatpush1.bf16.msra.mxu0 %v1338
      %1876 = vmatprep.subr.bf16.mxu0 0
      %1877 = vmatpush1.bf16.msra.mxu0 %v1337
      %1878 = vmatprep.subr.bf16.mxu0 0
      %1879 = vmatpush1.bf16.msra.mxu0 %v1336
      %1880 = vmatprep.subr.bf16.mxu0 0
      %1881 = vmatpush2.bf16.msra.mxu0 %v1351
      %1882 = vmatprep.subr.bf16.mxu0 0
      %1883 = vmatpush2.bf16.msra.mxu0 %v1350
      %1884 = vmatprep.subr.bf16.mxu0 0
      %1885 = vmatpush2.bf16.msra.mxu0 %v1349
      %1886 = vmatprep.subr.bf16.mxu0 0
      %1887 = vmatpush2.bf16.msra.mxu0 %v1348
      %1888 = vmatprep.subr.bf16.mxu0 0
      %1889 = vmatpush2.bf16.msra.mxu0 %v1347
      %1890 = vmatprep.subr.bf16.mxu0 0
      %1891 = vmatpush2.bf16.msra.mxu0 %v1346
      %1892 = vmatprep.subr.bf16.mxu0 0
      %1893 = vmatpush2.bf16.msra.mxu0 %v1345
      %1894 = vmatprep.subr.bf16.mxu0 0
      %1895 = vmatpush2.bf16.msra.mxu0 %v1344
      %1896 = vmatprep.mubr.bf16.mxu0 %v695
      %1897 = vmatmul.mubr.bf16.gmra.mxu0 %v694
      %v1898 = vpop.f32.mrf.mxu0
      %v1899 = vadd.f32 %v1819, %v1898
      %v1900 = vpop.f32.mrf.mxu0
      %v1901 = vpop.f32.mrf.mxu0
      %v1902 = vadd.f32 %v1822, %v1901
      %v1903 = vpop.f32.mrf.mxu0
      %1904 = vmatprep.mubr.bf16.mxu0 %v708
      %1905 = vmatmul.mubr.bf16.gmra.mxu0 %v707
      %v1906 = vpop.f32.mrf.mxu0
      %v1907 = vadd.f32 %v1827, %v1906
      %v1908 = vpop.f32.mrf.mxu0
      %v1909 = vpop.f32.mrf.mxu0
      %v1910 = vadd.f32 %v1830, %v1909
      %v1911 = vpop.f32.mrf.mxu0
      %1912 = vmatprep.mubr.bf16.mxu0 %v721
      %1913 = vmatmul.mubr.bf16.gmra.mxu0 %v720
      %v1914 = vpop.f32.mrf.mxu0
      %v1915 = vadd.f32 %v1835, %v1914
      %v1916 = vpop.f32.mrf.mxu0
      %v1917 = vpop.f32.mrf.mxu0
      %v1918 = vadd.f32 %v1838, %v1917
      %v1919 = vpop.f32.mrf.mxu0
      %1920 = vmatprep.mubr.bf16.mxu0 %v734
      %1921 = vmatmul.mubr.bf16.gmra.mxu0 %v733
      %v1922 = vpop.f32.mrf.mxu0
      %v1923 = vadd.f32 %v1843, %v1922
      %v1924 = vpop.f32.mrf.mxu0
      %v1925 = vpop.f32.mrf.mxu0
      %v1926 = vadd.f32 %v1846, %v1925
      %v1927 = vpop.f32.mrf.mxu0
      %1928 = vmatprep.mubr.bf16.mxu0 %v747
      %1929 = vmatmul.mubr.bf16.gmra.mxu0 %v746
      %v1930 = vpop.f32.mrf.mxu0
      %v1931 = vadd.f32 %v1851, %v1930
      %v1932 = vpop.f32.mrf.mxu0
      %v1933 = vpop.f32.mrf.mxu0
      %v1934 = vadd.f32 %v1854, %v1933
      %v1935 = vpop.f32.mrf.mxu0
      %1936 = vmatprep.mubr.bf16.mxu0 %v760
      %1937 = vmatmul.mubr.bf16.gmra.mxu0 %v759
      %v1938 = vpop.f32.mrf.mxu0
      %v1939 = vadd.f32 %v1859, %v1938
      %v1940 = vpop.f32.mrf.mxu0
      %v1941 = vpop.f32.mrf.mxu0
      %v1942 = vpop.f32.mrf.mxu0
      %1943 = vdwg.mxu0
      %1944 = vmatprep.subr.bf16.mxu0 0
      %1945 = vmatpush1.bf16.msra.mxu0 %v1359
      %1946 = vmatprep.subr.bf16.mxu0 0
      %1947 = vmatpush1.bf16.msra.mxu0 %v1358
      %1948 = vmatprep.subr.bf16.mxu0 0
      %1949 = vmatpush1.bf16.msra.mxu0 %v1357
      %1950 = vmatprep.subr.bf16.mxu0 0
      %1951 = vmatpush1.bf16.msra.mxu0 %v1356
      %1952 = vmatprep.subr.bf16.mxu0 0
      %1953 = vmatpush1.bf16.msra.mxu0 %v1355
      %1954 = vmatprep.subr.bf16.mxu0 0
      %1955 = vmatpush1.bf16.msra.mxu0 %v1354
      %1956 = vmatprep.subr.bf16.mxu0 0
      %1957 = vmatpush1.bf16.msra.mxu0 %v1353
      %1958 = vmatprep.subr.bf16.mxu0 0
      %1959 = vmatpush1.bf16.msra.mxu0 %v1352
      %1960 = vmatprep.subr.bf16.mxu0 0
      %1961 = vmatpush2.bf16.msra.mxu0 0
      %1962 = vmatprep.subr.bf16.mxu0 0
      %1963 = vmatpush2.bf16.msra.mxu0 0
      %1964 = vmatprep.subr.bf16.mxu0 0
      %1965 = vmatpush2.bf16.msra.mxu0 0
      %1966 = vmatprep.subr.bf16.mxu0 0
      %1967 = vmatpush2.bf16.msra.mxu0 0
      %1968 = vmatprep.subr.bf16.mxu0 0
      %1969 = vmatpush2.bf16.msra.mxu0 0
      %1970 = vmatprep.subr.bf16.mxu0 0
      %1971 = vmatpush2.bf16.msra.mxu0 0
      %1972 = vmatprep.subr.bf16.mxu0 0
      %1973 = vmatpush2.bf16.msra.mxu0 0
      %1974 = vmatprep.subr.bf16.mxu0 0
      %1975 = vmatpush2.bf16.msra.mxu0 0
      %1976 = vmatprep.mubr.bf16.mxu0 0
      %1977 = vmatmul.mubr.bf16.gmra.mxu0 %v696
      %v1978 = vpop.f32.mrf.mxu0
      %v1979 = vadd.f32 %v1899, %v1978
      %v1980 = vpop.f32.mrf.mxu0
      %v1981 = vpop.f32.mrf.mxu0
      %v1982 = vadd.f32 %v1902, %v1981
      %v1983 = vpop.f32.mrf.mxu0
      %1984 = vmatprep.mubr.bf16.mxu0 0
      %1985 = vmatmul.mubr.bf16.gmra.mxu0 %v709
      %v1986 = vpop.f32.mrf.mxu0
      %v1987 = vadd.f32 %v1907, %v1986
      %v1988 = vpop.f32.mrf.mxu0
      %v1989 = vpop.f32.mrf.mxu0
      %v1990 = vadd.f32 %v1910, %v1989
      %v1991 = vpop.f32.mrf.mxu0
      %1992 = vmatprep.mubr.bf16.mxu0 0
      %1993 = vmatmul.mubr.bf16.gmra.mxu0 %v722
      %v1994 = vpop.f32.mrf.mxu0
      %v1995 = vadd.f32 %v1915, %v1994
      %v1996 = vpop.f32.mrf.mxu0
      %v1997 = vpop.f32.mrf.mxu0
      %v1998 = vadd.f32 %v1918, %v1997
      %v1999 = vpop.f32.mrf.mxu0
      %2000 = vmatprep.mubr.bf16.mxu0 0
      %2001 = vmatmul.mubr.bf16.gmra.mxu0 %v735
      %v2002 = vpop.f32.mrf.mxu0
      %v2003 = vadd.f32 %v1923, %v2002
      %v2004 = vpop.f32.mrf.mxu0
      %v2005 = vpop.f32.mrf.mxu0
      %v2006 = vadd.f32 %v1926, %v2005
      %v2007 = vpop.f32.mrf.mxu0
      %2008 = vmatprep.mubr.bf16.mxu0 0
      %2009 = vmatmul.mubr.bf16.gmra.mxu0 %v748
      %v2010 = vpop.f32.mrf.mxu0
      %v2011 = vadd.f32 %v1931, %v2010
      %v2012 = vpop.f32.mrf.mxu0
      %v2013 = vpop.f32.mrf.mxu0
      %v2014 = vadd.f32 %v1934, %v2013
      %v2015 = vpop.f32.mrf.mxu0
      %2016 = vmatprep.mubr.bf16.mxu0 0
      %2017 = vmatmul.mubr.bf16.gmra.mxu0 %v761
      %v2018 = vpop.f32.mrf.mxu0
      %v2019 = vadd.f32 %v1939, %v2018
      %v2020 = vpop.f32.mrf.mxu0
      %v2021 = vpop.f32.mrf.mxu0
      %v2022 = vpop.f32.mrf.mxu0
      %2023 = vdwg.mxu0
      %v2024 = vmax.f32 %v1979, 0.0
      %v2025 = vmax.f32 %v1982, 0.0
      %v2026 = vmax.f32 %v1987, 0.0
      %v2027 = vmax.f32 %v1990, 0.0
      %v2028 = vmax.f32 %v1995, 0.0
      %v2029 = vmax.f32 %v1998, 0.0
      %v2030 = vmax.f32 %v2003, 0.0
      %v2031 = vmax.f32 %v2006, 0.0
      %v2032 = vmax.f32 %v2011, 0.0
      %v2033 = vmax.f32 %v2014, 0.0
      %v2034 = vmax.f32 %v2019, 0.0
      %v2046 = vcombine.high %v2024, %v2024
      %v2048 = vunpack.c.l.s4 1966171168
      %v2049 = vunpack.c.0.s8 %v2048
      %v2050 = vlaneseq
      %v2051 = vshrl.u32 %v2050, 7
      %v2052 = vsub.s32 %v2049, %v2051
      %v2053 = vrot.slane %v2024, %v2052
      %v2055 = vunpack.c.l.s4 1966171168
      %v2056 = vunpack.c.0.s8 %v2055
      %v2057 = vlaneseq
      %v2058 = vshrl.u32 %v2057, 7
      %v2059 = vsub.s32 %v2056, %v2058
      %v2060 = vrot.slane %v2046, %v2059
      %v2061 = vcombine.high %v2053, %v2053
      %v2062 = vcombine.high %v2060, %v2060
      %v2064 = vunpack.c.l.s4 1966171168
      %v2065 = vunpack.c.0.s8 %v2064
      %v2066 = vlaneseq
      %v2067 = vshrl.u32 %v2066, 7
      %v2068 = vsub.s32 %v2065, %v2067
      %v2069 = vrot.slane %v2053, %v2068
      %v2071 = vunpack.c.l.s4 1966171168
      %v2072 = vunpack.c.0.s8 %v2071
      %v2073 = vlaneseq
      %v2074 = vshrl.u32 %v2073, 7
      %v2075 = vsub.s32 %v2072, %v2074
      %v2076 = vrot.slane %v2060, %v2075
      %v2078 = vunpack.c.l.s4 1966171168
      %v2079 = vunpack.c.0.s8 %v2078
      %v2080 = vlaneseq
      %v2081 = vshrl.u32 %v2080, 7
      %v2082 = vsub.s32 %v2079, %v2081
      %v2083 = vrot.slane %v2061, %v2082
      %v2085 = vunpack.c.l.s4 1966171168
      %v2086 = vunpack.c.0.s8 %v2085
      %v2087 = vlaneseq
      %v2088 = vshrl.u32 %v2087, 7
      %v2089 = vsub.s32 %v2086, %v2088
      %v2090 = vrot.slane %v2062, %v2089
      %v2091 = vcombine.high %v2069, %v2069
      %v2092 = vcombine.high %v2076, %v2076
      %v2093 = vcombine.high %v2083, %v2083
      %v2094 = vcombine.high %v2090, %v2090
      %v2095 = vcombine.high %v2025, %v2025
      %v2097 = vunpack.c.l.s4 1966171168
      %v2098 = vunpack.c.0.s8 %v2097
      %v2099 = vlaneseq
      %v2100 = vshrl.u32 %v2099, 7
      %v2101 = vsub.s32 %v2098, %v2100
      %v2102 = vrot.slane %v2025, %v2101
      %v2104 = vunpack.c.l.s4 1966171168
      %v2105 = vunpack.c.0.s8 %v2104
      %v2106 = vlaneseq
      %v2107 = vshrl.u32 %v2106, 7
      %v2108 = vsub.s32 %v2105, %v2107
      %v2109 = vrot.slane %v2095, %v2108
      %v2110 = vcombine.high %v2102, %v2102
      %v2111 = vcombine.high %v2109, %v2109
      %v2113 = vunpack.c.l.s4 1966171168
      %v2114 = vunpack.c.0.s8 %v2113
      %v2115 = vlaneseq
      %v2116 = vshrl.u32 %v2115, 7
      %v2117 = vsub.s32 %v2114, %v2116
      %v2118 = vrot.slane %v2102, %v2117
      %v2120 = vunpack.c.l.s4 1966171168
      %v2121 = vunpack.c.0.s8 %v2120
      %v2122 = vlaneseq
      %v2123 = vshrl.u32 %v2122, 7
      %v2124 = vsub.s32 %v2121, %v2123
      %v2125 = vrot.slane %v2109, %v2124
      %v2127 = vunpack.c.l.s4 1966171168
      %v2128 = vunpack.c.0.s8 %v2127
      %v2129 = vlaneseq
      %v2130 = vshrl.u32 %v2129, 7
      %v2131 = vsub.s32 %v2128, %v2130
      %v2132 = vrot.slane %v2110, %v2131
      %v2134 = vunpack.c.l.s4 1966171168
      %v2135 = vunpack.c.0.s8 %v2134
      %v2136 = vlaneseq
      %v2137 = vshrl.u32 %v2136, 7
      %v2138 = vsub.s32 %v2135, %v2137
      %v2139 = vrot.slane %v2111, %v2138
      %v2140 = vcombine.high %v2118, %v2118
      %v2141 = vcombine.high %v2125, %v2125
      %v2142 = vcombine.high %v2132, %v2132
      %v2143 = vcombine.high %v2139, %v2139
      %v2144 = vcombine.high %v2026, %v2026
      %v2146 = vunpack.c.l.s4 1966171168
      %v2147 = vunpack.c.0.s8 %v2146
      %v2148 = vlaneseq
      %v2149 = vshrl.u32 %v2148, 7
      %v2150 = vsub.s32 %v2147, %v2149
      %v2151 = vrot.slane %v2026, %v2150
      %v2153 = vunpack.c.l.s4 1966171168
      %v2154 = vunpack.c.0.s8 %v2153
      %v2155 = vlaneseq
      %v2156 = vshrl.u32 %v2155, 7
      %v2157 = vsub.s32 %v2154, %v2156
      %v2158 = vrot.slane %v2144, %v2157
      %v2159 = vcombine.high %v2151, %v2151
      %v2160 = vcombine.high %v2158, %v2158
      %v2162 = vunpack.c.l.s4 1966171168
      %v2163 = vunpack.c.0.s8 %v2162
      %v2164 = vlaneseq
      %v2165 = vshrl.u32 %v2164, 7
      %v2166 = vsub.s32 %v2163, %v2165
      %v2167 = vrot.slane %v2151, %v2166
      %v2169 = vunpack.c.l.s4 1966171168
      %v2170 = vunpack.c.0.s8 %v2169
      %v2171 = vlaneseq
      %v2172 = vshrl.u32 %v2171, 7
      %v2173 = vsub.s32 %v2170, %v2172
      %v2174 = vrot.slane %v2158, %v2173
      %v2176 = vunpack.c.l.s4 1966171168
      %v2177 = vunpack.c.0.s8 %v2176
      %v2178 = vlaneseq
      %v2179 = vshrl.u32 %v2178, 7
      %v2180 = vsub.s32 %v2177, %v2179
      %v2181 = vrot.slane %v2159, %v2180
      %v2183 = vunpack.c.l.s4 1966171168
      %v2184 = vunpack.c.0.s8 %v2183
      %v2185 = vlaneseq
      %v2186 = vshrl.u32 %v2185, 7
      %v2187 = vsub.s32 %v2184, %v2186
      %v2188 = vrot.slane %v2160, %v2187
      %v2189 = vcombine.high %v2167, %v2167
      %v2190 = vcombine.high %v2174, %v2174
      %v2191 = vcombine.high %v2181, %v2181
      %v2192 = vcombine.high %v2188, %v2188
      %v2193 = vcombine.high %v2027, %v2027
      %v2195 = vunpack.c.l.s4 1966171168
      %v2196 = vunpack.c.0.s8 %v2195
      %v2197 = vlaneseq
      %v2198 = vshrl.u32 %v2197, 7
      %v2199 = vsub.s32 %v2196, %v2198
      %v2200 = vrot.slane %v2027, %v2199
      %v2202 = vunpack.c.l.s4 1966171168
      %v2203 = vunpack.c.0.s8 %v2202
      %v2204 = vlaneseq
      %v2205 = vshrl.u32 %v2204, 7
      %v2206 = vsub.s32 %v2203, %v2205
      %v2207 = vrot.slane %v2193, %v2206
      %v2208 = vcombine.high %v2200, %v2200
      %v2209 = vcombine.high %v2207, %v2207
      %v2211 = vunpack.c.l.s4 1966171168
      %v2212 = vunpack.c.0.s8 %v2211
      %v2213 = vlaneseq
      %v2214 = vshrl.u32 %v2213, 7
      %v2215 = vsub.s32 %v2212, %v2214
      %v2216 = vrot.slane %v2200, %v2215
      %v2218 = vunpack.c.l.s4 1966171168
      %v2219 = vunpack.c.0.s8 %v2218
      %v2220 = vlaneseq
      %v2221 = vshrl.u32 %v2220, 7
      %v2222 = vsub.s32 %v2219, %v2221
      %v2223 = vrot.slane %v2207, %v2222
      %v2225 = vunpack.c.l.s4 1966171168
      %v2226 = vunpack.c.0.s8 %v2225
      %v2227 = vlaneseq
      %v2228 = vshrl.u32 %v2227, 7
      %v2229 = vsub.s32 %v2226, %v2228
      %v2230 = vrot.slane %v2208, %v2229
      %v2232 = vunpack.c.l.s4 1966171168
      %v2233 = vunpack.c.0.s8 %v2232
      %v2234 = vlaneseq
      %v2235 = vshrl.u32 %v2234, 7
      %v2236 = vsub.s32 %v2233, %v2235
      %v2237 = vrot.slane %v2209, %v2236
      %v2238 = vcombine.high %v2216, %v2216
      %v2239 = vcombine.high %v2223, %v2223
      %v2240 = vcombine.high %v2230, %v2230
      %v2241 = vcombine.high %v2237, %v2237
      %v2242 = vcombine.high %v2028, %v2028
      %v2244 = vunpack.c.l.s4 1966171168
      %v2245 = vunpack.c.0.s8 %v2244
      %v2246 = vlaneseq
      %v2247 = vshrl.u32 %v2246, 7
      %v2248 = vsub.s32 %v2245, %v2247
      %v2249 = vrot.slane %v2028, %v2248
      %v2251 = vunpack.c.l.s4 1966171168
      %v2252 = vunpack.c.0.s8 %v2251
      %v2253 = vlaneseq
      %v2254 = vshrl.u32 %v2253, 7
      %v2255 = vsub.s32 %v2252, %v2254
      %v2256 = vrot.slane %v2242, %v2255
      %v2257 = vcombine.high %v2249, %v2249
      %v2258 = vcombine.high %v2256, %v2256
      %v2260 = vunpack.c.l.s4 1966171168
      %v2261 = vunpack.c.0.s8 %v2260
      %v2262 = vlaneseq
      %v2263 = vshrl.u32 %v2262, 7
      %v2264 = vsub.s32 %v2261, %v2263
      %v2265 = vrot.slane %v2249, %v2264
      %v2267 = vunpack.c.l.s4 1966171168
      %v2268 = vunpack.c.0.s8 %v2267
      %v2269 = vlaneseq
      %v2270 = vshrl.u32 %v2269, 7
      %v2271 = vsub.s32 %v2268, %v2270
      %v2272 = vrot.slane %v2256, %v2271
      %v2274 = vunpack.c.l.s4 1966171168
      %v2275 = vunpack.c.0.s8 %v2274
      %v2276 = vlaneseq
      %v2277 = vshrl.u32 %v2276, 7
      %v2278 = vsub.s32 %v2275, %v2277
      %v2279 = vrot.slane %v2257, %v2278
      %v2281 = vunpack.c.l.s4 1966171168
      %v2282 = vunpack.c.0.s8 %v2281
      %v2283 = vlaneseq
      %v2284 = vshrl.u32 %v2283, 7
      %v2285 = vsub.s32 %v2282, %v2284
      %v2286 = vrot.slane %v2258, %v2285
      %v2287 = vcombine.high %v2265, %v2265
      %v2288 = vcombine.high %v2272, %v2272
      %v2289 = vcombine.high %v2279, %v2279
      %v2290 = vcombine.high %v2286, %v2286
      %v2291 = vcombine.high %v2029, %v2029
      %v2293 = vunpack.c.l.s4 1966171168
      %v2294 = vunpack.c.0.s8 %v2293
      %v2295 = vlaneseq
      %v2296 = vshrl.u32 %v2295, 7
      %v2297 = vsub.s32 %v2294, %v2296
      %v2298 = vrot.slane %v2029, %v2297
      %v2300 = vunpack.c.l.s4 1966171168
      %v2301 = vunpack.c.0.s8 %v2300
      %v2302 = vlaneseq
      %v2303 = vshrl.u32 %v2302, 7
      %v2304 = vsub.s32 %v2301, %v2303
      %v2305 = vrot.slane %v2291, %v2304
      %v2306 = vcombine.high %v2298, %v2298
      %v2307 = vcombine.high %v2305, %v2305
      %v2309 = vunpack.c.l.s4 1966171168
      %v2310 = vunpack.c.0.s8 %v2309
      %v2311 = vlaneseq
      %v2312 = vshrl.u32 %v2311, 7
      %v2313 = vsub.s32 %v2310, %v2312
      %v2314 = vrot.slane %v2298, %v2313
      %v2316 = vunpack.c.l.s4 1966171168
      %v2317 = vunpack.c.0.s8 %v2316
      %v2318 = vlaneseq
      %v2319 = vshrl.u32 %v2318, 7
      %v2320 = vsub.s32 %v2317, %v2319
      %v2321 = vrot.slane %v2305, %v2320
      %v2323 = vunpack.c.l.s4 1966171168
      %v2324 = vunpack.c.0.s8 %v2323
      %v2325 = vlaneseq
      %v2326 = vshrl.u32 %v2325, 7
      %v2327 = vsub.s32 %v2324, %v2326
      %v2328 = vrot.slane %v2306, %v2327
      %v2330 = vunpack.c.l.s4 1966171168
      %v2331 = vunpack.c.0.s8 %v2330
      %v2332 = vlaneseq
      %v2333 = vshrl.u32 %v2332, 7
      %v2334 = vsub.s32 %v2331, %v2333
      %v2335 = vrot.slane %v2307, %v2334
      %v2336 = vcombine.high %v2314, %v2314
      %v2337 = vcombine.high %v2321, %v2321
      %v2338 = vcombine.high %v2328, %v2328
      %v2339 = vcombine.high %v2335, %v2335
      %v2340 = vcombine.high %v2030, %v2030
      %v2342 = vunpack.c.l.s4 1966171168
      %v2343 = vunpack.c.0.s8 %v2342
      %v2344 = vlaneseq
      %v2345 = vshrl.u32 %v2344, 7
      %v2346 = vsub.s32 %v2343, %v2345
      %v2347 = vrot.slane %v2030, %v2346
      %v2349 = vunpack.c.l.s4 1966171168
      %v2350 = vunpack.c.0.s8 %v2349
      %v2351 = vlaneseq
      %v2352 = vshrl.u32 %v2351, 7
      %v2353 = vsub.s32 %v2350, %v2352
      %v2354 = vrot.slane %v2340, %v2353
      %v2355 = vcombine.high %v2347, %v2347
      %v2356 = vcombine.high %v2354, %v2354
      %v2358 = vunpack.c.l.s4 1966171168
      %v2359 = vunpack.c.0.s8 %v2358
      %v2360 = vlaneseq
      %v2361 = vshrl.u32 %v2360, 7
      %v2362 = vsub.s32 %v2359, %v2361
      %v2363 = vrot.slane %v2347, %v2362
      %v2365 = vunpack.c.l.s4 1966171168
      %v2366 = vunpack.c.0.s8 %v2365
      %v2367 = vlaneseq
      %v2368 = vshrl.u32 %v2367, 7
      %v2369 = vsub.s32 %v2366, %v2368
      %v2370 = vrot.slane %v2354, %v2369
      %v2372 = vunpack.c.l.s4 1966171168
      %v2373 = vunpack.c.0.s8 %v2372
      %v2374 = vlaneseq
      %v2375 = vshrl.u32 %v2374, 7
      %v2376 = vsub.s32 %v2373, %v2375
      %v2377 = vrot.slane %v2355, %v2376
      %v2379 = vunpack.c.l.s4 1966171168
      %v2380 = vunpack.c.0.s8 %v2379
      %v2381 = vlaneseq
      %v2382 = vshrl.u32 %v2381, 7
      %v2383 = vsub.s32 %v2380, %v2382
      %v2384 = vrot.slane %v2356, %v2383
      %v2385 = vcombine.high %v2363, %v2363
      %v2386 = vcombine.high %v2370, %v2370
      %v2387 = vcombine.high %v2377, %v2377
      %v2388 = vcombine.high %v2384, %v2384
      %v2389 = vcombine.high %v2031, %v2031
      %v2391 = vunpack.c.l.s4 1966171168
      %v2392 = vunpack.c.0.s8 %v2391
      %v2393 = vlaneseq
      %v2394 = vshrl.u32 %v2393, 7
      %v2395 = vsub.s32 %v2392, %v2394
      %v2396 = vrot.slane %v2031, %v2395
      %v2398 = vunpack.c.l.s4 1966171168
      %v2399 = vunpack.c.0.s8 %v2398
      %v2400 = vlaneseq
      %v2401 = vshrl.u32 %v2400, 7
      %v2402 = vsub.s32 %v2399, %v2401
      %v2403 = vrot.slane %v2389, %v2402
      %v2404 = vcombine.high %v2396, %v2396
      %v2405 = vcombine.high %v2403, %v2403
      %v2407 = vunpack.c.l.s4 1966171168
      %v2408 = vunpack.c.0.s8 %v2407
      %v2409 = vlaneseq
      %v2410 = vshrl.u32 %v2409, 7
      %v2411 = vsub.s32 %v2408, %v2410
      %v2412 = vrot.slane %v2396, %v2411
      %v2414 = vunpack.c.l.s4 1966171168
      %v2415 = vunpack.c.0.s8 %v2414
      %v2416 = vlaneseq
      %v2417 = vshrl.u32 %v2416, 7
      %v2418 = vsub.s32 %v2415, %v2417
      %v2419 = vrot.slane %v2403, %v2418
      %v2421 = vunpack.c.l.s4 1966171168
      %v2422 = vunpack.c.0.s8 %v2421
      %v2423 = vlaneseq
      %v2424 = vshrl.u32 %v2423, 7
      %v2425 = vsub.s32 %v2422, %v2424
      %v2426 = vrot.slane %v2404, %v2425
      %v2428 = vunpack.c.l.s4 1966171168
      %v2429 = vunpack.c.0.s8 %v2428
      %v2430 = vlaneseq
      %v2431 = vshrl.u32 %v2430, 7
      %v2432 = vsub.s32 %v2429, %v2431
      %v2433 = vrot.slane %v2405, %v2432
      %v2434 = vcombine.high %v2412, %v2412
      %v2435 = vcombine.high %v2419, %v2419
      %v2436 = vcombine.high %v2426, %v2426
      %v2437 = vcombine.high %v2433, %v2433
      %v2438 = vcombine.high %v2032, %v2032
      %v2440 = vunpack.c.l.s4 1966171168
      %v2441 = vunpack.c.0.s8 %v2440
      %v2442 = vlaneseq
      %v2443 = vshrl.u32 %v2442, 7
      %v2444 = vsub.s32 %v2441, %v2443
      %v2445 = vrot.slane %v2032, %v2444
      %v2447 = vunpack.c.l.s4 1966171168
      %v2448 = vunpack.c.0.s8 %v2447
      %v2449 = vlaneseq
      %v2450 = vshrl.u32 %v2449, 7
      %v2451 = vsub.s32 %v2448, %v2450
      %v2452 = vrot.slane %v2438, %v2451
      %v2453 = vcombine.high %v2445, %v2445
      %v2454 = vcombine.high %v2452, %v2452
      %v2456 = vunpack.c.l.s4 1966171168
      %v2457 = vunpack.c.0.s8 %v2456
      %v2458 = vlaneseq
      %v2459 = vshrl.u32 %v2458, 7
      %v2460 = vsub.s32 %v2457, %v2459
      %v2461 = vrot.slane %v2445, %v2460
      %v2463 = vunpack.c.l.s4 1966171168
      %v2464 = vunpack.c.0.s8 %v2463
      %v2465 = vlaneseq
      %v2466 = vshrl.u32 %v2465, 7
      %v2467 = vsub.s32 %v2464, %v2466
      %v2468 = vrot.slane %v2452, %v2467
      %v2470 = vunpack.c.l.s4 1966171168
      %v2471 = vunpack.c.0.s8 %v2470
      %v2472 = vlaneseq
      %v2473 = vshrl.u32 %v2472, 7
      %v2474 = vsub.s32 %v2471, %v2473
      %v2475 = vrot.slane %v2453, %v2474
      %v2477 = vunpack.c.l.s4 1966171168
      %v2478 = vunpack.c.0.s8 %v2477
      %v2479 = vlaneseq
      %v2480 = vshrl.u32 %v2479, 7
      %v2481 = vsub.s32 %v2478, %v2480
      %v2482 = vrot.slane %v2454, %v2481
      %v2483 = vcombine.high %v2461, %v2461
      %v2484 = vcombine.high %v2468, %v2468
      %v2485 = vcombine.high %v2475, %v2475
      %v2486 = vcombine.high %v2482, %v2482
      %v2487 = vcombine.high %v2033, %v2033
      %v2489 = vunpack.c.l.s4 1966171168
      %v2490 = vunpack.c.0.s8 %v2489
      %v2491 = vlaneseq
      %v2492 = vshrl.u32 %v2491, 7
      %v2493 = vsub.s32 %v2490, %v2492
      %v2494 = vrot.slane %v2033, %v2493
      %v2496 = vunpack.c.l.s4 1966171168
      %v2497 = vunpack.c.0.s8 %v2496
      %v2498 = vlaneseq
      %v2499 = vshrl.u32 %v2498, 7
      %v2500 = vsub.s32 %v2497, %v2499
      %v2501 = vrot.slane %v2487, %v2500
      %v2502 = vcombine.high %v2494, %v2494
      %v2503 = vcombine.high %v2501, %v2501
      %v2505 = vunpack.c.l.s4 1966171168
      %v2506 = vunpack.c.0.s8 %v2505
      %v2507 = vlaneseq
      %v2508 = vshrl.u32 %v2507, 7
      %v2509 = vsub.s32 %v2506, %v2508
      %v2510 = vrot.slane %v2494, %v2509
      %v2512 = vunpack.c.l.s4 1966171168
      %v2513 = vunpack.c.0.s8 %v2512
      %v2514 = vlaneseq
      %v2515 = vshrl.u32 %v2514, 7
      %v2516 = vsub.s32 %v2513, %v2515
      %v2517 = vrot.slane %v2501, %v2516
      %v2519 = vunpack.c.l.s4 1966171168
      %v2520 = vunpack.c.0.s8 %v2519
      %v2521 = vlaneseq
      %v2522 = vshrl.u32 %v2521, 7
      %v2523 = vsub.s32 %v2520, %v2522
      %v2524 = vrot.slane %v2502, %v2523
      %v2526 = vunpack.c.l.s4 1966171168
      %v2527 = vunpack.c.0.s8 %v2526
      %v2528 = vlaneseq
      %v2529 = vshrl.u32 %v2528, 7
      %v2530 = vsub.s32 %v2527, %v2529
      %v2531 = vrot.slane %v2503, %v2530
      %v2532 = vcombine.high %v2510, %v2510
      %v2533 = vcombine.high %v2517, %v2517
      %v2534 = vcombine.high %v2524, %v2524
      %v2535 = vcombine.high %v2531, %v2531
      %v2537 = vunpack.c.l.s4 1966171168
      %v2538 = vunpack.c.0.s8 %v2537
      %v2539 = vlaneseq
      %v2540 = vshrl.u32 %v2539, 7
      %v2541 = vsub.s32 %v2538, %v2540
      %v2542 = vrot.slane %v2034, %v2541
      %v2544 = vunpack.c.l.s4 1966171168
      %v2545 = vunpack.c.0.s8 %v2544
      %v2546 = vlaneseq
      %v2547 = vshrl.u32 %v2546, 7
      %v2548 = vsub.s32 %v2545, %v2547
      %v2549 = vrot.slane %v2542, %v2548
      %v2631 = vmax.f32 %v2069, %v2083
      %v2632 = vmax.f32 %v2091, %v2093
      %v2633 = vmax.f32 %v2076, %v2090
      %v2634 = vmax.f32 %v2092, %v2094
      %v2635 = vmax.f32 %v2132, %v2140
      %v2636 = vmax.f32 %v2142, %v2125
      %v2637 = vmax.f32 %v2139, %v2141
      %v2638 = vmax.f32 %v2143, %v2167
      %v2639 = vmax.f32 %v2189, %v2191
      %v2640 = vmax.f32 %v2174, %v2188
      %v2641 = vmax.f32 %v2190, %v2192
      %v2642 = vmax.f32 %v2216, %v2230
      %v2643 = vmax.f32 %v2240, %v2223
      %v2644 = vmax.f32 %v2237, %v2239
      %v2645 = vmax.f32 %v2241, %v2265
      %v2646 = vmax.f32 %v2279, %v2287
      %v2647 = vmax.f32 %v2272, %v2286
      %v2648 = vmax.f32 %v2288, %v2290
      %v2649 = vmax.f32 %v2314, %v2328
      %v2650 = vmax.f32 %v2336, %v2338
      %v2651 = vmax.f32 %v2335, %v2337
      %v2652 = vmax.f32 %v2339, %v2363
      %v2653 = vmax.f32 %v2377, %v2385
      %v2654 = vmax.f32 %v2387, %v2370
      %v2655 = vmax.f32 %v2386, %v2388
      %v2656 = vmax.f32 %v2412, %v2426
      %v2657 = vmax.f32 %v2434, %v2436
      %v2658 = vmax.f32 %v2419, %v2433
      %v2659 = vmax.f32 %v2437, %v2461
      %v2660 = vmax.f32 %v2475, %v2483
      %v2661 = vmax.f32 %v2485, %v2468
      %v2662 = vmax.f32 %v2482, %v2484
      %v2663 = vmax.f32 %v2510, %v2524
      %v2664 = vmax.f32 %v2532, %v2534
      %v2665 = vmax.f32 %v2517, %v2531
      %v2666 = vmax.f32 %v2533, %v2535
      %v2667 = vmax.f32 %v2631, %v2091
      %v2668 = vmax.f32 %v2632, %v2076
      %v2669 = vmax.f32 %v2633, %v2092
      %v2670 = vmax.f32 %v2634, %v2118
      %v2671 = vmax.f32 %v2635, %v2142
      %v2672 = vmax.f32 %v2636, %v2139
      %v2673 = vmax.f32 %v2637, %v2143
      %v2674 = vmax.f32 %v2638, %v2181
      %v2675 = vmax.f32 %v2639, %v2174
      %v2676 = vmax.f32 %v2640, %v2190
      %v2677 = vmax.f32 %v2641, %v2216
      %v2678 = vmax.f32 %v2642, %v2238
      %v2679 = vmax.f32 %v2643, %v2237
      %v2680 = vmax.f32 %v2644, %v2241
      %v2681 = vmax.f32 %v2645, %v2279
      %v2682 = vmax.f32 %v2646, %v2289
      %v2683 = vmax.f32 %v2647, %v2288
      %v2684 = vmax.f32 %v2648, %v2314
      %v2685 = vmax.f32 %v2649, %v2336
      %v2686 = vmax.f32 %v2650, %v2321
      %v2687 = vmax.f32 %v2651, %v2339
      %v2688 = vmax.f32 %v2652, %v2377
      %v2689 = vmax.f32 %v2653, %v2387
      %v2690 = vmax.f32 %v2654, %v2384
      %v2691 = vmax.f32 %v2655, %v2412
      %v2692 = vmax.f32 %v2656, %v2434
      %v2693 = vmax.f32 %v2657, %v2419
      %v2694 = vmax.f32 %v2658, %v2435
      %v2695 = vmax.f32 %v2659, %v2475
      %v2696 = vmax.f32 %v2660, %v2485
      %v2697 = vmax.f32 %v2661, %v2482
      %v2698 = vmax.f32 %v2662, %v2486
      %v2699 = vmax.f32 %v2663, %v2532
      %v2700 = vmax.f32 %v2664, %v2517
      %v2701 = vmax.f32 %v2665, %v2533
      %v2702 = vmax.f32 %v2666, %v2549
      %v2703 = vmax.f32 %v2667, %v2671
      %v2704 = vmax.f32 %v2668, %v2672
      %v2705 = vmax.f32 %v2669, %v2673
      %v2706 = vmax.f32 %v2670, %v2674
      %v2707 = vmax.f32 %v2675, %v2679
      %v2708 = vmax.f32 %v2676, %v2680
      %v2709 = vmax.f32 %v2677, %v2681
      %v2710 = vmax.f32 %v2678, %v2682
      %v2711 = vmax.f32 %v2683, %v2687
      %v2712 = vmax.f32 %v2684, %v2688
      %v2713 = vmax.f32 %v2685, %v2689
      %v2714 = vmax.f32 %v2686, %v2690
      %v2715 = vmax.f32 %v2691, %v2695
      %v2716 = vmax.f32 %v2692, %v2696
      %v2717 = vmax.f32 %v2693, %v2697
      %v2718 = vmax.f32 %v2694, %v2698
      %v2719 = vmax.f32 %v2703, %v2675
      %v2720 = vmax.f32 %v2704, %v2676
      %v2721 = vmax.f32 %v2705, %v2677
      %v2722 = vmax.f32 %v2706, %v2678
      %v2723 = vmax.f32 %v2707, %v2683
      %v2724 = vmax.f32 %v2708, %v2684
      %v2725 = vmax.f32 %v2709, %v2685
      %v2726 = vmax.f32 %v2710, %v2686
      %v2727 = vmax.f32 %v2711, %v2691
      %v2728 = vmax.f32 %v2712, %v2692
      %v2729 = vmax.f32 %v2713, %v2693
      %v2730 = vmax.f32 %v2714, %v2694
      %v2731 = vmax.f32 %v2715, %v2699
      %v2732 = vmax.f32 %v2716, %v2700
      %v2733 = vmax.f32 %v2717, %v2701
      %v2734 = vmax.f32 %v2718, %v2702
      %v2735 = vpack.c.bf16 %v2719, %v2719
      %v2736 = vpack.c.bf16 %v2720, %v2720
      %v2737 = vpack.c.bf16 %v2721, %v2721
      %v2738 = vpack.c.bf16 %v2722, %v2722
      %v2739 = vpack.c.bf16 %v2723, %v2723
      %v2740 = vpack.c.bf16 %v2724, %v2724
      %v2741 = vpack.c.bf16 %v2725, %v2725
      %v2742 = vpack.c.bf16 %v2726, %v2726
      %v2743 = vpack.c.bf16 %v2727, %v2727
      %v2744 = vpack.c.bf16 %v2728, %v2728
      %v2745 = vpack.c.bf16 %v2729, %v2729
      %v2746 = vpack.c.bf16 %v2730, %v2730
      %v2747 = vpack.c.bf16 %v2731, %v2731
      %v2748 = vpack.c.bf16 %v2732, %v2732
      %v2749 = vpack.c.bf16 %v2733, %v2733
      %v2750 = vpack.c.bf16 %v2734, %v2734
      %v2768 = vunpack.c.l.s4 1983009808
      %v2769 = vunpack.c.0.s8 %v2768
      %v2770 = vlaneseq
      %v2771 = vshrl.u32 %v2770, 7
      %v2772 = vsub.s32 %v2769, %v2771
      %v2773 = vrot.slane %v2735, %v2772
      %v2775 = vunpack.c.l.s4 1983009808
      %v2776 = vunpack.c.0.s8 %v2775
      %v2777 = vlaneseq
      %v2778 = vshrl.u32 %v2777, 7
      %v2779 = vsub.s32 %v2776, %v2778
      %v2780 = vrot.slane %v2736, %v2779
      %v2782 = vunpack.c.l.s4 1983009808
      %v2783 = vunpack.c.0.s8 %v2782
      %v2784 = vlaneseq
      %v2785 = vshrl.u32 %v2784, 7
      %v2786 = vsub.s32 %v2783, %v2785
      %v2787 = vrot.slane %v2737, %v2786
      %v2789 = vunpack.c.l.s4 1983009808
      %v2790 = vunpack.c.0.s8 %v2789
      %v2791 = vlaneseq
      %v2792 = vshrl.u32 %v2791, 7
      %v2793 = vsub.s32 %v2790, %v2792
      %v2794 = vrot.slane %v2738, %v2793
      %v2796 = vunpack.c.l.s4 1983009808
      %v2797 = vunpack.c.0.s8 %v2796
      %v2798 = vlaneseq
      %v2799 = vshrl.u32 %v2798, 7
      %v2800 = vsub.s32 %v2797, %v2799
      %v2801 = vrot.slane %v2739, %v2800
      %v2803 = vunpack.c.l.s4 1983009808
      %v2804 = vunpack.c.0.s8 %v2803
      %v2805 = vlaneseq
      %v2806 = vshrl.u32 %v2805, 7
      %v2807 = vsub.s32 %v2804, %v2806
      %v2808 = vrot.slane %v2740, %v2807
      %v2810 = vunpack.c.l.s4 1983009808
      %v2811 = vunpack.c.0.s8 %v2810
      %v2812 = vlaneseq
      %v2813 = vshrl.u32 %v2812, 7
      %v2814 = vsub.s32 %v2811, %v2813
      %v2815 = vrot.slane %v2741, %v2814
      %v2817 = vunpack.c.l.s4 1983009808
      %v2818 = vunpack.c.0.s8 %v2817
      %v2819 = vlaneseq
      %v2820 = vshrl.u32 %v2819, 7
      %v2821 = vsub.s32 %v2818, %v2820
      %v2822 = vrot.slane %v2742, %v2821
      %v2824 = vunpack.c.l.s4 1983009808
      %v2825 = vunpack.c.0.s8 %v2824
      %v2826 = vlaneseq
      %v2827 = vshrl.u32 %v2826, 7
      %v2828 = vsub.s32 %v2825, %v2827
      %v2829 = vrot.slane %v2743, %v2828
      %v2831 = vunpack.c.l.s4 1983009808
      %v2832 = vunpack.c.0.s8 %v2831
      %v2833 = vlaneseq
      %v2834 = vshrl.u32 %v2833, 7
      %v2835 = vsub.s32 %v2832, %v2834
      %v2836 = vrot.slane %v2744, %v2835
      %v2838 = vunpack.c.l.s4 1983009808
      %v2839 = vunpack.c.0.s8 %v2838
      %v2840 = vlaneseq
      %v2841 = vshrl.u32 %v2840, 7
      %v2842 = vsub.s32 %v2839, %v2841
      %v2843 = vrot.slane %v2745, %v2842
      %v2845 = vunpack.c.l.s4 1983009808
      %v2846 = vunpack.c.0.s8 %v2845
      %v2847 = vlaneseq
      %v2848 = vshrl.u32 %v2847, 7
      %v2849 = vsub.s32 %v2846, %v2848
      %v2850 = vrot.slane %v2746, %v2849
      %v2852 = vunpack.c.l.s4 1983009808
      %v2853 = vunpack.c.0.s8 %v2852
      %v2854 = vlaneseq
      %v2855 = vshrl.u32 %v2854, 7
      %v2856 = vsub.s32 %v2853, %v2855
      %v2857 = vrot.slane %v2747, %v2856
      %v2859 = vunpack.c.l.s4 1983009808
      %v2860 = vunpack.c.0.s8 %v2859
      %v2861 = vlaneseq
      %v2862 = vshrl.u32 %v2861, 7
      %v2863 = vsub.s32 %v2860, %v2862
      %v2864 = vrot.slane %v2748, %v2863
      %v2866 = vunpack.c.l.s4 1983009808
      %v2867 = vunpack.c.0.s8 %v2866
      %v2868 = vlaneseq
      %v2869 = vshrl.u32 %v2868, 7
      %v2870 = vsub.s32 %v2867, %v2869
      %v2871 = vrot.slane %v2749, %v2870
      %v2873 = vunpack.c.l.s4 1983009808
      %v2874 = vunpack.c.0.s8 %v2873
      %v2875 = vlaneseq
      %v2876 = vshrl.u32 %v2875, 7
      %v2877 = vsub.s32 %v2874, %v2876
      %v2878 = vrot.slane %v2750, %v2877
      %v2880 = vunpack.c.l.s4 1983009808
      %v2881 = vunpack.c.0.s8 %v2880
      %v2882 = vlaneseq
      %v2883 = vshrl.u32 %v2882, 7
      %v2884 = vsub.s32 %v2881, %v2883
      %v2885 = vrot.slane %v2773, %v2884
      %v2887 = vunpack.c.l.s4 1983009808
      %v2888 = vunpack.c.0.s8 %v2887
      %v2889 = vlaneseq
      %v2890 = vshrl.u32 %v2889, 7
      %v2891 = vsub.s32 %v2888, %v2890
      %v2892 = vrot.slane %v2780, %v2891
      %v2894 = vunpack.c.l.s4 1983009808
      %v2895 = vunpack.c.0.s8 %v2894
      %v2896 = vlaneseq
      %v2897 = vshrl.u32 %v2896, 7
      %v2898 = vsub.s32 %v2895, %v2897
      %v2899 = vrot.slane %v2787, %v2898
      %v2901 = vunpack.c.l.s4 1983009808
      %v2902 = vunpack.c.0.s8 %v2901
      %v2903 = vlaneseq
      %v2904 = vshrl.u32 %v2903, 7
      %v2905 = vsub.s32 %v2902, %v2904
      %v2906 = vrot.slane %v2794, %v2905
      %v2908 = vunpack.c.l.s4 1983009808
      %v2909 = vunpack.c.0.s8 %v2908
      %v2910 = vlaneseq
      %v2911 = vshrl.u32 %v2910, 7
      %v2912 = vsub.s32 %v2909, %v2911
      %v2913 = vrot.slane %v2801, %v2912
      %v2915 = vunpack.c.l.s4 1983009808
      %v2916 = vunpack.c.0.s8 %v2915
      %v2917 = vlaneseq
      %v2918 = vshrl.u32 %v2917, 7
      %v2919 = vsub.s32 %v2916, %v2918
      %v2920 = vrot.slane %v2808, %v2919
      %v2922 = vunpack.c.l.s4 1983009808
      %v2923 = vunpack.c.0.s8 %v2922
      %v2924 = vlaneseq
      %v2925 = vshrl.u32 %v2924, 7
      %v2926 = vsub.s32 %v2923, %v2925
      %v2927 = vrot.slane %v2815, %v2926
      %v2929 = vunpack.c.l.s4 1983009808
      %v2930 = vunpack.c.0.s8 %v2929
      %v2931 = vlaneseq
      %v2932 = vshrl.u32 %v2931, 7
      %v2933 = vsub.s32 %v2930, %v2932
      %v2934 = vrot.slane %v2822, %v2933
      %v2936 = vunpack.c.l.s4 1983009808
      %v2937 = vunpack.c.0.s8 %v2936
      %v2938 = vlaneseq
      %v2939 = vshrl.u32 %v2938, 7
      %v2940 = vsub.s32 %v2937, %v2939
      %v2941 = vrot.slane %v2829, %v2940
      %v2943 = vunpack.c.l.s4 1983009808
      %v2944 = vunpack.c.0.s8 %v2943
      %v2945 = vlaneseq
      %v2946 = vshrl.u32 %v2945, 7
      %v2947 = vsub.s32 %v2944, %v2946
      %v2948 = vrot.slane %v2836, %v2947
      %v2950 = vunpack.c.l.s4 1983009808
      %v2951 = vunpack.c.0.s8 %v2950
      %v2952 = vlaneseq
      %v2953 = vshrl.u32 %v2952, 7
      %v2954 = vsub.s32 %v2951, %v2953
      %v2955 = vrot.slane %v2843, %v2954
      %v2957 = vunpack.c.l.s4 1983009808
      %v2958 = vunpack.c.0.s8 %v2957
      %v2959 = vlaneseq
      %v2960 = vshrl.u32 %v2959, 7
      %v2961 = vsub.s32 %v2958, %v2960
      %v2962 = vrot.slane %v2850, %v2961
      %v2964 = vunpack.c.l.s4 1983009808
      %v2965 = vunpack.c.0.s8 %v2964
      %v2966 = vlaneseq
      %v2967 = vshrl.u32 %v2966, 7
      %v2968 = vsub.s32 %v2965, %v2967
      %v2969 = vrot.slane %v2857, %v2968
      %v2971 = vunpack.c.l.s4 1983009808
      %v2972 = vunpack.c.0.s8 %v2971
      %v2973 = vlaneseq
      %v2974 = vshrl.u32 %v2973, 7
      %v2975 = vsub.s32 %v2972, %v2974
      %v2976 = vrot.slane %v2864, %v2975
      %v2978 = vunpack.c.l.s4 1983009808
      %v2979 = vunpack.c.0.s8 %v2978
      %v2980 = vlaneseq
      %v2981 = vshrl.u32 %v2980, 7
      %v2982 = vsub.s32 %v2979, %v2981
      %v2983 = vrot.slane %v2871, %v2982
      %v2985 = vunpack.c.l.s4 1983009808
      %v2986 = vunpack.c.0.s8 %v2985
      %v2987 = vlaneseq
      %v2988 = vshrl.u32 %v2987, 7
      %v2989 = vsub.s32 %v2986, %v2988
      %v2990 = vrot.slane %v2878, %v2989
      %v2991 = vunpack.c.l.b16 %v2885
      %v2992 = vunpack.c.l.b16 %v2892
      %v2993 = vunpack.c.l.b16 %v2899
      %v2994 = vunpack.c.l.b16 %v2906
      %v2995 = vunpack.c.l.b16 %v2913
      %v2996 = vunpack.c.l.b16 %v2920
      %v2997 = vunpack.c.l.b16 %v2927
      %v2998 = vunpack.c.l.b16 %v2934
      %v2999 = vunpack.c.l.b16 %v2941
      %v3000 = vunpack.c.l.b16 %v2948
      %v3001 = vunpack.c.l.b16 %v2955
      %v3002 = vunpack.c.l.b16 %v2962
      %v3003 = vunpack.c.l.b16 %v2969
      %v3004 = vunpack.c.l.b16 %v2976
      %v3005 = vunpack.c.l.b16 %v2983
      %v3006 = vunpack.c.l.b16 %v2990
      %v3007 = vrot.slane %v2992, 7
      %vm3008 = vcmask 1041409
      %v3009 = vsel %vm3008, %v3007, %v2991
      %v3010 = vrot.slane %v2993, 6
      %vm3011 = vcmask 1042434
      %v3012 = vsel %vm3011, %v3010, %v3009
      %v3013 = vrot.slane %v2994, 5
      %vm3014 = vcmask 1043459
      %v3015 = vsel %vm3014, %v3013, %v3012
      %v3016 = vrot.slane %v2996, 7
      %v3017 = vsel %vm3008, %v3016, %v2995
      %v3018 = vrot.slane %v2997, 6
      %v3019 = vsel %vm3011, %v3018, %v3017
      %v3020 = vrot.slane %v2998, 5
      %v3021 = vsel %vm3014, %v3020, %v3019
      %v3022 = vrot.slane %v3000, 7
      %v3023 = vsel %vm3008, %v3022, %v2999
      %v3024 = vrot.slane %v3001, 6
      %v3025 = vsel %vm3011, %v3024, %v3023
      %v3026 = vrot.slane %v3002, 5
      %v3027 = vsel %vm3014, %v3026, %v3025
      %v3028 = vrot.slane %v3004, 7
      %v3029 = vsel %vm3008, %v3028, %v3003
      %v3030 = vrot.slane %v3005, 6
      %v3031 = vsel %vm3011, %v3030, %v3029
      %v3032 = vrot.slane %v3006, 5
      %v3033 = vsel %vm3014, %v3032, %v3031
      %v3034 = vpack.c.b16 %v3015, %v3015
      %v3035 = vpack.c.b16 %v3021, %v3021
      %v3036 = vpack.c.b16 %v3027, %v3027
      %v3037 = vpack.c.b16 %v3033, %v3033
      %v3039 = vunpack.c.l.s4 1983009808
      %v3040 = vunpack.c.0.s8 %v3039
      %v3041 = vlaneseq
      %v3042 = vshrl.u32 %v3041, 7
      %v3043 = vsub.s32 %v3040, %v3042
      %v3044 = vrot.slane %v3034, %v3043
      %v3046 = vunpack.c.l.s4 1983009808
      %v3047 = vunpack.c.0.s8 %v3046
      %v3048 = vlaneseq
      %v3049 = vshrl.u32 %v3048, 7
      %v3050 = vsub.s32 %v3047, %v3049
      %v3051 = vrot.slane %v3035, %v3050
      %v3053 = vunpack.c.l.s4 1983009808
      %v3054 = vunpack.c.0.s8 %v3053
      %v3055 = vlaneseq
      %v3056 = vshrl.u32 %v3055, 7
      %v3057 = vsub.s32 %v3054, %v3056
      %v3058 = vrot.slane %v3036, %v3057
      %v3060 = vunpack.c.l.s4 1983009808
      %v3061 = vunpack.c.0.s8 %v3060
      %v3062 = vlaneseq
      %v3063 = vshrl.u32 %v3062, 7
      %v3064 = vsub.s32 %v3061, %v3063
      %v3065 = vrot.slane %v3037, %v3064
      %vm3070 = vcmask 517120
      %3071 = vst.msk [vmem:[%s170] sm:$0x3] %vm3070, %v3044
      %3072 = vst.msk [vmem:[%s170 + $0x2] sm:$0x3] %vm3070, %v3051
      %3073 = vst.msk [vmem:[%s170 + $0x4] sm:$0x3] %vm3070, %v3058
      %3074 = vst.msk [vmem:[%s170 + $0x6] sm:$0x3] %vm3070, %v3065
      %p3075 = scmp.lt.s32.totalorder %s14, 1
      %s3076 = scalar_select %p3075, %s14, 1
      %s3077 = smul.addr %s3076, 4
      %s3078 = smul.addr %s3077, 2
      %s3079 = scalar_lea.vmem %s3, %s3078
      // Predicated region
      $region33: #{cnn_net_forward.4} parent=31 // pred_check
        %p3080 = pneg %p100
      $region34: #{cnn_net_forward.4} parent=31 // pred_check_branch
        %3082 = sbr.rel (%p3080) target = $region36
      $region35: #{cnn_net_forward.4} parent=31 // pred_region
        _
      $region36: #{cnn_net_forward.4} parent=31 // pred_fallthru
        _
    $region32: #{cnn_net_forward.4} parent=5 // pred_fallthru
      _
    %p3083 = scmp.le.s32.totalorder 2, %s9
    // Predicated region
    $region37: #{cnn_net_forward.4} parent=5 // pred_check
      %p3084 = pneg %p3083
    $region38: #{cnn_net_forward.4} parent=5 // pred_check_branch
      %3086 = sbr.rel (%p3084) target = $region40
    $region39: #{cnn_net_forward.4} parent=5 // pred_region
      %s3087 = ssub.s32 %s9, 2
      // Predicated region
      $region41: #{cnn_net_forward.4} parent=39 // pred_check
        %p3088 = pneg %p106
      $region42: #{cnn_net_forward.4} parent=39 // pred_check_branch
        %3090 = sbr.rel (%p3088) target = $region44
      $region43: #{cnn_net_forward.4} parent=39 // pred_region
        %p3091 = scmp.lt.s32.totalorder %s15, 1
        %s3092 = scalar_select %p3091, %s15, 1
        %s3093 = smul.addr %s3092, 4
        %s3094 = smul.addr %s3093, 2
        %s3095 = scalar_lea.vmem %s3, %s3094
      $region44: #{cnn_net_forward.4} parent=39 // pred_fallthru
        _
    $region40: #{cnn_net_forward.4} parent=5 // pred_fallthru
      _
  $region6: #{cnn_net_forward.4} parent=0 // loop_footer
    %s13 = sadd.s32 1, %s9
  $region7: #{cnn_net_forward.4} parent=0 // loop_footer_branch
    %8 = sbr.rel target = $region3
  $region8: #{cnn_net_forward.4} parent=0 // loop_exit
    _

// kernel: cnn_net_forward.5
$region0: #{cnn_net_forward.5}
  #allocation0 [shape = 'u32[]', space=smem, size = 0x4, offset = 0x4, fixed_abs, tag = 'smem constant byte address 0x4 - core index']
  #allocation1 [shape = 'u32[144,128]{1,0:T(1,128)}', space=vmem, size = 0x12000, scoped, tag = 'internal scratch']
  %s0 = inlined_call_operand.vmem [shape: bf16[2,1024], index: 0, kind: input, shape index: {}]
  %s1 = inlined_call_operand.vmem [shape: bf16[1024,384], index: 1, kind: input, shape index: {}]
  %s2 = inlined_call_operand.vmem [shape: f32[1,384], index: 2, kind: input, shape index: {}]
  %s3 = inlined_call_operand.vmem [shape: bf16[384,192], index: 3, kind: input, shape index: {}]
  %s4 = inlined_call_operand.vmem [shape: f32[1,192], index: 4, kind: input, shape index: {}]
  %s5 = inlined_call_operand.vmem [shape: bf16[192,128], index: 5, kind: input, shape index: {}]
  %s6 = inlined_call_operand.vmem [shape: f32[1,128], index: 6, kind: input, shape index: {}]
  %s7 = inlined_call_operand.hbm [shape: f32[2,128], index: 7, kind: output, shape index: {}]
  %s8 = sld [smem:[#allocation0]]
  $region38: #{cnn_net_forward.5} parent=0
    _
  %s10 = ssub.s32 1, %s8
  %s11 = scalar_select 0, %s10, %s8
  $region1: #{cnn_net_forward.5} parent=0
    #allocation2 [shape = 'u8[1024]{0}', space=vmem, size = 0x400, scoped, tag = 'output window, operand 0, single buffered']
    #allocation3 [shape = 's32[1]{0}', space=sflag, size = 0x4, scoped, tag = 'scoped memory for cnn_net_forward.5']
    %12 = vsyncpa [#allocation3], 0
    // Predicated region
    $region2: #{cnn_net_forward.5} parent=1 // pred_check
      _
    $region3: #{cnn_net_forward.5} parent=1 // pred_check_branch
      %14 = sbr.rel (0) target = $region5
    $region4: #{cnn_net_forward.5} parent=1 // pred_region
      _
    $region5: #{cnn_net_forward.5} parent=1 // pred_fallthru
      _
    // Predicated region
    $region6: #{cnn_net_forward.5} parent=1 // pred_check
      _
    $region7: #{cnn_net_forward.5} parent=1 // pred_check_branch
      %16 = sbr.rel (0) target = $region9
    $region8: #{cnn_net_forward.5} parent=1 // pred_region
      _
    $region9: #{cnn_net_forward.5} parent=1 // pred_fallthru
      _
    // Predicated region
    $region10: #{cnn_net_forward.5} parent=1 // pred_check
      _
    $region11: #{cnn_net_forward.5} parent=1 // pred_check_branch
      %18 = sbr.rel (0) target = $region13
    $region12: #{cnn_net_forward.5} parent=1 // pred_region
      _
    $region13: #{cnn_net_forward.5} parent=1 // pred_fallthru
      _
    // Predicated region
    $region14: #{cnn_net_forward.5} parent=1 // pred_check
      _
    $region15: #{cnn_net_forward.5} parent=1 // pred_check_branch
      %20 = sbr.rel (0) target = $region17
    $region16: #{cnn_net_forward.5} parent=1 // pred_region
      _
    $region17: #{cnn_net_forward.5} parent=1 // pred_fallthru
      _
    // Predicated region
    $region18: #{cnn_net_forward.5} parent=1 // pred_check
      _
    $region19: #{cnn_net_forward.5} parent=1 // pred_check_branch
      %22 = sbr.rel (0) target = $region21
    $region20: #{cnn_net_forward.5} parent=1 // pred_region
      _
    $region21: #{cnn_net_forward.5} parent=1 // pred_fallthru
      _
    // Predicated region
    $region22: #{cnn_net_forward.5} parent=1 // pred_check
      _
    $region23: #{cnn_net_forward.5} parent=1 // pred_check_branch
      %24 = sbr.rel (0) target = $region25
    $region24: #{cnn_net_forward.5} parent=1 // pred_region
      _
    $region25: #{cnn_net_forward.5} parent=1 // pred_fallthru
      _
    // Predicated region
    $region26: #{cnn_net_forward.5} parent=1 // pred_check
      _
    $region27: #{cnn_net_forward.5} parent=1 // pred_check_branch
      %26 = sbr.rel (0) target = $region29
    $region28: #{cnn_net_forward.5} parent=1 // pred_region
      _
    $region29: #{cnn_net_forward.5} parent=1 // pred_fallthru
      _
    %v28 = vld [vmem:[%s0] sm:$0xff]
    %v29 = vld [vmem:[%s1] sm:$0xff]
    %v30 = vld [vmem:[%s1 + $0x8] sm:$0xf]
    %v31 = vld [vmem:[%s1 + $0xc] sm:$0xff]
    %v32 = vld [vmem:[%s1 + $0x14] sm:$0xf]
    %v33 = vld [vmem:[%s1 + $0x18] sm:$0xff]
    %v34 = vld [vmem:[%s1 + $0x20] sm:$0xf]
    %v35 = vld [vmem:[%s1 + $0x24] sm:$0xff]
    %v36 = vld [vmem:[%s1 + $0x2c] sm:$0xf]
    %v37 = vld [vmem:[%s1 + $0x30] sm:$0xff]
    %v38 = vld [vmem:[%s1 + $0x38] sm:$0xf]
    %v39 = vld [vmem:[%s1 + $0x3c] sm:$0xff]
    %v40 = vld [vmem:[%s1 + $0x44] sm:$0xf]
    %v41 = vld [vmem:[%s1 + $0x48] sm:$0xff]
    %v42 = vld [vmem:[%s1 + $0x50] sm:$0xf]
    %v43 = vld [vmem:[%s1 + $0x54] sm:$0xff]
    %v44 = vld [vmem:[%s1 + $0x5c] sm:$0xf]
    %v45 = vld [vmem:[%s1 + $0x60] sm:$0xff]
    %v46 = vld [vmem:[%s1 + $0x68] sm:$0xf]
    %v47 = vld [vmem:[%s1 + $0x6c] sm:$0xff]
    %v48 = vld [vmem:[%s1 + $0x74] sm:$0xf]
    %v49 = vld [vmem:[%s1 + $0x78] sm:$0xff]
    %v50 = vld [vmem:[%s1 + $0x80] sm:$0xf]
    %v51 = vld [vmem:[%s1 + $0x84] sm:$0xff]
    %v52 = vld [vmem:[%s1 + $0x8c] sm:$0xf]
    %v53 = vld [vmem:[%s1 + $0x90] sm:$0xff]
    %v54 = vld [vmem:[%s1 + $0x98] sm:$0xf]
    %v55 = vld [vmem:[%s1 + $0x9c] sm:$0xff]
    %v56 = vld [vmem:[%s1 + $0xa4] sm:$0xf]
    %v57 = vld [vmem:[%s1 + $0xa8] sm:$0xff]
    %v58 = vld [vmem:[%s1 + $0xb0] sm:$0xf]
    %v59 = vld [vmem:[%s1 + $0xb4] sm:$0xff]
    %v60 = vld [vmem:[%s1 + $0xbc] sm:$0xf]
    %v61 = vld [vmem:[%s1 + $0xc0] sm:$0xff]
    %v62 = vld [vmem:[%s1 + $0xc8] sm:$0xf]
    %v63 = vld [vmem:[%s1 + $0xcc] sm:$0xff]
    %v64 = vld [vmem:[%s1 + $0xd4] sm:$0xf]
    %v65 = vld [vmem:[%s1 + $0xd8] sm:$0xff]
    %v66 = vld [vmem:[%s1 + $0xe0] sm:$0xf]
    %v67 = vld [vmem:[%s1 + $0xe4] sm:$0xff]
    %v68 = vld [vmem:[%s1 + $0xec] sm:$0xf]
    %v69 = vld [vmem:[%s1 + $0xf0] sm:$0xff]
    %v70 = vld [vmem:[%s1 + $0xf8] sm:$0xf]
    %v71 = vld [vmem:[%s1 + $0xfc] sm:$0xff]
    %v72 = vld [vmem:[%s1 + $0x104] sm:$0xf]
    %v73 = vld [vmem:[%s1 + $0x108] sm:$0xff]
    %v74 = vld [vmem:[%s1 + $0x110] sm:$0xf]
    %v75 = vld [vmem:[%s1 + $0x114] sm:$0xff]
    %v76 = vld [vmem:[%s1 + $0x11c] sm:$0xf]
    %v77 = vld [vmem:[%s1 + $0x120] sm:$0xff]
    %v78 = vld [vmem:[%s1 + $0x128] sm:$0xf]
    %v79 = vld [vmem:[%s1 + $0x12c] sm:$0xff]
    %v80 = vld [vmem:[%s1 + $0x134] sm:$0xf]
    %v81 = vld [vmem:[%s1 + $0x138] sm:$0xff]
    %v82 = vld [vmem:[%s1 + $0x140] sm:$0xf]
    %v83 = vld [vmem:[%s1 + $0x144] sm:$0xff]
    %v84 = vld [vmem:[%s1 + $0x14c] sm:$0xf]
    %v85 = vld [vmem:[%s1 + $0x150] sm:$0xff]
    %v86 = vld [vmem:[%s1 + $0x158] sm:$0xf]
    %v87 = vld [vmem:[%s1 + $0x15c] sm:$0xff]
    %v88 = vld [vmem:[%s1 + $0x164] sm:$0xf]
    %v89 = vld [vmem:[%s1 + $0x168] sm:$0xff]
    %v90 = vld [vmem:[%s1 + $0x170] sm:$0xf]
    %v91 = vld [vmem:[%s1 + $0x174] sm:$0xff]
    %v92 = vld [vmem:[%s1 + $0x17c] sm:$0xf]
    %v93 = vld [vmem:[%s1 + $0x180] sm:$0xff]
    %v94 = vld [vmem:[%s1 + $0x188] sm:$0xf]
    %v95 = vld [vmem:[%s1 + $0x18c] sm:$0xff]
    %v96 = vld [vmem:[%s1 + $0x194] sm:$0xf]
    %v97 = vld [vmem:[%s1 + $0x198] sm:$0xff]
    %v98 = vld [vmem:[%s1 + $0x1a0] sm:$0xf]
    %v99 = vld [vmem:[%s1 + $0x1a4] sm:$0xff]
    %v100 = vld [vmem:[%s1 + $0x1ac] sm:$0xf]
    %v101 = vld [vmem:[%s1 + $0x1b0] sm:$0xff]
    %v102 = vld [vmem:[%s1 + $0x1b8] sm:$0xf]
    %v103 = vld [vmem:[%s1 + $0x1bc] sm:$0xff]
    %v104 = vld [vmem:[%s1 + $0x1c4] sm:$0xf]
    %v105 = vld [vmem:[%s1 + $0x1c8] sm:$0xff]
    %v106 = vld [vmem:[%s1 + $0x1d0] sm:$0xf]
    %v107 = vld [vmem:[%s1 + $0x1d4] sm:$0xff]
    %v108 = vld [vmem:[%s1 + $0x1dc] sm:$0xf]
    %v109 = vld [vmem:[%s1 + $0x1e0] sm:$0xff]
    %v110 = vld [vmem:[%s1 + $0x1e8] sm:$0xf]
    %v111 = vld [vmem:[%s1 + $0x1ec] sm:$0xff]
    %v112 = vld [vmem:[%s1 + $0x1f4] sm:$0xf]
    %v113 = vld [vmem:[%s1 + $0x1f8] sm:$0xff]
    %v114 = vld [vmem:[%s1 + $0x200] sm:$0xf]
    %v115 = vld [vmem:[%s1 + $0x204] sm:$0xff]
    %v116 = vld [vmem:[%s1 + $0x20c] sm:$0xf]
    %v117 = vld [vmem:[%s1 + $0x210] sm:$0xff]
    %v118 = vld [vmem:[%s1 + $0x218] sm:$0xf]
    %v119 = vld [vmem:[%s1 + $0x21c] sm:$0xff]
    %v120 = vld [vmem:[%s1 + $0x224] sm:$0xf]
    %v121 = vld [vmem:[%s1 + $0x228] sm:$0xff]
    %v122 = vld [vmem:[%s1 + $0x230] sm:$0xf]
    %v123 = vld [vmem:[%s1 + $0x234] sm:$0xff]
    %v124 = vld [vmem:[%s1 + $0x23c] sm:$0xf]
    %v125 = vld [vmem:[%s1 + $0x240] sm:$0xff]
    %v126 = vld [vmem:[%s1 + $0x248] sm:$0xf]
    %v127 = vld [vmem:[%s1 + $0x24c] sm:$0xff]
    %v128 = vld [vmem:[%s1 + $0x254] sm:$0xf]
    %v129 = vld [vmem:[%s1 + $0x258] sm:$0xff]
    %v130 = vld [vmem:[%s1 + $0x260] sm:$0xf]
    %v131 = vld [vmem:[%s1 + $0x264] sm:$0xff]
    %v132 = vld [vmem:[%s1 + $0x26c] sm:$0xf]
    %v133 = vld [vmem:[%s1 + $0x270] sm:$0xff]
    %v134 = vld [vmem:[%s1 + $0x278] sm:$0xf]
    %v135 = vld [vmem:[%s1 + $0x27c] sm:$0xff]
    %v136 = vld [vmem:[%s1 + $0x284] sm:$0xf]
    %v137 = vld [vmem:[%s1 + $0x288] sm:$0xff]
    %v138 = vld [vmem:[%s1 + $0x290] sm:$0xf]
    %v139 = vld [vmem:[%s1 + $0x294] sm:$0xff]
    %v140 = vld [vmem:[%s1 + $0x29c] sm:$0xf]
    %v141 = vld [vmem:[%s1 + $0x2a0] sm:$0xff]
    %v142 = vld [vmem:[%s1 + $0x2a8] sm:$0xf]
    %v143 = vld [vmem:[%s1 + $0x2ac] sm:$0xff]
    %v144 = vld [vmem:[%s1 + $0x2b4] sm:$0xf]
    %v145 = vld [vmem:[%s1 + $0x2b8] sm:$0xff]
    %v146 = vld [vmem:[%s1 + $0x2c0] sm:$0xf]
    %v147 = vld [vmem:[%s1 + $0x2c4] sm:$0xff]
    %v148 = vld [vmem:[%s1 + $0x2cc] sm:$0xf]
    %v149 = vld [vmem:[%s1 + $0x2d0] sm:$0xff]
    %v150 = vld [vmem:[%s1 + $0x2d8] sm:$0xf]
    %v151 = vld [vmem:[%s1 + $0x2dc] sm:$0xff]
    %v152 = vld [vmem:[%s1 + $0x2e4] sm:$0xf]
    %v153 = vld [vmem:[%s1 + $0x2e8] sm:$0xff]
    %v154 = vld [vmem:[%s1 + $0x2f0] sm:$0xf]
    %v155 = vld [vmem:[%s1 + $0x2f4] sm:$0xff]
    %v156 = vld [vmem:[%s1 + $0x2fc] sm:$0xf]
    %v157 = vld [vmem:[%s1 + $0x300] sm:$0xff]
    %v158 = vld [vmem:[%s1 + $0x308] sm:$0xf]
    %v159 = vld [vmem:[%s1 + $0x30c] sm:$0xff]
    %v160 = vld [vmem:[%s1 + $0x314] sm:$0xf]
    %v161 = vld [vmem:[%s1 + $0x318] sm:$0xff]
    %v162 = vld [vmem:[%s1 + $0x320] sm:$0xf]
    %v163 = vld [vmem:[%s1 + $0x324] sm:$0xff]
    %v164 = vld [vmem:[%s1 + $0x32c] sm:$0xf]
    %v165 = vld [vmem:[%s1 + $0x330] sm:$0xff]
    %v166 = vld [vmem:[%s1 + $0x338] sm:$0xf]
    %v167 = vld [vmem:[%s1 + $0x33c] sm:$0xff]
    %v168 = vld [vmem:[%s1 + $0x344] sm:$0xf]
    %v169 = vld [vmem:[%s1 + $0x348] sm:$0xff]
    %v170 = vld [vmem:[%s1 + $0x350] sm:$0xf]
    %v171 = vld [vmem:[%s1 + $0x354] sm:$0xff]
    %v172 = vld [vmem:[%s1 + $0x35c] sm:$0xf]
    %v173 = vld [vmem:[%s1 + $0x360] sm:$0xff]
    %v174 = vld [vmem:[%s1 + $0x368] sm:$0xf]
    %v175 = vld [vmem:[%s1 + $0x36c] sm:$0xff]
    %v176 = vld [vmem:[%s1 + $0x374] sm:$0xf]
    %v177 = vld [vmem:[%s1 + $0x378] sm:$0xff]
    %v178 = vld [vmem:[%s1 + $0x380] sm:$0xf]
    %v179 = vld [vmem:[%s1 + $0x384] sm:$0xff]
    %v180 = vld [vmem:[%s1 + $0x38c] sm:$0xf]
    %v181 = vld [vmem:[%s1 + $0x390] sm:$0xff]
    %v182 = vld [vmem:[%s1 + $0x398] sm:$0xf]
    %v183 = vld [vmem:[%s1 + $0x39c] sm:$0xff]
    %v184 = vld [vmem:[%s1 + $0x3a4] sm:$0xf]
    %v185 = vld [vmem:[%s1 + $0x3a8] sm:$0xff]
    %v186 = vld [vmem:[%s1 + $0x3b0] sm:$0xf]
    %v187 = vld [vmem:[%s1 + $0x3b4] sm:$0xff]
    %v188 = vld [vmem:[%s1 + $0x3bc] sm:$0xf]
    %v189 = vld [vmem:[%s1 + $0x3c0] sm:$0xff]
    %v190 = vld [vmem:[%s1 + $0x3c8] sm:$0xf]
    %v191 = vld [vmem:[%s1 + $0x3cc] sm:$0xff]
    %v192 = vld [vmem:[%s1 + $0x3d4] sm:$0xf]
    %v193 = vld [vmem:[%s1 + $0x3d8] sm:$0xff]
    %v194 = vld [vmem:[%s1 + $0x3e0] sm:$0xf]
    %v195 = vld [vmem:[%s1 + $0x3e4] sm:$0xff]
    %v196 = vld [vmem:[%s1 + $0x3ec] sm:$0xf]
    %v197 = vld [vmem:[%s1 + $0x3f0] sm:$0xff]
    %v198 = vld [vmem:[%s1 + $0x3f8] sm:$0xf]
    %v199 = vld [vmem:[%s1 + $0x3fc] sm:$0xff]
    %v200 = vld [vmem:[%s1 + $0x404] sm:$0xf]
    %v201 = vld [vmem:[%s1 + $0x408] sm:$0xff]
    %v202 = vld [vmem:[%s1 + $0x410] sm:$0xf]
    %v203 = vld [vmem:[%s1 + $0x414] sm:$0xff]
    %v204 = vld [vmem:[%s1 + $0x41c] sm:$0xf]
    %v205 = vld [vmem:[%s1 + $0x420] sm:$0xff]
    %v206 = vld [vmem:[%s1 + $0x428] sm:$0xf]
    %v207 = vld [vmem:[%s1 + $0x42c] sm:$0xff]
    %v208 = vld [vmem:[%s1 + $0x434] sm:$0xf]
    %v209 = vld [vmem:[%s1 + $0x438] sm:$0xff]
    %v210 = vld [vmem:[%s1 + $0x440] sm:$0xf]
    %v211 = vld [vmem:[%s1 + $0x444] sm:$0xff]
    %v212 = vld [vmem:[%s1 + $0x44c] sm:$0xf]
    %v213 = vld [vmem:[%s1 + $0x450] sm:$0xff]
    %v214 = vld [vmem:[%s1 + $0x458] sm:$0xf]
    %v215 = vld [vmem:[%s1 + $0x45c] sm:$0xff]
    %v216 = vld [vmem:[%s1 + $0x464] sm:$0xf]
    %v217 = vld [vmem:[%s1 + $0x468] sm:$0xff]
    %v218 = vld [vmem:[%s1 + $0x470] sm:$0xf]
    %v219 = vld [vmem:[%s1 + $0x474] sm:$0xff]
    %v220 = vld [vmem:[%s1 + $0x47c] sm:$0xf]
    %v221 = vld [vmem:[%s1 + $0x480] sm:$0xff]
    %v222 = vld [vmem:[%s1 + $0x488] sm:$0xf]
    %v223 = vld [vmem:[%s1 + $0x48c] sm:$0xff]
    %v224 = vld [vmem:[%s1 + $0x494] sm:$0xf]
    %v225 = vld [vmem:[%s1 + $0x498] sm:$0xff]
    %v226 = vld [vmem:[%s1 + $0x4a0] sm:$0xf]
    %v227 = vld [vmem:[%s1 + $0x4a4] sm:$0xff]
    %v228 = vld [vmem:[%s1 + $0x4ac] sm:$0xf]
    %v229 = vld [vmem:[%s1 + $0x4b0] sm:$0xff]
    %v230 = vld [vmem:[%s1 + $0x4b8] sm:$0xf]
    %v231 = vld [vmem:[%s1 + $0x4bc] sm:$0xff]
    %v232 = vld [vmem:[%s1 + $0x4c4] sm:$0xf]
    %v233 = vld [vmem:[%s1 + $0x4c8] sm:$0xff]
    %v234 = vld [vmem:[%s1 + $0x4d0] sm:$0xf]
    %v235 = vld [vmem:[%s1 + $0x4d4] sm:$0xff]
    %v236 = vld [vmem:[%s1 + $0x4dc] sm:$0xf]
    %v237 = vld [vmem:[%s1 + $0x4e0] sm:$0xff]
    %v238 = vld [vmem:[%s1 + $0x4e8] sm:$0xf]
    %v239 = vld [vmem:[%s1 + $0x4ec] sm:$0xff]
    %v240 = vld [vmem:[%s1 + $0x4f4] sm:$0xf]
    %v241 = vld [vmem:[%s1 + $0x4f8] sm:$0xff]
    %v242 = vld [vmem:[%s1 + $0x500] sm:$0xf]
    %v243 = vld [vmem:[%s1 + $0x504] sm:$0xff]
    %v244 = vld [vmem:[%s1 + $0x50c] sm:$0xf]
    %v245 = vld [vmem:[%s1 + $0x510] sm:$0xff]
    %v246 = vld [vmem:[%s1 + $0x518] sm:$0xf]
    %v247 = vld [vmem:[%s1 + $0x51c] sm:$0xff]
    %v248 = vld [vmem:[%s1 + $0x524] sm:$0xf]
    %v249 = vld [vmem:[%s1 + $0x528] sm:$0xff]
    %v250 = vld [vmem:[%s1 + $0x530] sm:$0xf]
    %v251 = vld [vmem:[%s1 + $0x534] sm:$0xff]
    %v252 = vld [vmem:[%s1 + $0x53c] sm:$0xf]
    %v253 = vld [vmem:[%s1 + $0x540] sm:$0xff]
    %v254 = vld [vmem:[%s1 + $0x548] sm:$0xf]
    %v255 = vld [vmem:[%s1 + $0x54c] sm:$0xff]
    %v256 = vld [vmem:[%s1 + $0x554] sm:$0xf]
    %v257 = vld [vmem:[%s1 + $0x558] sm:$0xff]
    %v258 = vld [vmem:[%s1 + $0x560] sm:$0xf]
    %v259 = vld [vmem:[%s1 + $0x564] sm:$0xff]
    %v260 = vld [vmem:[%s1 + $0x56c] sm:$0xf]
    %v261 = vld [vmem:[%s1 + $0x570] sm:$0xff]
    %v262 = vld [vmem:[%s1 + $0x578] sm:$0xf]
    %v263 = vld [vmem:[%s1 + $0x57c] sm:$0xff]
    %v264 = vld [vmem:[%s1 + $0x584] sm:$0xf]
    %v265 = vld [vmem:[%s1 + $0x588] sm:$0xff]
    %v266 = vld [vmem:[%s1 + $0x590] sm:$0xf]
    %v267 = vld [vmem:[%s1 + $0x594] sm:$0xff]
    %v268 = vld [vmem:[%s1 + $0x59c] sm:$0xf]
    %v269 = vld [vmem:[%s1 + $0x5a0] sm:$0xff]
    %v270 = vld [vmem:[%s1 + $0x5a8] sm:$0xf]
    %v271 = vld [vmem:[%s1 + $0x5ac] sm:$0xff]
    %v272 = vld [vmem:[%s1 + $0x5b4] sm:$0xf]
    %v273 = vld [vmem:[%s1 + $0x5b8] sm:$0xff]
    %v274 = vld [vmem:[%s1 + $0x5c0] sm:$0xf]
    %v275 = vld [vmem:[%s1 + $0x5c4] sm:$0xff]
    %v276 = vld [vmem:[%s1 + $0x5cc] sm:$0xf]
    %v277 = vld [vmem:[%s1 + $0x5d0] sm:$0xff]
    %v278 = vld [vmem:[%s1 + $0x5d8] sm:$0xf]
    %v279 = vld [vmem:[%s1 + $0x5dc] sm:$0xff]
    %v280 = vld [vmem:[%s1 + $0x5e4] sm:$0xf]
    %v281 = vld [vmem:[%s1 + $0x5e8] sm:$0xff]
    %v282 = vld [vmem:[%s1 + $0x5f0] sm:$0xf]
    %v283 = vld [vmem:[%s1 + $0x5f4] sm:$0xff]
    %v284 = vld [vmem:[%s1 + $0x5fc] sm:$0xf]
    %v285 = vld [vmem:[%s2] sm:$0x7]
    %v287 = vlaneseq
    %v288 = vshrl.u32 %v287, 7
    %v289 = vsub.s32 0, %v288
    %v290 = vrot.slane %v285, %v289
    %v291 = vlaneseq
    %v292 = vshrl.u32 %v291, 7
    %v293 = vsub.s32 1, %v292
    %v294 = vrot.slane %v285, %v293
    %v295 = vlaneseq
    %v296 = vshrl.u32 %v295, 7
    %v297 = vsub.s32 2, %v296
    %v298 = vrot.slane %v285, %v297
    %v303 = vcombine.high %v28, %v28
    %v305 = vunpack.c.l.s4 1966171168
    %v306 = vunpack.c.0.s8 %v305
    %v307 = vlaneseq
    %v308 = vshrl.u32 %v307, 7
    %v309 = vsub.s32 %v306, %v308
    %v310 = vrot.slane %v28, %v309
    %v312 = vunpack.c.l.s4 1966171168
    %v313 = vunpack.c.0.s8 %v312
    %v314 = vlaneseq
    %v315 = vshrl.u32 %v314, 7
    %v316 = vsub.s32 %v313, %v315
    %v317 = vrot.slane %v303, %v316
    %v318 = vcombine.high %v310, %v310
    %v319 = vcombine.high %v317, %v317
    %v321 = vunpack.c.l.s4 1966171168
    %v322 = vunpack.c.0.s8 %v321
    %v323 = vlaneseq
    %v324 = vshrl.u32 %v323, 7
    %v325 = vsub.s32 %v322, %v324
    %v326 = vrot.slane %v310, %v325
    %v328 = vunpack.c.l.s4 1966171168
    %v329 = vunpack.c.0.s8 %v328
    %v330 = vlaneseq
    %v331 = vshrl.u32 %v330, 7
    %v332 = vsub.s32 %v329, %v331
    %v333 = vrot.slane %v317, %v332
    %v335 = vunpack.c.l.s4 1966171168
    %v336 = vunpack.c.0.s8 %v335
    %v337 = vlaneseq
    %v338 = vshrl.u32 %v337, 7
    %v339 = vsub.s32 %v336, %v338
    %v340 = vrot.slane %v318, %v339
    %v342 = vunpack.c.l.s4 1966171168
    %v343 = vunpack.c.0.s8 %v342
    %v344 = vlaneseq
    %v345 = vshrl.u32 %v344, 7
    %v346 = vsub.s32 %v343, %v345
    %v347 = vrot.slane %v319, %v346
    %v348 = vcombine.high %v326, %v326
    %v349 = vcombine.high %v333, %v333
    %v350 = vcombine.high %v340, %v340
    %v351 = vcombine.high %v347, %v347
    %v616 = vunpack.c.l.b16 %v29
    %v617 = vunpack.c.h.b16 %v29
    %v618 = vunpack.c.l.b16 %v30
    %v619 = vunpack.c.l.b16 %v31
    %v620 = vunpack.c.h.b16 %v31
    %v621 = vunpack.c.l.b16 %v32
    %v622 = vunpack.c.l.b16 %v33
    %v623 = vunpack.c.h.b16 %v33
    %v624 = vunpack.c.l.b16 %v34
    %v625 = vunpack.c.l.b16 %v35
    %v626 = vunpack.c.h.b16 %v35
    %v627 = vunpack.c.l.b16 %v36
    %v628 = vunpack.c.l.b16 %v37
    %v629 = vunpack.c.h.b16 %v37
    %v630 = vunpack.c.l.b16 %v38
    %v631 = vunpack.c.l.b16 %v39
    %v632 = vunpack.c.h.b16 %v39
    %v633 = vunpack.c.l.b16 %v40
    %v634 = vunpack.c.l.b16 %v41
    %v635 = vunpack.c.h.b16 %v41
    %v636 = vunpack.c.l.b16 %v42
    %v637 = vunpack.c.l.b16 %v43
    %v638 = vunpack.c.h.b16 %v43
    %v639 = vunpack.c.l.b16 %v44
    %v640 = vunpack.c.l.b16 %v45
    %v641 = vunpack.c.h.b16 %v45
    %v642 = vunpack.c.l.b16 %v46
    %v643 = vunpack.c.l.b16 %v47
    %v644 = vunpack.c.h.b16 %v47
    %v645 = vunpack.c.l.b16 %v48
    %v646 = vunpack.c.l.b16 %v49
    %v647 = vunpack.c.h.b16 %v49
    %v648 = vunpack.c.l.b16 %v50
    %v649 = vunpack.c.l.b16 %v51
    %v650 = vunpack.c.h.b16 %v51
    %v651 = vunpack.c.l.b16 %v52
    %v652 = vunpack.c.l.b16 %v53
    %v653 = vunpack.c.h.b16 %v53
    %v654 = vunpack.c.l.b16 %v54
    %v655 = vunpack.c.l.b16 %v55
    %v656 = vunpack.c.h.b16 %v55
    %v657 = vunpack.c.l.b16 %v56
    %v658 = vunpack.c.l.b16 %v57
    %v659 = vunpack.c.h.b16 %v57
    %v660 = vunpack.c.l.b16 %v58
    %v661 = vunpack.c.l.b16 %v59
    %v662 = vunpack.c.h.b16 %v59
    %v663 = vunpack.c.l.b16 %v60
    %v664 = vunpack.c.l.b16 %v61
    %v665 = vunpack.c.h.b16 %v61
    %v666 = vunpack.c.l.b16 %v62
    %v667 = vunpack.c.l.b16 %v63
    %v668 = vunpack.c.h.b16 %v63
    %v669 = vunpack.c.l.b16 %v64
    %v670 = vunpack.c.l.b16 %v65
    %v671 = vunpack.c.h.b16 %v65
    %v672 = vunpack.c.l.b16 %v66
    %v673 = vunpack.c.l.b16 %v67
    %v674 = vunpack.c.h.b16 %v67
    %v675 = vunpack.c.l.b16 %v68
    %v676 = vunpack.c.l.b16 %v69
    %v677 = vunpack.c.h.b16 %v69
    %v678 = vunpack.c.l.b16 %v70
    %v679 = vunpack.c.l.b16 %v71
    %v680 = vunpack.c.h.b16 %v71
    %v681 = vunpack.c.l.b16 %v72
    %v682 = vunpack.c.l.b16 %v73
    %v683 = vunpack.c.h.b16 %v73
    %v684 = vunpack.c.l.b16 %v74
    %v685 = vunpack.c.l.b16 %v75
    %v686 = vunpack.c.h.b16 %v75
    %v687 = vunpack.c.l.b16 %v76
    %v688 = vunpack.c.l.b16 %v77
    %v689 = vunpack.c.h.b16 %v77
    %v690 = vunpack.c.l.b16 %v78
    %v691 = vunpack.c.l.b16 %v79
    %v692 = vunpack.c.h.b16 %v79
    %v693 = vunpack.c.l.b16 %v80
    %v694 = vunpack.c.l.b16 %v81
    %v695 = vunpack.c.h.b16 %v81
    %v696 = vunpack.c.l.b16 %v82
    %v697 = vunpack.c.l.b16 %v83
    %v698 = vunpack.c.h.b16 %v83
    %v699 = vunpack.c.l.b16 %v84
    %v700 = vunpack.c.l.b16 %v85
    %v701 = vunpack.c.h.b16 %v85
    %v702 = vunpack.c.l.b16 %v86
    %v703 = vunpack.c.l.b16 %v87
    %v704 = vunpack.c.h.b16 %v87
    %v705 = vunpack.c.l.b16 %v88
    %v706 = vunpack.c.l.b16 %v89
    %v707 = vunpack.c.h.b16 %v89
    %v708 = vunpack.c.l.b16 %v90
    %v709 = vunpack.c.l.b16 %v91
    %v710 = vunpack.c.h.b16 %v91
    %v711 = vunpack.c.l.b16 %v92
    %v712 = vunpack.c.l.b16 %v93
    %v713 = vunpack.c.h.b16 %v93
    %v714 = vunpack.c.l.b16 %v94
    %v715 = vunpack.c.l.b16 %v95
    %v716 = vunpack.c.h.b16 %v95
    %v717 = vunpack.c.l.b16 %v96
    %v718 = vunpack.c.l.b16 %v97
    %v719 = vunpack.c.h.b16 %v97
    %v720 = vunpack.c.l.b16 %v98
    %v721 = vunpack.c.l.b16 %v99
    %v722 = vunpack.c.h.b16 %v99
    %v723 = vunpack.c.l.b16 %v100
    %v724 = vunpack.c.l.b16 %v101
    %v725 = vunpack.c.h.b16 %v101
    %v726 = vunpack.c.l.b16 %v102
    %v727 = vunpack.c.l.b16 %v103
    %v728 = vunpack.c.h.b16 %v103
    %v729 = vunpack.c.l.b16 %v104
    %v730 = vunpack.c.l.b16 %v105
    %v731 = vunpack.c.h.b16 %v105
    %v732 = vunpack.c.l.b16 %v106
    %v733 = vunpack.c.l.b16 %v107
    %v734 = vunpack.c.h.b16 %v107
    %v735 = vunpack.c.l.b16 %v108
    %v736 = vunpack.c.l.b16 %v109
    %v737 = vunpack.c.h.b16 %v109
    %v738 = vunpack.c.l.b16 %v110
    %v739 = vunpack.c.l.b16 %v111
    %v740 = vunpack.c.h.b16 %v111
    %v741 = vunpack.c.l.b16 %v112
    %v742 = vunpack.c.l.b16 %v113
    %v743 = vunpack.c.h.b16 %v113
    %v744 = vunpack.c.l.b16 %v114
    %v745 = vunpack.c.l.b16 %v115
    %v746 = vunpack.c.h.b16 %v115
    %v747 = vunpack.c.l.b16 %v116
    %v748 = vunpack.c.l.b16 %v117
    %v749 = vunpack.c.h.b16 %v117
    %v750 = vunpack.c.l.b16 %v118
    %v751 = vunpack.c.l.b16 %v119
    %v752 = vunpack.c.h.b16 %v119
    %v753 = vunpack.c.l.b16 %v120
    %v754 = vunpack.c.l.b16 %v121
    %v755 = vunpack.c.h.b16 %v121
    %v756 = vunpack.c.l.b16 %v122
    %v757 = vunpack.c.l.b16 %v123
    %v758 = vunpack.c.h.b16 %v123
    %v759 = vunpack.c.l.b16 %v124
    %v760 = vunpack.c.l.b16 %v125
    %v761 = vunpack.c.h.b16 %v125
    %v762 = vunpack.c.l.b16 %v126
    %v763 = vunpack.c.l.b16 %v127
    %v764 = vunpack.c.h.b16 %v127
    %v765 = vunpack.c.l.b16 %v128
    %v766 = vunpack.c.l.b16 %v129
    %v767 = vunpack.c.h.b16 %v129
    %v768 = vunpack.c.l.b16 %v130
    %v769 = vunpack.c.l.b16 %v131
    %v770 = vunpack.c.h.b16 %v131
    %v771 = vunpack.c.l.b16 %v132
    %v772 = vunpack.c.l.b16 %v133
    %v773 = vunpack.c.h.b16 %v133
    %v774 = vunpack.c.l.b16 %v134
    %v775 = vunpack.c.l.b16 %v135
    %v776 = vunpack.c.h.b16 %v135
    %v777 = vunpack.c.l.b16 %v136
    %v778 = vunpack.c.l.b16 %v137
    %v779 = vunpack.c.h.b16 %v137
    %v780 = vunpack.c.l.b16 %v138
    %v781 = vunpack.c.l.b16 %v139
    %v782 = vunpack.c.h.b16 %v139
    %v783 = vunpack.c.l.b16 %v140
    %v784 = vunpack.c.l.b16 %v141
    %v785 = vunpack.c.h.b16 %v141
    %v786 = vunpack.c.l.b16 %v142
    %v787 = vunpack.c.l.b16 %v143
    %v788 = vunpack.c.h.b16 %v143
    %v789 = vunpack.c.l.b16 %v144
    %v790 = vunpack.c.l.b16 %v145
    %v791 = vunpack.c.h.b16 %v145
    %v792 = vunpack.c.l.b16 %v146
    %v793 = vunpack.c.l.b16 %v147
    %v794 = vunpack.c.h.b16 %v147
    %v795 = vunpack.c.l.b16 %v148
    %v796 = vunpack.c.l.b16 %v149
    %v797 = vunpack.c.h.b16 %v149
    %v798 = vunpack.c.l.b16 %v150
    %v799 = vunpack.c.l.b16 %v151
    %v800 = vunpack.c.h.b16 %v151
    %v801 = vunpack.c.l.b16 %v152
    %v802 = vunpack.c.l.b16 %v153
    %v803 = vunpack.c.h.b16 %v153
    %v804 = vunpack.c.l.b16 %v154
    %v805 = vunpack.c.l.b16 %v155
    %v806 = vunpack.c.h.b16 %v155
    %v807 = vunpack.c.l.b16 %v156
    %v808 = vunpack.c.l.b16 %v157
    %v809 = vunpack.c.h.b16 %v157
    %v810 = vunpack.c.l.b16 %v158
    %v811 = vunpack.c.l.b16 %v159
    %v812 = vunpack.c.h.b16 %v159
    %v813 = vunpack.c.l.b16 %v160
    %v814 = vunpack.c.l.b16 %v161
    %v815 = vunpack.c.h.b16 %v161
    %v816 = vunpack.c.l.b16 %v162
    %v817 = vunpack.c.l.b16 %v163
    %v818 = vunpack.c.h.b16 %v163
    %v819 = vunpack.c.l.b16 %v164
    %v820 = vunpack.c.l.b16 %v165
    %v821 = vunpack.c.h.b16 %v165
    %v822 = vunpack.c.l.b16 %v166
    %v823 = vunpack.c.l.b16 %v167
    %v824 = vunpack.c.h.b16 %v167
    %v825 = vunpack.c.l.b16 %v168
    %v826 = vunpack.c.l.b16 %v169
    %v827 = vunpack.c.h.b16 %v169
    %v828 = vunpack.c.l.b16 %v170
    %v829 = vunpack.c.l.b16 %v171
    %v830 = vunpack.c.h.b16 %v171
    %v831 = vunpack.c.l.b16 %v172
    %v832 = vunpack.c.l.b16 %v173
    %v833 = vunpack.c.h.b16 %v173
    %v834 = vunpack.c.l.b16 %v174
    %v835 = vunpack.c.l.b16 %v175
    %v836 = vunpack.c.h.b16 %v175
    %v837 = vunpack.c.l.b16 %v176
    %v838 = vunpack.c.l.b16 %v177
    %v839 = vunpack.c.h.b16 %v177
    %v840 = vunpack.c.l.b16 %v178
    %v841 = vunpack.c.l.b16 %v179
    %v842 = vunpack.c.h.b16 %v179
    %v843 = vunpack.c.l.b16 %v180
    %v844 = vunpack.c.l.b16 %v181
    %v845 = vunpack.c.h.b16 %v181
    %v846 = vunpack.c.l.b16 %v182
    %v847 = vunpack.c.l.b16 %v183
    %v848 = vunpack.c.h.b16 %v183
    %v849 = vunpack.c.l.b16 %v184
    %v850 = vunpack.c.l.b16 %v185
    %v851 = vunpack.c.h.b16 %v185
    %v852 = vunpack.c.l.b16 %v186
    %v853 = vunpack.c.l.b16 %v187
    %v854 = vunpack.c.h.b16 %v187
    %v855 = vunpack.c.l.b16 %v188
    %v856 = vunpack.c.l.b16 %v189
    %v857 = vunpack.c.h.b16 %v189
    %v858 = vunpack.c.l.b16 %v190
    %v859 = vunpack.c.l.b16 %v191
    %v860 = vunpack.c.h.b16 %v191
    %v861 = vunpack.c.l.b16 %v192
    %v862 = vunpack.c.l.b16 %v193
    %v863 = vunpack.c.h.b16 %v193
    %v864 = vunpack.c.l.b16 %v194
    %v865 = vunpack.c.l.b16 %v195
    %v866 = vunpack.c.h.b16 %v195
    %v867 = vunpack.c.l.b16 %v196
    %v868 = vunpack.c.l.b16 %v197
    %v869 = vunpack.c.h.b16 %v197
    %v870 = vunpack.c.l.b16 %v198
    %v871 = vunpack.c.l.b16 %v199
    %v872 = vunpack.c.h.b16 %v199
    %v873 = vunpack.c.l.b16 %v200
    %v874 = vunpack.c.l.b16 %v201
    %v875 = vunpack.c.h.b16 %v201
    %v876 = vunpack.c.l.b16 %v202
    %v877 = vunpack.c.l.b16 %v203
    %v878 = vunpack.c.h.b16 %v203
    %v879 = vunpack.c.l.b16 %v204
    %v880 = vunpack.c.l.b16 %v205
    %v881 = vunpack.c.h.b16 %v205
    %v882 = vunpack.c.l.b16 %v206
    %v883 = vunpack.c.l.b16 %v207
    %v884 = vunpack.c.h.b16 %v207
    %v885 = vunpack.c.l.b16 %v208
    %v886 = vunpack.c.l.b16 %v209
    %v887 = vunpack.c.h.b16 %v209
    %v888 = vunpack.c.l.b16 %v210
    %v889 = vunpack.c.l.b16 %v211
    %v890 = vunpack.c.h.b16 %v211
    %v891 = vunpack.c.l.b16 %v212
    %v892 = vunpack.c.l.b16 %v213
    %v893 = vunpack.c.h.b16 %v213
    %v894 = vunpack.c.l.b16 %v214
    %v895 = vunpack.c.l.b16 %v215
    %v896 = vunpack.c.h.b16 %v215
    %v897 = vunpack.c.l.b16 %v216
    %v898 = vunpack.c.l.b16 %v217
    %v899 = vunpack.c.h.b16 %v217
    %v900 = vunpack.c.l.b16 %v218
    %v901 = vunpack.c.l.b16 %v219
    %v902 = vunpack.c.h.b16 %v219
    %v903 = vunpack.c.l.b16 %v220
    %v904 = vunpack.c.l.b16 %v221
    %v905 = vunpack.c.h.b16 %v221
    %v906 = vunpack.c.l.b16 %v222
    %v907 = vunpack.c.l.b16 %v223
    %v908 = vunpack.c.h.b16 %v223
    %v909 = vunpack.c.l.b16 %v224
    %v910 = vunpack.c.l.b16 %v225
    %v911 = vunpack.c.h.b16 %v225
    %v912 = vunpack.c.l.b16 %v226
    %v913 = vunpack.c.l.b16 %v227
    %v914 = vunpack.c.h.b16 %v227
    %v915 = vunpack.c.l.b16 %v228
    %v916 = vunpack.c.l.b16 %v229
    %v917 = vunpack.c.h.b16 %v229
    %v918 = vunpack.c.l.b16 %v230
    %v919 = vunpack.c.l.b16 %v231
    %v920 = vunpack.c.h.b16 %v231
    %v921 = vunpack.c.l.b16 %v232
    %v922 = vunpack.c.l.b16 %v233
    %v923 = vunpack.c.h.b16 %v233
    %v924 = vunpack.c.l.b16 %v234
    %v925 = vunpack.c.l.b16 %v235
    %v926 = vunpack.c.h.b16 %v235
    %v927 = vunpack.c.l.b16 %v236
    %v928 = vunpack.c.l.b16 %v237
    %v929 = vunpack.c.h.b16 %v237
    %v930 = vunpack.c.l.b16 %v238
    %v931 = vunpack.c.l.b16 %v239
    %v932 = vunpack.c.h.b16 %v239
    %v933 = vunpack.c.l.b16 %v240
    %v934 = vunpack.c.l.b16 %v241
    %v935 = vunpack.c.h.b16 %v241
    %v936 = vunpack.c.l.b16 %v242
    %v937 = vunpack.c.l.b16 %v243
    %v938 = vunpack.c.h.b16 %v243
    %v939 = vunpack.c.l.b16 %v244
    %v940 = vunpack.c.l.b16 %v245
    %v941 = vunpack.c.h.b16 %v245
    %v942 = vunpack.c.l.b16 %v246
    %v943 = vunpack.c.l.b16 %v247
    %v944 = vunpack.c.h.b16 %v247
    %v945 = vunpack.c.l.b16 %v248
    %v946 = vunpack.c.l.b16 %v249
    %v947 = vunpack.c.h.b16 %v249
    %v948 = vunpack.c.l.b16 %v250
    %v949 = vunpack.c.l.b16 %v251
    %v950 = vunpack.c.h.b16 %v251
    %v951 = vunpack.c.l.b16 %v252
    %v952 = vunpack.c.l.b16 %v253
    %v953 = vunpack.c.h.b16 %v253
    %v954 = vunpack.c.l.b16 %v254
    %v955 = vunpack.c.l.b16 %v255
    %v956 = vunpack.c.h.b16 %v255
    %v957 = vunpack.c.l.b16 %v256
    %v958 = vunpack.c.l.b16 %v257
    %v959 = vunpack.c.h.b16 %v257
    %v960 = vunpack.c.l.b16 %v258
    %v961 = vunpack.c.l.b16 %v259
    %v962 = vunpack.c.h.b16 %v259
    %v963 = vunpack.c.l.b16 %v260
    %v964 = vunpack.c.l.b16 %v261
    %v965 = vunpack.c.h.b16 %v261
    %v966 = vunpack.c.l.b16 %v262
    %v967 = vunpack.c.l.b16 %v263
    %v968 = vunpack.c.h.b16 %v263
    %v969 = vunpack.c.l.b16 %v264
    %v970 = vunpack.c.l.b16 %v265
    %v971 = vunpack.c.h.b16 %v265
    %v972 = vunpack.c.l.b16 %v266
    %v973 = vunpack.c.l.b16 %v267
    %v974 = vunpack.c.h.b16 %v267
    %v975 = vunpack.c.l.b16 %v268
    %v976 = vunpack.c.l.b16 %v269
    %v977 = vunpack.c.h.b16 %v269
    %v978 = vunpack.c.l.b16 %v270
    %v979 = vunpack.c.l.b16 %v271
    %v980 = vunpack.c.h.b16 %v271
    %v981 = vunpack.c.l.b16 %v272
    %v982 = vunpack.c.l.b16 %v273
    %v983 = vunpack.c.h.b16 %v273
    %v984 = vunpack.c.l.b16 %v274
    %v985 = vunpack.c.l.b16 %v275
    %v986 = vunpack.c.h.b16 %v275
    %v987 = vunpack.c.l.b16 %v276
    %v988 = vunpack.c.l.b16 %v277
    %v989 = vunpack.c.h.b16 %v277
    %v990 = vunpack.c.l.b16 %v278
    %v991 = vunpack.c.l.b16 %v279
    %v992 = vunpack.c.h.b16 %v279
    %v993 = vunpack.c.l.b16 %v280
    %v994 = vunpack.c.l.b16 %v281
    %v995 = vunpack.c.h.b16 %v281
    %v996 = vunpack.c.l.b16 %v282
    %v997 = vunpack.c.l.b16 %v283
    %v998 = vunpack.c.h.b16 %v283
    %v999 = vunpack.c.l.b16 %v284
    %v1000 = vpack.c.b16 %v619, %v616
    %v1001 = vpack.c.b16 %v620, %v617
    %v1002 = vpack.c.b16 %v621, %v618
    %v1003 = vpack.c.b16 %v625, %v622
    %v1004 = vpack.c.b16 %v626, %v623
    %v1005 = vpack.c.b16 %v627, %v624
    %v1006 = vpack.c.b16 %v631, %v628
    %v1007 = vpack.c.b16 %v632, %v629
    %v1008 = vpack.c.b16 %v633, %v630
    %v1009 = vpack.c.b16 %v637, %v634
    %v1010 = vpack.c.b16 %v638, %v635
    %v1011 = vpack.c.b16 %v639, %v636
    %v1012 = vpack.c.b16 %v643, %v640
    %v1013 = vpack.c.b16 %v644, %v641
    %v1014 = vpack.c.b16 %v645, %v642
    %v1015 = vpack.c.b16 %v649, %v646
    %v1016 = vpack.c.b16 %v650, %v647
    %v1017 = vpack.c.b16 %v651, %v648
    %v1018 = vpack.c.b16 %v655, %v652
    %v1019 = vpack.c.b16 %v656, %v653
    %v1020 = vpack.c.b16 %v657, %v654
    %v1021 = vpack.c.b16 %v661, %v658
    %v1022 = vpack.c.b16 %v662, %v659
    %v1023 = vpack.c.b16 %v663, %v660
    %v1024 = vpack.c.b16 %v667, %v664
    %v1025 = vpack.c.b16 %v668, %v665
    %v1026 = vpack.c.b16 %v669, %v666
    %v1027 = vpack.c.b16 %v673, %v670
    %v1028 = vpack.c.b16 %v674, %v671
    %v1029 = vpack.c.b16 %v675, %v672
    %v1030 = vpack.c.b16 %v679, %v676
    %v1031 = vpack.c.b16 %v680, %v677
    %v1032 = vpack.c.b16 %v681, %v678
    %v1033 = vpack.c.b16 %v685, %v682
    %v1034 = vpack.c.b16 %v686, %v683
    %v1035 = vpack.c.b16 %v687, %v684
    %v1036 = vpack.c.b16 %v691, %v688
    %v1037 = vpack.c.b16 %v692, %v689
    %v1038 = vpack.c.b16 %v693, %v690
    %v1039 = vpack.c.b16 %v697, %v694
    %v1040 = vpack.c.b16 %v698, %v695
    %v1041 = vpack.c.b16 %v699, %v696
    %v1042 = vpack.c.b16 %v703, %v700
    %v1043 = vpack.c.b16 %v704, %v701
    %v1044 = vpack.c.b16 %v705, %v702
    %v1045 = vpack.c.b16 %v709, %v706
    %v1046 = vpack.c.b16 %v710, %v707
    %v1047 = vpack.c.b16 %v711, %v708
    %v1048 = vpack.c.b16 %v715, %v712
    %v1049 = vpack.c.b16 %v716, %v713
    %v1050 = vpack.c.b16 %v717, %v714
    %v1051 = vpack.c.b16 %v721, %v718
    %v1052 = vpack.c.b16 %v722, %v719
    %v1053 = vpack.c.b16 %v723, %v720
    %v1054 = vpack.c.b16 %v727, %v724
    %v1055 = vpack.c.b16 %v728, %v725
    %v1056 = vpack.c.b16 %v729, %v726
    %v1057 = vpack.c.b16 %v733, %v730
    %v1058 = vpack.c.b16 %v734, %v731
    %v1059 = vpack.c.b16 %v735, %v732
    %v1060 = vpack.c.b16 %v739, %v736
    %v1061 = vpack.c.b16 %v740, %v737
    %v1062 = vpack.c.b16 %v741, %v738
    %v1063 = vpack.c.b16 %v745, %v742
    %v1064 = vpack.c.b16 %v746, %v743
    %v1065 = vpack.c.b16 %v747, %v744
    %v1066 = vpack.c.b16 %v751, %v748
    %v1067 = vpack.c.b16 %v752, %v749
    %v1068 = vpack.c.b16 %v753, %v750
    %v1069 = vpack.c.b16 %v757, %v754
    %v1070 = vpack.c.b16 %v758, %v755
    %v1071 = vpack.c.b16 %v759, %v756
    %v1072 = vpack.c.b16 %v763, %v760
    %v1073 = vpack.c.b16 %v764, %v761
    %v1074 = vpack.c.b16 %v765, %v762
    %v1075 = vpack.c.b16 %v769, %v766
    %v1076 = vpack.c.b16 %v770, %v767
    %v1077 = vpack.c.b16 %v771, %v768
    %v1078 = vpack.c.b16 %v775, %v772
    %v1079 = vpack.c.b16 %v776, %v773
    %v1080 = vpack.c.b16 %v777, %v774
    %v1081 = vpack.c.b16 %v781, %v778
    %v1082 = vpack.c.b16 %v782, %v779
    %v1083 = vpack.c.b16 %v783, %v780
    %v1084 = vpack.c.b16 %v787, %v784
    %v1085 = vpack.c.b16 %v788, %v785
    %v1086 = vpack.c.b16 %v789, %v786
    %v1087 = vpack.c.b16 %v793, %v790
    %v1088 = vpack.c.b16 %v794, %v791
    %v1089 = vpack.c.b16 %v795, %v792
    %v1090 = vpack.c.b16 %v799, %v796
    %v1091 = vpack.c.b16 %v800, %v797
    %v1092 = vpack.c.b16 %v801, %v798
    %v1093 = vpack.c.b16 %v805, %v802
    %v1094 = vpack.c.b16 %v806, %v803
    %v1095 = vpack.c.b16 %v807, %v804
    %v1096 = vpack.c.b16 %v811, %v808
    %v1097 = vpack.c.b16 %v812, %v809
    %v1098 = vpack.c.b16 %v813, %v810
    %v1099 = vpack.c.b16 %v817, %v814
    %v1100 = vpack.c.b16 %v818, %v815
    %v1101 = vpack.c.b16 %v819, %v816
    %v1102 = vpack.c.b16 %v823, %v820
    %v1103 = vpack.c.b16 %v824, %v821
    %v1104 = vpack.c.b16 %v825, %v822
    %v1105 = vpack.c.b16 %v829, %v826
    %v1106 = vpack.c.b16 %v830, %v827
    %v1107 = vpack.c.b16 %v831, %v828
    %v1108 = vpack.c.b16 %v835, %v832
    %v1109 = vpack.c.b16 %v836, %v833
    %v1110 = vpack.c.b16 %v837, %v834
    %v1111 = vpack.c.b16 %v841, %v838
    %v1112 = vpack.c.b16 %v842, %v839
    %v1113 = vpack.c.b16 %v843, %v840
    %v1114 = vpack.c.b16 %v847, %v844
    %v1115 = vpack.c.b16 %v848, %v845
    %v1116 = vpack.c.b16 %v849, %v846
    %v1117 = vpack.c.b16 %v853, %v850
    %v1118 = vpack.c.b16 %v854, %v851
    %v1119 = vpack.c.b16 %v855, %v852
    %v1120 = vpack.c.b16 %v859, %v856
    %v1121 = vpack.c.b16 %v860, %v857
    %v1122 = vpack.c.b16 %v861, %v858
    %v1123 = vpack.c.b16 %v865, %v862
    %v1124 = vpack.c.b16 %v866, %v863
    %v1125 = vpack.c.b16 %v867, %v864
    %v1126 = vpack.c.b16 %v871, %v868
    %v1127 = vpack.c.b16 %v872, %v869
    %v1128 = vpack.c.b16 %v873, %v870
    %v1129 = vpack.c.b16 %v877, %v874
    %v1130 = vpack.c.b16 %v878, %v875
    %v1131 = vpack.c.b16 %v879, %v876
    %v1132 = vpack.c.b16 %v883, %v880
    %v1133 = vpack.c.b16 %v884, %v881
    %v1134 = vpack.c.b16 %v885, %v882
    %v1135 = vpack.c.b16 %v889, %v886
    %v1136 = vpack.c.b16 %v890, %v887
    %v1137 = vpack.c.b16 %v891, %v888
    %v1138 = vpack.c.b16 %v895, %v892
    %v1139 = vpack.c.b16 %v896, %v893
    %v1140 = vpack.c.b16 %v897, %v894
    %v1141 = vpack.c.b16 %v901, %v898
    %v1142 = vpack.c.b16 %v902, %v899
    %v1143 = vpack.c.b16 %v903, %v900
    %v1144 = vpack.c.b16 %v907, %v904
    %v1145 = vpack.c.b16 %v908, %v905
    %v1146 = vpack.c.b16 %v909, %v906
    %v1147 = vpack.c.b16 %v913, %v910
    %v1148 = vpack.c.b16 %v914, %v911
    %v1149 = vpack.c.b16 %v915, %v912
    %v1150 = vpack.c.b16 %v919, %v916
    %v1151 = vpack.c.b16 %v920, %v917
    %v1152 = vpack.c.b16 %v921, %v918
    %v1153 = vpack.c.b16 %v925, %v922
    %v1154 = vpack.c.b16 %v926, %v923
    %v1155 = vpack.c.b16 %v927, %v924
    %v1156 = vpack.c.b16 %v931, %v928
    %v1157 = vpack.c.b16 %v932, %v929
    %v1158 = vpack.c.b16 %v933, %v930
    %v1159 = vpack.c.b16 %v937, %v934
    %v1160 = vpack.c.b16 %v938, %v935
    %v1161 = vpack.c.b16 %v939, %v936
    %v1162 = vpack.c.b16 %v943, %v940
    %v1163 = vpack.c.b16 %v944, %v941
    %v1164 = vpack.c.b16 %v945, %v942
    %v1165 = vpack.c.b16 %v949, %v946
    %v1166 = vpack.c.b16 %v950, %v947
    %v1167 = vpack.c.b16 %v951, %v948
    %v1168 = vpack.c.b16 %v955, %v952
    %v1169 = vpack.c.b16 %v956, %v953
    %v1170 = vpack.c.b16 %v957, %v954
    %v1171 = vpack.c.b16 %v961, %v958
    %v1172 = vpack.c.b16 %v962, %v959
    %v1173 = vpack.c.b16 %v963, %v960
    %v1174 = vpack.c.b16 %v967, %v964
    %v1175 = vpack.c.b16 %v968, %v965
    %v1176 = vpack.c.b16 %v969, %v966
    %v1177 = vpack.c.b16 %v973, %v970
    %v1178 = vpack.c.b16 %v974, %v971
    %v1179 = vpack.c.b16 %v975, %v972
    %v1180 = vpack.c.b16 %v979, %v976
    %v1181 = vpack.c.b16 %v980, %v977
    %v1182 = vpack.c.b16 %v981, %v978
    %v1183 = vpack.c.b16 %v985, %v982
    %v1184 = vpack.c.b16 %v986, %v983
    %v1185 = vpack.c.b16 %v987, %v984
    %v1186 = vpack.c.b16 %v991, %v988
    %v1187 = vpack.c.b16 %v992, %v989
    %v1188 = vpack.c.b16 %v993, %v990
    %v1189 = vpack.c.b16 %v997, %v994
    %v1190 = vpack.c.b16 %v998, %v995
    %v1191 = vpack.c.b16 %v999, %v996
    %1384 = vmatprep.subr.bf16.mxu0 %v1022
    %1385 = vmatpush1.bf16.msra.mxu0 %v1021
    %1386 = vmatprep.subr.bf16.mxu0 %v1019
    %1387 = vmatpush1.bf16.msra.mxu0 %v1018
    %1388 = vmatprep.subr.bf16.mxu0 %v1016
    %1389 = vmatpush1.bf16.msra.mxu0 %v1015
    %1390 = vmatprep.subr.bf16.mxu0 %v1013
    %1391 = vmatpush1.bf16.msra.mxu0 %v1012
    %1392 = vmatprep.subr.bf16.mxu0 %v1010
    %1393 = vmatpush1.bf16.msra.mxu0 %v1009
    %1394 = vmatprep.subr.bf16.mxu0 %v1007
    %1395 = vmatpush1.bf16.msra.mxu0 %v1006
    %1396 = vmatprep.subr.bf16.mxu0 %v1004
    %1397 = vmatpush1.bf16.msra.mxu0 %v1003
    %1398 = vmatprep.subr.bf16.mxu0 %v1001
    %1399 = vmatpush1.bf16.msra.mxu0 %v1000
    %1400 = vmatprep.subr.bf16.mxu0 %v1046
    %1401 = vmatpush2.bf16.msra.mxu0 %v1045
    %1402 = vmatprep.subr.bf16.mxu0 %v1043
    %1403 = vmatpush2.bf16.msra.mxu0 %v1042
    %1404 = vmatprep.subr.bf16.mxu0 %v1040
    %1405 = vmatpush2.bf16.msra.mxu0 %v1039
    %1406 = vmatprep.subr.bf16.mxu0 %v1037
    %1407 = vmatpush2.bf16.msra.mxu0 %v1036
    %1408 = vmatprep.subr.bf16.mxu0 %v1034
    %1409 = vmatpush2.bf16.msra.mxu0 %v1033
    %1410 = vmatprep.subr.bf16.mxu0 %v1031
    %1411 = vmatpush2.bf16.msra.mxu0 %v1030
    %1412 = vmatprep.subr.bf16.mxu0 %v1028
    %1413 = vmatpush2.bf16.msra.mxu0 %v1027
    %1414 = vmatprep.subr.bf16.mxu0 %v1025
    %1415 = vmatpush2.bf16.msra.mxu0 %v1024
    %1416 = vmatprep.mubr.bf16.mxu0 %v340
    %1417 = vmatmul.mubr.bf16.gmra.mxu0 %v326
    %v1418 = vpop.f32.mrf.mxu0
    %v1419 = vadd.f32 %v290, %v1418
    %v1420 = vpop.f32.mrf.mxu0
    %v1421 = vadd.f32 %v294, %v1420
    %v1422 = vpop.f32.mrf.mxu0
    %v1423 = vpop.f32.mrf.mxu0
    %1424 = vdwg.mxu0
    %1425 = vmatprep.subr.bf16.mxu0 %v1070
    %1426 = vmatpush1.bf16.msra.mxu0 %v1069
    %1427 = vmatprep.subr.bf16.mxu0 %v1067
    %1428 = vmatpush1.bf16.msra.mxu0 %v1066
    %1429 = vmatprep.subr.bf16.mxu0 %v1064
    %1430 = vmatpush1.bf16.msra.mxu0 %v1063
    %1431 = vmatprep.subr.bf16.mxu0 %v1061
    %1432 = vmatpush1.bf16.msra.mxu0 %v1060
    %1433 = vmatprep.subr.bf16.mxu0 %v1058
    %1434 = vmatpush1.bf16.msra.mxu0 %v1057
    %1435 = vmatprep.subr.bf16.mxu0 %v1055
    %1436 = vmatpush1.bf16.msra.mxu0 %v1054
    %1437 = vmatprep.subr.bf16.mxu0 %v1052
    %1438 = vmatpush1.bf16.msra.mxu0 %v1051
    %1439 = vmatprep.subr.bf16.mxu0 %v1049
    %1440 = vmatpush1.bf16.msra.mxu0 %v1048
    %1441 = vmatprep.subr.bf16.mxu0 %v1094
    %1442 = vmatpush2.bf16.msra.mxu0 %v1093
    %1443 = vmatprep.subr.bf16.mxu0 %v1091
    %1444 = vmatpush2.bf16.msra.mxu0 %v1090
    %1445 = vmatprep.subr.bf16.mxu0 %v1088
    %1446 = vmatpush2.bf16.msra.mxu0 %v1087
    %1447 = vmatprep.subr.bf16.mxu0 %v1085
    %1448 = vmatpush2.bf16.msra.mxu0 %v1084
    %1449 = vmatprep.subr.bf16.mxu0 %v1082
    %1450 = vmatpush2.bf16.msra.mxu0 %v1081
    %1451 = vmatprep.subr.bf16.mxu0 %v1079
    %1452 = vmatpush2.bf16.msra.mxu0 %v1078
    %1453 = vmatprep.subr.bf16.mxu0 %v1076
    %1454 = vmatpush2.bf16.msra.mxu0 %v1075
    %1455 = vmatprep.subr.bf16.mxu0 %v1073
    %1456 = vmatpush2.bf16.msra.mxu0 %v1072
    %1457 = vmatprep.mubr.bf16.mxu0 %v350
    %1458 = vmatmul.mubr.bf16.gmra.mxu0 %v348
    %v1459 = vpop.f32.mrf.mxu0
    %v1460 = vadd.f32 %v1419, %v1459
    %v1461 = vpop.f32.mrf.mxu0
    %v1462 = vadd.f32 %v1421, %v1461
    %v1463 = vpop.f32.mrf.mxu0
    %v1464 = vpop.f32.mrf.mxu0
    %1465 = vdwg.mxu0
    %1466 = vmatprep.subr.bf16.mxu0 %v1118
    %1467 = vmatpush1.bf16.msra.mxu0 %v1117
    %1468 = vmatprep.subr.bf16.mxu0 %v1115
    %1469 = vmatpush1.bf16.msra.mxu0 %v1114
    %1470 = vmatprep.subr.bf16.mxu0 %v1112
    %1471 = vmatpush1.bf16.msra.mxu0 %v1111
    %1472 = vmatprep.subr.bf16.mxu0 %v1109
    %1473 = vmatpush1.bf16.msra.mxu0 %v1108
    %1474 = vmatprep.subr.bf16.mxu0 %v1106
    %1475 = vmatpush1.bf16.msra.mxu0 %v1105
    %1476 = vmatprep.subr.bf16.mxu0 %v1103
    %1477 = vmatpush1.bf16.msra.mxu0 %v1102
    %1478 = vmatprep.subr.bf16.mxu0 %v1100
    %1479 = vmatpush1.bf16.msra.mxu0 %v1099
    %1480 = vmatprep.subr.bf16.mxu0 %v1097
    %1481 = vmatpush1.bf16.msra.mxu0 %v1096
    %1482 = vmatprep.subr.bf16.mxu0 %v1142
    %1483 = vmatpush2.bf16.msra.mxu0 %v1141
    %1484 = vmatprep.subr.bf16.mxu0 %v1139
    %1485 = vmatpush2.bf16.msra.mxu0 %v1138
    %1486 = vmatprep.subr.bf16.mxu0 %v1136
    %1487 = vmatpush2.bf16.msra.mxu0 %v1135
    %1488 = vmatprep.subr.bf16.mxu0 %v1133
    %1489 = vmatpush2.bf16.msra.mxu0 %v1132
    %1490 = vmatprep.subr.bf16.mxu0 %v1130
    %1491 = vmatpush2.bf16.msra.mxu0 %v1129
    %1492 = vmatprep.subr.bf16.mxu0 %v1127
    %1493 = vmatpush2.bf16.msra.mxu0 %v1126
    %1494 = vmatprep.subr.bf16.mxu0 %v1124
    %1495 = vmatpush2.bf16.msra.mxu0 %v1123
    %1496 = vmatprep.subr.bf16.mxu0 %v1121
    %1497 = vmatpush2.bf16.msra.mxu0 %v1120
    %1498 = vmatprep.mubr.bf16.mxu0 %v347
    %1499 = vmatmul.mubr.bf16.gmra.mxu0 %v333
    %v1500 = vpop.f32.mrf.mxu0
    %v1501 = vadd.f32 %v1460, %v1500
    %v1502 = vpop.f32.mrf.mxu0
    %v1503 = vadd.f32 %v1462, %v1502
    %v1504 = vpop.f32.mrf.mxu0
    %v1505 = vpop.f32.mrf.mxu0
    %1506 = vdwg.mxu0
    %1507 = vmatprep.subr.bf16.mxu0 %v1166
    %1508 = vmatpush1.bf16.msra.mxu0 %v1165
    %1509 = vmatprep.subr.bf16.mxu0 %v1163
    %1510 = vmatpush1.bf16.msra.mxu0 %v1162
    %1511 = vmatprep.subr.bf16.mxu0 %v1160
    %1512 = vmatpush1.bf16.msra.mxu0 %v1159
    %1513 = vmatprep.subr.bf16.mxu0 %v1157
    %1514 = vmatpush1.bf16.msra.mxu0 %v1156
    %1515 = vmatprep.subr.bf16.mxu0 %v1154
    %1516 = vmatpush1.bf16.msra.mxu0 %v1153
    %1517 = vmatprep.subr.bf16.mxu0 %v1151
    %1518 = vmatpush1.bf16.msra.mxu0 %v1150
    %1519 = vmatprep.subr.bf16.mxu0 %v1148
    %1520 = vmatpush1.bf16.msra.mxu0 %v1147
    %1521 = vmatprep.subr.bf16.mxu0 %v1145
    %1522 = vmatpush1.bf16.msra.mxu0 %v1144
    %1523 = vmatprep.subr.bf16.mxu0 %v1190
    %1524 = vmatpush2.bf16.msra.mxu0 %v1189
    %1525 = vmatprep.subr.bf16.mxu0 %v1187
    %1526 = vmatpush2.bf16.msra.mxu0 %v1186
    %1527 = vmatprep.subr.bf16.mxu0 %v1184
    %1528 = vmatpush2.bf16.msra.mxu0 %v1183
    %1529 = vmatprep.subr.bf16.mxu0 %v1181
    %1530 = vmatpush2.bf16.msra.mxu0 %v1180
    %1531 = vmatprep.subr.bf16.mxu0 %v1178
    %1532 = vmatpush2.bf16.msra.mxu0 %v1177
    %1533 = vmatprep.subr.bf16.mxu0 %v1175
    %1534 = vmatpush2.bf16.msra.mxu0 %v1174
    %1535 = vmatprep.subr.bf16.mxu0 %v1172
    %1536 = vmatpush2.bf16.msra.mxu0 %v1171
    %1537 = vmatprep.subr.bf16.mxu0 %v1169
    %1538 = vmatpush2.bf16.msra.mxu0 %v1168
    %1539 = vmatprep.mubr.bf16.mxu0 %v351
    %1540 = vmatmul.mubr.bf16.gmra.mxu0 %v349
    %v1541 = vpop.f32.mrf.mxu0
    %v1542 = vadd.f32 %v1501, %v1541
    %v1543 = vpop.f32.mrf.mxu0
    %v1544 = vadd.f32 %v1503, %v1543
    %v1545 = vpop.f32.mrf.mxu0
    %v1546 = vpop.f32.mrf.mxu0
    %1547 = vdwg.mxu0
    %1548 = vmatprep.subr.bf16.mxu0 0
    %1549 = vmatpush1.bf16.msra.mxu0 %v1023
    %1550 = vmatprep.subr.bf16.mxu0 0
    %1551 = vmatpush1.bf16.msra.mxu0 %v1020
    %1552 = vmatprep.subr.bf16.mxu0 0
    %1553 = vmatpush1.bf16.msra.mxu0 %v1017
    %1554 = vmatprep.subr.bf16.mxu0 0
    %1555 = vmatpush1.bf16.msra.mxu0 %v1014
    %1556 = vmatprep.subr.bf16.mxu0 0
    %1557 = vmatpush1.bf16.msra.mxu0 %v1011
    %1558 = vmatprep.subr.bf16.mxu0 0
    %1559 = vmatpush1.bf16.msra.mxu0 %v1008
    %1560 = vmatprep.subr.bf16.mxu0 0
    %1561 = vmatpush1.bf16.msra.mxu0 %v1005
    %1562 = vmatprep.subr.bf16.mxu0 0
    %1563 = vmatpush1.bf16.msra.mxu0 %v1002
    %1564 = vmatprep.subr.bf16.mxu0 0
    %1565 = vmatpush2.bf16.msra.mxu0 %v1047
    %1566 = vmatprep.subr.bf16.mxu0 0
    %1567 = vmatpush2.bf16.msra.mxu0 %v1044
    %1568 = vmatprep.subr.bf16.mxu0 0
    %1569 = vmatpush2.bf16.msra.mxu0 %v1041
    %1570 = vmatprep.subr.bf16.mxu0 0
    %1571 = vmatpush2.bf16.msra.mxu0 %v1038
    %1572 = vmatprep.subr.bf16.mxu0 0
    %1573 = vmatpush2.bf16.msra.mxu0 %v1035
    %1574 = vmatprep.subr.bf16.mxu0 0
    %1575 = vmatpush2.bf16.msra.mxu0 %v1032
    %1576 = vmatprep.subr.bf16.mxu0 0
    %1577 = vmatpush2.bf16.msra.mxu0 %v1029
    %1578 = vmatprep.subr.bf16.mxu0 0
    %1579 = vmatpush2.bf16.msra.mxu0 %v1026
    %1580 = vmatprep.mubr.bf16.mxu0 %v340
    %1581 = vmatmul.mubr.bf16.gmra.mxu0 %v326
    %v1582 = vpop.f32.mrf.mxu0
    %v1583 = vadd.f32 %v298, %v1582
    %v1584 = vpop.f32.mrf.mxu0
    %v1585 = vpop.f32.mrf.mxu0
    %v1586 = vpop.f32.mrf.mxu0
    %1587 = vdwg.mxu0
    %1588 = vmatprep.subr.bf16.mxu0 0
    %1589 = vmatpush1.bf16.msra.mxu0 %v1071
    %1590 = vmatprep.subr.bf16.mxu0 0
    %1591 = vmatpush1.bf16.msra.mxu0 %v1068
    %1592 = vmatprep.subr.bf16.mxu0 0
    %1593 = vmatpush1.bf16.msra.mxu0 %v1065
    %1594 = vmatprep.subr.bf16.mxu0 0
    %1595 = vmatpush1.bf16.msra.mxu0 %v1062
    %1596 = vmatprep.subr.bf16.mxu0 0
    %1597 = vmatpush1.bf16.msra.mxu0 %v1059
    %1598 = vmatprep.subr.bf16.mxu0 0
    %1599 = vmatpush1.bf16.msra.mxu0 %v1056
    %1600 = vmatprep.subr.bf16.mxu0 0
    %1601 = vmatpush1.bf16.msra.mxu0 %v1053
    %1602 = vmatprep.subr.bf16.mxu0 0
    %1603 = vmatpush1.bf16.msra.mxu0 %v1050
    %1604 = vmatprep.subr.bf16.mxu0 0
    %1605 = vmatpush2.bf16.msra.mxu0 %v1095
    %1606 = vmatprep.subr.bf16.mxu0 0
    %1607 = vmatpush2.bf16.msra.mxu0 %v1092
    %1608 = vmatprep.subr.bf16.mxu0 0
    %1609 = vmatpush2.bf16.msra.mxu0 %v1089
    %1610 = vmatprep.subr.bf16.mxu0 0
    %1611 = vmatpush2.bf16.msra.mxu0 %v1086
    %1612 = vmatprep.subr.bf16.mxu0 0
    %1613 = vmatpush2.bf16.msra.mxu0 %v1083
    %1614 = vmatprep.subr.bf16.mxu0 0
    %1615 = vmatpush2.bf16.msra.mxu0 %v1080
    %1616 = vmatprep.subr.bf16.mxu0 0
    %1617 = vmatpush2.bf16.msra.mxu0 %v1077
    %1618 = vmatprep.subr.bf16.mxu0 0
    %1619 = vmatpush2.bf16.msra.mxu0 %v1074
    %1620 = vmatprep.mubr.bf16.mxu0 %v350
    %1621 = vmatmul.mubr.bf16.gmra.mxu0 %v348
    %v1622 = vpop.f32.mrf.mxu0
    %v1623 = vadd.f32 %v1583, %v1622
    %v1624 = vpop.f32.mrf.mxu0
    %v1625 = vpop.f32.mrf.mxu0
    %v1626 = vpop.f32.mrf.mxu0
    %1627 = vdwg.mxu0
    %1628 = vmatprep.subr.bf16.mxu0 0
    %1629 = vmatpush1.bf16.msra.mxu0 %v1119
    %1630 = vmatprep.subr.bf16.mxu0 0
    %1631 = vmatpush1.bf16.msra.mxu0 %v1116
    %1632 = vmatprep.subr.bf16.mxu0 0
    %1633 = vmatpush1.bf16.msra.mxu0 %v1113
    %1634 = vmatprep.subr.bf16.mxu0 0
    %1635 = vmatpush1.bf16.msra.mxu0 %v1110
    %1636 = vmatprep.subr.bf16.mxu0 0
    %1637 = vmatpush1.bf16.msra.mxu0 %v1107
    %1638 = vmatprep.subr.bf16.mxu0 0
    %1639 = vmatpush1.bf16.msra.mxu0 %v1104
    %1640 = vmatprep.subr.bf16.mxu0 0
    %1641 = vmatpush1.bf16.msra.mxu0 %v1101
    %1642 = vmatprep.subr.bf16.mxu0 0
    %1643 = vmatpush1.bf16.msra.mxu0 %v1098
    %1644 = vmatprep.subr.bf16.mxu0 0
    %1645 = vmatpush2.bf16.msra.mxu0 %v1143
    %1646 = vmatprep.subr.bf16.mxu0 0
    %1647 = vmatpush2.bf16.msra.mxu0 %v1140
    %1648 = vmatprep.subr.bf16.mxu0 0
    %1649 = vmatpush2.bf16.msra.mxu0 %v1137
    %1650 = vmatprep.subr.bf16.mxu0 0
    %1651 = vmatpush2.bf16.msra.mxu0 %v1134
    %1652 = vmatprep.subr.bf16.mxu0 0
    %1653 = vmatpush2.bf16.msra.mxu0 %v1131
    %1654 = vmatprep.subr.bf16.mxu0 0
    %1655 = vmatpush2.bf16.msra.mxu0 %v1128
    %1656 = vmatprep.subr.bf16.mxu0 0
    %1657 = vmatpush2.bf16.msra.mxu0 %v1125
    %1658 = vmatprep.subr.bf16.mxu0 0
    %1659 = vmatpush2.bf16.msra.mxu0 %v1122
    %1660 = vmatprep.mubr.bf16.mxu0 %v347
    %1661 = vmatmul.mubr.bf16.gmra.mxu0 %v333
    %v1662 = vpop.f32.mrf.mxu0
    %v1663 = vadd.f32 %v1623, %v1662
    %v1664 = vpop.f32.mrf.mxu0
    %v1665 = vpop.f32.mrf.mxu0
    %v1666 = vpop.f32.mrf.mxu0
    %1667 = vdwg.mxu0
    %1668 = vmatprep.subr.bf16.mxu0 0
    %1669 = vmatpush1.bf16.msra.mxu0 %v1167
    %1670 = vmatprep.subr.bf16.mxu0 0
    %1671 = vmatpush1.bf16.msra.mxu0 %v1164
    %1672 = vmatprep.subr.bf16.mxu0 0
    %1673 = vmatpush1.bf16.msra.mxu0 %v1161
    %1674 = vmatprep.subr.bf16.mxu0 0
    %1675 = vmatpush1.bf16.msra.mxu0 %v1158
    %1676 = vmatprep.subr.bf16.mxu0 0
    %1677 = vmatpush1.bf16.msra.mxu0 %v1155
    %1678 = vmatprep.subr.bf16.mxu0 0
    %1679 = vmatpush1.bf16.msra.mxu0 %v1152
    %1680 = vmatprep.subr.bf16.mxu0 0
    %1681 = vmatpush1.bf16.msra.mxu0 %v1149
    %1682 = vmatprep.subr.bf16.mxu0 0
    %1683 = vmatpush1.bf16.msra.mxu0 %v1146
    %1684 = vmatprep.subr.bf16.mxu0 0
    %1685 = vmatpush2.bf16.msra.mxu0 %v1191
    %1686 = vmatprep.subr.bf16.mxu0 0
    %1687 = vmatpush2.bf16.msra.mxu0 %v1188
    %1688 = vmatprep.subr.bf16.mxu0 0
    %1689 = vmatpush2.bf16.msra.mxu0 %v1185
    %1690 = vmatprep.subr.bf16.mxu0 0
    %1691 = vmatpush2.bf16.msra.mxu0 %v1182
    %1692 = vmatprep.subr.bf16.mxu0 0
    %1693 = vmatpush2.bf16.msra.mxu0 %v1179
    %1694 = vmatprep.subr.bf16.mxu0 0
    %1695 = vmatpush2.bf16.msra.mxu0 %v1176
    %1696 = vmatprep.subr.bf16.mxu0 0
    %1697 = vmatpush2.bf16.msra.mxu0 %v1173
    %1698 = vmatprep.subr.bf16.mxu0 0
    %1699 = vmatpush2.bf16.msra.mxu0 %v1170
    %1700 = vmatprep.mubr.bf16.mxu0 %v351
    %1701 = vmatmul.mubr.bf16.gmra.mxu0 %v349
    %v1702 = vpop.f32.mrf.mxu0
    %v1703 = vadd.f32 %v1663, %v1702
    %v1704 = vpop.f32.mrf.mxu0
    %v1705 = vpop.f32.mrf.mxu0
    %v1706 = vpop.f32.mrf.mxu0
    %1707 = vdwg.mxu0
    %v1708 = vmax.f32 %v1542, 0.0
    %v1709 = vmax.f32 %v1544, 0.0
    %v1710 = vmax.f32 %v1703, 0.0
    %v1711 = vpack.c.bf16 %v1708, %v1708
    %v1712 = vpack.c.bf16 %v1709, %v1709
    %v1713 = vpack.c.bf16 %v1710, %v1710
    %v1714 = vld [vmem:[%s3] sm:$0xff]
    %v1715 = vld [vmem:[%s3 + $0x8] sm:$0xff]
    %v1716 = vld [vmem:[%s3 + $0x10] sm:$0xff]
    %v1717 = vld [vmem:[%s3 + $0x18] sm:$0xff]
    %v1718 = vld [vmem:[%s3 + $0x20] sm:$0xff]
    %v1719 = vld [vmem:[%s3 + $0x28] sm:$0xff]
    %v1720 = vld [vmem:[%s3 + $0x30] sm:$0xff]
    %v1721 = vld [vmem:[%s3 + $0x38] sm:$0xff]
    %v1722 = vld [vmem:[%s3 + $0x40] sm:$0xff]
    %v1723 = vld [vmem:[%s3 + $0x48] sm:$0xff]
    %v1724 = vld [vmem:[%s3 + $0x50] sm:$0xff]
    %v1725 = vld [vmem:[%s3 + $0x58] sm:$0xff]
    %v1726 = vld [vmem:[%s3 + $0x60] sm:$0xff]
    %v1727 = vld [vmem:[%s3 + $0x68] sm:$0xff]
    %v1728 = vld [vmem:[%s3 + $0x70] sm:$0xff]
    %v1729 = vld [vmem:[%s3 + $0x78] sm:$0xff]
    %v1730 = vld [vmem:[%s3 + $0x80] sm:$0xff]
    %v1731 = vld [vmem:[%s3 + $0x88] sm:$0xff]
    %v1732 = vld [vmem:[%s3 + $0x90] sm:$0xff]
    %v1733 = vld [vmem:[%s3 + $0x98] sm:$0xff]
    %v1734 = vld [vmem:[%s3 + $0xa0] sm:$0xff]
    %v1735 = vld [vmem:[%s3 + $0xa8] sm:$0xff]
    %v1736 = vld [vmem:[%s3 + $0xb0] sm:$0xff]
    %v1737 = vld [vmem:[%s3 + $0xb8] sm:$0xff]
    %v1738 = vld [vmem:[%s3 + $0xc0] sm:$0xff]
    %v1739 = vld [vmem:[%s3 + $0xc8] sm:$0xff]
    %v1740 = vld [vmem:[%s3 + $0xd0] sm:$0xff]
    %v1741 = vld [vmem:[%s3 + $0xd8] sm:$0xff]
    %v1742 = vld [vmem:[%s3 + $0xe0] sm:$0xff]
    %v1743 = vld [vmem:[%s3 + $0xe8] sm:$0xff]
    %v1744 = vld [vmem:[%s3 + $0xf0] sm:$0xff]
    %v1745 = vld [vmem:[%s3 + $0xf8] sm:$0xff]
    %v1746 = vld [vmem:[%s3 + $0x100] sm:$0xff]
    %v1747 = vld [vmem:[%s3 + $0x108] sm:$0xff]
    %v1748 = vld [vmem:[%s3 + $0x110] sm:$0xff]
    %v1749 = vld [vmem:[%s3 + $0x118] sm:$0xff]
    %v1750 = vld [vmem:[%s3 + $0x120] sm:$0xff]
    %v1751 = vld [vmem:[%s3 + $0x128] sm:$0xff]
    %v1752 = vld [vmem:[%s3 + $0x130] sm:$0xff]
    %v1753 = vld [vmem:[%s3 + $0x138] sm:$0xff]
    %v1754 = vld [vmem:[%s3 + $0x140] sm:$0xff]
    %v1755 = vld [vmem:[%s3 + $0x148] sm:$0xff]
    %v1756 = vld [vmem:[%s3 + $0x150] sm:$0xff]
    %v1757 = vld [vmem:[%s3 + $0x158] sm:$0xff]
    %v1758 = vld [vmem:[%s3 + $0x160] sm:$0xff]
    %v1759 = vld [vmem:[%s3 + $0x168] sm:$0xff]
    %v1760 = vld [vmem:[%s3 + $0x170] sm:$0xff]
    %v1761 = vld [vmem:[%s3 + $0x178] sm:$0xff]
    %v1762 = vld [vmem:[%s4] sm:$0x3]
    %v1764 = vlaneseq
    %v1765 = vshrl.u32 %v1764, 7
    %v1766 = vsub.s32 0, %v1765
    %v1767 = vrot.slane %v1762, %v1766
    %v1768 = vlaneseq
    %v1769 = vshrl.u32 %v1768, 7
    %v1770 = vsub.s32 1, %v1769
    %v1771 = vrot.slane %v1762, %v1770
    %v1822 = vunpack.c.l.b16 %v1714
    %v1823 = vunpack.c.h.b16 %v1714
    %v1824 = vunpack.c.l.b16 %v1715
    %v1825 = vunpack.c.h.b16 %v1715
    %v1826 = vunpack.c.l.b16 %v1716
    %v1827 = vunpack.c.h.b16 %v1716
    %v1828 = vunpack.c.l.b16 %v1717
    %v1829 = vunpack.c.h.b16 %v1717
    %v1830 = vunpack.c.l.b16 %v1718
    %v1831 = vunpack.c.h.b16 %v1718
    %v1832 = vunpack.c.l.b16 %v1719
    %v1833 = vunpack.c.h.b16 %v1719
    %v1834 = vunpack.c.l.b16 %v1720
    %v1835 = vunpack.c.h.b16 %v1720
    %v1836 = vunpack.c.l.b16 %v1721
    %v1837 = vunpack.c.h.b16 %v1721
    %v1838 = vunpack.c.l.b16 %v1722
    %v1839 = vunpack.c.h.b16 %v1722
    %v1840 = vunpack.c.l.b16 %v1723
    %v1841 = vunpack.c.h.b16 %v1723
    %v1842 = vunpack.c.l.b16 %v1724
    %v1843 = vunpack.c.h.b16 %v1724
    %v1844 = vunpack.c.l.b16 %v1725
    %v1845 = vunpack.c.h.b16 %v1725
    %v1846 = vunpack.c.l.b16 %v1726
    %v1847 = vunpack.c.h.b16 %v1726
    %v1848 = vunpack.c.l.b16 %v1727
    %v1849 = vunpack.c.h.b16 %v1727
    %v1850 = vunpack.c.l.b16 %v1728
    %v1851 = vunpack.c.h.b16 %v1728
    %v1852 = vunpack.c.l.b16 %v1729
    %v1853 = vunpack.c.h.b16 %v1729
    %v1854 = vunpack.c.l.b16 %v1730
    %v1855 = vunpack.c.h.b16 %v1730
    %v1856 = vunpack.c.l.b16 %v1731
    %v1857 = vunpack.c.h.b16 %v1731
    %v1858 = vunpack.c.l.b16 %v1732
    %v1859 = vunpack.c.h.b16 %v1732
    %v1860 = vunpack.c.l.b16 %v1733
    %v1861 = vunpack.c.h.b16 %v1733
    %v1862 = vunpack.c.l.b16 %v1734
    %v1863 = vunpack.c.h.b16 %v1734
    %v1864 = vunpack.c.l.b16 %v1735
    %v1865 = vunpack.c.h.b16 %v1735
    %v1866 = vunpack.c.l.b16 %v1736
    %v1867 = vunpack.c.h.b16 %v1736
    %v1868 = vunpack.c.l.b16 %v1737
    %v1869 = vunpack.c.h.b16 %v1737
    %v1870 = vunpack.c.l.b16 %v1738
    %v1871 = vunpack.c.h.b16 %v1738
    %v1872 = vunpack.c.l.b16 %v1739
    %v1873 = vunpack.c.h.b16 %v1739
    %v1874 = vunpack.c.l.b16 %v1740
    %v1875 = vunpack.c.h.b16 %v1740
    %v1876 = vunpack.c.l.b16 %v1741
    %v1877 = vunpack.c.h.b16 %v1741
    %v1878 = vunpack.c.l.b16 %v1742
    %v1879 = vunpack.c.h.b16 %v1742
    %v1880 = vunpack.c.l.b16 %v1743
    %v1881 = vunpack.c.h.b16 %v1743
    %v1882 = vunpack.c.l.b16 %v1744
    %v1883 = vunpack.c.h.b16 %v1744
    %v1884 = vunpack.c.l.b16 %v1745
    %v1885 = vunpack.c.h.b16 %v1745
    %v1886 = vunpack.c.l.b16 %v1746
    %v1887 = vunpack.c.h.b16 %v1746
    %v1888 = vunpack.c.l.b16 %v1747
    %v1889 = vunpack.c.h.b16 %v1747
    %v1890 = vunpack.c.l.b16 %v1748
    %v1891 = vunpack.c.h.b16 %v1748
    %v1892 = vunpack.c.l.b16 %v1749
    %v1893 = vunpack.c.h.b16 %v1749
    %v1894 = vunpack.c.l.b16 %v1750
    %v1895 = vunpack.c.h.b16 %v1750
    %v1896 = vunpack.c.l.b16 %v1751
    %v1897 = vunpack.c.h.b16 %v1751
    %v1898 = vunpack.c.l.b16 %v1752
    %v1899 = vunpack.c.h.b16 %v1752
    %v1900 = vunpack.c.l.b16 %v1753
    %v1901 = vunpack.c.h.b16 %v1753
    %v1902 = vunpack.c.l.b16 %v1754
    %v1903 = vunpack.c.h.b16 %v1754
    %v1904 = vunpack.c.l.b16 %v1755
    %v1905 = vunpack.c.h.b16 %v1755
    %v1906 = vunpack.c.l.b16 %v1756
    %v1907 = vunpack.c.h.b16 %v1756
    %v1908 = vunpack.c.l.b16 %v1757
    %v1909 = vunpack.c.h.b16 %v1757
    %v1910 = vunpack.c.l.b16 %v1758
    %v1911 = vunpack.c.h.b16 %v1758
    %v1912 = vunpack.c.l.b16 %v1759
    %v1913 = vunpack.c.h.b16 %v1759
    %v1914 = vunpack.c.l.b16 %v1760
    %v1915 = vunpack.c.h.b16 %v1760
    %v1916 = vunpack.c.l.b16 %v1761
    %v1917 = vunpack.c.h.b16 %v1761
    %v1918 = vpack.c.b16 %v1824, %v1822
    %v1919 = vpack.c.b16 %v1825, %v1823
    %v1920 = vpack.c.b16 %v1828, %v1826
    %v1921 = vpack.c.b16 %v1829, %v1827
    %v1922 = vpack.c.b16 %v1832, %v1830
    %v1923 = vpack.c.b16 %v1833, %v1831
    %v1924 = vpack.c.b16 %v1836, %v1834
    %v1925 = vpack.c.b16 %v1837, %v1835
    %v1926 = vpack.c.b16 %v1840, %v1838
    %v1927 = vpack.c.b16 %v1841, %v1839
    %v1928 = vpack.c.b16 %v1844, %v1842
    %v1929 = vpack.c.b16 %v1845, %v1843
    %v1930 = vpack.c.b16 %v1848, %v1846
    %v1931 = vpack.c.b16 %v1849, %v1847
    %v1932 = vpack.c.b16 %v1852, %v1850
    %v1933 = vpack.c.b16 %v1853, %v1851
    %v1934 = vpack.c.b16 %v1856, %v1854
    %v1935 = vpack.c.b16 %v1857, %v1855
    %v1936 = vpack.c.b16 %v1860, %v1858
    %v1937 = vpack.c.b16 %v1861, %v1859
    %v1938 = vpack.c.b16 %v1864, %v1862
    %v1939 = vpack.c.b16 %v1865, %v1863
    %v1940 = vpack.c.b16 %v1868, %v1866
    %v1941 = vpack.c.b16 %v1869, %v1867
    %v1942 = vpack.c.b16 %v1872, %v1870
    %v1943 = vpack.c.b16 %v1873, %v1871
    %v1944 = vpack.c.b16 %v1876, %v1874
    %v1945 = vpack.c.b16 %v1877, %v1875
    %v1946 = vpack.c.b16 %v1880, %v1878
    %v1947 = vpack.c.b16 %v1881, %v1879
    %v1948 = vpack.c.b16 %v1884, %v1882
    %v1949 = vpack.c.b16 %v1885, %v1883
    %v1950 = vpack.c.b16 %v1888, %v1886
    %v1951 = vpack.c.b16 %v1889, %v1887
    %v1952 = vpack.c.b16 %v1892, %v1890
    %v1953 = vpack.c.b16 %v1893, %v1891
    %v1954 = vpack.c.b16 %v1896, %v1894
    %v1955 = vpack.c.b16 %v1897, %v1895
    %v1956 = vpack.c.b16 %v1900, %v1898
    %v1957 = vpack.c.b16 %v1901, %v1899
    %v1958 = vpack.c.b16 %v1904, %v1902
    %v1959 = vpack.c.b16 %v1905, %v1903
    %v1960 = vpack.c.b16 %v1908, %v1906
    %v1961 = vpack.c.b16 %v1909, %v1907
    %v1962 = vpack.c.b16 %v1912, %v1910
    %v1963 = vpack.c.b16 %v1913, %v1911
    %v1964 = vpack.c.b16 %v1916, %v1914
    %v1965 = vpack.c.b16 %v1917, %v1915
    %2014 = vmatprep.subr.bf16.mxu0 %v1933
    %2015 = vmatpush1.bf16.msra.mxu0 %v1932
    %2016 = vmatprep.subr.bf16.mxu0 %v1931
    %2017 = vmatpush1.bf16.msra.mxu0 %v1930
    %2018 = vmatprep.subr.bf16.mxu0 %v1929
    %2019 = vmatpush1.bf16.msra.mxu0 %v1928
    %2020 = vmatprep.subr.bf16.mxu0 %v1927
    %2021 = vmatpush1.bf16.msra.mxu0 %v1926
    %2022 = vmatprep.subr.bf16.mxu0 %v1925
    %2023 = vmatpush1.bf16.msra.mxu0 %v1924
    %2024 = vmatprep.subr.bf16.mxu0 %v1923
    %2025 = vmatpush1.bf16.msra.mxu0 %v1922
    %2026 = vmatprep.subr.bf16.mxu0 %v1921
    %2027 = vmatpush1.bf16.msra.mxu0 %v1920
    %2028 = vmatprep.subr.bf16.mxu0 %v1919
    %2029 = vmatpush1.bf16.msra.mxu0 %v1918
    %2030 = vmatprep.subr.bf16.mxu0 %v1949
    %2031 = vmatpush2.bf16.msra.mxu0 %v1948
    %2032 = vmatprep.subr.bf16.mxu0 %v1947
    %2033 = vmatpush2.bf16.msra.mxu0 %v1946
    %2034 = vmatprep.subr.bf16.mxu0 %v1945
    %2035 = vmatpush2.bf16.msra.mxu0 %v1944
    %2036 = vmatprep.subr.bf16.mxu0 %v1943
    %2037 = vmatpush2.bf16.msra.mxu0 %v1942
    %2038 = vmatprep.subr.bf16.mxu0 %v1941
    %2039 = vmatpush2.bf16.msra.mxu0 %v1940
    %2040 = vmatprep.subr.bf16.mxu0 %v1939
    %2041 = vmatpush2.bf16.msra.mxu0 %v1938
    %2042 = vmatprep.subr.bf16.mxu0 %v1937
    %2043 = vmatpush2.bf16.msra.mxu0 %v1936
    %2044 = vmatprep.subr.bf16.mxu0 %v1935
    %2045 = vmatpush2.bf16.msra.mxu0 %v1934
    %2046 = vmatprep.mubr.bf16.mxu0 %v1712
    %2047 = vmatmul.mubr.bf16.gmra.mxu0 %v1711
    %v2048 = vpop.f32.mrf.mxu0
    %v2049 = vadd.f32 %v1767, %v2048
    %v2050 = vpop.f32.mrf.mxu0
    %v2051 = vadd.f32 %v1771, %v2050
    %v2052 = vpop.f32.mrf.mxu0
    %v2053 = vpop.f32.mrf.mxu0
    %2054 = vdwg.mxu0
    %2055 = vmatprep.subr.bf16.mxu0 %v1965
    %2056 = vmatpush1.bf16.msra.mxu0 %v1964
    %2057 = vmatprep.subr.bf16.mxu0 %v1963
    %2058 = vmatpush1.bf16.msra.mxu0 %v1962
    %2059 = vmatprep.subr.bf16.mxu0 %v1961
    %2060 = vmatpush1.bf16.msra.mxu0 %v1960
    %2061 = vmatprep.subr.bf16.mxu0 %v1959
    %2062 = vmatpush1.bf16.msra.mxu0 %v1958
    %2063 = vmatprep.subr.bf16.mxu0 %v1957
    %2064 = vmatpush1.bf16.msra.mxu0 %v1956
    %2065 = vmatprep.subr.bf16.mxu0 %v1955
    %2066 = vmatpush1.bf16.msra.mxu0 %v1954
    %2067 = vmatprep.subr.bf16.mxu0 %v1953
    %2068 = vmatpush1.bf16.msra.mxu0 %v1952
    %2069 = vmatprep.subr.bf16.mxu0 %v1951
    %2070 = vmatpush1.bf16.msra.mxu0 %v1950
    %2071 = vmatprep.subr.bf16.mxu0 0
    %2072 = vmatpush2.bf16.msra.mxu0 0
    %2073 = vmatprep.subr.bf16.mxu0 0
    %2074 = vmatpush2.bf16.msra.mxu0 0
    %2075 = vmatprep.subr.bf16.mxu0 0
    %2076 = vmatpush2.bf16.msra.mxu0 0
    %2077 = vmatprep.subr.bf16.mxu0 0
    %2078 = vmatpush2.bf16.msra.mxu0 0
    %2079 = vmatprep.subr.bf16.mxu0 0
    %2080 = vmatpush2.bf16.msra.mxu0 0
    %2081 = vmatprep.subr.bf16.mxu0 0
    %2082 = vmatpush2.bf16.msra.mxu0 0
    %2083 = vmatprep.subr.bf16.mxu0 0
    %2084 = vmatpush2.bf16.msra.mxu0 0
    %2085 = vmatprep.subr.bf16.mxu0 0
    %2086 = vmatpush2.bf16.msra.mxu0 0
    %2087 = vmatprep.mubr.bf16.mxu0 0
    %2088 = vmatmul.mubr.bf16.gmra.mxu0 %v1713
    %v2089 = vpop.f32.mrf.mxu0
    %v2090 = vadd.f32 %v2049, %v2089
    %v2091 = vpop.f32.mrf.mxu0
    %v2092 = vadd.f32 %v2051, %v2091
    %v2093 = vpop.f32.mrf.mxu0
    %v2094 = vpop.f32.mrf.mxu0
    %2095 = vdwg.mxu0
    %v2096 = vmax.f32 %v2090, 0.0
    %v2097 = vmax.f32 %v2092, 0.0
    %v2098 = vpack.c.bf16 %v2096, %v2096
    %v2099 = vpack.c.bf16 %v2097, %v2097
    %v2100 = vld [vmem:[%s5] sm:$0xf]
    %v2101 = vld [vmem:[%s5 + $0x4] sm:$0xf]
    %v2102 = vld [vmem:[%s5 + $0x8] sm:$0xf]
    %v2103 = vld [vmem:[%s5 + $0xc] sm:$0xf]
    %v2104 = vld [vmem:[%s5 + $0x10] sm:$0xf]
    %v2105 = vld [vmem:[%s5 + $0x14] sm:$0xf]
    %v2106 = vld [vmem:[%s5 + $0x18] sm:$0xf]
    %v2107 = vld [vmem:[%s5 + $0x1c] sm:$0xf]
    %v2108 = vld [vmem:[%s5 + $0x20] sm:$0xf]
    %v2109 = vld [vmem:[%s5 + $0x24] sm:$0xf]
    %v2110 = vld [vmem:[%s5 + $0x28] sm:$0xf]
    %v2111 = vld [vmem:[%s5 + $0x2c] sm:$0xf]
    %v2112 = vld [vmem:[%s5 + $0x30] sm:$0xf]
    %v2113 = vld [vmem:[%s5 + $0x34] sm:$0xf]
    %v2114 = vld [vmem:[%s5 + $0x38] sm:$0xf]
    %v2115 = vld [vmem:[%s5 + $0x3c] sm:$0xf]
    %v2116 = vld [vmem:[%s5 + $0x40] sm:$0xf]
    %v2117 = vld [vmem:[%s5 + $0x44] sm:$0xf]
    %v2118 = vld [vmem:[%s5 + $0x48] sm:$0xf]
    %v2119 = vld [vmem:[%s5 + $0x4c] sm:$0xf]
    %v2120 = vld [vmem:[%s5 + $0x50] sm:$0xf]
    %v2121 = vld [vmem:[%s5 + $0x54] sm:$0xf]
    %v2122 = vld [vmem:[%s5 + $0x58] sm:$0xf]
    %v2123 = vld [vmem:[%s5 + $0x5c] sm:$0xf]
    %v2124 = vld [vmem:[%s6] sm:$0x1]
    %v2126 = vlaneseq
    %v2127 = vshrl.u32 %v2126, 7
    %v2128 = vsub.s32 0, %v2127
    %v2129 = vrot.slane %v2124, %v2128
    %v2155 = vunpack.c.l.b16 %v2100
    %v2156 = vunpack.c.l.b16 %v2101
    %v2157 = vunpack.c.l.b16 %v2102
    %v2158 = vunpack.c.l.b16 %v2103
    %v2159 = vunpack.c.l.b16 %v2104
    %v2160 = vunpack.c.l.b16 %v2105
    %v2161 = vunpack.c.l.b16 %v2106
    %v2162 = vunpack.c.l.b16 %v2107
    %v2163 = vunpack.c.l.b16 %v2108
    %v2164 = vunpack.c.l.b16 %v2109
    %v2165 = vunpack.c.l.b16 %v2110
    %v2166 = vunpack.c.l.b16 %v2111
    %v2167 = vunpack.c.l.b16 %v2112
    %v2168 = vunpack.c.l.b16 %v2113
    %v2169 = vunpack.c.l.b16 %v2114
    %v2170 = vunpack.c.l.b16 %v2115
    %v2171 = vunpack.c.l.b16 %v2116
    %v2172 = vunpack.c.l.b16 %v2117
    %v2173 = vunpack.c.l.b16 %v2118
    %v2174 = vunpack.c.l.b16 %v2119
    %v2175 = vunpack.c.l.b16 %v2120
    %v2176 = vunpack.c.l.b16 %v2121
    %v2177 = vunpack.c.l.b16 %v2122
    %v2178 = vunpack.c.l.b16 %v2123
    %v2179 = vpack.c.b16 %v2156, %v2155
    %v2180 = vpack.c.b16 %v2158, %v2157
    %v2181 = vpack.c.b16 %v2160, %v2159
    %v2182 = vpack.c.b16 %v2162, %v2161
    %v2183 = vpack.c.b16 %v2164, %v2163
    %v2184 = vpack.c.b16 %v2166, %v2165
    %v2185 = vpack.c.b16 %v2168, %v2167
    %v2186 = vpack.c.b16 %v2170, %v2169
    %v2187 = vpack.c.b16 %v2172, %v2171
    %v2188 = vpack.c.b16 %v2174, %v2173
    %v2189 = vpack.c.b16 %v2176, %v2175
    %v2190 = vpack.c.b16 %v2178, %v2177
    %vm2203 = vcmask 523264
    %v2205 = vsel %vm2203, %v2099, 0
    %2207 = vmatprep.subr.bf16.mxu0 0
    %2208 = vmatpush1.bf16.msra.mxu0 %v2186
    %2209 = vmatprep.subr.bf16.mxu0 0
    %2210 = vmatpush1.bf16.msra.mxu0 %v2185
    %2211 = vmatprep.subr.bf16.mxu0 0
    %2212 = vmatpush1.bf16.msra.mxu0 %v2184
    %2213 = vmatprep.subr.bf16.mxu0 0
    %2214 = vmatpush1.bf16.msra.mxu0 %v2183
    %2215 = vmatprep.subr.bf16.mxu0 0
    %2216 = vmatpush1.bf16.msra.mxu0 %v2182
    %2217 = vmatprep.subr.bf16.mxu0 0
    %2218 = vmatpush1.bf16.msra.mxu0 %v2181
    %2219 = vmatprep.subr.bf16.mxu0 0
    %2220 = vmatpush1.bf16.msra.mxu0 %v2180
    %2221 = vmatprep.subr.bf16.mxu0 0
    %2222 = vmatpush1.bf16.msra.mxu0 %v2179
    %2223 = vmatprep.subr.bf16.mxu0 0
    %2224 = vmatpush2.bf16.msra.mxu0 0
    %2225 = vmatprep.subr.bf16.mxu0 0
    %2226 = vmatpush2.bf16.msra.mxu0 0
    %2227 = vmatprep.subr.bf16.mxu0 0
    %2228 = vmatpush2.bf16.msra.mxu0 0
    %2229 = vmatprep.subr.bf16.mxu0 0
    %2230 = vmatpush2.bf16.msra.mxu0 0
    %2231 = vmatprep.subr.bf16.mxu0 0
    %2232 = vmatpush2.bf16.msra.mxu0 %v2190
    %2233 = vmatprep.subr.bf16.mxu0 0
    %2234 = vmatpush2.bf16.msra.mxu0 %v2189
    %2235 = vmatprep.subr.bf16.mxu0 0
    %2236 = vmatpush2.bf16.msra.mxu0 %v2188
    %2237 = vmatprep.subr.bf16.mxu0 0
    %2238 = vmatpush2.bf16.msra.mxu0 %v2187
    %2239 = vmatprep.mubr.bf16.mxu0 %v2205
    %2240 = vmatmul.mubr.bf16.gmra.mxu0 %v2098
    %v2241 = vpop.f32.mrf.mxu0
    %v2242 = vadd.f32 %v2129, %v2241
    %v2243 = vpop.f32.mrf.mxu0
    %v2244 = vpop.f32.mrf.mxu0
    %v2245 = vpop.f32.mrf.mxu0
    %2246 = vdwg.mxu0
    %2247 = vst [vmem:[#allocation2] sm:$0x3] %v2242
    // Predicated region
    $region30: #{cnn_net_forward.5} parent=1 // pred_check
      _
    $region31: #{cnn_net_forward.5} parent=1 // pred_check_branch
      %2249 = sbr.rel (0) target = $region33
    $region32: #{cnn_net_forward.5} parent=1 // pred_region
      %s2251 = ssub.s32 32, 32
      %2252 = vsyncadd [#allocation3], %s2251
      %s2254 = sshll.u32 [#allocation2], 4
      %s2255 = int_to_ptr.vmem [resolvable:$true] %s2254
      %2257 = dma.vmem_to_hbm [thread:$0]  %s2255, 32, %s7, [#allocation3]
    $region33: #{cnn_net_forward.5} parent=1 // pred_fallthru
      _
    // Predicated region
    $region34: #{cnn_net_forward.5} parent=1 // pred_check
      _
    $region35: #{cnn_net_forward.5} parent=1 // pred_check_branch
      %2259 = sbr.rel (0) target = $region37
    $region36: #{cnn_net_forward.5} parent=1 // pred_region
      %2260 = dma.done [#allocation3], 32
    $region37: #{cnn_net_forward.5} parent=1 // pred_fallthru
      _
    %2261 = vsyncpa [#allocation3], 1

</llo_original>
